<compile_context>
chip_gen: v7x
topology: tpu7x:2x2x1
jax: 0.10.0
libtpu: 0.0.40
codegen_flags: <defaults>
</compile_context>

<pallas_src>
import functools
import math

import jax
import jax.numpy as jnp
from jax.experimental import pallas as pl
from jax.experimental.pallas import tpu as pltpu

_EPS = 1e-5
_NEG = -1e9
VMEM_SPEC = pl.BlockSpec(memory_space=pltpu.MemorySpace.VMEM)


# --------------------------- in-kernel math helpers ------------------------- #

def _ln_math(z, g, b, eps=_EPS):
    mu = jnp.mean(z, axis=-1, keepdims=True)
    var = jnp.mean((z - mu) ** 2, axis=-1, keepdims=True)
    return (z - mu) * jax.lax.rsqrt(var + eps) * g + b


def _mha_math(q, k, v, bias, w_o, b_o, nhead, scale):
    """q: (Lq, E) f32; k, v: (Lk, E) f32; bias: (1, Lk) f32 or None;
    w_o: (E, E) f32; b_o: (1, E) f32  ->  (Lq, E) f32."""
    lq, e = q.shape
    dh = e // nhead
    out = jnp.zeros((lq, e), jnp.float32)
    for h in range(nhead):                       # static unrolled head loop
        sl = slice(h * dh, (h + 1) * dh)
        qh, kh, vh = q[:, sl], k[:, sl], v[:, sl]
        s = jax.lax.dot_general(qh, kh, (((1,), (1,)), ((), ())),
                                preferred_element_type=jnp.float32) * scale
        if bias is not None:
            s = s + bias
        m = jnp.max(s, axis=-1, keepdims=True)
        p = jnp.exp(s - m)
        p = p * pl.reciprocal(jnp.sum(p, axis=-1, keepdims=True), approx=True)
        ah = jnp.dot(p, vh, preferred_element_type=jnp.float32)      # (Lq, dh)
        # accumulate the output projection head-by-head (== concat(heads) @ w_o)
        out = out + jnp.dot(ah, w_o[sl, :], preferred_element_type=jnp.float32)
    return out + b_o


def _proj(x_f32, w_bf16, b_f32):
    # bf16 MXU matmul with f32 accumulation, f32 bias add.
    return jnp.dot(x_f32.astype(jnp.bfloat16), w_bf16,
                   preferred_element_type=jnp.float32) + b_f32


def _ffn_math(x, w1, b1, w2, b2):
    h = jnp.maximum(_proj(x, w1, b1), 0.0)
    return _proj(h, w2, b2)


# ----------------------------- Pallas kernels ------------------------------ #

def _enc_layer_kernel(x_ref, bias_ref,
                      wqkv_ref, bqkv_ref, wo_ref, bo_ref,
                      g1_ref, b1_ref,
                      w1_ref, fb1_ref, w2_ref, fb2_ref,
                      g2_ref, b2_ref,
                      gf_ref, bf_ref,
                      o_ref, *, nhead, final_norm):
    x = x_ref[0]            # (L, E) f32
    bias = bias_ref[0]      # (1, L) f32 additive key-padding bias
    e = x.shape[-1]
    scale = 1.0 / math.sqrt(e // nhead)

    qkv = _proj(x, wqkv_ref[...], bqkv_ref[...])                     # (L, 3E)
    sa = _mha_math(qkv[:, :e], qkv[:, e:2 * e], qkv[:, 2 * e:],
                   bias, wo_ref[...], bo_ref[...], nhead, scale)
    x1 = _ln_math(x + sa, g1_ref[...], b1_ref[...])

    f = _ffn_math(x1, w1_ref[...], fb1_ref[...], w2_ref[...], fb2_ref[...])
    x2 = _ln_math(x1 + f, g2_ref[...], b2_ref[...])

    if final_norm:          # fold the transformer-encoder final LayerNorm in
        x2 = _ln_math(x2, gf_ref[...], bf_ref[...])
    o_ref[0] = x2


def _dec_layer_kernel(x_ref, mem_ref, mbias_ref,
                      sa_wqkv_ref, sa_bqkv_ref, sa_wo_ref, sa_bo_ref,
                      g1_ref, b1_ref,
                      ca_wq_ref, ca_bq_ref, ca_wkv_ref, ca_bkv_ref,
                      ca_wo_ref, ca_bo_ref,
                      g2_ref, b2_ref,
                      w1_ref, fb1_ref, w2_ref, fb2_ref,
                      g3_ref, b3_ref,
                      o_ref, *, nhead):
    x = x_ref[0]            # (T, E)
    mem = mem_ref[0]        # (S1, E)
    mbias = mbias_ref[0]    # (1, S1)
    e = x.shape[-1]
    scale = 1.0 / math.sqrt(e // nhead)

    # self attention (no tgt mask), fused QKV
    qkv = _proj(x, sa_wqkv_ref[...], sa_bqkv_ref[...])
    sa = _mha_math(qkv[:, :e], qkv[:, e:2 * e], qkv[:, 2 * e:],
                   None, sa_wo_ref[...], sa_bo_ref[...], nhead, scale)
    x1 = _ln_math(x + sa, g1_ref[...], b1_ref[...])

    # cross attention (memory key-padding mask), fused KV
    q = _proj(x1, ca_wq_ref[...], ca_bq_ref[...])
    kv = _proj(mem, ca_wkv_ref[...], ca_bkv_ref[...])
    ca = _mha_math(q, kv[:, :e], kv[:, e:],
                   mbias, ca_wo_ref[...], ca_bo_ref[...], nhead, scale)
    x2 = _ln_math(x1 + ca, g2_ref[...], b2_ref[...])

    # feed-forward
    f = _ffn_math(x2, w1_ref[...], fb1_ref[...], w2_ref[...], fb2_ref[...])
    o_ref[0] = _ln_math(x2 + f, g3_ref[...], b3_ref[...])


def _head_kernel(x_ref, g_ref, b_ref, w_ref, wb_ref, o_ref, *, apply_softmax):
    # fused: final decoder LayerNorm -> output linear (lane-dense 128-wide pad)
    #        -> (optional) softmax.  Padded columns have zero weight & -1e9 bias.
    z = _ln_math(x_ref[...], g_ref[...], b_ref[...])
    logits = _proj(z, w_ref[...], wb_ref[...])               # (M, A_pad)
    if apply_softmax:
        m = jnp.max(logits, axis=-1, keepdims=True)
        ex = jnp.exp(logits - m)                             # padded cols -> 0
        logits = ex / jnp.sum(ex, axis=-1, keepdims=True)    # exact divide
    o_ref[...] = logits


def _ln_kernel(x_ref, g_ref, b_ref, o_ref):
    o_ref[...] = _ln_math(x_ref[...], g_ref[...], b_ref[...])


# ------------------------------ JAX wrappers ------------------------------- #

def _full_spec(arr):
    zero = (0,) * arr.ndim
    return pl.BlockSpec(arr.shape, lambda i: zero)


def encoder_layer(x, src_bias, lp, enc_norm, nhead, final_norm):
    n, l, e = x.shape
    act_spec = pl.BlockSpec((1, l, e), lambda i: (i, 0, 0))
    bias_spec = pl.BlockSpec((1, 1, src_bias.shape[-1]), lambda i: (i, 0, 0))
    sa = lp["self_attn"]
    weights = (sa["w"], sa["b"], sa["w_o"], sa["b_o"],
               lp["ln1"]["g"], lp["ln1"]["b"],
               lp["w1"], lp["b1"], lp["w2"], lp["b2"],
               lp["ln2"]["g"], lp["ln2"]["b"],
               enc_norm["g"], enc_norm["b"])
    return pl.pallas_call(
        functools.partial(_enc_layer_kernel, nhead=nhead, final_norm=final_norm),
        out_shape=jax.ShapeDtypeStruct((n, l, e), jnp.float32),
        grid=(n,),
        in_specs=[act_spec, bias_spec] + [_full_spec(w) for w in weights],
        out_specs=act_spec,
        compiler_params=pltpu.CompilerParams(dimension_semantics=("parallel",)),
    )(x, src_bias, *weights)


def decoder_layer(x, mem, mem_bias, lp, nhead):
    n, t, e = x.shape
    s1 = mem.shape[1]
    x_spec = pl.BlockSpec((1, t, e), lambda i: (i, 0, 0))
    mem_spec = pl.BlockSpec((1, s1, e), lambda i: (i, 0, 0))
    bias_spec = pl.BlockSpec((1, 1, s1), lambda i: (i, 0, 0))
    sa, ca = lp["self_attn"], lp["cross_attn"]
    weights = (sa["w"], sa["b"], sa["w_o"], sa["b_o"],
               lp["ln1"]["g"], lp["ln1"]["b"],
               ca["w_q"], ca["b_q"], ca["w_kv"], ca["b_kv"], ca["w_o"], ca["b_o"],
               lp["ln2"]["g"], lp["ln2"]["b"],
               lp["w1"], lp["b1"], lp["w2"], lp["b2"],
               lp["ln3"]["g"], lp["ln3"]["b"])
    return pl.pallas_call(
        functools.partial(_dec_layer_kernel, nhead=nhead),
        out_shape=jax.ShapeDtypeStruct((n, t, e), jnp.float32),
        grid=(n,),
        in_specs=[x_spec, mem_spec, bias_spec] + [_full_spec(w) for w in weights],
        out_specs=x_spec,
        compiler_params=pltpu.CompilerParams(dimension_semantics=("parallel",)),
    )(x, mem, mem_bias, *weights)


def output_head(x, dec_norm, out_p, apply_softmax):
    n, t, e = x.shape
    m = n * t
    a_pad = out_p["w"].shape[1]
    out = pl.pallas_call(
        functools.partial(_head_kernel, apply_softmax=apply_softmax),
        out_shape=jax.ShapeDtypeStruct((m, a_pad), jnp.float32),
        in_specs=[VMEM_SPEC] * 5,
        out_specs=VMEM_SPEC,
    )(x.reshape(m, e), dec_norm["g"], dec_norm["b"], out_p["w"], out_p["b"])
    return out.reshape(n, t, a_pad)


def layer_norm(x, ln):
    n, l, e = x.shape
    out = pl.pallas_call(
        _ln_kernel,
        out_shape=jax.ShapeDtypeStruct((n * l, e), jnp.float32),
        in_specs=[VMEM_SPEC] * 3,
        out_specs=VMEM_SPEC,
    )(x.reshape(n * l, e), ln["g"], ln["b"])
    return out.reshape(n, l, e)


# ------------------------- TeamBuilder forward pass ------------------------ #

def sinusoidal_pos_encoding(max_len, d_model):
    pos = jnp.arange(max_len, dtype=jnp.float32)[:, None]
    div = jnp.exp(jnp.arange(0, d_model, 2, dtype=jnp.float32)
                  * (-math.log(10000.0) / d_model))
    pe = jnp.zeros((max_len, d_model), jnp.float32)
    pe = pe.at[:, 0::2].set(jnp.sin(pos * div))
    pe = pe.at[:, 1::2].set(jnp.cos(pos * div))
    return pe


def _build_source(params, cfg, n, obs_preembed, obs_mask):
    """source = cat(obs_embed, embedding(CLS2)); additive key-padding bias."""
    e = cfg["embedding_dim"]
    # TODO(synk): `InputEmbedder` not provided -> identity embedder.
    if obs_preembed is None:
        obs_embed, embed_mask, s = None, None, 0
    else:
        obs_embed = obs_preembed.astype(jnp.float32)
        embed_mask = obs_mask
        s = obs_embed.shape[1]
    cls2 = jnp.broadcast_to(params["agent_embedding"][cfg["CLS2"]], (n, 1, e))
    source = cls2 if obs_embed is None else jnp.concatenate([obs_embed, cls2], axis=1)
    if embed_mask is None:
        embed_mask = jnp.zeros((n, s), dtype=bool)
    src_mask = jnp.concatenate([embed_mask, jnp.zeros((n, 1), dtype=bool)], axis=1)
    src_bias = jnp.where(src_mask, _NEG, 0.0).astype(jnp.float32).reshape(n, 1, s + 1)
    return source, src_bias


def team_builder_forward(params, cfg, obs_preembed, target_team, obs_mask,
                         output_probs=True, pre_softmax=False, output_layer_idx=None):
    if output_layer_idx is None:
        output_layer_idx = 0
    nhead = cfg["nhead"]
    n, t = target_team.shape

    source, src_bias = _build_source(params, cfg, n, obs_preembed, obs_mask)

    # target embedding + (precomputed) positional encoding
    tgt = (jnp.take(params["agent_embedding"], target_team, axis=0)
           + params["pos_enc"][:t][None, :, :])

    # ---- encoder (post-norm); final encoder norm fused into the last layer ----
    mem = source
    n_enc = len(params["enc_layers"])
    for li, lp in enumerate(params["enc_layers"]):
        mem = encoder_layer(mem, src_bias, lp, params["enc_norm"], nhead,
                            final_norm=(li == n_enc - 1))
    if n_enc == 0:
        mem = layer_norm(mem, params["enc_norm"])

    # ---- decoder (post-norm, no tgt mask) ----
    x = tgt
    for lp in params["dec_layers"]:
        x = decoder_layer(x, mem, src_bias, lp, nhead)

    if not output_probs:
        return layer_norm(x, params["dec_norm"])

    out = output_head(x, params["dec_norm"],
                      params["output_layers"][output_layer_idx],
                      apply_softmax=not pre_softmax)
    return out[..., :cfg["num_agents"]]


# --------------------------- params: init & pack --------------------------- #

def init_params(key, num_agents, e, dff, n_enc, n_dec, num_output_layers=1):
    num_tokens = num_agents + 3
    keys = iter(jax.random.split(key, 512))

    def nrm(shape, scale=0.02):
        return (scale * jax.random.normal(next(keys), shape)).astype(jnp.float32)

    def zeros(shape):
        return jnp.zeros(shape, jnp.float32)

    def attn_params():
        return dict(w_q=nrm((e, e)), b_q=zeros((e,)),
                    w_k=nrm((e, e)), b_k=zeros((e,)),
                    w_v=nrm((e, e)), b_v=zeros((e,)),
                    w_o=nrm((e, e)), b_o=zeros((e,)))

    def ln_params():
        return dict(g=jnp.ones((e,), jnp.float32), b=zeros((e,)))

    def enc_layer():
        return dict(self_attn=attn_params(),
                    w1=nrm((e, dff)), b1=zeros((dff,)),
                    w2=nrm((dff, e)), b2=zeros((e,)),
                    ln1=ln_params(), ln2=ln_params())

    def dec_layer():
        return dict(self_attn=attn_params(), cross_attn=attn_params(),
                    w1=nrm((e, dff)), b1=zeros((dff,)),
                    w2=nrm((dff, e)), b2=zeros((e,)),
                    ln1=ln_params(), ln2=ln_params(), ln3=ln_params())

    return dict(
        agent_embedding=nrm((num_tokens, e), scale=1.0),
        enc_layers=[enc_layer() for _ in range(n_enc)],
        dec_layers=[dec_layer() for _ in range(n_dec)],
        enc_norm=ln_params(), dec_norm=ln_params(),
        output_layers=[dict(w=nrm((e, num_agents)), b=zeros((num_agents,)))
                       for _ in range(num_output_layers)],
    )


def prepare_params(raw, cfg, max_len=64):
    """Pack raw (PyTorch-like) weights into kernel-ready form: fused QKV / KV,
    bf16 matmul weights, 2D biases/LN params, lane-dense padded output head,
    precomputed positional-encoding table."""
    e, a = cfg["embedding_dim"], cfg["num_agents"]
    a_pad = max(128, ((a + 127) // 128) * 128)

    def ln2d(p):
        return dict(g=p["g"].reshape(1, -1).astype(jnp.float32),
                    b=p["b"].reshape(1, -1).astype(jnp.float32))

    def pack_self(p):
        return dict(
            w=jnp.concatenate([p["w_q"], p["w_k"], p["w_v"]], axis=1).astype(jnp.bfloat16),
            b=jnp.concatenate([p["b_q"], p["b_k"], p["b_v"]]).reshape(1, -1).astype(jnp.float32),
            w_o=p["w_o"].astype(jnp.float32),
            b_o=p["b_o"].reshape(1, -1).astype(jnp.float32))

    def pack_cross(p):
        return dict(
            w_q=p["w_q"].astype(jnp.bfloat16),
            b_q=p["b_q"].reshape(1, -1).astype(jnp.float32),
            w_kv=jnp.concatenate([p["w_k"], p["w_v"]], axis=1).astype(jnp.bfloat16),
            b_kv=jnp.concatenate([p["b_k"], p["b_v"]]).reshape(1, -1).astype(jnp.float32),
            w_o=p["w_o"].astype(jnp.float32),
            b_o=p["b_o"].reshape(1, -1).astype(jnp.float32))

    def pack_ffn(lp):
        return dict(w1=lp["w1"].astype(jnp.bfloat16),
                    b1=lp["b1"].reshape(1, -1).astype(jnp.float32),
                    w2=lp["w2"].astype(jnp.bfloat16),
                    b2=lp["b2"].reshape(1, -1).astype(jnp.float32))

    enc_layers = [dict(self_attn=pack_self(lp["self_attn"]),
                       ln1=ln2d(lp["ln1"]), ln2=ln2d(lp["ln2"]), **pack_ffn(lp))
                  for lp in raw["enc_layers"]]
    dec_layers = [dict(self_attn=pack_self(lp["self_attn"]),
                       cross_attn=pack_cross(lp["cross_attn"]),
                       ln1=ln2d(lp["ln1"]), ln2=ln2d(lp["ln2"]), ln3=ln2d(lp["ln3"]),
                       **pack_ffn(lp))
                  for lp in raw["dec_layers"]]

    out_layers = []
    for ol in raw["output_layers"]:
        w_pad = jnp.zeros((e, a_pad), jnp.float32).at[:, :a].set(ol["w"]).astype(jnp.bfloat16)
        b_pad = jnp.full((1, a_pad), _NEG, jnp.float32).at[0, :a].set(ol["b"])
        out_layers.append(dict(w=w_pad, b=b_pad))

    return dict(agent_embedding=raw["agent_embedding"].astype(jnp.float32),
                pos_enc=sinusoidal_pos_encoding(max_len, e),
                enc_layers=enc_layers, dec_layers=dec_layers,
                enc_norm=ln2d(raw["enc_norm"]), dec_norm=ln2d(raw["dec_norm"]),
                output_layers=out_layers)


# --------------------------- pure-JAX f32 reference ------------------------ #

def _unpack_sa(p, e):
    w = p["w"].astype(jnp.float32)
    b = p["b"][0]
    return (w[:, :e], b[:e], w[:, e:2 * e], b[e:2 * e], w[:, 2 * e:], b[2 * e:],
            p["w_o"], p["b_o"][0])


def _unpack_ca(p, e):
    wkv = p["w_kv"].astype(jnp.float32)
    bkv = p["b_kv"][0]
    return (p["w_q"].astype(jnp.float32), p["b_q"][0],
            wkv[:, :e], bkv[:e], wkv[:, e:], bkv[e:],
            p["w_o"], p["b_o"][0])


def _ref_ln(z, p):
    mu = z.mean(-1, keepdims=True)
    var = ((z - mu) ** 2).mean(-1, keepdims=True)
    return (z - mu) / jnp.sqrt(var + _EPS) * p["g"][0] + p["b"][0]


def _ref_mha(xq, xkv, wq, bq, wk, bk, wv, bv, wo, bo, bias, nhead):
    n, lq, e = xq.shape
    lk = xkv.shape[1]
    dh = e // nhead
    q = (xq @ wq + bq).reshape(n, lq, nhead, dh).transpose(0, 2, 1, 3)
    k = (xkv @ wk + bk).reshape(n, lk, nhead, dh).transpose(0, 2, 1, 3)
    v = (xkv @ wv + bv).reshape(n, lk, nhead, dh).transpose(0, 2, 1, 3)
    s = jnp.einsum("nhqd,nhkd->nhqk", q, k) / math.sqrt(dh)
    if bias is not None:
        s = s + bias[:, None, :, :]
    p = jax.nn.softmax(s, axis=-1)
    o = jnp.einsum("nhqk,nhkd->nhqd", p, v).transpose(0, 2, 1, 3).reshape(n, lq, e)
    return o @ wo + bo


def _ref_ffn(z, lp):
    h = jnp.maximum(z @ lp["w1"].astype(jnp.float32) + lp["b1"][0], 0.0)
    return h @ lp["w2"].astype(jnp.float32) + lp["b2"][0]


def _ref_forward(params, cfg, obs_preembed, target_team, obs_mask):
    nhead, e = cfg["nhead"], cfg["embedding_dim"]
    n, t = target_team.shape
    source, src_bias = _build_source(params, cfg, n, obs_preembed, obs_mask)
    tgt = (jnp.take(params["agent_embedding"], target_team, axis=0)
           + params["pos_enc"][:t][None, :, :])
    mem = source
    for lp in params["enc_layers"]:
        sa = _ref_mha(mem, mem, *_unpack_sa(lp["self_attn"], e), src_bias, nhead)
        mem = _ref_ln(mem + sa, lp["ln1"])
        mem = _ref_ln(mem + _ref_ffn(mem, lp), lp["ln2"])
    mem = _ref_ln(mem, params["enc_norm"])
    x = tgt
    for lp in params["dec_layers"]:
        sa = _ref_mha(x, x, *_unpack_sa(lp["self_attn"], e), None, nhead)
        x = _ref_ln(x + sa, lp["ln1"])
        ca = _ref_mha(x, mem, *_unpack_ca(lp["cross_attn"], e), src_bias, nhead)
        x = _ref_ln(x + ca, lp["ln2"])
        x = _ref_ln(x + _ref_ffn(x, lp), lp["ln3"])
    x = _ref_ln(x, params["dec_norm"])
    a = cfg["num_agents"]
    w = params["output_layers"][0]["w"].astype(jnp.float32)[:, :a]
    b = params["output_layers"][0]["b"][0, :a]
    return jax.nn.softmax(x @ w + b, axis=-1)


# ---------------------------------- main ----------------------------------- #

if __name__ == "__main__":
    N, S, team_size = 2, 4, 4
    num_agents = 6
    embedding_dim, nhead = 32, 4
    dim_feedforward = 4 * embedding_dim
    num_encoder_layers, num_decoder_layers = 2, 2

    cfg = dict(embedding_dim=embedding_dim, nhead=nhead, num_agents=num_agents,
               CLS=num_agents, CLS2=num_agents + 1, MASK=num_agents + 2)

    root = jax.random.PRNGKey(0)
    k_params, k_obs, k_team = jax.random.split(root, 3)

    raw = init_params(k_params, num_agents, embedding_dim, dim_feedforward,
                      num_encoder_layers, num_decoder_layers, num_output_layers=1)
    params = prepare_params(raw, cfg, max_len=64)

    obs_preembed = jax.random.normal(k_obs, (N, S, embedding_dim), jnp.float32)
    team = jax.random.randint(k_team, (N, team_size), 0, num_agents, dtype=jnp.int32)
    # add_cls_tokens: each team ends with [CLS]
    target_team = jnp.concatenate(
        [team, jnp.full((N, 1), cfg["CLS"], dtype=jnp.int32)], axis=1)  # (N, T)
    obs_mask = jnp.zeros((N, S), dtype=bool).at[0, -1].set(True)

    fwd = jax.jit(lambda p, o, t, m: team_builder_forward(p, cfg, o, t, m))
    out = jax.block_until_ready(fwd(params, obs_preembed, target_team, obs_mask))

    T = team_size + 1
    assert out.shape == (N, T, num_agents), out.shape
    assert bool(jnp.all(jnp.isfinite(out)))
    # probability rows must sum to 1
    assert bool(jnp.all(jnp.abs(jnp.sum(out, axis=-1) - 1.0) < 1e-4))

    # sanity check against a pure-JAX f32 reference (bf16/approx-recip tolerance)
    ref = _ref_forward(params, cfg, obs_preembed, target_team, obs_mask)
    max_err = float(jnp.max(jnp.abs(out - ref)))
    assert max_err < 5e-2, max_err

    print("KERNEL_OK")
</pallas_src>

<mosaic_0001>
module attributes {stable_mosaic.version = 11 : i64} {
  func.func @_enc_layer_kernel(%arg0: i32, %arg1: memref<1x5x32xf32, #tpu.memory_space<vmem>>, %arg2: memref<1x1x5xf32, #tpu.memory_space<vmem>>, %arg3: memref<32x96xbf16, #tpu.memory_space<vmem>>, %arg4: memref<1x96xf32, #tpu.memory_space<vmem>>, %arg5: memref<32x32xf32, #tpu.memory_space<vmem>>, %arg6: memref<1x32xf32, #tpu.memory_space<vmem>>, %arg7: memref<1x32xf32, #tpu.memory_space<vmem>>, %arg8: memref<1x32xf32, #tpu.memory_space<vmem>>, %arg9: memref<32x128xbf16, #tpu.memory_space<vmem>>, %arg10: memref<1x128xf32, #tpu.memory_space<vmem>>, %arg11: memref<128x32xbf16, #tpu.memory_space<vmem>>, %arg12: memref<1x32xf32, #tpu.memory_space<vmem>>, %arg13: memref<1x32xf32, #tpu.memory_space<vmem>>, %arg14: memref<1x32xf32, #tpu.memory_space<vmem>>, %arg15: memref<1x32xf32, #tpu.memory_space<vmem>>, %arg16: memref<1x32xf32, #tpu.memory_space<vmem>>, %arg17: memref<1x5x32xf32, #tpu.memory_space<vmem>>) attributes {dimension_semantics = [#tpu.dimension_semantics<parallel>], iteration_bounds = array<i64: 2>, scalar_prefetch = 0 : i64, scratch_operands = 0 : i64, tpu.core_type = #tpu.core_type<tc>, window_params = [{transform_indices = @transform_0, window_bounds = array<i64: 1, 5, 32>}, {transform_indices = @transform_1, window_bounds = array<i64: 1, 1, 5>}, {pipeline_mode = #tpu.pipeline_mode<synchronous>, transform_indices = @transform_2, window_bounds = array<i64: 32, 96>}, {pipeline_mode = #tpu.pipeline_mode<synchronous>, transform_indices = @transform_3, window_bounds = array<i64: 1, 96>}, {pipeline_mode = #tpu.pipeline_mode<synchronous>, transform_indices = @transform_4, window_bounds = array<i64: 32, 32>}, {pipeline_mode = #tpu.pipeline_mode<synchronous>, transform_indices = @transform_5, window_bounds = array<i64: 1, 32>}, {pipeline_mode = #tpu.pipeline_mode<synchronous>, transform_indices = @transform_6, window_bounds = array<i64: 1, 32>}, {pipeline_mode = #tpu.pipeline_mode<synchronous>, transform_indices = @transform_7, window_bounds = array<i64: 1, 32>}, {pipeline_mode = #tpu.pipeline_mode<synchronous>, transform_indices = @transform_8, window_bounds = array<i64: 32, 128>}, {pipeline_mode = #tpu.pipeline_mode<synchronous>, transform_indices = @transform_9, window_bounds = array<i64: 1, 128>}, {pipeline_mode = #tpu.pipeline_mode<synchronous>, transform_indices = @transform_10, window_bounds = array<i64: 128, 32>}, {pipeline_mode = #tpu.pipeline_mode<synchronous>, transform_indices = @transform_11, window_bounds = array<i64: 1, 32>}, {pipeline_mode = #tpu.pipeline_mode<synchronous>, transform_indices = @transform_12, window_bounds = array<i64: 1, 32>}, {pipeline_mode = #tpu.pipeline_mode<synchronous>, transform_indices = @transform_13, window_bounds = array<i64: 1, 32>}, {pipeline_mode = #tpu.pipeline_mode<synchronous>, transform_indices = @transform_14, window_bounds = array<i64: 1, 32>}, {pipeline_mode = #tpu.pipeline_mode<synchronous>, transform_indices = @transform_15, window_bounds = array<i64: 1, 32>}, {transform_indices = @transform_16, window_bounds = array<i64: 1, 5, 32>}]} {
    %c0 = arith.constant 0 : index
    %c0_0 = arith.constant 0 : index
    %c0_1 = arith.constant 0 : index
    %0 = vector.load %arg1[%c0, %c0_0, %c0_1] : memref<1x5x32xf32, #tpu.memory_space<vmem>>, vector<1x5x32xf32>
    %1 = vector.shape_cast %0 : vector<1x5x32xf32> to vector<5x32xf32>
    %c0_2 = arith.constant 0 : index
    %c0_3 = arith.constant 0 : index
    %c0_4 = arith.constant 0 : index
    %2 = vector.load %arg2[%c0_2, %c0_3, %c0_4] : memref<1x1x5xf32, #tpu.memory_space<vmem>>, vector<1x1x5xf32>
    %3 = vector.shape_cast %2 : vector<1x1x5xf32> to vector<1x5xf32>
    %c0_5 = arith.constant 0 : index
    %c0_6 = arith.constant 0 : index
    %4 = vector.load %arg3[%c0_5, %c0_6] : memref<32x96xbf16, #tpu.memory_space<vmem>>, vector<32x96xbf16>
    %c0_7 = arith.constant 0 : index
    %c0_8 = arith.constant 0 : index
    %5 = vector.load %arg4[%c0_7, %c0_8] : memref<1x96xf32, #tpu.memory_space<vmem>>, vector<1x96xf32>
    %6 = arith.truncf %1 : vector<5x32xf32> to vector<5x32xbf16>
    %cst = arith.constant dense<0.000000e+00> : vector<5x96xf32>
    %7 = tpu.matmul %6, %4, %cst {dimension_numbers = #tpu.dot_dimension_numbers<[1], [0], [0], [1], [0, 0, 1, 1], [], []>} : vector<5x32xbf16>, vector<32x96xbf16>, vector<5x96xf32> -> vector<5x96xf32>
    %8 = vector.broadcast %5 : vector<1x96xf32> to vector<5x96xf32>
    %9 = arith.addf %7, %8 : vector<5x96xf32>
    %10 = vector.extract_strided_slice %9 {offsets = [0, 0], sizes = [5, 32], strides = [1, 1]} : vector<5x96xf32> to vector<5x32xf32>
    %11 = vector.extract_strided_slice %9 {offsets = [0, 32], sizes = [5, 32], strides = [1, 1]} : vector<5x96xf32> to vector<5x32xf32>
    %12 = vector.extract_strided_slice %9 {offsets = [0, 64], sizes = [5, 32], strides = [1, 1]} : vector<5x96xf32> to vector<5x32xf32>
    %c0_9 = arith.constant 0 : index
    %c0_10 = arith.constant 0 : index
    %13 = vector.load %arg5[%c0_9, %c0_10] : memref<32x32xf32, #tpu.memory_space<vmem>>, vector<32x32xf32>
    %c0_11 = arith.constant 0 : index
    %c0_12 = arith.constant 0 : index
    %14 = vector.load %arg6[%c0_11, %c0_12] : memref<1x32xf32, #tpu.memory_space<vmem>>, vector<1x32xf32>
    %cst_13 = arith.constant 0.000000e+00 : f32
    %15 = vector.broadcast %cst_13 : f32 to vector<5x32xf32>
    %16 = vector.extract_strided_slice %10 {offsets = [0, 0], sizes = [5, 8], strides = [1, 1]} : vector<5x32xf32> to vector<5x8xf32>
    %17 = vector.extract_strided_slice %11 {offsets = [0, 0], sizes = [5, 8], strides = [1, 1]} : vector<5x32xf32> to vector<5x8xf32>
    %18 = vector.extract_strided_slice %12 {offsets = [0, 0], sizes = [5, 8], strides = [1, 1]} : vector<5x32xf32> to vector<5x8xf32>
    %cst_14 = arith.constant dense<0.000000e+00> : vector<5x5xf32>
    %19 = tpu.matmul %16, %17, %cst_14 {dimension_numbers = #tpu.dot_dimension_numbers<[1], [1], [0], [0], [0, 0, 1, 0], [], []>} : vector<5x8xf32>, vector<5x8xf32>, vector<5x5xf32> -> vector<5x5xf32>
    %cst_15 = arith.constant 0.353553385 : f32
    %20 = vector.broadcast %cst_15 : f32 to vector<5x5xf32>
    %21 = arith.mulf %19, %20 : vector<5x5xf32>
    %22 = vector.broadcast %3 : vector<1x5xf32> to vector<5x5xf32>
    %23 = arith.addf %21, %22 : vector<5x5xf32>
    %cst_16 = arith.constant dense<0xFF800000> : vector<5xf32>
    %24 = vector.multi_reduction <maximumf>, %23, %cst_16 [1] : vector<5x5xf32> to vector<5xf32>
    %25 = vector.shape_cast %24 : vector<5xf32> to vector<5x1xf32>
    %26 = vector.broadcast %25 : vector<5x1xf32> to vector<5x5xf32>
    %27 = arith.subf %23, %26 : vector<5x5xf32>
    %28 = math.exp %27 : vector<5x5xf32>
    %cst_17 = arith.constant dense<0.000000e+00> : vector<5xf32>
    %29 = vector.multi_reduction <add>, %28, %cst_17 [1] : vector<5x5xf32> to vector<5xf32>
    %30 = vector.shape_cast %29 : vector<5xf32> to vector<5x1xf32>
    %31 = tpu.reciprocal %30 {approx = true} : vector<5x1xf32> -> vector<5x1xf32>
    %32 = vector.broadcast %31 : vector<5x1xf32> to vector<5x5xf32>
    %33 = arith.mulf %28, %32 : vector<5x5xf32>
    %cst_18 = arith.constant dense<0.000000e+00> : vector<5x8xf32>
    %34 = tpu.matmul %33, %18, %cst_18 {dimension_numbers = #tpu.dot_dimension_numbers<[1], [0], [0], [1], [0, 0, 1, 1], [], []>} : vector<5x5xf32>, vector<5x8xf32>, vector<5x8xf32> -> vector<5x8xf32>
    %35 = vector.extract_strided_slice %13 {offsets = [0, 0], sizes = [8, 32], strides = [1, 1]} : vector<32x32xf32> to vector<8x32xf32>
    %cst_19 = arith.constant dense<0.000000e+00> : vector<5x32xf32>
    %36 = tpu.matmul %34, %35, %cst_19 {dimension_numbers = #tpu.dot_dimension_numbers<[1], [0], [0], [1], [0, 0, 1, 1], [], []>} : vector<5x8xf32>, vector<8x32xf32>, vector<5x32xf32> -> vector<5x32xf32>
    %37 = arith.addf %15, %36 : vector<5x32xf32>
    %38 = vector.extract_strided_slice %10 {offsets = [0, 8], sizes = [5, 8], strides = [1, 1]} : vector<5x32xf32> to vector<5x8xf32>
    %39 = vector.extract_strided_slice %11 {offsets = [0, 8], sizes = [5, 8], strides = [1, 1]} : vector<5x32xf32> to vector<5x8xf32>
    %40 = vector.extract_strided_slice %12 {offsets = [0, 8], sizes = [5, 8], strides = [1, 1]} : vector<5x32xf32> to vector<5x8xf32>
    %cst_20 = arith.constant dense<0.000000e+00> : vector<5x5xf32>
    %41 = tpu.matmul %38, %39, %cst_20 {dimension_numbers = #tpu.dot_dimension_numbers<[1], [1], [0], [0], [0, 0, 1, 0], [], []>} : vector<5x8xf32>, vector<5x8xf32>, vector<5x5xf32> -> vector<5x5xf32>
    %cst_21 = arith.constant 0.353553385 : f32
    %42 = vector.broadcast %cst_21 : f32 to vector<5x5xf32>
    %43 = arith.mulf %41, %42 : vector<5x5xf32>
    %44 = vector.broadcast %3 : vector<1x5xf32> to vector<5x5xf32>
    %45 = arith.addf %43, %44 : vector<5x5xf32>
    %cst_22 = arith.constant dense<0xFF800000> : vector<5xf32>
    %46 = vector.multi_reduction <maximumf>, %45, %cst_22 [1] : vector<5x5xf32> to vector<5xf32>
    %47 = vector.shape_cast %46 : vector<5xf32> to vector<5x1xf32>
    %48 = vector.broadcast %47 : vector<5x1xf32> to vector<5x5xf32>
    %49 = arith.subf %45, %48 : vector<5x5xf32>
    %50 = math.exp %49 : vector<5x5xf32>
    %cst_23 = arith.constant dense<0.000000e+00> : vector<5xf32>
    %51 = vector.multi_reduction <add>, %50, %cst_23 [1] : vector<5x5xf32> to vector<5xf32>
    %52 = vector.shape_cast %51 : vector<5xf32> to vector<5x1xf32>
    %53 = tpu.reciprocal %52 {approx = true} : vector<5x1xf32> -> vector<5x1xf32>
    %54 = vector.broadcast %53 : vector<5x1xf32> to vector<5x5xf32>
    %55 = arith.mulf %50, %54 : vector<5x5xf32>
    %cst_24 = arith.constant dense<0.000000e+00> : vector<5x8xf32>
    %56 = tpu.matmul %55, %40, %cst_24 {dimension_numbers = #tpu.dot_dimension_numbers<[1], [0], [0], [1], [0, 0, 1, 1], [], []>} : vector<5x5xf32>, vector<5x8xf32>, vector<5x8xf32> -> vector<5x8xf32>
    %57 = vector.extract_strided_slice %13 {offsets = [8, 0], sizes = [8, 32], strides = [1, 1]} : vector<32x32xf32> to vector<8x32xf32>
    %cst_25 = arith.constant dense<0.000000e+00> : vector<5x32xf32>
    %58 = tpu.matmul %56, %57, %cst_25 {dimension_numbers = #tpu.dot_dimension_numbers<[1], [0], [0], [1], [0, 0, 1, 1], [], []>} : vector<5x8xf32>, vector<8x32xf32>, vector<5x32xf32> -> vector<5x32xf32>
    %59 = arith.addf %37, %58 : vector<5x32xf32>
    %60 = vector.extract_strided_slice %10 {offsets = [0, 16], sizes = [5, 8], strides = [1, 1]} : vector<5x32xf32> to vector<5x8xf32>
    %61 = vector.extract_strided_slice %11 {offsets = [0, 16], sizes = [5, 8], strides = [1, 1]} : vector<5x32xf32> to vector<5x8xf32>
    %62 = vector.extract_strided_slice %12 {offsets = [0, 16], sizes = [5, 8], strides = [1, 1]} : vector<5x32xf32> to vector<5x8xf32>
    %cst_26 = arith.constant dense<0.000000e+00> : vector<5x5xf32>
    %63 = tpu.matmul %60, %61, %cst_26 {dimension_numbers = #tpu.dot_dimension_numbers<[1], [1], [0], [0], [0, 0, 1, 0], [], []>} : vector<5x8xf32>, vector<5x8xf32>, vector<5x5xf32> -> vector<5x5xf32>
    %cst_27 = arith.constant 0.353553385 : f32
    %64 = vector.broadcast %cst_27 : f32 to vector<5x5xf32>
    %65 = arith.mulf %63, %64 : vector<5x5xf32>
    %66 = vector.broadcast %3 : vector<1x5xf32> to vector<5x5xf32>
    %67 = arith.addf %65, %66 : vector<5x5xf32>
    %cst_28 = arith.constant dense<0xFF800000> : vector<5xf32>
    %68 = vector.multi_reduction <maximumf>, %67, %cst_28 [1] : vector<5x5xf32> to vector<5xf32>
    %69 = vector.shape_cast %68 : vector<5xf32> to vector<5x1xf32>
    %70 = vector.broadcast %69 : vector<5x1xf32> to vector<5x5xf32>
    %71 = arith.subf %67, %70 : vector<5x5xf32>
    %72 = math.exp %71 : vector<5x5xf32>
    %cst_29 = arith.constant dense<0.000000e+00> : vector<5xf32>
    %73 = vector.multi_reduction <add>, %72, %cst_29 [1] : vector<5x5xf32> to vector<5xf32>
    %74 = vector.shape_cast %73 : vector<5xf32> to vector<5x1xf32>
    %75 = tpu.reciprocal %74 {approx = true} : vector<5x1xf32> -> vector<5x1xf32>
    %76 = vector.broadcast %75 : vector<5x1xf32> to vector<5x5xf32>
    %77 = arith.mulf %72, %76 : vector<5x5xf32>
    %cst_30 = arith.constant dense<0.000000e+00> : vector<5x8xf32>
    %78 = tpu.matmul %77, %62, %cst_30 {dimension_numbers = #tpu.dot_dimension_numbers<[1], [0], [0], [1], [0, 0, 1, 1], [], []>} : vector<5x5xf32>, vector<5x8xf32>, vector<5x8xf32> -> vector<5x8xf32>
    %79 = vector.extract_strided_slice %13 {offsets = [16, 0], sizes = [8, 32], strides = [1, 1]} : vector<32x32xf32> to vector<8x32xf32>
    %cst_31 = arith.constant dense<0.000000e+00> : vector<5x32xf32>
    %80 = tpu.matmul %78, %79, %cst_31 {dimension_numbers = #tpu.dot_dimension_numbers<[1], [0], [0], [1], [0, 0, 1, 1], [], []>} : vector<5x8xf32>, vector<8x32xf32>, vector<5x32xf32> -> vector<5x32xf32>
    %81 = arith.addf %59, %80 : vector<5x32xf32>
    %82 = vector.extract_strided_slice %10 {offsets = [0, 24], sizes = [5, 8], strides = [1, 1]} : vector<5x32xf32> to vector<5x8xf32>
    %83 = vector.extract_strided_slice %11 {offsets = [0, 24], sizes = [5, 8], strides = [1, 1]} : vector<5x32xf32> to vector<5x8xf32>
    %84 = vector.extract_strided_slice %12 {offsets = [0, 24], sizes = [5, 8], strides = [1, 1]} : vector<5x32xf32> to vector<5x8xf32>
    %cst_32 = arith.constant dense<0.000000e+00> : vector<5x5xf32>
    %85 = tpu.matmul %82, %83, %cst_32 {dimension_numbers = #tpu.dot_dimension_numbers<[1], [1], [0], [0], [0, 0, 1, 0], [], []>} : vector<5x8xf32>, vector<5x8xf32>, vector<5x5xf32> -> vector<5x5xf32>
    %cst_33 = arith.constant 0.353553385 : f32
    %86 = vector.broadcast %cst_33 : f32 to vector<5x5xf32>
    %87 = arith.mulf %85, %86 : vector<5x5xf32>
    %88 = vector.broadcast %3 : vector<1x5xf32> to vector<5x5xf32>
    %89 = arith.addf %87, %88 : vector<5x5xf32>
    %cst_34 = arith.constant dense<0xFF800000> : vector<5xf32>
    %90 = vector.multi_reduction <maximumf>, %89, %cst_34 [1] : vector<5x5xf32> to vector<5xf32>
    %91 = vector.shape_cast %90 : vector<5xf32> to vector<5x1xf32>
    %92 = vector.broadcast %91 : vector<5x1xf32> to vector<5x5xf32>
    %93 = arith.subf %89, %92 : vector<5x5xf32>
    %94 = math.exp %93 : vector<5x5xf32>
    %cst_35 = arith.constant dense<0.000000e+00> : vector<5xf32>
    %95 = vector.multi_reduction <add>, %94, %cst_35 [1] : vector<5x5xf32> to vector<5xf32>
    %96 = vector.shape_cast %95 : vector<5xf32> to vector<5x1xf32>
    %97 = tpu.reciprocal %96 {approx = true} : vector<5x1xf32> -> vector<5x1xf32>
    %98 = vector.broadcast %97 : vector<5x1xf32> to vector<5x5xf32>
    %99 = arith.mulf %94, %98 : vector<5x5xf32>
    %cst_36 = arith.constant dense<0.000000e+00> : vector<5x8xf32>
    %100 = tpu.matmul %99, %84, %cst_36 {dimension_numbers = #tpu.dot_dimension_numbers<[1], [0], [0], [1], [0, 0, 1, 1], [], []>} : vector<5x5xf32>, vector<5x8xf32>, vector<5x8xf32> -> vector<5x8xf32>
    %101 = vector.extract_strided_slice %13 {offsets = [24, 0], sizes = [8, 32], strides = [1, 1]} : vector<32x32xf32> to vector<8x32xf32>
    %cst_37 = arith.constant dense<0.000000e+00> : vector<5x32xf32>
    %102 = tpu.matmul %100, %101, %cst_37 {dimension_numbers = #tpu.dot_dimension_numbers<[1], [0], [0], [1], [0, 0, 1, 1], [], []>} : vector<5x8xf32>, vector<8x32xf32>, vector<5x32xf32> -> vector<5x32xf32>
    %103 = arith.addf %81, %102 : vector<5x32xf32>
    %104 = vector.broadcast %14 : vector<1x32xf32> to vector<5x32xf32>
    %105 = arith.addf %103, %104 : vector<5x32xf32>
    %106 = arith.addf %1, %105 : vector<5x32xf32>
    %c0_38 = arith.constant 0 : index
    %c0_39 = arith.constant 0 : index
    %107 = vector.load %arg7[%c0_38, %c0_39] : memref<1x32xf32, #tpu.memory_space<vmem>>, vector<1x32xf32>
    %c0_40 = arith.constant 0 : index
    %c0_41 = arith.constant 0 : index
    %108 = vector.load %arg8[%c0_40, %c0_41] : memref<1x32xf32, #tpu.memory_space<vmem>>, vector<1x32xf32>
    %cst_42 = arith.constant dense<0.000000e+00> : vector<5xf32>
    %109 = vector.multi_reduction <add>, %106, %cst_42 [1] : vector<5x32xf32> to vector<5xf32>
    %110 = vector.shape_cast %109 : vector<5xf32> to vector<5x1xf32>
    %cst_43 = arith.constant 3.200000e+01 : f32
    %111 = vector.broadcast %cst_43 : f32 to vector<5x1xf32>
    %112 = arith.divf %110, %111 : vector<5x1xf32>
    %113 = vector.broadcast %112 : vector<5x1xf32> to vector<5x32xf32>
    %114 = arith.subf %106, %113 : vector<5x32xf32>
    %115 = arith.mulf %114, %114 : vector<5x32xf32>
    %cst_44 = arith.constant dense<0.000000e+00> : vector<5xf32>
    %116 = vector.multi_reduction <add>, %115, %cst_44 [1] : vector<5x32xf32> to vector<5xf32>
    %117 = vector.shape_cast %116 : vector<5xf32> to vector<5x1xf32>
    %cst_45 = arith.constant 3.200000e+01 : f32
    %118 = vector.broadcast %cst_45 : f32 to vector<5x1xf32>
    %119 = arith.divf %117, %118 : vector<5x1xf32>
    %120 = vector.broadcast %112 : vector<5x1xf32> to vector<5x32xf32>
    %121 = arith.subf %106, %120 : vector<5x32xf32>
    %cst_46 = arith.constant 9.99999974E-6 : f32
    %122 = vector.broadcast %cst_46 : f32 to vector<5x1xf32>
    %123 = arith.addf %119, %122 : vector<5x1xf32>
    %124 = math.rsqrt %123 : vector<5x1xf32>
    %125 = vector.broadcast %124 : vector<5x1xf32> to vector<5x32xf32>
    %126 = arith.mulf %121, %125 : vector<5x32xf32>
    %127 = vector.broadcast %107 : vector<1x32xf32> to vector<5x32xf32>
    %128 = arith.mulf %126, %127 : vector<5x32xf32>
    %129 = vector.broadcast %108 : vector<1x32xf32> to vector<5x32xf32>
    %130 = arith.addf %128, %129 : vector<5x32xf32>
    %c0_47 = arith.constant 0 : index
    %c0_48 = arith.constant 0 : index
    %131 = vector.load %arg9[%c0_47, %c0_48] : memref<32x128xbf16, #tpu.memory_space<vmem>>, vector<32x128xbf16>
    %c0_49 = arith.constant 0 : index
    %c0_50 = arith.constant 0 : index
    %132 = vector.load %arg10[%c0_49, %c0_50] : memref<1x128xf32, #tpu.memory_space<vmem>>, vector<1x128xf32>
    %c0_51 = arith.constant 0 : index
    %c0_52 = arith.constant 0 : index
    %133 = vector.load %arg11[%c0_51, %c0_52] : memref<128x32xbf16, #tpu.memory_space<vmem>>, vector<128x32xbf16>
    %c0_53 = arith.constant 0 : index
    %c0_54 = arith.constant 0 : index
    %134 = vector.load %arg12[%c0_53, %c0_54] : memref<1x32xf32, #tpu.memory_space<vmem>>, vector<1x32xf32>
    %135 = arith.truncf %130 : vector<5x32xf32> to vector<5x32xbf16>
    %cst_55 = arith.constant dense<0.000000e+00> : vector<5x128xf32>
    %136 = tpu.matmul %135, %131, %cst_55 {dimension_numbers = #tpu.dot_dimension_numbers<[1], [0], [0], [1], [0, 0, 1, 1], [], []>} : vector<5x32xbf16>, vector<32x128xbf16>, vector<5x128xf32> -> vector<5x128xf32>
    %137 = vector.broadcast %132 : vector<1x128xf32> to vector<5x128xf32>
    %138 = arith.addf %136, %137 : vector<5x128xf32>
    %cst_56 = arith.constant 0.000000e+00 : f32
    %139 = vector.broadcast %cst_56 : f32 to vector<5x128xf32>
    %140 = arith.maximumf %138, %139 : vector<5x128xf32>
    %141 = arith.truncf %140 : vector<5x128xf32> to vector<5x128xbf16>
    %cst_57 = arith.constant dense<0.000000e+00> : vector<5x32xf32>
    %142 = tpu.matmul %141, %133, %cst_57 {dimension_numbers = #tpu.dot_dimension_numbers<[1], [0], [0], [1], [0, 0, 1, 1], [], []>} : vector<5x128xbf16>, vector<128x32xbf16>, vector<5x32xf32> -> vector<5x32xf32>
    %143 = vector.broadcast %134 : vector<1x32xf32> to vector<5x32xf32>
    %144 = arith.addf %142, %143 : vector<5x32xf32>
    %145 = arith.addf %130, %144 : vector<5x32xf32>
    %c0_58 = arith.constant 0 : index
    %c0_59 = arith.constant 0 : index
    %146 = vector.load %arg13[%c0_58, %c0_59] : memref<1x32xf32, #tpu.memory_space<vmem>>, vector<1x32xf32>
    %c0_60 = arith.constant 0 : index
    %c0_61 = arith.constant 0 : index
    %147 = vector.load %arg14[%c0_60, %c0_61] : memref<1x32xf32, #tpu.memory_space<vmem>>, vector<1x32xf32>
    %cst_62 = arith.constant dense<0.000000e+00> : vector<5xf32>
    %148 = vector.multi_reduction <add>, %145, %cst_62 [1] : vector<5x32xf32> to vector<5xf32>
    %149 = vector.shape_cast %148 : vector<5xf32> to vector<5x1xf32>
    %cst_63 = arith.constant 3.200000e+01 : f32
    %150 = vector.broadcast %cst_63 : f32 to vector<5x1xf32>
    %151 = arith.divf %149, %150 : vector<5x1xf32>
    %152 = vector.broadcast %151 : vector<5x1xf32> to vector<5x32xf32>
    %153 = arith.subf %145, %152 : vector<5x32xf32>
    %154 = arith.mulf %153, %153 : vector<5x32xf32>
    %cst_64 = arith.constant dense<0.000000e+00> : vector<5xf32>
    %155 = vector.multi_reduction <add>, %154, %cst_64 [1] : vector<5x32xf32> to vector<5xf32>
    %156 = vector.shape_cast %155 : vector<5xf32> to vector<5x1xf32>
    %cst_65 = arith.constant 3.200000e+01 : f32
    %157 = vector.broadcast %cst_65 : f32 to vector<5x1xf32>
    %158 = arith.divf %156, %157 : vector<5x1xf32>
    %159 = vector.broadcast %151 : vector<5x1xf32> to vector<5x32xf32>
    %160 = arith.subf %145, %159 : vector<5x32xf32>
    %cst_66 = arith.constant 9.99999974E-6 : f32
    %161 = vector.broadcast %cst_66 : f32 to vector<5x1xf32>
    %162 = arith.addf %158, %161 : vector<5x1xf32>
    %163 = math.rsqrt %162 : vector<5x1xf32>
    %164 = vector.broadcast %163 : vector<5x1xf32> to vector<5x32xf32>
    %165 = arith.mulf %160, %164 : vector<5x32xf32>
    %166 = vector.broadcast %146 : vector<1x32xf32> to vector<5x32xf32>
    %167 = arith.mulf %165, %166 : vector<5x32xf32>
    %168 = vector.broadcast %147 : vector<1x32xf32> to vector<5x32xf32>
    %169 = arith.addf %167, %168 : vector<5x32xf32>
    %c0_67 = arith.constant 0 : index
    %c0_68 = arith.constant 0 : index
    %c0_69 = arith.constant 0 : index
    %170 = vector.load %arg17[%c0_67, %c0_68, %c0_69] : memref<1x5x32xf32, #tpu.memory_space<vmem>>, vector<1x5x32xf32>
    %171 = vector.shape_cast %170 : vector<1x5x32xf32> to vector<5x32xf32>
    %172 = vector.shape_cast %169 : vector<5x32xf32> to vector<1x5x32xf32>
    tpu.vector_store %arg17[%c0_67, %c0_68, %c0_69], %172 {strides = array<i32>} : memref<1x5x32xf32, #tpu.memory_space<vmem>>, vector<1x5x32xf32>,
    return
  }
  func.func @transform_0(%arg0: i32) -> (i32, i32, i32) {
    %c0_i32 = arith.constant 0 : i32
    %c0_i32_0 = arith.constant 0 : i32
    %c0_i32_1 = arith.constant 0 : i32
    return %arg0, %c0_i32, %c0_i32_0 : i32, i32, i32
  }
  func.func @transform_1(%arg0: i32) -> (i32, i32, i32) {
    %c0_i32 = arith.constant 0 : i32
    %c0_i32_0 = arith.constant 0 : i32
    %c0_i32_1 = arith.constant 0 : i32
    return %arg0, %c0_i32, %c0_i32_0 : i32, i32, i32
  }
  func.func @transform_2(%arg0: i32) -> (i32, i32) {
    %c0_i32 = arith.constant 0 : i32
    %c0_i32_0 = arith.constant 0 : i32
    %c0_i32_1 = arith.constant 0 : i32
    return %c0_i32, %c0_i32_0 : i32, i32
  }
  func.func @transform_3(%arg0: i32) -> (i32, i32) {
    %c0_i32 = arith.constant 0 : i32
    %c0_i32_0 = arith.constant 0 : i32
    %c0_i32_1 = arith.constant 0 : i32
    return %c0_i32, %c0_i32_0 : i32, i32
  }
  func.func @transform_4(%arg0: i32) -> (i32, i32) {
    %c0_i32 = arith.constant 0 : i32
    %c0_i32_0 = arith.constant 0 : i32
    %c0_i32_1 = arith.constant 0 : i32
    return %c0_i32, %c0_i32_0 : i32, i32
  }
  func.func @transform_5(%arg0: i32) -> (i32, i32) {
    %c0_i32 = arith.constant 0 : i32
    %c0_i32_0 = arith.constant 0 : i32
    %c0_i32_1 = arith.constant 0 : i32
    return %c0_i32, %c0_i32_0 : i32, i32
  }
  func.func @transform_6(%arg0: i32) -> (i32, i32) {
    %c0_i32 = arith.constant 0 : i32
    %c0_i32_0 = arith.constant 0 : i32
    %c0_i32_1 = arith.constant 0 : i32
    return %c0_i32, %c0_i32_0 : i32, i32
  }
  func.func @transform_7(%arg0: i32) -> (i32, i32) {
    %c0_i32 = arith.constant 0 : i32
    %c0_i32_0 = arith.constant 0 : i32
    %c0_i32_1 = arith.constant 0 : i32
    return %c0_i32, %c0_i32_0 : i32, i32
  }
  func.func @transform_8(%arg0: i32) -> (i32, i32) {
    %c0_i32 = arith.constant 0 : i32
    %c0_i32_0 = arith.constant 0 : i32
    %c0_i32_1 = arith.constant 0 : i32
    return %c0_i32, %c0_i32_0 : i32, i32
  }
  func.func @transform_9(%arg0: i32) -> (i32, i32) {
    %c0_i32 = arith.constant 0 : i32
    %c0_i32_0 = arith.constant 0 : i32
    %c0_i32_1 = arith.constant 0 : i32
    return %c0_i32, %c0_i32_0 : i32, i32
  }
  func.func @transform_10(%arg0: i32) -> (i32, i32) {
    %c0_i32 = arith.constant 0 : i32
    %c0_i32_0 = arith.constant 0 : i32
    %c0_i32_1 = arith.constant 0 : i32
    return %c0_i32, %c0_i32_0 : i32, i32
  }
  func.func @transform_11(%arg0: i32) -> (i32, i32) {
    %c0_i32 = arith.constant 0 : i32
    %c0_i32_0 = arith.constant 0 : i32
    %c0_i32_1 = arith.constant 0 : i32
    return %c0_i32, %c0_i32_0 : i32, i32
  }
  func.func @transform_12(%arg0: i32) -> (i32, i32) {
    %c0_i32 = arith.constant 0 : i32
    %c0_i32_0 = arith.constant 0 : i32
    %c0_i32_1 = arith.constant 0 : i32
    return %c0_i32, %c0_i32_0 : i32, i32
  }
  func.func @transform_13(%arg0: i32) -> (i32, i32) {
    %c0_i32 = arith.constant 0 : i32
    %c0_i32_0 = arith.constant 0 : i32
    %c0_i32_1 = arith.constant 0 : i32
    return %c0_i32, %c0_i32_0 : i32, i32
  }
  func.func @transform_14(%arg0: i32) -> (i32, i32) {
    %c0_i32 = arith.constant 0 : i32
    %c0_i32_0 = arith.constant 0 : i32
    %c0_i32_1 = arith.constant 0 : i32
    return %c0_i32, %c0_i32_0 : i32, i32
  }
  func.func @transform_15(%arg0: i32) -> (i32, i32) {
    %c0_i32 = arith.constant 0 : i32
    %c0_i32_0 = arith.constant 0 : i32
    %c0_i32_1 = arith.constant 0 : i32
    return %c0_i32, %c0_i32_0 : i32, i32
  }
  func.func @transform_16(%arg0: i32) -> (i32, i32, i32) {
    %c0_i32 = arith.constant 0 : i32
    %c0_i32_0 = arith.constant 0 : i32
    %c0_i32_1 = arith.constant 0 : i32
    return %arg0, %c0_i32, %c0_i32_0 : i32, i32, i32
  }
}

module attributes {stable_mosaic.version = 11 : i64} {
  func.func @_enc_layer_kernel(%arg0: i32, %arg1: memref<1x5x32xf32, #tpu.memory_space<vmem>>, %arg2: memref<1x1x5xf32, #tpu.memory_space<vmem>>, %arg3: memref<32x96xbf16, #tpu.memory_space<vmem>>, %arg4: memref<1x96xf32, #tpu.memory_space<vmem>>, %arg5: memref<32x32xf32, #tpu.memory_space<vmem>>, %arg6: memref<1x32xf32, #tpu.memory_space<vmem>>, %arg7: memref<1x32xf32, #tpu.memory_space<vmem>>, %arg8: memref<1x32xf32, #tpu.memory_space<vmem>>, %arg9: memref<32x128xbf16, #tpu.memory_space<vmem>>, %arg10: memref<1x128xf32, #tpu.memory_space<vmem>>, %arg11: memref<128x32xbf16, #tpu.memory_space<vmem>>, %arg12: memref<1x32xf32, #tpu.memory_space<vmem>>, %arg13: memref<1x32xf32, #tpu.memory_space<vmem>>, %arg14: memref<1x32xf32, #tpu.memory_space<vmem>>, %arg15: memref<1x32xf32, #tpu.memory_space<vmem>>, %arg16: memref<1x32xf32, #tpu.memory_space<vmem>>, %arg17: memref<1x5x32xf32, #tpu.memory_space<vmem>>) attributes {dimension_semantics = [#tpu.dimension_semantics<parallel>], iteration_bounds = array<i64: 2>, scalar_prefetch = 0 : i64, scratch_operands = 0 : i64, tpu.core_type = #tpu.core_type<tc>, window_params = [{transform_indices = @transform_0, window_bounds = array<i64: 1, 5, 32>}, {transform_indices = @transform_1, window_bounds = array<i64: 1, 1, 5>}, {pipeline_mode = #tpu.pipeline_mode<synchronous>, transform_indices = @transform_2, window_bounds = array<i64: 32, 96>}, {pipeline_mode = #tpu.pipeline_mode<synchronous>, transform_indices = @transform_3, window_bounds = array<i64: 1, 96>}, {pipeline_mode = #tpu.pipeline_mode<synchronous>, transform_indices = @transform_4, window_bounds = array<i64: 32, 32>}, {pipeline_mode = #tpu.pipeline_mode<synchronous>, transform_indices = @transform_5, window_bounds = array<i64: 1, 32>}, {pipeline_mode = #tpu.pipeline_mode<synchronous>, transform_indices = @transform_6, window_bounds = array<i64: 1, 32>}, {pipeline_mode = #tpu.pipeline_mode<synchronous>, transform_indices = @transform_7, window_bounds = array<i64: 1, 32>}, {pipeline_mode = #tpu.pipeline_mode<synchronous>, transform_indices = @transform_8, window_bounds = array<i64: 32, 128>}, {pipeline_mode = #tpu.pipeline_mode<synchronous>, transform_indices = @transform_9, window_bounds = array<i64: 1, 128>}, {pipeline_mode = #tpu.pipeline_mode<synchronous>, transform_indices = @transform_10, window_bounds = array<i64: 128, 32>}, {pipeline_mode = #tpu.pipeline_mode<synchronous>, transform_indices = @transform_11, window_bounds = array<i64: 1, 32>}, {pipeline_mode = #tpu.pipeline_mode<synchronous>, transform_indices = @transform_12, window_bounds = array<i64: 1, 32>}, {pipeline_mode = #tpu.pipeline_mode<synchronous>, transform_indices = @transform_13, window_bounds = array<i64: 1, 32>}, {pipeline_mode = #tpu.pipeline_mode<synchronous>, transform_indices = @transform_14, window_bounds = array<i64: 1, 32>}, {pipeline_mode = #tpu.pipeline_mode<synchronous>, transform_indices = @transform_15, window_bounds = array<i64: 1, 32>}, {transform_indices = @transform_16, window_bounds = array<i64: 1, 5, 32>}]} {
    %c0 = arith.constant 0 : index
    %c0_0 = arith.constant 0 : index
    %c0_1 = arith.constant 0 : index
    %0 = vector.load %arg1[%c0, %c0_0, %c0_1] : memref<1x5x32xf32, #tpu.memory_space<vmem>>, vector<1x5x32xf32>
    %1 = vector.shape_cast %0 : vector<1x5x32xf32> to vector<5x32xf32>
    %c0_2 = arith.constant 0 : index
    %c0_3 = arith.constant 0 : index
    %c0_4 = arith.constant 0 : index
    %2 = vector.load %arg2[%c0_2, %c0_3, %c0_4] : memref<1x1x5xf32, #tpu.memory_space<vmem>>, vector<1x1x5xf32>
    %3 = vector.shape_cast %2 : vector<1x1x5xf32> to vector<1x5xf32>
    %c0_5 = arith.constant 0 : index
    %c0_6 = arith.constant 0 : index
    %4 = vector.load %arg3[%c0_5, %c0_6] : memref<32x96xbf16, #tpu.memory_space<vmem>>, vector<32x96xbf16>
    %c0_7 = arith.constant 0 : index
    %c0_8 = arith.constant 0 : index
    %5 = vector.load %arg4[%c0_7, %c0_8] : memref<1x96xf32, #tpu.memory_space<vmem>>, vector<1x96xf32>
    %6 = arith.truncf %1 : vector<5x32xf32> to vector<5x32xbf16>
    %cst = arith.constant dense<0.000000e+00> : vector<5x96xf32>
    %7 = tpu.matmul %6, %4, %cst {dimension_numbers = #tpu.dot_dimension_numbers<[1], [0], [0], [1], [0, 0, 1, 1], [], []>} : vector<5x32xbf16>, vector<32x96xbf16>, vector<5x96xf32> -> vector<5x96xf32>
    %8 = vector.broadcast %5 : vector<1x96xf32> to vector<5x96xf32>
    %9 = arith.addf %7, %8 : vector<5x96xf32>
    %10 = vector.extract_strided_slice %9 {offsets = [0, 0], sizes = [5, 32], strides = [1, 1]} : vector<5x96xf32> to vector<5x32xf32>
    %11 = vector.extract_strided_slice %9 {offsets = [0, 32], sizes = [5, 32], strides = [1, 1]} : vector<5x96xf32> to vector<5x32xf32>
    %12 = vector.extract_strided_slice %9 {offsets = [0, 64], sizes = [5, 32], strides = [1, 1]} : vector<5x96xf32> to vector<5x32xf32>
    %c0_9 = arith.constant 0 : index
    %c0_10 = arith.constant 0 : index
    %13 = vector.load %arg5[%c0_9, %c0_10] : memref<32x32xf32, #tpu.memory_space<vmem>>, vector<32x32xf32>
    %c0_11 = arith.constant 0 : index
    %c0_12 = arith.constant 0 : index
    %14 = vector.load %arg6[%c0_11, %c0_12] : memref<1x32xf32, #tpu.memory_space<vmem>>, vector<1x32xf32>
    %cst_13 = arith.constant 0.000000e+00 : f32
    %15 = vector.broadcast %cst_13 : f32 to vector<5x32xf32>
    %16 = vector.extract_strided_slice %10 {offsets = [0, 0], sizes = [5, 8], strides = [1, 1]} : vector<5x32xf32> to vector<5x8xf32>
    %17 = vector.extract_strided_slice %11 {offsets = [0, 0], sizes = [5, 8], strides = [1, 1]} : vector<5x32xf32> to vector<5x8xf32>
    %18 = vector.extract_strided_slice %12 {offsets = [0, 0], sizes = [5, 8], strides = [1, 1]} : vector<5x32xf32> to vector<5x8xf32>
    %cst_14 = arith.constant dense<0.000000e+00> : vector<5x5xf32>
    %19 = tpu.matmul %16, %17, %cst_14 {dimension_numbers = #tpu.dot_dimension_numbers<[1], [1], [0], [0], [0, 0, 1, 0], [], []>} : vector<5x8xf32>, vector<5x8xf32>, vector<5x5xf32> -> vector<5x5xf32>
    %cst_15 = arith.constant 0.353553385 : f32
    %20 = vector.broadcast %cst_15 : f32 to vector<5x5xf32>
    %21 = arith.mulf %19, %20 : vector<5x5xf32>
    %22 = vector.broadcast %3 : vector<1x5xf32> to vector<5x5xf32>
    %23 = arith.addf %21, %22 : vector<5x5xf32>
    %cst_16 = arith.constant dense<0xFF800000> : vector<5xf32>
    %24 = vector.multi_reduction <maximumf>, %23, %cst_16 [1] : vector<5x5xf32> to vector<5xf32>
    %25 = vector.shape_cast %24 : vector<5xf32> to vector<5x1xf32>
    %26 = vector.broadcast %25 : vector<5x1xf32> to vector<5x5xf32>
    %27 = arith.subf %23, %26 : vector<5x5xf32>
    %28 = math.exp %27 : vector<5x5xf32>
    %cst_17 = arith.constant dense<0.000000e+00> : vector<5xf32>
    %29 = vector.multi_reduction <add>, %28, %cst_17 [1] : vector<5x5xf32> to vector<5xf32>
    %30 = vector.shape_cast %29 : vector<5xf32> to vector<5x1xf32>
    %31 = tpu.reciprocal %30 {approx = true} : vector<5x1xf32> -> vector<5x1xf32>
    %32 = vector.broadcast %31 : vector<5x1xf32> to vector<5x5xf32>
    %33 = arith.mulf %28, %32 : vector<5x5xf32>
    %cst_18 = arith.constant dense<0.000000e+00> : vector<5x8xf32>
    %34 = tpu.matmul %33, %18, %cst_18 {dimension_numbers = #tpu.dot_dimension_numbers<[1], [0], [0], [1], [0, 0, 1, 1], [], []>} : vector<5x5xf32>, vector<5x8xf32>, vector<5x8xf32> -> vector<5x8xf32>
    %35 = vector.extract_strided_slice %13 {offsets = [0, 0], sizes = [8, 32], strides = [1, 1]} : vector<32x32xf32> to vector<8x32xf32>
    %cst_19 = arith.constant dense<0.000000e+00> : vector<5x32xf32>
    %36 = tpu.matmul %34, %35, %cst_19 {dimension_numbers = #tpu.dot_dimension_numbers<[1], [0], [0], [1], [0, 0, 1, 1], [], []>} : vector<5x8xf32>, vector<8x32xf32>, vector<5x32xf32> -> vector<5x32xf32>
    %37 = arith.addf %15, %36 : vector<5x32xf32>
    %38 = vector.extract_strided_slice %10 {offsets = [0, 8], sizes = [5, 8], strides = [1, 1]} : vector<5x32xf32> to vector<5x8xf32>
    %39 = vector.extract_strided_slice %11 {offsets = [0, 8], sizes = [5, 8], strides = [1, 1]} : vector<5x32xf32> to vector<5x8xf32>
    %40 = vector.extract_strided_slice %12 {offsets = [0, 8], sizes = [5, 8], strides = [1, 1]} : vector<5x32xf32> to vector<5x8xf32>
    %cst_20 = arith.constant dense<0.000000e+00> : vector<5x5xf32>
    %41 = tpu.matmul %38, %39, %cst_20 {dimension_numbers = #tpu.dot_dimension_numbers<[1], [1], [0], [0], [0, 0, 1, 0], [], []>} : vector<5x8xf32>, vector<5x8xf32>, vector<5x5xf32> -> vector<5x5xf32>
    %cst_21 = arith.constant 0.353553385 : f32
    %42 = vector.broadcast %cst_21 : f32 to vector<5x5xf32>
    %43 = arith.mulf %41, %42 : vector<5x5xf32>
    %44 = vector.broadcast %3 : vector<1x5xf32> to vector<5x5xf32>
    %45 = arith.addf %43, %44 : vector<5x5xf32>
    %cst_22 = arith.constant dense<0xFF800000> : vector<5xf32>
    %46 = vector.multi_reduction <maximumf>, %45, %cst_22 [1] : vector<5x5xf32> to vector<5xf32>
    %47 = vector.shape_cast %46 : vector<5xf32> to vector<5x1xf32>
    %48 = vector.broadcast %47 : vector<5x1xf32> to vector<5x5xf32>
    %49 = arith.subf %45, %48 : vector<5x5xf32>
    %50 = math.exp %49 : vector<5x5xf32>
    %cst_23 = arith.constant dense<0.000000e+00> : vector<5xf32>
    %51 = vector.multi_reduction <add>, %50, %cst_23 [1] : vector<5x5xf32> to vector<5xf32>
    %52 = vector.shape_cast %51 : vector<5xf32> to vector<5x1xf32>
    %53 = tpu.reciprocal %52 {approx = true} : vector<5x1xf32> -> vector<5x1xf32>
    %54 = vector.broadcast %53 : vector<5x1xf32> to vector<5x5xf32>
    %55 = arith.mulf %50, %54 : vector<5x5xf32>
    %cst_24 = arith.constant dense<0.000000e+00> : vector<5x8xf32>
    %56 = tpu.matmul %55, %40, %cst_24 {dimension_numbers = #tpu.dot_dimension_numbers<[1], [0], [0], [1], [0, 0, 1, 1], [], []>} : vector<5x5xf32>, vector<5x8xf32>, vector<5x8xf32> -> vector<5x8xf32>
    %57 = vector.extract_strided_slice %13 {offsets = [8, 0], sizes = [8, 32], strides = [1, 1]} : vector<32x32xf32> to vector<8x32xf32>
    %cst_25 = arith.constant dense<0.000000e+00> : vector<5x32xf32>
    %58 = tpu.matmul %56, %57, %cst_25 {dimension_numbers = #tpu.dot_dimension_numbers<[1], [0], [0], [1], [0, 0, 1, 1], [], []>} : vector<5x8xf32>, vector<8x32xf32>, vector<5x32xf32> -> vector<5x32xf32>
    %59 = arith.addf %37, %58 : vector<5x32xf32>
    %60 = vector.extract_strided_slice %10 {offsets = [0, 16], sizes = [5, 8], strides = [1, 1]} : vector<5x32xf32> to vector<5x8xf32>
    %61 = vector.extract_strided_slice %11 {offsets = [0, 16], sizes = [5, 8], strides = [1, 1]} : vector<5x32xf32> to vector<5x8xf32>
    %62 = vector.extract_strided_slice %12 {offsets = [0, 16], sizes = [5, 8], strides = [1, 1]} : vector<5x32xf32> to vector<5x8xf32>
    %cst_26 = arith.constant dense<0.000000e+00> : vector<5x5xf32>
    %63 = tpu.matmul %60, %61, %cst_26 {dimension_numbers = #tpu.dot_dimension_numbers<[1], [1], [0], [0], [0, 0, 1, 0], [], []>} : vector<5x8xf32>, vector<5x8xf32>, vector<5x5xf32> -> vector<5x5xf32>
    %cst_27 = arith.constant 0.353553385 : f32
    %64 = vector.broadcast %cst_27 : f32 to vector<5x5xf32>
    %65 = arith.mulf %63, %64 : vector<5x5xf32>
    %66 = vector.broadcast %3 : vector<1x5xf32> to vector<5x5xf32>
    %67 = arith.addf %65, %66 : vector<5x5xf32>
    %cst_28 = arith.constant dense<0xFF800000> : vector<5xf32>
    %68 = vector.multi_reduction <maximumf>, %67, %cst_28 [1] : vector<5x5xf32> to vector<5xf32>
    %69 = vector.shape_cast %68 : vector<5xf32> to vector<5x1xf32>
    %70 = vector.broadcast %69 : vector<5x1xf32> to vector<5x5xf32>
    %71 = arith.subf %67, %70 : vector<5x5xf32>
    %72 = math.exp %71 : vector<5x5xf32>
    %cst_29 = arith.constant dense<0.000000e+00> : vector<5xf32>
    %73 = vector.multi_reduction <add>, %72, %cst_29 [1] : vector<5x5xf32> to vector<5xf32>
    %74 = vector.shape_cast %73 : vector<5xf32> to vector<5x1xf32>
    %75 = tpu.reciprocal %74 {approx = true} : vector<5x1xf32> -> vector<5x1xf32>
    %76 = vector.broadcast %75 : vector<5x1xf32> to vector<5x5xf32>
    %77 = arith.mulf %72, %76 : vector<5x5xf32>
    %cst_30 = arith.constant dense<0.000000e+00> : vector<5x8xf32>
    %78 = tpu.matmul %77, %62, %cst_30 {dimension_numbers = #tpu.dot_dimension_numbers<[1], [0], [0], [1], [0, 0, 1, 1], [], []>} : vector<5x5xf32>, vector<5x8xf32>, vector<5x8xf32> -> vector<5x8xf32>
    %79 = vector.extract_strided_slice %13 {offsets = [16, 0], sizes = [8, 32], strides = [1, 1]} : vector<32x32xf32> to vector<8x32xf32>
    %cst_31 = arith.constant dense<0.000000e+00> : vector<5x32xf32>
    %80 = tpu.matmul %78, %79, %cst_31 {dimension_numbers = #tpu.dot_dimension_numbers<[1], [0], [0], [1], [0, 0, 1, 1], [], []>} : vector<5x8xf32>, vector<8x32xf32>, vector<5x32xf32> -> vector<5x32xf32>
    %81 = arith.addf %59, %80 : vector<5x32xf32>
    %82 = vector.extract_strided_slice %10 {offsets = [0, 24], sizes = [5, 8], strides = [1, 1]} : vector<5x32xf32> to vector<5x8xf32>
    %83 = vector.extract_strided_slice %11 {offsets = [0, 24], sizes = [5, 8], strides = [1, 1]} : vector<5x32xf32> to vector<5x8xf32>
    %84 = vector.extract_strided_slice %12 {offsets = [0, 24], sizes = [5, 8], strides = [1, 1]} : vector<5x32xf32> to vector<5x8xf32>
    %cst_32 = arith.constant dense<0.000000e+00> : vector<5x5xf32>
    %85 = tpu.matmul %82, %83, %cst_32 {dimension_numbers = #tpu.dot_dimension_numbers<[1], [1], [0], [0], [0, 0, 1, 0], [], []>} : vector<5x8xf32>, vector<5x8xf32>, vector<5x5xf32> -> vector<5x5xf32>
    %cst_33 = arith.constant 0.353553385 : f32
    %86 = vector.broadcast %cst_33 : f32 to vector<5x5xf32>
    %87 = arith.mulf %85, %86 : vector<5x5xf32>
    %88 = vector.broadcast %3 : vector<1x5xf32> to vector<5x5xf32>
    %89 = arith.addf %87, %88 : vector<5x5xf32>
    %cst_34 = arith.constant dense<0xFF800000> : vector<5xf32>
    %90 = vector.multi_reduction <maximumf>, %89, %cst_34 [1] : vector<5x5xf32> to vector<5xf32>
    %91 = vector.shape_cast %90 : vector<5xf32> to vector<5x1xf32>
    %92 = vector.broadcast %91 : vector<5x1xf32> to vector<5x5xf32>
    %93 = arith.subf %89, %92 : vector<5x5xf32>
    %94 = math.exp %93 : vector<5x5xf32>
    %cst_35 = arith.constant dense<0.000000e+00> : vector<5xf32>
    %95 = vector.multi_reduction <add>, %94, %cst_35 [1] : vector<5x5xf32> to vector<5xf32>
    %96 = vector.shape_cast %95 : vector<5xf32> to vector<5x1xf32>
    %97 = tpu.reciprocal %96 {approx = true} : vector<5x1xf32> -> vector<5x1xf32>
    %98 = vector.broadcast %97 : vector<5x1xf32> to vector<5x5xf32>
    %99 = arith.mulf %94, %98 : vector<5x5xf32>
    %cst_36 = arith.constant dense<0.000000e+00> : vector<5x8xf32>
    %100 = tpu.matmul %99, %84, %cst_36 {dimension_numbers = #tpu.dot_dimension_numbers<[1], [0], [0], [1], [0, 0, 1, 1], [], []>} : vector<5x5xf32>, vector<5x8xf32>, vector<5x8xf32> -> vector<5x8xf32>
    %101 = vector.extract_strided_slice %13 {offsets = [24, 0], sizes = [8, 32], strides = [1, 1]} : vector<32x32xf32> to vector<8x32xf32>
    %cst_37 = arith.constant dense<0.000000e+00> : vector<5x32xf32>
    %102 = tpu.matmul %100, %101, %cst_37 {dimension_numbers = #tpu.dot_dimension_numbers<[1], [0], [0], [1], [0, 0, 1, 1], [], []>} : vector<5x8xf32>, vector<8x32xf32>, vector<5x32xf32> -> vector<5x32xf32>
    %103 = arith.addf %81, %102 : vector<5x32xf32>
    %104 = vector.broadcast %14 : vector<1x32xf32> to vector<5x32xf32>
    %105 = arith.addf %103, %104 : vector<5x32xf32>
    %106 = arith.addf %1, %105 : vector<5x32xf32>
    %c0_38 = arith.constant 0 : index
    %c0_39 = arith.constant 0 : index
    %107 = vector.load %arg7[%c0_38, %c0_39] : memref<1x32xf32, #tpu.memory_space<vmem>>, vector<1x32xf32>
    %c0_40 = arith.constant 0 : index
    %c0_41 = arith.constant 0 : index
    %108 = vector.load %arg8[%c0_40, %c0_41] : memref<1x32xf32, #tpu.memory_space<vmem>>, vector<1x32xf32>
    %cst_42 = arith.constant dense<0.000000e+00> : vector<5xf32>
    %109 = vector.multi_reduction <add>, %106, %cst_42 [1] : vector<5x32xf32> to vector<5xf32>
    %110 = vector.shape_cast %109 : vector<5xf32> to vector<5x1xf32>
    %cst_43 = arith.constant 3.200000e+01 : f32
    %111 = vector.broadcast %cst_43 : f32 to vector<5x1xf32>
    %112 = arith.divf %110, %111 : vector<5x1xf32>
    %113 = vector.broadcast %112 : vector<5x1xf32> to vector<5x32xf32>
    %114 = arith.subf %106, %113 : vector<5x32xf32>
    %115 = arith.mulf %114, %114 : vector<5x32xf32>
    %cst_44 = arith.constant dense<0.000000e+00> : vector<5xf32>
    %116 = vector.multi_reduction <add>, %115, %cst_44 [1] : vector<5x32xf32> to vector<5xf32>
    %117 = vector.shape_cast %116 : vector<5xf32> to vector<5x1xf32>
    %cst_45 = arith.constant 3.200000e+01 : f32
    %118 = vector.broadcast %cst_45 : f32 to vector<5x1xf32>
    %119 = arith.divf %117, %118 : vector<5x1xf32>
    %120 = vector.broadcast %112 : vector<5x1xf32> to vector<5x32xf32>
    %121 = arith.subf %106, %120 : vector<5x32xf32>
    %cst_46 = arith.constant 9.99999974E-6 : f32
    %122 = vector.broadcast %cst_46 : f32 to vector<5x1xf32>
    %123 = arith.addf %119, %122 : vector<5x1xf32>
    %124 = math.rsqrt %123 : vector<5x1xf32>
    %125 = vector.broadcast %124 : vector<5x1xf32> to vector<5x32xf32>
    %126 = arith.mulf %121, %125 : vector<5x32xf32>
    %127 = vector.broadcast %107 : vector<1x32xf32> to vector<5x32xf32>
    %128 = arith.mulf %126, %127 : vector<5x32xf32>
    %129 = vector.broadcast %108 : vector<1x32xf32> to vector<5x32xf32>
    %130 = arith.addf %128, %129 : vector<5x32xf32>
    %c0_47 = arith.constant 0 : index
    %c0_48 = arith.constant 0 : index
    %131 = vector.load %arg9[%c0_47, %c0_48] : memref<32x128xbf16, #tpu.memory_space<vmem>>, vector<32x128xbf16>
    %c0_49 = arith.constant 0 : index
    %c0_50 = arith.constant 0 : index
    %132 = vector.load %arg10[%c0_49, %c0_50] : memref<1x128xf32, #tpu.memory_space<vmem>>, vector<1x128xf32>
    %c0_51 = arith.constant 0 : index
    %c0_52 = arith.constant 0 : index
    %133 = vector.load %arg11[%c0_51, %c0_52] : memref<128x32xbf16, #tpu.memory_space<vmem>>, vector<128x32xbf16>
    %c0_53 = arith.constant 0 : index
    %c0_54 = arith.constant 0 : index
    %134 = vector.load %arg12[%c0_53, %c0_54] : memref<1x32xf32, #tpu.memory_space<vmem>>, vector<1x32xf32>
    %135 = arith.truncf %130 : vector<5x32xf32> to vector<5x32xbf16>
    %cst_55 = arith.constant dense<0.000000e+00> : vector<5x128xf32>
    %136 = tpu.matmul %135, %131, %cst_55 {dimension_numbers = #tpu.dot_dimension_numbers<[1], [0], [0], [1], [0, 0, 1, 1], [], []>} : vector<5x32xbf16>, vector<32x128xbf16>, vector<5x128xf32> -> vector<5x128xf32>
    %137 = vector.broadcast %132 : vector<1x128xf32> to vector<5x128xf32>
    %138 = arith.addf %136, %137 : vector<5x128xf32>
    %cst_56 = arith.constant 0.000000e+00 : f32
    %139 = vector.broadcast %cst_56 : f32 to vector<5x128xf32>
    %140 = arith.maximumf %138, %139 : vector<5x128xf32>
    %141 = arith.truncf %140 : vector<5x128xf32> to vector<5x128xbf16>
    %cst_57 = arith.constant dense<0.000000e+00> : vector<5x32xf32>
    %142 = tpu.matmul %141, %133, %cst_57 {dimension_numbers = #tpu.dot_dimension_numbers<[1], [0], [0], [1], [0, 0, 1, 1], [], []>} : vector<5x128xbf16>, vector<128x32xbf16>, vector<5x32xf32> -> vector<5x32xf32>
    %143 = vector.broadcast %134 : vector<1x32xf32> to vector<5x32xf32>
    %144 = arith.addf %142, %143 : vector<5x32xf32>
    %145 = arith.addf %130, %144 : vector<5x32xf32>
    %c0_58 = arith.constant 0 : index
    %c0_59 = arith.constant 0 : index
    %146 = vector.load %arg13[%c0_58, %c0_59] : memref<1x32xf32, #tpu.memory_space<vmem>>, vector<1x32xf32>
    %c0_60 = arith.constant 0 : index
    %c0_61 = arith.constant 0 : index
    %147 = vector.load %arg14[%c0_60, %c0_61] : memref<1x32xf32, #tpu.memory_space<vmem>>, vector<1x32xf32>
    %cst_62 = arith.constant dense<0.000000e+00> : vector<5xf32>
    %148 = vector.multi_reduction <add>, %145, %cst_62 [1] : vector<5x32xf32> to vector<5xf32>
    %149 = vector.shape_cast %148 : vector<5xf32> to vector<5x1xf32>
    %cst_63 = arith.constant 3.200000e+01 : f32
    %150 = vector.broadcast %cst_63 : f32 to vector<5x1xf32>
    %151 = arith.divf %149, %150 : vector<5x1xf32>
    %152 = vector.broadcast %151 : vector<5x1xf32> to vector<5x32xf32>
    %153 = arith.subf %145, %152 : vector<5x32xf32>
    %154 = arith.mulf %153, %153 : vector<5x32xf32>
    %cst_64 = arith.constant dense<0.000000e+00> : vector<5xf32>
    %155 = vector.multi_reduction <add>, %154, %cst_64 [1] : vector<5x32xf32> to vector<5xf32>
    %156 = vector.shape_cast %155 : vector<5xf32> to vector<5x1xf32>
    %cst_65 = arith.constant 3.200000e+01 : f32
    %157 = vector.broadcast %cst_65 : f32 to vector<5x1xf32>
    %158 = arith.divf %156, %157 : vector<5x1xf32>
    %159 = vector.broadcast %151 : vector<5x1xf32> to vector<5x32xf32>
    %160 = arith.subf %145, %159 : vector<5x32xf32>
    %cst_66 = arith.constant 9.99999974E-6 : f32
    %161 = vector.broadcast %cst_66 : f32 to vector<5x1xf32>
    %162 = arith.addf %158, %161 : vector<5x1xf32>
    %163 = math.rsqrt %162 : vector<5x1xf32>
    %164 = vector.broadcast %163 : vector<5x1xf32> to vector<5x32xf32>
    %165 = arith.mulf %160, %164 : vector<5x32xf32>
    %166 = vector.broadcast %146 : vector<1x32xf32> to vector<5x32xf32>
    %167 = arith.mulf %165, %166 : vector<5x32xf32>
    %168 = vector.broadcast %147 : vector<1x32xf32> to vector<5x32xf32>
    %169 = arith.addf %167, %168 : vector<5x32xf32>
    %c0_67 = arith.constant 0 : index
    %c0_68 = arith.constant 0 : index
    %170 = vector.load %arg15[%c0_67, %c0_68] : memref<1x32xf32, #tpu.memory_space<vmem>>, vector<1x32xf32>
    %c0_69 = arith.constant 0 : index
    %c0_70 = arith.constant 0 : index
    %171 = vector.load %arg16[%c0_69, %c0_70] : memref<1x32xf32, #tpu.memory_space<vmem>>, vector<1x32xf32>
    %cst_71 = arith.constant dense<0.000000e+00> : vector<5xf32>
    %172 = vector.multi_reduction <add>, %169, %cst_71 [1] : vector<5x32xf32> to vector<5xf32>
    %173 = vector.shape_cast %172 : vector<5xf32> to vector<5x1xf32>
    %cst_72 = arith.constant 3.200000e+01 : f32
    %174 = vector.broadcast %cst_72 : f32 to vector<5x1xf32>
    %175 = arith.divf %173, %174 : vector<5x1xf32>
    %176 = vector.broadcast %175 : vector<5x1xf32> to vector<5x32xf32>
    %177 = arith.subf %169, %176 : vector<5x32xf32>
    %178 = arith.mulf %177, %177 : vector<5x32xf32>
    %cst_73 = arith.constant dense<0.000000e+00> : vector<5xf32>
    %179 = vector.multi_reduction <add>, %178, %cst_73 [1] : vector<5x32xf32> to vector<5xf32>
    %180 = vector.shape_cast %179 : vector<5xf32> to vector<5x1xf32>
    %cst_74 = arith.constant 3.200000e+01 : f32
    %181 = vector.broadcast %cst_74 : f32 to vector<5x1xf32>
    %182 = arith.divf %180, %181 : vector<5x1xf32>
    %183 = vector.broadcast %175 : vector<5x1xf32> to vector<5x32xf32>
    %184 = arith.subf %169, %183 : vector<5x32xf32>
    %cst_75 = arith.constant 9.99999974E-6 : f32
    %185 = vector.broadcast %cst_75 : f32 to vector<5x1xf32>
    %186 = arith.addf %182, %185 : vector<5x1xf32>
    %187 = math.rsqrt %186 : vector<5x1xf32>
    %188 = vector.broadcast %187 : vector<5x1xf32> to vector<5x32xf32>
    %189 = arith.mulf %184, %188 : vector<5x32xf32>
    %190 = vector.broadcast %170 : vector<1x32xf32> to vector<5x32xf32>
    %191 = arith.mulf %189, %190 : vector<5x32xf32>
    %192 = vector.broadcast %171 : vector<1x32xf32> to vector<5x32xf32>
    %193 = arith.addf %191, %192 : vector<5x32xf32>
    %c0_76 = arith.constant 0 : index
    %c0_77 = arith.constant 0 : index
    %c0_78 = arith.constant 0 : index
    %194 = vector.load %arg17[%c0_76, %c0_77, %c0_78] : memref<1x5x32xf32, #tpu.memory_space<vmem>>, vector<1x5x32xf32>
    %195 = vector.shape_cast %194 : vector<1x5x32xf32> to vector<5x32xf32>
    %196 = vector.shape_cast %193 : vector<5x32xf32> to vector<1x5x32xf32>
    tpu.vector_store %arg17[%c0_76, %c0_77, %c0_78], %196 {strides = array<i32>} : memref<1x5x32xf32, #tpu.memory_space<vmem>>, vector<1x5x32xf32>,
    return
  }
  func.func @transform_0(%arg0: i32) -> (i32, i32, i32) {
    %c0_i32 = arith.constant 0 : i32
    %c0_i32_0 = arith.constant 0 : i32
    %c0_i32_1 = arith.constant 0 : i32
    return %arg0, %c0_i32, %c0_i32_0 : i32, i32, i32
  }
  func.func @transform_1(%arg0: i32) -> (i32, i32, i32) {
    %c0_i32 = arith.constant 0 : i32
    %c0_i32_0 = arith.constant 0 : i32
    %c0_i32_1 = arith.constant 0 : i32
    return %arg0, %c0_i32, %c0_i32_0 : i32, i32, i32
  }
  func.func @transform_2(%arg0: i32) -> (i32, i32) {
    %c0_i32 = arith.constant 0 : i32
    %c0_i32_0 = arith.constant 0 : i32
    %c0_i32_1 = arith.constant 0 : i32
    return %c0_i32, %c0_i32_0 : i32, i32
  }
  func.func @transform_3(%arg0: i32) -> (i32, i32) {
    %c0_i32 = arith.constant 0 : i32
    %c0_i32_0 = arith.constant 0 : i32
    %c0_i32_1 = arith.constant 0 : i32
    return %c0_i32, %c0_i32_0 : i32, i32
  }
  func.func @transform_4(%arg0: i32) -> (i32, i32) {
    %c0_i32 = arith.constant 0 : i32
    %c0_i32_0 = arith.constant 0 : i32
    %c0_i32_1 = arith.constant 0 : i32
    return %c0_i32, %c0_i32_0 : i32, i32
  }
  func.func @transform_5(%arg0: i32) -> (i32, i32) {
    %c0_i32 = arith.constant 0 : i32
    %c0_i32_0 = arith.constant 0 : i32
    %c0_i32_1 = arith.constant 0 : i32
    return %c0_i32, %c0_i32_0 : i32, i32
  }
  func.func @transform_6(%arg0: i32) -> (i32, i32) {
    %c0_i32 = arith.constant 0 : i32
    %c0_i32_0 = arith.constant 0 : i32
    %c0_i32_1 = arith.constant 0 : i32
    return %c0_i32, %c0_i32_0 : i32, i32
  }
  func.func @transform_7(%arg0: i32) -> (i32, i32) {
    %c0_i32 = arith.constant 0 : i32
    %c0_i32_0 = arith.constant 0 : i32
    %c0_i32_1 = arith.constant 0 : i32
    return %c0_i32, %c0_i32_0 : i32, i32
  }
  func.func @transform_8(%arg0: i32) -> (i32, i32) {
    %c0_i32 = arith.constant 0 : i32
    %c0_i32_0 = arith.constant 0 : i32
    %c0_i32_1 = arith.constant 0 : i32
    return %c0_i32, %c0_i32_0 : i32, i32
  }
  func.func @transform_9(%arg0: i32) -> (i32, i32) {
    %c0_i32 = arith.constant 0 : i32
    %c0_i32_0 = arith.constant 0 : i32
    %c0_i32_1 = arith.constant 0 : i32
    return %c0_i32, %c0_i32_0 : i32, i32
  }
  func.func @transform_10(%arg0: i32) -> (i32, i32) {
    %c0_i32 = arith.constant 0 : i32
    %c0_i32_0 = arith.constant 0 : i32
    %c0_i32_1 = arith.constant 0 : i32
    return %c0_i32, %c0_i32_0 : i32, i32
  }
  func.func @transform_11(%arg0: i32) -> (i32, i32) {
    %c0_i32 = arith.constant 0 : i32
    %c0_i32_0 = arith.constant 0 : i32
    %c0_i32_1 = arith.constant 0 : i32
    return %c0_i32, %c0_i32_0 : i32, i32
  }
  func.func @transform_12(%arg0: i32) -> (i32, i32) {
    %c0_i32 = arith.constant 0 : i32
    %c0_i32_0 = arith.constant 0 : i32
    %c0_i32_1 = arith.constant 0 : i32
    return %c0_i32, %c0_i32_0 : i32, i32
  }
  func.func @transform_13(%arg0: i32) -> (i32, i32) {
    %c0_i32 = arith.constant 0 : i32
    %c0_i32_0 = arith.constant 0 : i32
    %c0_i32_1 = arith.constant 0 : i32
    return %c0_i32, %c0_i32_0 : i32, i32
  }
  func.func @transform_14(%arg0: i32) -> (i32, i32) {
    %c0_i32 = arith.constant 0 : i32
    %c0_i32_0 = arith.constant 0 : i32
    %c0_i32_1 = arith.constant 0 : i32
    return %c0_i32, %c0_i32_0 : i32, i32
  }
  func.func @transform_15(%arg0: i32) -> (i32, i32) {
    %c0_i32 = arith.constant 0 : i32
    %c0_i32_0 = arith.constant 0 : i32
    %c0_i32_1 = arith.constant 0 : i32
    return %c0_i32, %c0_i32_0 : i32, i32
  }
  func.func @transform_16(%arg0: i32) -> (i32, i32, i32) {
    %c0_i32 = arith.constant 0 : i32
    %c0_i32_0 = arith.constant 0 : i32
    %c0_i32_1 = arith.constant 0 : i32
    return %arg0, %c0_i32, %c0_i32_0 : i32, i32, i32
  }
}

module attributes {stable_mosaic.version = 11 : i64} {
  func.func @_head_kernel(%arg0: memref<10x32xf32, #tpu.memory_space<vmem>>, %arg1: memref<1x32xf32, #tpu.memory_space<vmem>>, %arg2: memref<1x32xf32, #tpu.memory_space<vmem>>, %arg3: memref<32x128xbf16, #tpu.memory_space<vmem>>, %arg4: memref<1x128xf32, #tpu.memory_space<vmem>>, %arg5: memref<10x128xf32, #tpu.memory_space<vmem>>) attributes {dimension_semantics = [], scalar_prefetch = 0 : i64, scratch_operands = 0 : i64, tpu.core_type = #tpu.core_type<tc>} {
    %c0 = arith.constant 0 : index
    %c0_0 = arith.constant 0 : index
    %0 = vector.load %arg0[%c0, %c0_0] : memref<10x32xf32, #tpu.memory_space<vmem>>, vector<10x32xf32>
    %c0_1 = arith.constant 0 : index
    %c0_2 = arith.constant 0 : index
    %1 = vector.load %arg1[%c0_1, %c0_2] : memref<1x32xf32, #tpu.memory_space<vmem>>, vector<1x32xf32>
    %c0_3 = arith.constant 0 : index
    %c0_4 = arith.constant 0 : index
    %2 = vector.load %arg2[%c0_3, %c0_4] : memref<1x32xf32, #tpu.memory_space<vmem>>, vector<1x32xf32>
    %cst = arith.constant dense<0.000000e+00> : vector<10xf32>
    %3 = vector.multi_reduction <add>, %0, %cst [1] : vector<10x32xf32> to vector<10xf32>
    %4 = vector.shape_cast %3 : vector<10xf32> to vector<10x1xf32>
    %cst_5 = arith.constant 3.200000e+01 : f32
    %5 = vector.broadcast %cst_5 : f32 to vector<10x1xf32>
    %6 = arith.divf %4, %5 : vector<10x1xf32>
    %7 = vector.broadcast %6 : vector<10x1xf32> to vector<10x32xf32>
    %8 = arith.subf %0, %7 : vector<10x32xf32>
    %9 = arith.mulf %8, %8 : vector<10x32xf32>
    %cst_6 = arith.constant dense<0.000000e+00> : vector<10xf32>
    %10 = vector.multi_reduction <add>, %9, %cst_6 [1] : vector<10x32xf32> to vector<10xf32>
    %11 = vector.shape_cast %10 : vector<10xf32> to vector<10x1xf32>
    %cst_7 = arith.constant 3.200000e+01 : f32
    %12 = vector.broadcast %cst_7 : f32 to vector<10x1xf32>
    %13 = arith.divf %11, %12 : vector<10x1xf32>
    %14 = vector.broadcast %6 : vector<10x1xf32> to vector<10x32xf32>
    %15 = arith.subf %0, %14 : vector<10x32xf32>
    %cst_8 = arith.constant 9.99999974E-6 : f32
    %16 = vector.broadcast %cst_8 : f32 to vector<10x1xf32>
    %17 = arith.addf %13, %16 : vector<10x1xf32>
    %18 = math.rsqrt %17 : vector<10x1xf32>
    %19 = vector.broadcast %18 : vector<10x1xf32> to vector<10x32xf32>
    %20 = arith.mulf %15, %19 : vector<10x32xf32>
    %21 = vector.broadcast %1 : vector<1x32xf32> to vector<10x32xf32>
    %22 = arith.mulf %20, %21 : vector<10x32xf32>
    %23 = vector.broadcast %2 : vector<1x32xf32> to vector<10x32xf32>
    %24 = arith.addf %22, %23 : vector<10x32xf32>
    %c0_9 = arith.constant 0 : index
    %c0_10 = arith.constant 0 : index
    %25 = vector.load %arg3[%c0_9, %c0_10] : memref<32x128xbf16, #tpu.memory_space<vmem>>, vector<32x128xbf16>
    %c0_11 = arith.constant 0 : index
    %c0_12 = arith.constant 0 : index
    %26 = vector.load %arg4[%c0_11, %c0_12] : memref<1x128xf32, #tpu.memory_space<vmem>>, vector<1x128xf32>
    %27 = arith.truncf %24 : vector<10x32xf32> to vector<10x32xbf16>
    %cst_13 = arith.constant dense<0.000000e+00> : vector<10x128xf32>
    %28 = tpu.matmul %27, %25, %cst_13 {dimension_numbers = #tpu.dot_dimension_numbers<[1], [0], [0], [1], [0, 0, 1, 1], [], []>} : vector<10x32xbf16>, vector<32x128xbf16>, vector<10x128xf32> -> vector<10x128xf32>
    %29 = vector.broadcast %26 : vector<1x128xf32> to vector<10x128xf32>
    %30 = arith.addf %28, %29 : vector<10x128xf32>
    %cst_14 = arith.constant dense<0xFF800000> : vector<10xf32>
    %31 = vector.multi_reduction <maximumf>, %30, %cst_14 [1] : vector<10x128xf32> to vector<10xf32>
    %32 = vector.shape_cast %31 : vector<10xf32> to vector<10x1xf32>
    %33 = vector.broadcast %32 : vector<10x1xf32> to vector<10x128xf32>
    %34 = arith.subf %30, %33 : vector<10x128xf32>
    %35 = math.exp %34 : vector<10x128xf32>
    %cst_15 = arith.constant dense<0.000000e+00> : vector<10xf32>
    %36 = vector.multi_reduction <add>, %35, %cst_15 [1] : vector<10x128xf32> to vector<10xf32>
    %37 = vector.shape_cast %36 : vector<10xf32> to vector<10x1xf32>
    %38 = vector.broadcast %37 : vector<10x1xf32> to vector<10x128xf32>
    %39 = arith.divf %35, %38 : vector<10x128xf32>
    %c0_16 = arith.constant 0 : index
    %c0_17 = arith.constant 0 : index
    %40 = vector.load %arg5[%c0_16, %c0_17] : memref<10x128xf32, #tpu.memory_space<vmem>>, vector<10x128xf32>
    tpu.vector_store %arg5[%c0_16, %c0_17], %39 {strides = array<i32>} : memref<10x128xf32, #tpu.memory_space<vmem>>, vector<10x128xf32>,
    return
  }
}

module attributes {stable_mosaic.version = 11 : i64} {
  func.func @_dec_layer_kernel(%arg0: i32, %arg1: memref<1x5x32xf32, #tpu.memory_space<vmem>>, %arg2: memref<1x5x32xf32, #tpu.memory_space<vmem>>, %arg3: memref<1x1x5xf32, #tpu.memory_space<vmem>>, %arg4: memref<32x96xbf16, #tpu.memory_space<vmem>>, %arg5: memref<1x96xf32, #tpu.memory_space<vmem>>, %arg6: memref<32x32xf32, #tpu.memory_space<vmem>>, %arg7: memref<1x32xf32, #tpu.memory_space<vmem>>, %arg8: memref<1x32xf32, #tpu.memory_space<vmem>>, %arg9: memref<1x32xf32, #tpu.memory_space<vmem>>, %arg10: memref<32x32xbf16, #tpu.memory_space<vmem>>, %arg11: memref<1x32xf32, #tpu.memory_space<vmem>>, %arg12: memref<32x64xbf16, #tpu.memory_space<vmem>>, %arg13: memref<1x64xf32, #tpu.memory_space<vmem>>, %arg14: memref<32x32xf32, #tpu.memory_space<vmem>>, %arg15: memref<1x32xf32, #tpu.memory_space<vmem>>, %arg16: memref<1x32xf32, #tpu.memory_space<vmem>>, %arg17: memref<1x32xf32, #tpu.memory_space<vmem>>, %arg18: memref<32x128xbf16, #tpu.memory_space<vmem>>, %arg19: memref<1x128xf32, #tpu.memory_space<vmem>>, %arg20: memref<128x32xbf16, #tpu.memory_space<vmem>>, %arg21: memref<1x32xf32, #tpu.memory_space<vmem>>, %arg22: memref<1x32xf32, #tpu.memory_space<vmem>>, %arg23: memref<1x32xf32, #tpu.memory_space<vmem>>, %arg24: memref<1x5x32xf32, #tpu.memory_space<vmem>>) attributes {dimension_semantics = [#tpu.dimension_semantics<parallel>], iteration_bounds = array<i64: 2>, scalar_prefetch = 0 : i64, scratch_operands = 0 : i64, tpu.core_type = #tpu.core_type<tc>, window_params = [{transform_indices = @transform_0, window_bounds = array<i64: 1, 5, 32>}, {transform_indices = @transform_1, window_bounds = array<i64: 1, 5, 32>}, {transform_indices = @transform_2, window_bounds = array<i64: 1, 1, 5>}, {pipeline_mode = #tpu.pipeline_mode<synchronous>, transform_indices = @transform_3, window_bounds = array<i64: 32, 96>}, {pipeline_mode = #tpu.pipeline_mode<synchronous>, transform_indices = @transform_4, window_bounds = array<i64: 1, 96>}, {pipeline_mode = #tpu.pipeline_mode<synchronous>, transform_indices = @transform_5, window_bounds = array<i64: 32, 32>}, {pipeline_mode = #tpu.pipeline_mode<synchronous>, transform_indices = @transform_6, window_bounds = array<i64: 1, 32>}, {pipeline_mode = #tpu.pipeline_mode<synchronous>, transform_indices = @transform_7, window_bounds = array<i64: 1, 32>}, {pipeline_mode = #tpu.pipeline_mode<synchronous>, transform_indices = @transform_8, window_bounds = array<i64: 1, 32>}, {pipeline_mode = #tpu.pipeline_mode<synchronous>, transform_indices = @transform_9, window_bounds = array<i64: 32, 32>}, {pipeline_mode = #tpu.pipeline_mode<synchronous>, transform_indices = @transform_10, window_bounds = array<i64: 1, 32>}, {pipeline_mode = #tpu.pipeline_mode<synchronous>, transform_indices = @transform_11, window_bounds = array<i64: 32, 64>}, {pipeline_mode = #tpu.pipeline_mode<synchronous>, transform_indices = @transform_12, window_bounds = array<i64: 1, 64>}, {pipeline_mode = #tpu.pipeline_mode<synchronous>, transform_indices = @transform_13, window_bounds = array<i64: 32, 32>}, {pipeline_mode = #tpu.pipeline_mode<synchronous>, transform_indices = @transform_14, window_bounds = array<i64: 1, 32>}, {pipeline_mode = #tpu.pipeline_mode<synchronous>, transform_indices = @transform_15, window_bounds = array<i64: 1, 32>}, {pipeline_mode = #tpu.pipeline_mode<synchronous>, transform_indices = @transform_16, window_bounds = array<i64: 1, 32>}, {pipeline_mode = #tpu.pipeline_mode<synchronous>, transform_indices = @transform_17, window_bounds = array<i64: 32, 128>}, {pipeline_mode = #tpu.pipeline_mode<synchronous>, transform_indices = @transform_18, window_bounds = array<i64: 1, 128>}, {pipeline_mode = #tpu.pipeline_mode<synchronous>, transform_indices = @transform_19, window_bounds = array<i64: 128, 32>}, {pipeline_mode = #tpu.pipeline_mode<synchronous>, transform_indices = @transform_20, window_bounds = array<i64: 1, 32>}, {pipeline_mode = #tpu.pipeline_mode<synchronous>, transform_indices = @transform_21, window_bounds = array<i64: 1, 32>}, {pipeline_mode = #tpu.pipeline_mode<synchronous>, transform_indices = @transform_22, window_bounds = array<i64: 1, 32>}, {transform_indices = @transform_23, window_bounds = array<i64: 1, 5, 32>}]} {
    %c0 = arith.constant 0 : index
    %c0_0 = arith.constant 0 : index
    %c0_1 = arith.constant 0 : index
    %0 = vector.load %arg1[%c0, %c0_0, %c0_1] : memref<1x5x32xf32, #tpu.memory_space<vmem>>, vector<1x5x32xf32>
    %1 = vector.shape_cast %0 : vector<1x5x32xf32> to vector<5x32xf32>
    %c0_2 = arith.constant 0 : index
    %c0_3 = arith.constant 0 : index
    %c0_4 = arith.constant 0 : index
    %2 = vector.load %arg2[%c0_2, %c0_3, %c0_4] : memref<1x5x32xf32, #tpu.memory_space<vmem>>, vector<1x5x32xf32>
    %3 = vector.shape_cast %2 : vector<1x5x32xf32> to vector<5x32xf32>
    %c0_5 = arith.constant 0 : index
    %c0_6 = arith.constant 0 : index
    %c0_7 = arith.constant 0 : index
    %4 = vector.load %arg3[%c0_5, %c0_6, %c0_7] : memref<1x1x5xf32, #tpu.memory_space<vmem>>, vector<1x1x5xf32>
    %5 = vector.shape_cast %4 : vector<1x1x5xf32> to vector<1x5xf32>
    %c0_8 = arith.constant 0 : index
    %c0_9 = arith.constant 0 : index
    %6 = vector.load %arg4[%c0_8, %c0_9] : memref<32x96xbf16, #tpu.memory_space<vmem>>, vector<32x96xbf16>
    %c0_10 = arith.constant 0 : index
    %c0_11 = arith.constant 0 : index
    %7 = vector.load %arg5[%c0_10, %c0_11] : memref<1x96xf32, #tpu.memory_space<vmem>>, vector<1x96xf32>
    %8 = arith.truncf %1 : vector<5x32xf32> to vector<5x32xbf16>
    %cst = arith.constant dense<0.000000e+00> : vector<5x96xf32>
    %9 = tpu.matmul %8, %6, %cst {dimension_numbers = #tpu.dot_dimension_numbers<[1], [0], [0], [1], [0, 0, 1, 1], [], []>} : vector<5x32xbf16>, vector<32x96xbf16>, vector<5x96xf32> -> vector<5x96xf32>
    %10 = vector.broadcast %7 : vector<1x96xf32> to vector<5x96xf32>
    %11 = arith.addf %9, %10 : vector<5x96xf32>
    %12 = vector.extract_strided_slice %11 {offsets = [0, 0], sizes = [5, 32], strides = [1, 1]} : vector<5x96xf32> to vector<5x32xf32>
    %13 = vector.extract_strided_slice %11 {offsets = [0, 32], sizes = [5, 32], strides = [1, 1]} : vector<5x96xf32> to vector<5x32xf32>
    %14 = vector.extract_strided_slice %11 {offsets = [0, 64], sizes = [5, 32], strides = [1, 1]} : vector<5x96xf32> to vector<5x32xf32>
    %c0_12 = arith.constant 0 : index
    %c0_13 = arith.constant 0 : index
    %15 = vector.load %arg6[%c0_12, %c0_13] : memref<32x32xf32, #tpu.memory_space<vmem>>, vector<32x32xf32>
    %c0_14 = arith.constant 0 : index
    %c0_15 = arith.constant 0 : index
    %16 = vector.load %arg7[%c0_14, %c0_15] : memref<1x32xf32, #tpu.memory_space<vmem>>, vector<1x32xf32>
    %cst_16 = arith.constant 0.000000e+00 : f32
    %17 = vector.broadcast %cst_16 : f32 to vector<5x32xf32>
    %18 = vector.extract_strided_slice %12 {offsets = [0, 0], sizes = [5, 8], strides = [1, 1]} : vector<5x32xf32> to vector<5x8xf32>
    %19 = vector.extract_strided_slice %13 {offsets = [0, 0], sizes = [5, 8], strides = [1, 1]} : vector<5x32xf32> to vector<5x8xf32>
    %20 = vector.extract_strided_slice %14 {offsets = [0, 0], sizes = [5, 8], strides = [1, 1]} : vector<5x32xf32> to vector<5x8xf32>
    %cst_17 = arith.constant dense<0.000000e+00> : vector<5x5xf32>
    %21 = tpu.matmul %18, %19, %cst_17 {dimension_numbers = #tpu.dot_dimension_numbers<[1], [1], [0], [0], [0, 0, 1, 0], [], []>} : vector<5x8xf32>, vector<5x8xf32>, vector<5x5xf32> -> vector<5x5xf32>
    %cst_18 = arith.constant 0.353553385 : f32
    %22 = vector.broadcast %cst_18 : f32 to vector<5x5xf32>
    %23 = arith.mulf %21, %22 : vector<5x5xf32>
    %cst_19 = arith.constant dense<0xFF800000> : vector<5xf32>
    %24 = vector.multi_reduction <maximumf>, %23, %cst_19 [1] : vector<5x5xf32> to vector<5xf32>
    %25 = vector.shape_cast %24 : vector<5xf32> to vector<5x1xf32>
    %26 = vector.broadcast %25 : vector<5x1xf32> to vector<5x5xf32>
    %27 = arith.subf %23, %26 : vector<5x5xf32>
    %28 = math.exp %27 : vector<5x5xf32>
    %cst_20 = arith.constant dense<0.000000e+00> : vector<5xf32>
    %29 = vector.multi_reduction <add>, %28, %cst_20 [1] : vector<5x5xf32> to vector<5xf32>
    %30 = vector.shape_cast %29 : vector<5xf32> to vector<5x1xf32>
    %31 = tpu.reciprocal %30 {approx = true} : vector<5x1xf32> -> vector<5x1xf32>
    %32 = vector.broadcast %31 : vector<5x1xf32> to vector<5x5xf32>
    %33 = arith.mulf %28, %32 : vector<5x5xf32>
    %cst_21 = arith.constant dense<0.000000e+00> : vector<5x8xf32>
    %34 = tpu.matmul %33, %20, %cst_21 {dimension_numbers = #tpu.dot_dimension_numbers<[1], [0], [0], [1], [0, 0, 1, 1], [], []>} : vector<5x5xf32>, vector<5x8xf32>, vector<5x8xf32> -> vector<5x8xf32>
    %35 = vector.extract_strided_slice %15 {offsets = [0, 0], sizes = [8, 32], strides = [1, 1]} : vector<32x32xf32> to vector<8x32xf32>
    %cst_22 = arith.constant dense<0.000000e+00> : vector<5x32xf32>
    %36 = tpu.matmul %34, %35, %cst_22 {dimension_numbers = #tpu.dot_dimension_numbers<[1], [0], [0], [1], [0, 0, 1, 1], [], []>} : vector<5x8xf32>, vector<8x32xf32>, vector<5x32xf32> -> vector<5x32xf32>
    %37 = arith.addf %17, %36 : vector<5x32xf32>
    %38 = vector.extract_strided_slice %12 {offsets = [0, 8], sizes = [5, 8], strides = [1, 1]} : vector<5x32xf32> to vector<5x8xf32>
    %39 = vector.extract_strided_slice %13 {offsets = [0, 8], sizes = [5, 8], strides = [1, 1]} : vector<5x32xf32> to vector<5x8xf32>
    %40 = vector.extract_strided_slice %14 {offsets = [0, 8], sizes = [5, 8], strides = [1, 1]} : vector<5x32xf32> to vector<5x8xf32>
    %cst_23 = arith.constant dense<0.000000e+00> : vector<5x5xf32>
    %41 = tpu.matmul %38, %39, %cst_23 {dimension_numbers = #tpu.dot_dimension_numbers<[1], [1], [0], [0], [0, 0, 1, 0], [], []>} : vector<5x8xf32>, vector<5x8xf32>, vector<5x5xf32> -> vector<5x5xf32>
    %cst_24 = arith.constant 0.353553385 : f32
    %42 = vector.broadcast %cst_24 : f32 to vector<5x5xf32>
    %43 = arith.mulf %41, %42 : vector<5x5xf32>
    %cst_25 = arith.constant dense<0xFF800000> : vector<5xf32>
    %44 = vector.multi_reduction <maximumf>, %43, %cst_25 [1] : vector<5x5xf32> to vector<5xf32>
    %45 = vector.shape_cast %44 : vector<5xf32> to vector<5x1xf32>
    %46 = vector.broadcast %45 : vector<5x1xf32> to vector<5x5xf32>
    %47 = arith.subf %43, %46 : vector<5x5xf32>
    %48 = math.exp %47 : vector<5x5xf32>
    %cst_26 = arith.constant dense<0.000000e+00> : vector<5xf32>
    %49 = vector.multi_reduction <add>, %48, %cst_26 [1] : vector<5x5xf32> to vector<5xf32>
    %50 = vector.shape_cast %49 : vector<5xf32> to vector<5x1xf32>
    %51 = tpu.reciprocal %50 {approx = true} : vector<5x1xf32> -> vector<5x1xf32>
    %52 = vector.broadcast %51 : vector<5x1xf32> to vector<5x5xf32>
    %53 = arith.mulf %48, %52 : vector<5x5xf32>
    %cst_27 = arith.constant dense<0.000000e+00> : vector<5x8xf32>
    %54 = tpu.matmul %53, %40, %cst_27 {dimension_numbers = #tpu.dot_dimension_numbers<[1], [0], [0], [1], [0, 0, 1, 1], [], []>} : vector<5x5xf32>, vector<5x8xf32>, vector<5x8xf32> -> vector<5x8xf32>
    %55 = vector.extract_strided_slice %15 {offsets = [8, 0], sizes = [8, 32], strides = [1, 1]} : vector<32x32xf32> to vector<8x32xf32>
    %cst_28 = arith.constant dense<0.000000e+00> : vector<5x32xf32>
    %56 = tpu.matmul %54, %55, %cst_28 {dimension_numbers = #tpu.dot_dimension_numbers<[1], [0], [0], [1], [0, 0, 1, 1], [], []>} : vector<5x8xf32>, vector<8x32xf32>, vector<5x32xf32> -> vector<5x32xf32>
    %57 = arith.addf %37, %56 : vector<5x32xf32>
    %58 = vector.extract_strided_slice %12 {offsets = [0, 16], sizes = [5, 8], strides = [1, 1]} : vector<5x32xf32> to vector<5x8xf32>
    %59 = vector.extract_strided_slice %13 {offsets = [0, 16], sizes = [5, 8], strides = [1, 1]} : vector<5x32xf32> to vector<5x8xf32>
    %60 = vector.extract_strided_slice %14 {offsets = [0, 16], sizes = [5, 8], strides = [1, 1]} : vector<5x32xf32> to vector<5x8xf32>
    %cst_29 = arith.constant dense<0.000000e+00> : vector<5x5xf32>
    %61 = tpu.matmul %58, %59, %cst_29 {dimension_numbers = #tpu.dot_dimension_numbers<[1], [1], [0], [0], [0, 0, 1, 0], [], []>} : vector<5x8xf32>, vector<5x8xf32>, vector<5x5xf32> -> vector<5x5xf32>
    %cst_30 = arith.constant 0.353553385 : f32
    %62 = vector.broadcast %cst_30 : f32 to vector<5x5xf32>
    %63 = arith.mulf %61, %62 : vector<5x5xf32>
    %cst_31 = arith.constant dense<0xFF800000> : vector<5xf32>
    %64 = vector.multi_reduction <maximumf>, %63, %cst_31 [1] : vector<5x5xf32> to vector<5xf32>
    %65 = vector.shape_cast %64 : vector<5xf32> to vector<5x1xf32>
    %66 = vector.broadcast %65 : vector<5x1xf32> to vector<5x5xf32>
    %67 = arith.subf %63, %66 : vector<5x5xf32>
    %68 = math.exp %67 : vector<5x5xf32>
    %cst_32 = arith.constant dense<0.000000e+00> : vector<5xf32>
    %69 = vector.multi_reduction <add>, %68, %cst_32 [1] : vector<5x5xf32> to vector<5xf32>
    %70 = vector.shape_cast %69 : vector<5xf32> to vector<5x1xf32>
    %71 = tpu.reciprocal %70 {approx = true} : vector<5x1xf32> -> vector<5x1xf32>
    %72 = vector.broadcast %71 : vector<5x1xf32> to vector<5x5xf32>
    %73 = arith.mulf %68, %72 : vector<5x5xf32>
    %cst_33 = arith.constant dense<0.000000e+00> : vector<5x8xf32>
    %74 = tpu.matmul %73, %60, %cst_33 {dimension_numbers = #tpu.dot_dimension_numbers<[1], [0], [0], [1], [0, 0, 1, 1], [], []>} : vector<5x5xf32>, vector<5x8xf32>, vector<5x8xf32> -> vector<5x8xf32>
    %75 = vector.extract_strided_slice %15 {offsets = [16, 0], sizes = [8, 32], strides = [1, 1]} : vector<32x32xf32> to vector<8x32xf32>
    %cst_34 = arith.constant dense<0.000000e+00> : vector<5x32xf32>
    %76 = tpu.matmul %74, %75, %cst_34 {dimension_numbers = #tpu.dot_dimension_numbers<[1], [0], [0], [1], [0, 0, 1, 1], [], []>} : vector<5x8xf32>, vector<8x32xf32>, vector<5x32xf32> -> vector<5x32xf32>
    %77 = arith.addf %57, %76 : vector<5x32xf32>
    %78 = vector.extract_strided_slice %12 {offsets = [0, 24], sizes = [5, 8], strides = [1, 1]} : vector<5x32xf32> to vector<5x8xf32>
    %79 = vector.extract_strided_slice %13 {offsets = [0, 24], sizes = [5, 8], strides = [1, 1]} : vector<5x32xf32> to vector<5x8xf32>
    %80 = vector.extract_strided_slice %14 {offsets = [0, 24], sizes = [5, 8], strides = [1, 1]} : vector<5x32xf32> to vector<5x8xf32>
    %cst_35 = arith.constant dense<0.000000e+00> : vector<5x5xf32>
    %81 = tpu.matmul %78, %79, %cst_35 {dimension_numbers = #tpu.dot_dimension_numbers<[1], [1], [0], [0], [0, 0, 1, 0], [], []>} : vector<5x8xf32>, vector<5x8xf32>, vector<5x5xf32> -> vector<5x5xf32>
    %cst_36 = arith.constant 0.353553385 : f32
    %82 = vector.broadcast %cst_36 : f32 to vector<5x5xf32>
    %83 = arith.mulf %81, %82 : vector<5x5xf32>
    %cst_37 = arith.constant dense<0xFF800000> : vector<5xf32>
    %84 = vector.multi_reduction <maximumf>, %83, %cst_37 [1] : vector<5x5xf32> to vector<5xf32>
    %85 = vector.shape_cast %84 : vector<5xf32> to vector<5x1xf32>
    %86 = vector.broadcast %85 : vector<5x1xf32> to vector<5x5xf32>
    %87 = arith.subf %83, %86 : vector<5x5xf32>
    %88 = math.exp %87 : vector<5x5xf32>
    %cst_38 = arith.constant dense<0.000000e+00> : vector<5xf32>
    %89 = vector.multi_reduction <add>, %88, %cst_38 [1] : vector<5x5xf32> to vector<5xf32>
    %90 = vector.shape_cast %89 : vector<5xf32> to vector<5x1xf32>
    %91 = tpu.reciprocal %90 {approx = true} : vector<5x1xf32> -> vector<5x1xf32>
    %92 = vector.broadcast %91 : vector<5x1xf32> to vector<5x5xf32>
    %93 = arith.mulf %88, %92 : vector<5x5xf32>
    %cst_39 = arith.constant dense<0.000000e+00> : vector<5x8xf32>
    %94 = tpu.matmul %93, %80, %cst_39 {dimension_numbers = #tpu.dot_dimension_numbers<[1], [0], [0], [1], [0, 0, 1, 1], [], []>} : vector<5x5xf32>, vector<5x8xf32>, vector<5x8xf32> -> vector<5x8xf32>
    %95 = vector.extract_strided_slice %15 {offsets = [24, 0], sizes = [8, 32], strides = [1, 1]} : vector<32x32xf32> to vector<8x32xf32>
    %cst_40 = arith.constant dense<0.000000e+00> : vector<5x32xf32>
    %96 = tpu.matmul %94, %95, %cst_40 {dimension_numbers = #tpu.dot_dimension_numbers<[1], [0], [0], [1], [0, 0, 1, 1], [], []>} : vector<5x8xf32>, vector<8x32xf32>, vector<5x32xf32> -> vector<5x32xf32>
    %97 = arith.addf %77, %96 : vector<5x32xf32>
    %98 = vector.broadcast %16 : vector<1x32xf32> to vector<5x32xf32>
    %99 = arith.addf %97, %98 : vector<5x32xf32>
    %100 = arith.addf %1, %99 : vector<5x32xf32>
    %c0_41 = arith.constant 0 : index
    %c0_42 = arith.constant 0 : index
    %101 = vector.load %arg8[%c0_41, %c0_42] : memref<1x32xf32, #tpu.memory_space<vmem>>, vector<1x32xf32>
    %c0_43 = arith.constant 0 : index
    %c0_44 = arith.constant 0 : index
    %102 = vector.load %arg9[%c0_43, %c0_44] : memref<1x32xf32, #tpu.memory_space<vmem>>, vector<1x32xf32>
    %cst_45 = arith.constant dense<0.000000e+00> : vector<5xf32>
    %103 = vector.multi_reduction <add>, %100, %cst_45 [1] : vector<5x32xf32> to vector<5xf32>
    %104 = vector.shape_cast %103 : vector<5xf32> to vector<5x1xf32>
    %cst_46 = arith.constant 3.200000e+01 : f32
    %105 = vector.broadcast %cst_46 : f32 to vector<5x1xf32>
    %106 = arith.divf %104, %105 : vector<5x1xf32>
    %107 = vector.broadcast %106 : vector<5x1xf32> to vector<5x32xf32>
    %108 = arith.subf %100, %107 : vector<5x32xf32>
    %109 = arith.mulf %108, %108 : vector<5x32xf32>
    %cst_47 = arith.constant dense<0.000000e+00> : vector<5xf32>
    %110 = vector.multi_reduction <add>, %109, %cst_47 [1] : vector<5x32xf32> to vector<5xf32>
    %111 = vector.shape_cast %110 : vector<5xf32> to vector<5x1xf32>
    %cst_48 = arith.constant 3.200000e+01 : f32
    %112 = vector.broadcast %cst_48 : f32 to vector<5x1xf32>
    %113 = arith.divf %111, %112 : vector<5x1xf32>
    %114 = vector.broadcast %106 : vector<5x1xf32> to vector<5x32xf32>
    %115 = arith.subf %100, %114 : vector<5x32xf32>
    %cst_49 = arith.constant 9.99999974E-6 : f32
    %116 = vector.broadcast %cst_49 : f32 to vector<5x1xf32>
    %117 = arith.addf %113, %116 : vector<5x1xf32>
    %118 = math.rsqrt %117 : vector<5x1xf32>
    %119 = vector.broadcast %118 : vector<5x1xf32> to vector<5x32xf32>
    %120 = arith.mulf %115, %119 : vector<5x32xf32>
    %121 = vector.broadcast %101 : vector<1x32xf32> to vector<5x32xf32>
    %122 = arith.mulf %120, %121 : vector<5x32xf32>
    %123 = vector.broadcast %102 : vector<1x32xf32> to vector<5x32xf32>
    %124 = arith.addf %122, %123 : vector<5x32xf32>
    %c0_50 = arith.constant 0 : index
    %c0_51 = arith.constant 0 : index
    %125 = vector.load %arg10[%c0_50, %c0_51] : memref<32x32xbf16, #tpu.memory_space<vmem>>, vector<32x32xbf16>
    %c0_52 = arith.constant 0 : index
    %c0_53 = arith.constant 0 : index
    %126 = vector.load %arg11[%c0_52, %c0_53] : memref<1x32xf32, #tpu.memory_space<vmem>>, vector<1x32xf32>
    %127 = arith.truncf %124 : vector<5x32xf32> to vector<5x32xbf16>
    %cst_54 = arith.constant dense<0.000000e+00> : vector<5x32xf32>
    %128 = tpu.matmul %127, %125, %cst_54 {dimension_numbers = #tpu.dot_dimension_numbers<[1], [0], [0], [1], [0, 0, 1, 1], [], []>} : vector<5x32xbf16>, vector<32x32xbf16>, vector<5x32xf32> -> vector<5x32xf32>
    %129 = vector.broadcast %126 : vector<1x32xf32> to vector<5x32xf32>
    %130 = arith.addf %128, %129 : vector<5x32xf32>
    %c0_55 = arith.constant 0 : index
    %c0_56 = arith.constant 0 : index
    %131 = vector.load %arg12[%c0_55, %c0_56] : memref<32x64xbf16, #tpu.memory_space<vmem>>, vector<32x64xbf16>
    %c0_57 = arith.constant 0 : index
    %c0_58 = arith.constant 0 : index
    %132 = vector.load %arg13[%c0_57, %c0_58] : memref<1x64xf32, #tpu.memory_space<vmem>>, vector<1x64xf32>
    %133 = arith.truncf %3 : vector<5x32xf32> to vector<5x32xbf16>
    %cst_59 = arith.constant dense<0.000000e+00> : vector<5x64xf32>
    %134 = tpu.matmul %133, %131, %cst_59 {dimension_numbers = #tpu.dot_dimension_numbers<[1], [0], [0], [1], [0, 0, 1, 1], [], []>} : vector<5x32xbf16>, vector<32x64xbf16>, vector<5x64xf32> -> vector<5x64xf32>
    %135 = vector.broadcast %132 : vector<1x64xf32> to vector<5x64xf32>
    %136 = arith.addf %134, %135 : vector<5x64xf32>
    %137 = vector.extract_strided_slice %136 {offsets = [0, 0], sizes = [5, 32], strides = [1, 1]} : vector<5x64xf32> to vector<5x32xf32>
    %138 = vector.extract_strided_slice %136 {offsets = [0, 32], sizes = [5, 32], strides = [1, 1]} : vector<5x64xf32> to vector<5x32xf32>
    %c0_60 = arith.constant 0 : index
    %c0_61 = arith.constant 0 : index
    %139 = vector.load %arg14[%c0_60, %c0_61] : memref<32x32xf32, #tpu.memory_space<vmem>>, vector<32x32xf32>
    %c0_62 = arith.constant 0 : index
    %c0_63 = arith.constant 0 : index
    %140 = vector.load %arg15[%c0_62, %c0_63] : memref<1x32xf32, #tpu.memory_space<vmem>>, vector<1x32xf32>
    %cst_64 = arith.constant 0.000000e+00 : f32
    %141 = vector.broadcast %cst_64 : f32 to vector<5x32xf32>
    %142 = vector.extract_strided_slice %130 {offsets = [0, 0], sizes = [5, 8], strides = [1, 1]} : vector<5x32xf32> to vector<5x8xf32>
    %143 = vector.extract_strided_slice %137 {offsets = [0, 0], sizes = [5, 8], strides = [1, 1]} : vector<5x32xf32> to vector<5x8xf32>
    %144 = vector.extract_strided_slice %138 {offsets = [0, 0], sizes = [5, 8], strides = [1, 1]} : vector<5x32xf32> to vector<5x8xf32>
    %cst_65 = arith.constant dense<0.000000e+00> : vector<5x5xf32>
    %145 = tpu.matmul %142, %143, %cst_65 {dimension_numbers = #tpu.dot_dimension_numbers<[1], [1], [0], [0], [0, 0, 1, 0], [], []>} : vector<5x8xf32>, vector<5x8xf32>, vector<5x5xf32> -> vector<5x5xf32>
    %cst_66 = arith.constant 0.353553385 : f32
    %146 = vector.broadcast %cst_66 : f32 to vector<5x5xf32>
    %147 = arith.mulf %145, %146 : vector<5x5xf32>
    %148 = vector.broadcast %5 : vector<1x5xf32> to vector<5x5xf32>
    %149 = arith.addf %147, %148 : vector<5x5xf32>
    %cst_67 = arith.constant dense<0xFF800000> : vector<5xf32>
    %150 = vector.multi_reduction <maximumf>, %149, %cst_67 [1] : vector<5x5xf32> to vector<5xf32>
    %151 = vector.shape_cast %150 : vector<5xf32> to vector<5x1xf32>
    %152 = vector.broadcast %151 : vector<5x1xf32> to vector<5x5xf32>
    %153 = arith.subf %149, %152 : vector<5x5xf32>
    %154 = math.exp %153 : vector<5x5xf32>
    %cst_68 = arith.constant dense<0.000000e+00> : vector<5xf32>
    %155 = vector.multi_reduction <add>, %154, %cst_68 [1] : vector<5x5xf32> to vector<5xf32>
    %156 = vector.shape_cast %155 : vector<5xf32> to vector<5x1xf32>
    %157 = tpu.reciprocal %156 {approx = true} : vector<5x1xf32> -> vector<5x1xf32>
    %158 = vector.broadcast %157 : vector<5x1xf32> to vector<5x5xf32>
    %159 = arith.mulf %154, %158 : vector<5x5xf32>
    %cst_69 = arith.constant dense<0.000000e+00> : vector<5x8xf32>
    %160 = tpu.matmul %159, %144, %cst_69 {dimension_numbers = #tpu.dot_dimension_numbers<[1], [0], [0], [1], [0, 0, 1, 1], [], []>} : vector<5x5xf32>, vector<5x8xf32>, vector<5x8xf32> -> vector<5x8xf32>
    %161 = vector.extract_strided_slice %139 {offsets = [0, 0], sizes = [8, 32], strides = [1, 1]} : vector<32x32xf32> to vector<8x32xf32>
    %cst_70 = arith.constant dense<0.000000e+00> : vector<5x32xf32>
    %162 = tpu.matmul %160, %161, %cst_70 {dimension_numbers = #tpu.dot_dimension_numbers<[1], [0], [0], [1], [0, 0, 1, 1], [], []>} : vector<5x8xf32>, vector<8x32xf32>, vector<5x32xf32> -> vector<5x32xf32>
    %163 = arith.addf %141, %162 : vector<5x32xf32>
    %164 = vector.extract_strided_slice %130 {offsets = [0, 8], sizes = [5, 8], strides = [1, 1]} : vector<5x32xf32> to vector<5x8xf32>
    %165 = vector.extract_strided_slice %137 {offsets = [0, 8], sizes = [5, 8], strides = [1, 1]} : vector<5x32xf32> to vector<5x8xf32>
    %166 = vector.extract_strided_slice %138 {offsets = [0, 8], sizes = [5, 8], strides = [1, 1]} : vector<5x32xf32> to vector<5x8xf32>
    %cst_71 = arith.constant dense<0.000000e+00> : vector<5x5xf32>
    %167 = tpu.matmul %164, %165, %cst_71 {dimension_numbers = #tpu.dot_dimension_numbers<[1], [1], [0], [0], [0, 0, 1, 0], [], []>} : vector<5x8xf32>, vector<5x8xf32>, vector<5x5xf32> -> vector<5x5xf32>
    %cst_72 = arith.constant 0.353553385 : f32
    %168 = vector.broadcast %cst_72 : f32 to vector<5x5xf32>
    %169 = arith.mulf %167, %168 : vector<5x5xf32>
    %170 = vector.broadcast %5 : vector<1x5xf32> to vector<5x5xf32>
    %171 = arith.addf %169, %170 : vector<5x5xf32>
    %cst_73 = arith.constant dense<0xFF800000> : vector<5xf32>
    %172 = vector.multi_reduction <maximumf>, %171, %cst_73 [1] : vector<5x5xf32> to vector<5xf32>
    %173 = vector.shape_cast %172 : vector<5xf32> to vector<5x1xf32>
    %174 = vector.broadcast %173 : vector<5x1xf32> to vector<5x5xf32>
    %175 = arith.subf %171, %174 : vector<5x5xf32>
    %176 = math.exp %175 : vector<5x5xf32>
    %cst_74 = arith.constant dense<0.000000e+00> : vector<5xf32>
    %177 = vector.multi_reduction <add>, %176, %cst_74 [1] : vector<5x5xf32> to vector<5xf32>
    %178 = vector.shape_cast %177 : vector<5xf32> to vector<5x1xf32>
    %179 = tpu.reciprocal %178 {approx = true} : vector<5x1xf32> -> vector<5x1xf32>
    %180 = vector.broadcast %179 : vector<5x1xf32> to vector<5x5xf32>
    %181 = arith.mulf %176, %180 : vector<5x5xf32>
    %cst_75 = arith.constant dense<0.000000e+00> : vector<5x8xf32>
    %182 = tpu.matmul %181, %166, %cst_75 {dimension_numbers = #tpu.dot_dimension_numbers<[1], [0], [0], [1], [0, 0, 1, 1], [], []>} : vector<5x5xf32>, vector<5x8xf32>, vector<5x8xf32> -> vector<5x8xf32>
    %183 = vector.extract_strided_slice %139 {offsets = [8, 0], sizes = [8, 32], strides = [1, 1]} : vector<32x32xf32> to vector<8x32xf32>
    %cst_76 = arith.constant dense<0.000000e+00> : vector<5x32xf32>
    %184 = tpu.matmul %182, %183, %cst_76 {dimension_numbers = #tpu.dot_dimension_numbers<[1], [0], [0], [1], [0, 0, 1, 1], [], []>} : vector<5x8xf32>, vector<8x32xf32>, vector<5x32xf32> -> vector<5x32xf32>
    %185 = arith.addf %163, %184 : vector<5x32xf32>
    %186 = vector.extract_strided_slice %130 {offsets = [0, 16], sizes = [5, 8], strides = [1, 1]} : vector<5x32xf32> to vector<5x8xf32>
    %187 = vector.extract_strided_slice %137 {offsets = [0, 16], sizes = [5, 8], strides = [1, 1]} : vector<5x32xf32> to vector<5x8xf32>
    %188 = vector.extract_strided_slice %138 {offsets = [0, 16], sizes = [5, 8], strides = [1, 1]} : vector<5x32xf32> to vector<5x8xf32>
    %cst_77 = arith.constant dense<0.000000e+00> : vector<5x5xf32>
    %189 = tpu.matmul %186, %187, %cst_77 {dimension_numbers = #tpu.dot_dimension_numbers<[1], [1], [0], [0], [0, 0, 1, 0], [], []>} : vector<5x8xf32>, vector<5x8xf32>, vector<5x5xf32> -> vector<5x5xf32>
    %cst_78 = arith.constant 0.353553385 : f32
    %190 = vector.broadcast %cst_78 : f32 to vector<5x5xf32>
    %191 = arith.mulf %189, %190 : vector<5x5xf32>
    %192 = vector.broadcast %5 : vector<1x5xf32> to vector<5x5xf32>
    %193 = arith.addf %191, %192 : vector<5x5xf32>
    %cst_79 = arith.constant dense<0xFF800000> : vector<5xf32>
    %194 = vector.multi_reduction <maximumf>, %193, %cst_79 [1] : vector<5x5xf32> to vector<5xf32>
    %195 = vector.shape_cast %194 : vector<5xf32> to vector<5x1xf32>
    %196 = vector.broadcast %195 : vector<5x1xf32> to vector<5x5xf32>
    %197 = arith.subf %193, %196 : vector<5x5xf32>
    %198 = math.exp %197 : vector<5x5xf32>
    %cst_80 = arith.constant dense<0.000000e+00> : vector<5xf32>
    %199 = vector.multi_reduction <add>, %198, %cst_80 [1] : vector<5x5xf32> to vector<5xf32>
    %200 = vector.shape_cast %199 : vector<5xf32> to vector<5x1xf32>
    %201 = tpu.reciprocal %200 {approx = true} : vector<5x1xf32> -> vector<5x1xf32>
    %202 = vector.broadcast %201 : vector<5x1xf32> to vector<5x5xf32>
    %203 = arith.mulf %198, %202 : vector<5x5xf32>
    %cst_81 = arith.constant dense<0.000000e+00> : vector<5x8xf32>
    %204 = tpu.matmul %203, %188, %cst_81 {dimension_numbers = #tpu.dot_dimension_numbers<[1], [0], [0], [1], [0, 0, 1, 1], [], []>} : vector<5x5xf32>, vector<5x8xf32>, vector<5x8xf32> -> vector<5x8xf32>
    %205 = vector.extract_strided_slice %139 {offsets = [16, 0], sizes = [8, 32], strides = [1, 1]} : vector<32x32xf32> to vector<8x32xf32>
    %cst_82 = arith.constant dense<0.000000e+00> : vector<5x32xf32>
    %206 = tpu.matmul %204, %205, %cst_82 {dimension_numbers = #tpu.dot_dimension_numbers<[1], [0], [0], [1], [0, 0, 1, 1], [], []>} : vector<5x8xf32>, vector<8x32xf32>, vector<5x32xf32> -> vector<5x32xf32>
    %207 = arith.addf %185, %206 : vector<5x32xf32>
    %208 = vector.extract_strided_slice %130 {offsets = [0, 24], sizes = [5, 8], strides = [1, 1]} : vector<5x32xf32> to vector<5x8xf32>
    %209 = vector.extract_strided_slice %137 {offsets = [0, 24], sizes = [5, 8], strides = [1, 1]} : vector<5x32xf32> to vector<5x8xf32>
    %210 = vector.extract_strided_slice %138 {offsets = [0, 24], sizes = [5, 8], strides = [1, 1]} : vector<5x32xf32> to vector<5x8xf32>
    %cst_83 = arith.constant dense<0.000000e+00> : vector<5x5xf32>
    %211 = tpu.matmul %208, %209, %cst_83 {dimension_numbers = #tpu.dot_dimension_numbers<[1], [1], [0], [0], [0, 0, 1, 0], [], []>} : vector<5x8xf32>, vector<5x8xf32>, vector<5x5xf32> -> vector<5x5xf32>
    %cst_84 = arith.constant 0.353553385 : f32
    %212 = vector.broadcast %cst_84 : f32 to vector<5x5xf32>
    %213 = arith.mulf %211, %212 : vector<5x5xf32>
    %214 = vector.broadcast %5 : vector<1x5xf32> to vector<5x5xf32>
    %215 = arith.addf %213, %214 : vector<5x5xf32>
    %cst_85 = arith.constant dense<0xFF800000> : vector<5xf32>
    %216 = vector.multi_reduction <maximumf>, %215, %cst_85 [1] : vector<5x5xf32> to vector<5xf32>
    %217 = vector.shape_cast %216 : vector<5xf32> to vector<5x1xf32>
    %218 = vector.broadcast %217 : vector<5x1xf32> to vector<5x5xf32>
    %219 = arith.subf %215, %218 : vector<5x5xf32>
    %220 = math.exp %219 : vector<5x5xf32>
    %cst_86 = arith.constant dense<0.000000e+00> : vector<5xf32>
    %221 = vector.multi_reduction <add>, %220, %cst_86 [1] : vector<5x5xf32> to vector<5xf32>
    %222 = vector.shape_cast %221 : vector<5xf32> to vector<5x1xf32>
    %223 = tpu.reciprocal %222 {approx = true} : vector<5x1xf32> -> vector<5x1xf32>
    %224 = vector.broadcast %223 : vector<5x1xf32> to vector<5x5xf32>
    %225 = arith.mulf %220, %224 : vector<5x5xf32>
    %cst_87 = arith.constant dense<0.000000e+00> : vector<5x8xf32>
    %226 = tpu.matmul %225, %210, %cst_87 {dimension_numbers = #tpu.dot_dimension_numbers<[1], [0], [0], [1], [0, 0, 1, 1], [], []>} : vector<5x5xf32>, vector<5x8xf32>, vector<5x8xf32> -> vector<5x8xf32>
    %227 = vector.extract_strided_slice %139 {offsets = [24, 0], sizes = [8, 32], strides = [1, 1]} : vector<32x32xf32> to vector<8x32xf32>
    %cst_88 = arith.constant dense<0.000000e+00> : vector<5x32xf32>
    %228 = tpu.matmul %226, %227, %cst_88 {dimension_numbers = #tpu.dot_dimension_numbers<[1], [0], [0], [1], [0, 0, 1, 1], [], []>} : vector<5x8xf32>, vector<8x32xf32>, vector<5x32xf32> -> vector<5x32xf32>
    %229 = arith.addf %207, %228 : vector<5x32xf32>
    %230 = vector.broadcast %140 : vector<1x32xf32> to vector<5x32xf32>
    %231 = arith.addf %229, %230 : vector<5x32xf32>
    %232 = arith.addf %124, %231 : vector<5x32xf32>
    %c0_89 = arith.constant 0 : index
    %c0_90 = arith.constant 0 : index
    %233 = vector.load %arg16[%c0_89, %c0_90] : memref<1x32xf32, #tpu.memory_space<vmem>>, vector<1x32xf32>
    %c0_91 = arith.constant 0 : index
    %c0_92 = arith.constant 0 : index
    %234 = vector.load %arg17[%c0_91, %c0_92] : memref<1x32xf32, #tpu.memory_space<vmem>>, vector<1x32xf32>
    %cst_93 = arith.constant dense<0.000000e+00> : vector<5xf32>
    %235 = vector.multi_reduction <add>, %232, %cst_93 [1] : vector<5x32xf32> to vector<5xf32>
    %236 = vector.shape_cast %235 : vector<5xf32> to vector<5x1xf32>
    %cst_94 = arith.constant 3.200000e+01 : f32
    %237 = vector.broadcast %cst_94 : f32 to vector<5x1xf32>
    %238 = arith.divf %236, %237 : vector<5x1xf32>
    %239 = vector.broadcast %238 : vector<5x1xf32> to vector<5x32xf32>
    %240 = arith.subf %232, %239 : vector<5x32xf32>
    %241 = arith.mulf %240, %240 : vector<5x32xf32>
    %cst_95 = arith.constant dense<0.000000e+00> : vector<5xf32>
    %242 = vector.multi_reduction <add>, %241, %cst_95 [1] : vector<5x32xf32> to vector<5xf32>
    %243 = vector.shape_cast %242 : vector<5xf32> to vector<5x1xf32>
    %cst_96 = arith.constant 3.200000e+01 : f32
    %244 = vector.broadcast %cst_96 : f32 to vector<5x1xf32>
    %245 = arith.divf %243, %244 : vector<5x1xf32>
    %246 = vector.broadcast %238 : vector<5x1xf32> to vector<5x32xf32>
    %247 = arith.subf %232, %246 : vector<5x32xf32>
    %cst_97 = arith.constant 9.99999974E-6 : f32
    %248 = vector.broadcast %cst_97 : f32 to vector<5x1xf32>
    %249 = arith.addf %245, %248 : vector<5x1xf32>
    %250 = math.rsqrt %249 : vector<5x1xf32>
    %251 = vector.broadcast %250 : vector<5x1xf32> to vector<5x32xf32>
    %252 = arith.mulf %247, %251 : vector<5x32xf32>
    %253 = vector.broadcast %233 : vector<1x32xf32> to vector<5x32xf32>
    %254 = arith.mulf %252, %253 : vector<5x32xf32>
    %255 = vector.broadcast %234 : vector<1x32xf32> to vector<5x32xf32>
    %256 = arith.addf %254, %255 : vector<5x32xf32>
    %c0_98 = arith.constant 0 : index
    %c0_99 = arith.constant 0 : index
    %257 = vector.load %arg18[%c0_98, %c0_99] : memref<32x128xbf16, #tpu.memory_space<vmem>>, vector<32x128xbf16>
    %c0_100 = arith.constant 0 : index
    %c0_101 = arith.constant 0 : index
    %258 = vector.load %arg19[%c0_100, %c0_101] : memref<1x128xf32, #tpu.memory_space<vmem>>, vector<1x128xf32>
    %c0_102 = arith.constant 0 : index
    %c0_103 = arith.constant 0 : index
    %259 = vector.load %arg20[%c0_102, %c0_103] : memref<128x32xbf16, #tpu.memory_space<vmem>>, vector<128x32xbf16>
    %c0_104 = arith.constant 0 : index
    %c0_105 = arith.constant 0 : index
    %260 = vector.load %arg21[%c0_104, %c0_105] : memref<1x32xf32, #tpu.memory_space<vmem>>, vector<1x32xf32>
    %261 = arith.truncf %256 : vector<5x32xf32> to vector<5x32xbf16>
    %cst_106 = arith.constant dense<0.000000e+00> : vector<5x128xf32>
    %262 = tpu.matmul %261, %257, %cst_106 {dimension_numbers = #tpu.dot_dimension_numbers<[1], [0], [0], [1], [0, 0, 1, 1], [], []>} : vector<5x32xbf16>, vector<32x128xbf16>, vector<5x128xf32> -> vector<5x128xf32>
    %263 = vector.broadcast %258 : vector<1x128xf32> to vector<5x128xf32>
    %264 = arith.addf %262, %263 : vector<5x128xf32>
    %cst_107 = arith.constant 0.000000e+00 : f32
    %265 = vector.broadcast %cst_107 : f32 to vector<5x128xf32>
    %266 = arith.maximumf %264, %265 : vector<5x128xf32>
    %267 = arith.truncf %266 : vector<5x128xf32> to vector<5x128xbf16>
    %cst_108 = arith.constant dense<0.000000e+00> : vector<5x32xf32>
    %268 = tpu.matmul %267, %259, %cst_108 {dimension_numbers = #tpu.dot_dimension_numbers<[1], [0], [0], [1], [0, 0, 1, 1], [], []>} : vector<5x128xbf16>, vector<128x32xbf16>, vector<5x32xf32> -> vector<5x32xf32>
    %269 = vector.broadcast %260 : vector<1x32xf32> to vector<5x32xf32>
    %270 = arith.addf %268, %269 : vector<5x32xf32>
    %271 = arith.addf %256, %270 : vector<5x32xf32>
    %c0_109 = arith.constant 0 : index
    %c0_110 = arith.constant 0 : index
    %272 = vector.load %arg22[%c0_109, %c0_110] : memref<1x32xf32, #tpu.memory_space<vmem>>, vector<1x32xf32>
    %c0_111 = arith.constant 0 : index
    %c0_112 = arith.constant 0 : index
    %273 = vector.load %arg23[%c0_111, %c0_112] : memref<1x32xf32, #tpu.memory_space<vmem>>, vector<1x32xf32>
    %cst_113 = arith.constant dense<0.000000e+00> : vector<5xf32>
    %274 = vector.multi_reduction <add>, %271, %cst_113 [1] : vector<5x32xf32> to vector<5xf32>
    %275 = vector.shape_cast %274 : vector<5xf32> to vector<5x1xf32>
    %cst_114 = arith.constant 3.200000e+01 : f32
    %276 = vector.broadcast %cst_114 : f32 to vector<5x1xf32>
    %277 = arith.divf %275, %276 : vector<5x1xf32>
    %278 = vector.broadcast %277 : vector<5x1xf32> to vector<5x32xf32>
    %279 = arith.subf %271, %278 : vector<5x32xf32>
    %280 = arith.mulf %279, %279 : vector<5x32xf32>
    %cst_115 = arith.constant dense<0.000000e+00> : vector<5xf32>
    %281 = vector.multi_reduction <add>, %280, %cst_115 [1] : vector<5x32xf32> to vector<5xf32>
    %282 = vector.shape_cast %281 : vector<5xf32> to vector<5x1xf32>
    %cst_116 = arith.constant 3.200000e+01 : f32
    %283 = vector.broadcast %cst_116 : f32 to vector<5x1xf32>
    %284 = arith.divf %282, %283 : vector<5x1xf32>
    %285 = vector.broadcast %277 : vector<5x1xf32> to vector<5x32xf32>
    %286 = arith.subf %271, %285 : vector<5x32xf32>
    %cst_117 = arith.constant 9.99999974E-6 : f32
    %287 = vector.broadcast %cst_117 : f32 to vector<5x1xf32>
    %288 = arith.addf %284, %287 : vector<5x1xf32>
    %289 = math.rsqrt %288 : vector<5x1xf32>
    %290 = vector.broadcast %289 : vector<5x1xf32> to vector<5x32xf32>
    %291 = arith.mulf %286, %290 : vector<5x32xf32>
    %292 = vector.broadcast %272 : vector<1x32xf32> to vector<5x32xf32>
    %293 = arith.mulf %291, %292 : vector<5x32xf32>
    %294 = vector.broadcast %273 : vector<1x32xf32> to vector<5x32xf32>
    %295 = arith.addf %293, %294 : vector<5x32xf32>
    %c0_118 = arith.constant 0 : index
    %c0_119 = arith.constant 0 : index
    %c0_120 = arith.constant 0 : index
    %296 = vector.load %arg24[%c0_118, %c0_119, %c0_120] : memref<1x5x32xf32, #tpu.memory_space<vmem>>, vector<1x5x32xf32>
    %297 = vector.shape_cast %296 : vector<1x5x32xf32> to vector<5x32xf32>
    %298 = vector.shape_cast %295 : vector<5x32xf32> to vector<1x5x32xf32>
    tpu.vector_store %arg24[%c0_118, %c0_119, %c0_120], %298 {strides = array<i32>} : memref<1x5x32xf32, #tpu.memory_space<vmem>>, vector<1x5x32xf32>,
    return
  }
  func.func @transform_0(%arg0: i32) -> (i32, i32, i32) {
    %c0_i32 = arith.constant 0 : i32
    %c0_i32_0 = arith.constant 0 : i32
    %c0_i32_1 = arith.constant 0 : i32
    return %arg0, %c0_i32, %c0_i32_0 : i32, i32, i32
  }
  func.func @transform_1(%arg0: i32) -> (i32, i32, i32) {
    %c0_i32 = arith.constant 0 : i32
    %c0_i32_0 = arith.constant 0 : i32
    %c0_i32_1 = arith.constant 0 : i32
    return %arg0, %c0_i32, %c0_i32_0 : i32, i32, i32
  }
  func.func @transform_2(%arg0: i32) -> (i32, i32, i32) {
    %c0_i32 = arith.constant 0 : i32
    %c0_i32_0 = arith.constant 0 : i32
    %c0_i32_1 = arith.constant 0 : i32
    return %arg0, %c0_i32, %c0_i32_0 : i32, i32, i32
  }
  func.func @transform_3(%arg0: i32) -> (i32, i32) {
    %c0_i32 = arith.constant 0 : i32
    %c0_i32_0 = arith.constant 0 : i32
    %c0_i32_1 = arith.constant 0 : i32
    return %c0_i32, %c0_i32_0 : i32, i32
  }
  func.func @transform_4(%arg0: i32) -> (i32, i32) {
    %c0_i32 = arith.constant 0 : i32
    %c0_i32_0 = arith.constant 0 : i32
    %c0_i32_1 = arith.constant 0 : i32
    return %c0_i32, %c0_i32_0 : i32, i32
  }
  func.func @transform_5(%arg0: i32) -> (i32, i32) {
    %c0_i32 = arith.constant 0 : i32
    %c0_i32_0 = arith.constant 0 : i32
    %c0_i32_1 = arith.constant 0 : i32
    return %c0_i32, %c0_i32_0 : i32, i32
  }
  func.func @transform_6(%arg0: i32) -> (i32, i32) {
    %c0_i32 = arith.constant 0 : i32
    %c0_i32_0 = arith.constant 0 : i32
    %c0_i32_1 = arith.constant 0 : i32
    return %c0_i32, %c0_i32_0 : i32, i32
  }
  func.func @transform_7(%arg0: i32) -> (i32, i32) {
    %c0_i32 = arith.constant 0 : i32
    %c0_i32_0 = arith.constant 0 : i32
    %c0_i32_1 = arith.constant 0 : i32
    return %c0_i32, %c0_i32_0 : i32, i32
  }
  func.func @transform_8(%arg0: i32) -> (i32, i32) {
    %c0_i32 = arith.constant 0 : i32
    %c0_i32_0 = arith.constant 0 : i32
    %c0_i32_1 = arith.constant 0 : i32
    return %c0_i32, %c0_i32_0 : i32, i32
  }
  func.func @transform_9(%arg0: i32) -> (i32, i32) {
    %c0_i32 = arith.constant 0 : i32
    %c0_i32_0 = arith.constant 0 : i32
    %c0_i32_1 = arith.constant 0 : i32
    return %c0_i32, %c0_i32_0 : i32, i32
  }
  func.func @transform_10(%arg0: i32) -> (i32, i32) {
    %c0_i32 = arith.constant 0 : i32
    %c0_i32_0 = arith.constant 0 : i32
    %c0_i32_1 = arith.constant 0 : i32
    return %c0_i32, %c0_i32_0 : i32, i32
  }
  func.func @transform_11(%arg0: i32) -> (i32, i32) {
    %c0_i32 = arith.constant 0 : i32
    %c0_i32_0 = arith.constant 0 : i32
    %c0_i32_1 = arith.constant 0 : i32
    return %c0_i32, %c0_i32_0 : i32, i32
  }
  func.func @transform_12(%arg0: i32) -> (i32, i32) {
    %c0_i32 = arith.constant 0 : i32
    %c0_i32_0 = arith.constant 0 : i32
    %c0_i32_1 = arith.constant 0 : i32
    return %c0_i32, %c0_i32_0 : i32, i32
  }
  func.func @transform_13(%arg0: i32) -> (i32, i32) {
    %c0_i32 = arith.constant 0 : i32
    %c0_i32_0 = arith.constant 0 : i32
    %c0_i32_1 = arith.constant 0 : i32
    return %c0_i32, %c0_i32_0 : i32, i32
  }
  func.func @transform_14(%arg0: i32) -> (i32, i32) {
    %c0_i32 = arith.constant 0 : i32
    %c0_i32_0 = arith.constant 0 : i32
    %c0_i32_1 = arith.constant 0 : i32
    return %c0_i32, %c0_i32_0 : i32, i32
  }
  func.func @transform_15(%arg0: i32) -> (i32, i32) {
    %c0_i32 = arith.constant 0 : i32
    %c0_i32_0 = arith.constant 0 : i32
    %c0_i32_1 = arith.constant 0 : i32
    return %c0_i32, %c0_i32_0 : i32, i32
  }
  func.func @transform_16(%arg0: i32) -> (i32, i32) {
    %c0_i32 = arith.constant 0 : i32
    %c0_i32_0 = arith.constant 0 : i32
    %c0_i32_1 = arith.constant 0 : i32
    return %c0_i32, %c0_i32_0 : i32, i32
  }
  func.func @transform_17(%arg0: i32) -> (i32, i32) {
    %c0_i32 = arith.constant 0 : i32
    %c0_i32_0 = arith.constant 0 : i32
    %c0_i32_1 = arith.constant 0 : i32
    return %c0_i32, %c0_i32_0 : i32, i32
  }
  func.func @transform_18(%arg0: i32) -> (i32, i32) {
    %c0_i32 = arith.constant 0 : i32
    %c0_i32_0 = arith.constant 0 : i32
    %c0_i32_1 = arith.constant 0 : i32
    return %c0_i32, %c0_i32_0 : i32, i32
  }
  func.func @transform_19(%arg0: i32) -> (i32, i32) {
    %c0_i32 = arith.constant 0 : i32
    %c0_i32_0 = arith.constant 0 : i32
    %c0_i32_1 = arith.constant 0 : i32
    return %c0_i32, %c0_i32_0 : i32, i32
  }
  func.func @transform_20(%arg0: i32) -> (i32, i32) {
    %c0_i32 = arith.constant 0 : i32
    %c0_i32_0 = arith.constant 0 : i32
    %c0_i32_1 = arith.constant 0 : i32
    return %c0_i32, %c0_i32_0 : i32, i32
  }
  func.func @transform_21(%arg0: i32) -> (i32, i32) {
    %c0_i32 = arith.constant 0 : i32
    %c0_i32_0 = arith.constant 0 : i32
    %c0_i32_1 = arith.constant 0 : i32
    return %c0_i32, %c0_i32_0 : i32, i32
  }
  func.func @transform_22(%arg0: i32) -> (i32, i32) {
    %c0_i32 = arith.constant 0 : i32
    %c0_i32_0 = arith.constant 0 : i32
    %c0_i32_1 = arith.constant 0 : i32
    return %c0_i32, %c0_i32_0 : i32, i32
  }
  func.func @transform_23(%arg0: i32) -> (i32, i32, i32) {
    %c0_i32 = arith.constant 0 : i32
    %c0_i32_0 = arith.constant 0 : i32
    %c0_i32_1 = arith.constant 0 : i32
    return %arg0, %c0_i32, %c0_i32_0 : i32, i32, i32
  }
}

</mosaic_0001>

<llo_original>
// kernel: _lambda_.9
$region0: #{_lambda_.9}
  #allocation0 [shape = 'u32[]', space=smem, size = 0x4, offset = 0x4, fixed_abs, tag = 'smem constant byte address 0x4 - core index']
  #allocation1 [shape = 'u32[144,128]{1,0:T(1,128)}', space=vmem, size = 0x12000, scoped, tag = 'internal scratch']
  %s0 = inlined_call_operand.vmem [shape: f32[10,32], index: 0, kind: input, shape index: {}]
  %s1 = inlined_call_operand.vmem [shape: f32[1,32], index: 1, kind: input, shape index: {}]
  %s2 = inlined_call_operand.vmem [shape: f32[1,32], index: 2, kind: input, shape index: {}]
  %s3 = inlined_call_operand.vmem [shape: bf16[32,128], index: 3, kind: input, shape index: {}]
  %s4 = inlined_call_operand.vmem [shape: f32[1,128], index: 4, kind: input, shape index: {}]
  %s5 = inlined_call_operand.vmem [shape: f32[10,128], index: 5, kind: output, shape index: {}]
  %s6 = sld [smem:[#allocation0]]
  $region30: #{_lambda_.9} parent=0
    _
  %s8 = ssub.s32 1, %s6
  %s9 = scalar_select 0, %s8, %s6
  // Predicated region
  $region2: #{_lambda_.9} parent=0 // pred_check
    _
  $region3: #{_lambda_.9} parent=0 // pred_check_branch
    %11 = sbr.rel (0) target = $region5
  $region4: #{_lambda_.9} parent=0 // pred_region
    _
  $region5: #{_lambda_.9} parent=0 // pred_fallthru
    _
  // Predicated region
  $region6: #{_lambda_.9} parent=0 // pred_check
    _
  $region7: #{_lambda_.9} parent=0 // pred_check_branch
    %13 = sbr.rel (0) target = $region9
  $region8: #{_lambda_.9} parent=0 // pred_region
    _
  $region9: #{_lambda_.9} parent=0 // pred_fallthru
    _
  // Predicated region
  $region10: #{_lambda_.9} parent=0 // pred_check
    _
  $region11: #{_lambda_.9} parent=0 // pred_check_branch
    %15 = sbr.rel (0) target = $region13
  $region12: #{_lambda_.9} parent=0 // pred_region
    _
  $region13: #{_lambda_.9} parent=0 // pred_fallthru
    _
  // Predicated region
  $region14: #{_lambda_.9} parent=0 // pred_check
    _
  $region15: #{_lambda_.9} parent=0 // pred_check_branch
    %17 = sbr.rel (0) target = $region17
  $region16: #{_lambda_.9} parent=0 // pred_region
    _
  $region17: #{_lambda_.9} parent=0 // pred_fallthru
    _
  // Predicated region
  $region18: #{_lambda_.9} parent=0 // pred_check
    _
  $region19: #{_lambda_.9} parent=0 // pred_check_branch
    %19 = sbr.rel (0) target = $region21
  $region20: #{_lambda_.9} parent=0 // pred_region
    _
  $region21: #{_lambda_.9} parent=0 // pred_fallthru
    _
  %v21 = vld [vmem:[%s0] sm:$0xff]
  %v22 = vld [vmem:[%s0 + $0x8] sm:$0x3]
  %v23 = vld [vmem:[%s1] sm:$0x1]
  %v24 = vld [vmem:[%s2] sm:$0x1]
  %vm25 = vcmask 261120
  %v26 = vsel %vm25, %v21, 0.0
  %27 = vadd.xlane.f32.xlu0 %v26
  %v28 = vpop.xlane.xlu0 %27
  %vm29 = vcmask 254976
  %v30 = vsel %vm29, %v22, 0.0
  %31 = vadd.xlane.f32.xlu0 %v30
  %v32 = vpop.xlane.xlu0 %31
  %v33 = vrcp.pop 32.0
  %v34 = vmul.f32 %v28, %v33
  %v35 = vmul.f32 %v32, %v33
  %v36 = vsub.f32 %v21, %v34
  %v37 = vsub.f32 %v22, %v35
  %v38 = vmul.f32 %v36, %v36
  %v39 = vmul.f32 %v37, %v37
  %v40 = vsel %vm25, %v38, 0.0
  %41 = vadd.xlane.f32.xlu0 %v40
  %v42 = vpop.xlane.xlu0 %41
  %v43 = vsel %vm29, %v39, 0.0
  %44 = vadd.xlane.f32.xlu0 %v43
  %v45 = vpop.xlane.xlu0 %44
  %v46 = vmul.f32 %v42, %v33
  %v47 = vmul.f32 %v45, %v33
  %v48 = vadd.f32 %v46, 1e-05
  %v49 = vadd.f32 %v47, 1e-05
  %v50 = vrsqrt.pop %v48
  %v51 = vrsqrt.pop %v49
  %v52 = vmul.f32 %v36, %v50
  %v53 = vmul.f32 %v37, %v51
  %v55 = vlaneseq
  %v56 = vshrl.u32 %v55, 7
  %v57 = vsub.s32 0, %v56
  %v58 = vrot.slane %v23, %v57
  %v60 = vmul.f32 %v52, %v58
  %v61 = vmul.f32 %v53, %v58
  %v63 = vlaneseq
  %v64 = vshrl.u32 %v63, 7
  %v65 = vsub.s32 0, %v64
  %v66 = vrot.slane %v24, %v65
  %v68 = vadd.f32 %v60, %v66
  %v69 = vadd.f32 %v61, %v66
  %v70 = vld [vmem:[%s3] sm:$0xf]
  %v71 = vld [vmem:[%s3 + $0x4] sm:$0xf]
  %v72 = vld [vmem:[%s3 + $0x8] sm:$0xf]
  %v73 = vld [vmem:[%s3 + $0xc] sm:$0xf]
  %v74 = vld [vmem:[%s4] sm:$0x1]
  %v75 = vpack.c.bf16 %v69, %v68
  %v77 = vlaneseq
  %v78 = vshrl.u32 %v77, 7
  %v79 = vsub.s32 0, %v78
  %v80 = vrot.slane %v74, %v79
  %v86 = vunpack.c.l.b16 %v70
  %v87 = vunpack.c.l.b16 %v71
  %v88 = vunpack.c.l.b16 %v72
  %v89 = vunpack.c.l.b16 %v73
  %v90 = vpack.c.b16 %v87, %v86
  %v91 = vpack.c.b16 %v89, %v88
  %v95 = vsel %vm25, %v75, 0
  %97 = vmatprep.subr.bf16.mxu0 0
  %98 = vmatpush1.bf16.msra.mxu0 %v90
  %99 = vmatprep.subr.bf16.mxu0 0
  %100 = vmatpush1.bf16.msra.mxu0 %v91
  %101 = vmatprep.subr.bf16.mxu0 0
  %102 = vmatpush1.bf16.msra.mxu0 0
  %103 = vmatprep.subr.bf16.mxu0 0
  %104 = vmatpush1.bf16.msra.mxu0 0
  %105 = vmatprep.subr.bf16.mxu0 0
  %106 = vmatpush1.bf16.msra.mxu0 0
  %107 = vmatprep.subr.bf16.mxu0 0
  %108 = vmatpush1.bf16.msra.mxu0 0
  %109 = vmatprep.subr.bf16.mxu0 0
  %110 = vmatpush1.bf16.msra.mxu0 0
  %111 = vmatprep.subr.bf16.mxu0 0
  %112 = vmatpush1.bf16.msra.mxu0 0
  %113 = vmatprep.subr.bf16.mxu0 0
  %114 = vmatpush1.bf16.msra.mxu0 0
  %115 = vmatprep.subr.bf16.mxu0 0
  %116 = vmatpush1.bf16.msra.mxu0 0
  %117 = vmatprep.subr.bf16.mxu0 0
  %118 = vmatpush1.bf16.msra.mxu0 0
  %119 = vmatprep.subr.bf16.mxu0 0
  %120 = vmatpush1.bf16.msra.mxu0 0
  %121 = vmatprep.subr.bf16.mxu0 0
  %122 = vmatpush1.bf16.msra.mxu0 0
  %123 = vmatprep.subr.bf16.mxu0 0
  %124 = vmatpush1.bf16.msra.mxu0 0
  %125 = vmatprep.subr.bf16.mxu0 0
  %126 = vmatpush1.bf16.msra.mxu0 0
  %127 = vmatprep.subr.bf16.mxu0 0
  %128 = vmatpush1.bf16.msra.mxu0 0
  %129 = vmatprep.mubr.bf16.mxu0 0
  %130 = vmatmul.mubr.bf16.gmra.mrb[0].mxu0 %v95
  %v131 = vpop.f32.mrb[0].mxu0
  %v132 = vadd.f32 %v80, %v131
  %v133 = vpop.f32.mrb[0].mxu0
  %v134 = vpop.f32.mrb[0].mxu0
  %v135 = vadd.f32 %v80, %v134
  %v136 = vpop.f32.mrb[0].mxu0
  %137 = vdwg.mxu0
  %138 = vmax.xlane.f32.xlu0 %v132
  %v139 = vpop.xlane.xlu0 %138
  %vm140 = vcmask 1041408
  %v141 = vsel %vm140, %v135, -inf
  %142 = vmax.xlane.f32.xlu0 %v141
  %v143 = vpop.xlane.xlu0 %142
  %v144 = vsub.f32 %v132, %v139
  %v145 = vsub.f32 %v135, %v143
  %v146 = vmul.f32 %v144, 1.442695
  %v147 = vpow.pop %v146
  %v148 = vmul.f32 %v145, 1.442695
  %v149 = vpow.pop %v148
  %150 = vadd.xlane.f32.xlu0 %v147
  %v151 = vpop.xlane.xlu0 %150
  %v152 = vsel %vm140, %v149, 0.0
  %153 = vadd.xlane.f32.xlu0 %v152
  %v154 = vpop.xlane.xlu0 %153
  %v155 = vrcp.pop %v151
  %v156 = vmul.f32 %v147, %v155
  %v157 = vrcp.pop %v154
  %v158 = vmul.f32 %v149, %v157
  %159 = vst [vmem:[%s5] sm:$0xff] %v156
  %160 = vst [vmem:[%s5 + $0x8] sm:$0x3] %v158
  // Predicated region
  $region22: #{_lambda_.9} parent=0 // pred_check
    _
  $region23: #{_lambda_.9} parent=0 // pred_check_branch
    %162 = sbr.rel (0) target = $region25
  $region24: #{_lambda_.9} parent=0 // pred_region
    _
  $region25: #{_lambda_.9} parent=0 // pred_fallthru
    _
  // Predicated region
  $region26: #{_lambda_.9} parent=0 // pred_check
    _
  $region27: #{_lambda_.9} parent=0 // pred_check_branch
    %164 = sbr.rel (0) target = $region29
  $region28: #{_lambda_.9} parent=0 // pred_region
    _
  $region29: #{_lambda_.9} parent=0 // pred_fallthru
    _

// kernel: _lambda_.5
$region0: #{_lambda_.5}
  #allocation0 [shape = 'u32[]', space=smem, size = 0x4, offset = 0x4, fixed_abs, tag = 'smem constant byte address 0x4 - core index']
  #allocation1 [shape = 'u32[144,128]{1,0:T(1,128)}', space=vmem, size = 0x12000, scoped, tag = 'internal scratch']
  %s0 = inlined_call_operand.vmem [shape: f32[2,5,32], index: 0, kind: input, shape index: {}]
  %s1 = inlined_call_operand.vmem [shape: f32[2,1,5], index: 1, kind: input, shape index: {}]
  %s2 = inlined_call_operand.vmem [shape: bf16[32,96], index: 2, kind: input, shape index: {}]
  %s3 = inlined_call_operand.vmem [shape: f32[1,96], index: 3, kind: input, shape index: {}]
  %s4 = inlined_call_operand.vmem [shape: f32[32,32], index: 4, kind: input, shape index: {}]
  %s5 = inlined_call_operand.vmem [shape: f32[1,32], index: 5, kind: input, shape index: {}]
  %s6 = inlined_call_operand.vmem [shape: f32[1,32], index: 6, kind: input, shape index: {}]
  %s7 = inlined_call_operand.vmem [shape: f32[1,32], index: 7, kind: input, shape index: {}]
  %s8 = inlined_call_operand.vmem [shape: bf16[32,128], index: 8, kind: input, shape index: {}]
  %s9 = inlined_call_operand.vmem [shape: f32[1,128], index: 9, kind: input, shape index: {}]
  %s10 = inlined_call_operand.vmem [shape: bf16[128,32], index: 10, kind: input, shape index: {}]
  %s11 = inlined_call_operand.vmem [shape: f32[1,32], index: 11, kind: input, shape index: {}]
  %s12 = inlined_call_operand.vmem [shape: f32[1,32], index: 12, kind: input, shape index: {}]
  %s13 = inlined_call_operand.vmem [shape: f32[1,32], index: 13, kind: input, shape index: {}]
  %s14 = inlined_call_operand.vmem [shape: f32[1,32], index: 14, kind: input, shape index: {}]
  %s15 = inlined_call_operand.vmem [shape: f32[1,32], index: 15, kind: input, shape index: {}]
  %s16 = inlined_call_operand.vmem [shape: f32[2,5,32], index: 16, kind: output, shape index: {}]
  %s17 = sld [smem:[#allocation0]]
  $region97: #{_lambda_.5} parent=0
    _
  %s19 = ssub.s32 1, %s17
  %s20 = scalar_select 0, %s19, %s17
  loop: start=0, step=1, limit=4
  $region2: #{_lambda_.5} parent=0 // loop_pre_header
    _
  $region3: #{_lambda_.5} parent=0 // loop_header
    %s22 = sphi 0, %s26
    %p23 = scmp.ge.s32.totalorder %s22, 4
    %s32 = sphi 0, %s34
    %s35 = sphi 0, %s32
    %s36 = sphi 0, %s35
    %s52 = sphi 0, %s36
    %s58 = sphi 0, %s60
    %s61 = sphi 0, %s58
    %s62 = sphi 0, %s61
    %s78 = sphi 0, %s62
    %s82 = sphi 0, %s82
    %s84 = sphi 0, %s82
    %s85 = sphi 0, %s84
    %s99 = sphi 0, %s85
    %s103 = sphi 0, %s103
    %s105 = sphi 0, %s103
    %s106 = sphi 0, %s105
    %s120 = sphi 0, %s106
    %s124 = sphi 0, %s124
    %s126 = sphi 0, %s124
    %s127 = sphi 0, %s126
    %s141 = sphi 0, %s127
    %s145 = sphi 0, %s145
    %s147 = sphi 0, %s145
    %s148 = sphi 0, %s147
    %s162 = sphi 0, %s148
    %s166 = sphi 0, %s166
    %s168 = sphi 0, %s166
    %s169 = sphi 0, %s168
    %s183 = sphi 0, %s169
    %s187 = sphi 0, %s187
    %s189 = sphi 0, %s187
    %s190 = sphi 0, %s189
    %s204 = sphi 0, %s190
    %s208 = sphi 0, %s208
    %s210 = sphi 0, %s208
    %s211 = sphi 0, %s210
    %s225 = sphi 0, %s211
    %s229 = sphi 0, %s229
    %s231 = sphi 0, %s229
    %s232 = sphi 0, %s231
    %s246 = sphi 0, %s232
    %s250 = sphi 0, %s250
    %s252 = sphi 0, %s250
    %s253 = sphi 0, %s252
    %s267 = sphi 0, %s253
    %s271 = sphi 0, %s271
    %s273 = sphi 0, %s271
    %s274 = sphi 0, %s273
    %s288 = sphi 0, %s274
    %s292 = sphi 0, %s292
    %s294 = sphi 0, %s292
    %s295 = sphi 0, %s294
    %s309 = sphi 0, %s295
    %s313 = sphi 0, %s313
    %s315 = sphi 0, %s313
    %s316 = sphi 0, %s315
    %s330 = sphi 0, %s316
    %s334 = sphi 0, %s334
    %s336 = sphi 0, %s334
    %s337 = sphi 0, %s336
    %s351 = sphi 0, %s337
    %s355 = sphi 0, %s355
    %s357 = sphi 0, %s355
    %s358 = sphi 0, %s357
    %s372 = sphi 0, %s358
    %s378 = sphi 0, %s380
    %s381 = sphi 0, %s378
    %s382 = sphi 0, %s381
    %s398 = sphi 0, %s382
  $region4: #{_lambda_.5} parent=0 // loop_header_branch
    %25 = sbr.rel (%p23) target = $region8
  $region5: #{_lambda_.5} parent=0 // loop_body
    %s27 = ssub.s32 %s22, 1
    %s28 = ssub.s32 %s22, 2
    %s29 = sadd.s32 %s22, 1
    %s30 = ssub.s32 %s22, %s29
    %p31 = scmp.eq.s32.totalorder %s30, 0
    %s33 = sadd.s32 %s32, 1
    %s34 = scalar_select %p31, %s32, %s33
    %p37 = pneg %p31
    %p38 = scmp.eq.s32.totalorder %s22, 1
    %p39 = por %p37, %p38
    %p40 = scmp.ne.s32.totalorder %s32, %s35
    %p41 = scmp.eq.s32.totalorder %s22, 0
    %p42 = por %p40, %p41
    %p43 = scmp.ne.s32.totalorder %s32, %s35
    %p44 = scmp.eq.s32.totalorder %s27, 1
    %p45 = por %p43, %p44
    %p46 = scmp.ne.s32.totalorder %s35, %s36
    %p47 = scmp.eq.s32.totalorder %s27, 0
    %p48 = por %p46, %p47
    %p49 = scmp.ne.s32.totalorder %s35, %s36
    %p50 = scmp.eq.s32.totalorder %s28, 1
    %p51 = por %p49, %p50
    %p53 = scmp.ne.s32.totalorder %s36, %s52
    %p54 = scmp.eq.s32.totalorder %s28, 0
    %p55 = por %p53, %p54
    %s56 = ssub.s32 %s22, %s29
    %p57 = scmp.eq.s32.totalorder %s56, 0
    %s59 = sadd.s32 %s58, 1
    %s60 = scalar_select %p57, %s58, %s59
    %p63 = pneg %p57
    %p64 = scmp.eq.s32.totalorder %s22, 1
    %p65 = por %p63, %p64
    %p66 = scmp.ne.s32.totalorder %s58, %s61
    %p67 = scmp.eq.s32.totalorder %s22, 0
    %p68 = por %p66, %p67
    %p69 = scmp.ne.s32.totalorder %s58, %s61
    %p70 = scmp.eq.s32.totalorder %s27, 1
    %p71 = por %p69, %p70
    %p72 = scmp.ne.s32.totalorder %s61, %s62
    %p73 = scmp.eq.s32.totalorder %s27, 0
    %p74 = por %p72, %p73
    %p75 = scmp.ne.s32.totalorder %s61, %s62
    %p76 = scmp.eq.s32.totalorder %s28, 1
    %p77 = por %p75, %p76
    %p79 = scmp.ne.s32.totalorder %s62, %s78
    %p80 = scmp.eq.s32.totalorder %s28, 0
    %p81 = por %p79, %p80
    %s83 = sadd.s32 %s82, 1
    %p86 = scmp.eq.s32.totalorder %s22, 1
    %p87 = scmp.ne.s32.totalorder %s82, %s84
    %p88 = scmp.eq.s32.totalorder %s22, 0
    %p89 = por %p87, %p88
    %p90 = scmp.ne.s32.totalorder %s82, %s84
    %p91 = scmp.eq.s32.totalorder %s27, 1
    %p92 = por %p90, %p91
    %p93 = scmp.ne.s32.totalorder %s84, %s85
    %p94 = scmp.eq.s32.totalorder %s27, 0
    %p95 = por %p93, %p94
    %p96 = scmp.ne.s32.totalorder %s84, %s85
    %p97 = scmp.eq.s32.totalorder %s28, 1
    %p98 = por %p96, %p97
    %p100 = scmp.ne.s32.totalorder %s85, %s99
    %p101 = scmp.eq.s32.totalorder %s28, 0
    %p102 = por %p100, %p101
    %s104 = sadd.s32 %s103, 1
    %p107 = scmp.eq.s32.totalorder %s22, 1
    %p108 = scmp.ne.s32.totalorder %s103, %s105
    %p109 = scmp.eq.s32.totalorder %s22, 0
    %p110 = por %p108, %p109
    %p111 = scmp.ne.s32.totalorder %s103, %s105
    %p112 = scmp.eq.s32.totalorder %s27, 1
    %p113 = por %p111, %p112
    %p114 = scmp.ne.s32.totalorder %s105, %s106
    %p115 = scmp.eq.s32.totalorder %s27, 0
    %p116 = por %p114, %p115
    %p117 = scmp.ne.s32.totalorder %s105, %s106
    %p118 = scmp.eq.s32.totalorder %s28, 1
    %p119 = por %p117, %p118
    %p121 = scmp.ne.s32.totalorder %s106, %s120
    %p122 = scmp.eq.s32.totalorder %s28, 0
    %p123 = por %p121, %p122
    %s125 = sadd.s32 %s124, 1
    %p128 = scmp.eq.s32.totalorder %s22, 1
    %p129 = scmp.ne.s32.totalorder %s124, %s126
    %p130 = scmp.eq.s32.totalorder %s22, 0
    %p131 = por %p129, %p130
    %p132 = scmp.ne.s32.totalorder %s124, %s126
    %p133 = scmp.eq.s32.totalorder %s27, 1
    %p134 = por %p132, %p133
    %p135 = scmp.ne.s32.totalorder %s126, %s127
    %p136 = scmp.eq.s32.totalorder %s27, 0
    %p137 = por %p135, %p136
    %p138 = scmp.ne.s32.totalorder %s126, %s127
    %p139 = scmp.eq.s32.totalorder %s28, 1
    %p140 = por %p138, %p139
    %p142 = scmp.ne.s32.totalorder %s127, %s141
    %p143 = scmp.eq.s32.totalorder %s28, 0
    %p144 = por %p142, %p143
    %s146 = sadd.s32 %s145, 1
    %p149 = scmp.eq.s32.totalorder %s22, 1
    %p150 = scmp.ne.s32.totalorder %s145, %s147
    %p151 = scmp.eq.s32.totalorder %s22, 0
    %p152 = por %p150, %p151
    %p153 = scmp.ne.s32.totalorder %s145, %s147
    %p154 = scmp.eq.s32.totalorder %s27, 1
    %p155 = por %p153, %p154
    %p156 = scmp.ne.s32.totalorder %s147, %s148
    %p157 = scmp.eq.s32.totalorder %s27, 0
    %p158 = por %p156, %p157
    %p159 = scmp.ne.s32.totalorder %s147, %s148
    %p160 = scmp.eq.s32.totalorder %s28, 1
    %p161 = por %p159, %p160
    %p163 = scmp.ne.s32.totalorder %s148, %s162
    %p164 = scmp.eq.s32.totalorder %s28, 0
    %p165 = por %p163, %p164
    %s167 = sadd.s32 %s166, 1
    %p170 = scmp.eq.s32.totalorder %s22, 1
    %p171 = scmp.ne.s32.totalorder %s166, %s168
    %p172 = scmp.eq.s32.totalorder %s22, 0
    %p173 = por %p171, %p172
    %p174 = scmp.ne.s32.totalorder %s166, %s168
    %p175 = scmp.eq.s32.totalorder %s27, 1
    %p176 = por %p174, %p175
    %p177 = scmp.ne.s32.totalorder %s168, %s169
    %p178 = scmp.eq.s32.totalorder %s27, 0
    %p179 = por %p177, %p178
    %p180 = scmp.ne.s32.totalorder %s168, %s169
    %p181 = scmp.eq.s32.totalorder %s28, 1
    %p182 = por %p180, %p181
    %p184 = scmp.ne.s32.totalorder %s169, %s183
    %p185 = scmp.eq.s32.totalorder %s28, 0
    %p186 = por %p184, %p185
    %s188 = sadd.s32 %s187, 1
    %p191 = scmp.eq.s32.totalorder %s22, 1
    %p192 = scmp.ne.s32.totalorder %s187, %s189
    %p193 = scmp.eq.s32.totalorder %s22, 0
    %p194 = por %p192, %p193
    %p195 = scmp.ne.s32.totalorder %s187, %s189
    %p196 = scmp.eq.s32.totalorder %s27, 1
    %p197 = por %p195, %p196
    %p198 = scmp.ne.s32.totalorder %s189, %s190
    %p199 = scmp.eq.s32.totalorder %s27, 0
    %p200 = por %p198, %p199
    %p201 = scmp.ne.s32.totalorder %s189, %s190
    %p202 = scmp.eq.s32.totalorder %s28, 1
    %p203 = por %p201, %p202
    %p205 = scmp.ne.s32.totalorder %s190, %s204
    %p206 = scmp.eq.s32.totalorder %s28, 0
    %p207 = por %p205, %p206
    %s209 = sadd.s32 %s208, 1
    %p212 = scmp.eq.s32.totalorder %s22, 1
    %p213 = scmp.ne.s32.totalorder %s208, %s210
    %p214 = scmp.eq.s32.totalorder %s22, 0
    %p215 = por %p213, %p214
    %p216 = scmp.ne.s32.totalorder %s208, %s210
    %p217 = scmp.eq.s32.totalorder %s27, 1
    %p218 = por %p216, %p217
    %p219 = scmp.ne.s32.totalorder %s210, %s211
    %p220 = scmp.eq.s32.totalorder %s27, 0
    %p221 = por %p219, %p220
    %p222 = scmp.ne.s32.totalorder %s210, %s211
    %p223 = scmp.eq.s32.totalorder %s28, 1
    %p224 = por %p222, %p223
    %p226 = scmp.ne.s32.totalorder %s211, %s225
    %p227 = scmp.eq.s32.totalorder %s28, 0
    %p228 = por %p226, %p227
    %s230 = sadd.s32 %s229, 1
    %p233 = scmp.eq.s32.totalorder %s22, 1
    %p234 = scmp.ne.s32.totalorder %s229, %s231
    %p235 = scmp.eq.s32.totalorder %s22, 0
    %p236 = por %p234, %p235
    %p237 = scmp.ne.s32.totalorder %s229, %s231
    %p238 = scmp.eq.s32.totalorder %s27, 1
    %p239 = por %p237, %p238
    %p240 = scmp.ne.s32.totalorder %s231, %s232
    %p241 = scmp.eq.s32.totalorder %s27, 0
    %p242 = por %p240, %p241
    %p243 = scmp.ne.s32.totalorder %s231, %s232
    %p244 = scmp.eq.s32.totalorder %s28, 1
    %p245 = por %p243, %p244
    %p247 = scmp.ne.s32.totalorder %s232, %s246
    %p248 = scmp.eq.s32.totalorder %s28, 0
    %p249 = por %p247, %p248
    %s251 = sadd.s32 %s250, 1
    %p254 = scmp.eq.s32.totalorder %s22, 1
    %p255 = scmp.ne.s32.totalorder %s250, %s252
    %p256 = scmp.eq.s32.totalorder %s22, 0
    %p257 = por %p255, %p256
    %p258 = scmp.ne.s32.totalorder %s250, %s252
    %p259 = scmp.eq.s32.totalorder %s27, 1
    %p260 = por %p258, %p259
    %p261 = scmp.ne.s32.totalorder %s252, %s253
    %p262 = scmp.eq.s32.totalorder %s27, 0
    %p263 = por %p261, %p262
    %p264 = scmp.ne.s32.totalorder %s252, %s253
    %p265 = scmp.eq.s32.totalorder %s28, 1
    %p266 = por %p264, %p265
    %p268 = scmp.ne.s32.totalorder %s253, %s267
    %p269 = scmp.eq.s32.totalorder %s28, 0
    %p270 = por %p268, %p269
    %s272 = sadd.s32 %s271, 1
    %p275 = scmp.eq.s32.totalorder %s22, 1
    %p276 = scmp.ne.s32.totalorder %s271, %s273
    %p277 = scmp.eq.s32.totalorder %s22, 0
    %p278 = por %p276, %p277
    %p279 = scmp.ne.s32.totalorder %s271, %s273
    %p280 = scmp.eq.s32.totalorder %s27, 1
    %p281 = por %p279, %p280
    %p282 = scmp.ne.s32.totalorder %s273, %s274
    %p283 = scmp.eq.s32.totalorder %s27, 0
    %p284 = por %p282, %p283
    %p285 = scmp.ne.s32.totalorder %s273, %s274
    %p286 = scmp.eq.s32.totalorder %s28, 1
    %p287 = por %p285, %p286
    %p289 = scmp.ne.s32.totalorder %s274, %s288
    %p290 = scmp.eq.s32.totalorder %s28, 0
    %p291 = por %p289, %p290
    %s293 = sadd.s32 %s292, 1
    %p296 = scmp.eq.s32.totalorder %s22, 1
    %p297 = scmp.ne.s32.totalorder %s292, %s294
    %p298 = scmp.eq.s32.totalorder %s22, 0
    %p299 = por %p297, %p298
    %p300 = scmp.ne.s32.totalorder %s292, %s294
    %p301 = scmp.eq.s32.totalorder %s27, 1
    %p302 = por %p300, %p301
    %p303 = scmp.ne.s32.totalorder %s294, %s295
    %p304 = scmp.eq.s32.totalorder %s27, 0
    %p305 = por %p303, %p304
    %p306 = scmp.ne.s32.totalorder %s294, %s295
    %p307 = scmp.eq.s32.totalorder %s28, 1
    %p308 = por %p306, %p307
    %p310 = scmp.ne.s32.totalorder %s295, %s309
    %p311 = scmp.eq.s32.totalorder %s28, 0
    %p312 = por %p310, %p311
    %s314 = sadd.s32 %s313, 1
    %p317 = scmp.eq.s32.totalorder %s22, 1
    %p318 = scmp.ne.s32.totalorder %s313, %s315
    %p319 = scmp.eq.s32.totalorder %s22, 0
    %p320 = por %p318, %p319
    %p321 = scmp.ne.s32.totalorder %s313, %s315
    %p322 = scmp.eq.s32.totalorder %s27, 1
    %p323 = por %p321, %p322
    %p324 = scmp.ne.s32.totalorder %s315, %s316
    %p325 = scmp.eq.s32.totalorder %s27, 0
    %p326 = por %p324, %p325
    %p327 = scmp.ne.s32.totalorder %s315, %s316
    %p328 = scmp.eq.s32.totalorder %s28, 1
    %p329 = por %p327, %p328
    %p331 = scmp.ne.s32.totalorder %s316, %s330
    %p332 = scmp.eq.s32.totalorder %s28, 0
    %p333 = por %p331, %p332
    %s335 = sadd.s32 %s334, 1
    %p338 = scmp.eq.s32.totalorder %s22, 1
    %p339 = scmp.ne.s32.totalorder %s334, %s336
    %p340 = scmp.eq.s32.totalorder %s22, 0
    %p341 = por %p339, %p340
    %p342 = scmp.ne.s32.totalorder %s334, %s336
    %p343 = scmp.eq.s32.totalorder %s27, 1
    %p344 = por %p342, %p343
    %p345 = scmp.ne.s32.totalorder %s336, %s337
    %p346 = scmp.eq.s32.totalorder %s27, 0
    %p347 = por %p345, %p346
    %p348 = scmp.ne.s32.totalorder %s336, %s337
    %p349 = scmp.eq.s32.totalorder %s28, 1
    %p350 = por %p348, %p349
    %p352 = scmp.ne.s32.totalorder %s337, %s351
    %p353 = scmp.eq.s32.totalorder %s28, 0
    %p354 = por %p352, %p353
    %s356 = sadd.s32 %s355, 1
    %p359 = scmp.eq.s32.totalorder %s22, 1
    %p360 = scmp.ne.s32.totalorder %s355, %s357
    %p361 = scmp.eq.s32.totalorder %s22, 0
    %p362 = por %p360, %p361
    %p363 = scmp.ne.s32.totalorder %s355, %s357
    %p364 = scmp.eq.s32.totalorder %s27, 1
    %p365 = por %p363, %p364
    %p366 = scmp.ne.s32.totalorder %s357, %s358
    %p367 = scmp.eq.s32.totalorder %s27, 0
    %p368 = por %p366, %p367
    %p369 = scmp.ne.s32.totalorder %s357, %s358
    %p370 = scmp.eq.s32.totalorder %s28, 1
    %p371 = por %p369, %p370
    %p373 = scmp.ne.s32.totalorder %s358, %s372
    %p374 = scmp.eq.s32.totalorder %s28, 0
    %p375 = por %p373, %p374
    %s376 = ssub.s32 %s22, %s29
    %p377 = scmp.eq.s32.totalorder %s376, 0
    %s379 = sadd.s32 %s378, 1
    %s380 = scalar_select %p377, %s378, %s379
    %p383 = pneg %p377
    %p384 = scmp.eq.s32.totalorder %s22, 1
    %p385 = por %p383, %p384
    %p386 = scmp.ne.s32.totalorder %s378, %s381
    %p387 = scmp.eq.s32.totalorder %s22, 0
    %p388 = por %p386, %p387
    %p389 = scmp.ne.s32.totalorder %s378, %s381
    %p390 = scmp.eq.s32.totalorder %s27, 1
    %p391 = por %p389, %p390
    %p392 = scmp.ne.s32.totalorder %s381, %s382
    %p393 = scmp.eq.s32.totalorder %s27, 0
    %p394 = por %p392, %p393
    %p395 = scmp.ne.s32.totalorder %s381, %s382
    %p396 = scmp.eq.s32.totalorder %s28, 1
    %p397 = por %p395, %p396
    %p399 = scmp.ne.s32.totalorder %s382, %s398
    %p400 = scmp.eq.s32.totalorder %s28, 0
    %p401 = por %p399, %p400
    %p402 = scmp.le.s32.totalorder 1, %s22
    %p403 = scmp.lt.s32.totalorder %s22, 3
    %p404 = pnand %p402, %p403
    %p405 = pneg %p404
    // Predicated region
    $region9: #{_lambda_.5} parent=5 // pred_check
      _
    $region10: #{_lambda_.5} parent=5 // pred_check_branch
      %407 = sbr.rel (%p404) target = $region12
    $region11: #{_lambda_.5} parent=5 // pred_region
      %s408 = ssub.s32 %s22, 1
      // Predicated region
      $region13: #{_lambda_.5} parent=11 // pred_check
        %p409 = pneg %p95
      $region14: #{_lambda_.5} parent=11 // pred_check_branch
        %411 = sbr.rel (%p409) target = $region16
      $region15: #{_lambda_.5} parent=11 // pred_region
        _
      $region16: #{_lambda_.5} parent=11 // pred_fallthru
        _
      // Predicated region
      $region17: #{_lambda_.5} parent=11 // pred_check
        %p412 = pneg %p116
      $region18: #{_lambda_.5} parent=11 // pred_check_branch
        %414 = sbr.rel (%p412) target = $region20
      $region19: #{_lambda_.5} parent=11 // pred_region
        _
      $region20: #{_lambda_.5} parent=11 // pred_fallthru
        _
      // Predicated region
      $region21: #{_lambda_.5} parent=11 // pred_check
        %p415 = pneg %p137
      $region22: #{_lambda_.5} parent=11 // pred_check_branch
        %417 = sbr.rel (%p415) target = $region24
      $region23: #{_lambda_.5} parent=11 // pred_region
        _
      $region24: #{_lambda_.5} parent=11 // pred_fallthru
        _
      // Predicated region
      $region25: #{_lambda_.5} parent=11 // pred_check
        %p418 = pneg %p158
      $region26: #{_lambda_.5} parent=11 // pred_check_branch
        %420 = sbr.rel (%p418) target = $region28
      $region27: #{_lambda_.5} parent=11 // pred_region
        _
      $region28: #{_lambda_.5} parent=11 // pred_fallthru
        _
      // Predicated region
      $region29: #{_lambda_.5} parent=11 // pred_check
        %p421 = pneg %p179
      $region30: #{_lambda_.5} parent=11 // pred_check_branch
        %423 = sbr.rel (%p421) target = $region32
      $region31: #{_lambda_.5} parent=11 // pred_region
        _
      $region32: #{_lambda_.5} parent=11 // pred_fallthru
        _
      // Predicated region
      $region33: #{_lambda_.5} parent=11 // pred_check
        %p424 = pneg %p200
      $region34: #{_lambda_.5} parent=11 // pred_check_branch
        %426 = sbr.rel (%p424) target = $region36
      $region35: #{_lambda_.5} parent=11 // pred_region
        _
      $region36: #{_lambda_.5} parent=11 // pred_fallthru
        _
      // Predicated region
      $region37: #{_lambda_.5} parent=11 // pred_check
        %p427 = pneg %p221
      $region38: #{_lambda_.5} parent=11 // pred_check_branch
        %429 = sbr.rel (%p427) target = $region40
      $region39: #{_lambda_.5} parent=11 // pred_region
        _
      $region40: #{_lambda_.5} parent=11 // pred_fallthru
        _
      // Predicated region
      $region41: #{_lambda_.5} parent=11 // pred_check
        %p430 = pneg %p242
      $region42: #{_lambda_.5} parent=11 // pred_check_branch
        %432 = sbr.rel (%p430) target = $region44
      $region43: #{_lambda_.5} parent=11 // pred_region
        _
      $region44: #{_lambda_.5} parent=11 // pred_fallthru
        _
      // Predicated region
      $region45: #{_lambda_.5} parent=11 // pred_check
        %p433 = pneg %p263
      $region46: #{_lambda_.5} parent=11 // pred_check_branch
        %435 = sbr.rel (%p433) target = $region48
      $region47: #{_lambda_.5} parent=11 // pred_region
        _
      $region48: #{_lambda_.5} parent=11 // pred_fallthru
        _
      // Predicated region
      $region49: #{_lambda_.5} parent=11 // pred_check
        %p436 = pneg %p284
      $region50: #{_lambda_.5} parent=11 // pred_check_branch
        %438 = sbr.rel (%p436) target = $region52
      $region51: #{_lambda_.5} parent=11 // pred_region
        _
      $region52: #{_lambda_.5} parent=11 // pred_fallthru
        _
      // Predicated region
      $region53: #{_lambda_.5} parent=11 // pred_check
        %p439 = pneg %p305
      $region54: #{_lambda_.5} parent=11 // pred_check_branch
        %441 = sbr.rel (%p439) target = $region56
      $region55: #{_lambda_.5} parent=11 // pred_region
        _
      $region56: #{_lambda_.5} parent=11 // pred_fallthru
        _
      // Predicated region
      $region57: #{_lambda_.5} parent=11 // pred_check
        %p442 = pneg %p326
      $region58: #{_lambda_.5} parent=11 // pred_check_branch
        %444 = sbr.rel (%p442) target = $region60
      $region59: #{_lambda_.5} parent=11 // pred_region
        _
      $region60: #{_lambda_.5} parent=11 // pred_fallthru
        _
      // Predicated region
      $region61: #{_lambda_.5} parent=11 // pred_check
        %p445 = pneg %p347
      $region62: #{_lambda_.5} parent=11 // pred_check_branch
        %447 = sbr.rel (%p445) target = $region64
      $region63: #{_lambda_.5} parent=11 // pred_region
        _
      $region64: #{_lambda_.5} parent=11 // pred_fallthru
        _
      // Predicated region
      $region65: #{_lambda_.5} parent=11 // pred_check
        %p448 = pneg %p368
      $region66: #{_lambda_.5} parent=11 // pred_check_branch
        %450 = sbr.rel (%p448) target = $region68
      $region67: #{_lambda_.5} parent=11 // pred_region
        _
      $region68: #{_lambda_.5} parent=11 // pred_fallthru
        _
    $region12: #{_lambda_.5} parent=5 // pred_fallthru
      _
    %p451 = scmp.lt.s32.totalorder %s22, 2
    // Predicated region
    $region69: #{_lambda_.5} parent=5 // pred_check
      %p452 = pneg %p451
    $region70: #{_lambda_.5} parent=5 // pred_check_branch
      %454 = sbr.rel (%p452) target = $region72
    $region71: #{_lambda_.5} parent=5 // pred_region
      // Predicated region
      $region73: #{_lambda_.5} parent=71 // pred_check
        %p455 = pneg %p42
      $region74: #{_lambda_.5} parent=71 // pred_check_branch
        %457 = sbr.rel (%p455) target = $region76
      $region75: #{_lambda_.5} parent=71 // pred_region
        %p458 = scmp.lt.s32.totalorder %s22, 1
        %s459 = scalar_select %p458, %s22, 1
        %s460 = smul.addr %s459, 8
        %s461 = scalar_lea.vmem %s0, %s460
      $region76: #{_lambda_.5} parent=71 // pred_fallthru
        _
      // Predicated region
      $region77: #{_lambda_.5} parent=71 // pred_check
        %p462 = pneg %p68
      $region78: #{_lambda_.5} parent=71 // pred_check_branch
        %464 = sbr.rel (%p462) target = $region80
      $region79: #{_lambda_.5} parent=71 // pred_region
        %p465 = scmp.lt.s32.totalorder %s22, 1
        %s466 = scalar_select %p465, %s22, 1
        %s467 = scalar_lea.vmem %s1, %s466
      $region80: #{_lambda_.5} parent=71 // pred_fallthru
        _
    $region72: #{_lambda_.5} parent=5 // pred_fallthru
      _
    %p468 = scmp.le.s32.totalorder 1, %s22
    %p469 = scmp.lt.s32.totalorder %s22, 3
    %p470 = pnand %p468, %p469
    %p471 = pneg %p470
    // Predicated region
    $region81: #{_lambda_.5} parent=5 // pred_check
      _
    $region82: #{_lambda_.5} parent=5 // pred_check_branch
      %473 = sbr.rel (%p470) target = $region84
    $region83: #{_lambda_.5} parent=5 // pred_region
      %s474 = ssub.s32 %s22, 1
      %p475 = scmp.lt.s32.totalorder %s27, 1
      %s476 = scalar_select %p475, %s27, 1
      %s477 = smul.addr %s476, 8
      %s478 = scalar_lea.vmem %s0, %s477
      %p479 = pneg %p48
      %p480 = pneg %p45
      %p481 = scmp.lt.s32.totalorder %s27, 1
      %s482 = scalar_select %p481, %s27, 1
      %s483 = scalar_lea.vmem %s1, %s482
      %p484 = pneg %p74
      %p485 = pneg %p71
      %p486 = pneg %p95
      %p487 = pneg %p92
      %p488 = pneg %p116
      %p489 = pneg %p113
      %p490 = pneg %p137
      %p491 = pneg %p134
      %p492 = pneg %p158
      %p493 = pneg %p155
      %p494 = pneg %p179
      %p495 = pneg %p176
      %p496 = pneg %p200
      %p497 = pneg %p197
      %p498 = pneg %p221
      %p499 = pneg %p218
      %p500 = pneg %p242
      %p501 = pneg %p239
      %p502 = pneg %p263
      %p503 = pneg %p260
      %p504 = pneg %p284
      %p505 = pneg %p281
      %p506 = pneg %p305
      %p507 = pneg %p302
      %p508 = pneg %p326
      %p509 = pneg %p323
      %p510 = pneg %p347
      %p511 = pneg %p344
      %p512 = pneg %p368
      %p513 = pneg %p365
      %p514 = pneg %p394
      %p515 = pneg %p391
      %p516 = scmp.lt.s32.totalorder %s27, 1
      %s517 = scalar_select %p516, %s27, 1
      %s518 = smul.addr %s517, 8
      %s519 = scalar_lea.vmem %s16, %s518
      %p520 = scmp.lt.s32.totalorder %s27, 1
      %s521 = scalar_select %p520, %s27, 1
      %s522 = smul.addr %s521, 8
      %s523 = scalar_lea.vmem %s0, %s522
      %p524 = scmp.lt.s32.totalorder %s27, 1
      %s525 = scalar_select %p524, %s27, 1
      %s526 = scalar_lea.vmem %s1, %s525
      %p527 = scmp.lt.s32.totalorder %s27, 1
      %s528 = scalar_select %p527, %s27, 1
      %s529 = smul.addr %s528, 8
      %s530 = scalar_lea.vmem %s16, %s529
      %v532 = vld [vmem:[%s523] sm:$0x1f]
      %v533 = vld [vmem:[%s526] sm:$0x1]
      %v534 = vld [vmem:[%s2] sm:$0xf]
      %v535 = vld [vmem:[%s2 + $0x4] sm:$0xf]
      %v536 = vld [vmem:[%s2 + $0x8] sm:$0xf]
      %v537 = vld [vmem:[%s2 + $0xc] sm:$0xf]
      %v538 = vld [vmem:[%s3] sm:$0x1]
      %v539 = vpack.c.bf16 %v532, %v532
      %v541 = vlaneseq
      %v542 = vshrl.u32 %v541, 7
      %v543 = vsub.s32 0, %v542
      %v544 = vrot.slane %v538, %v543
      %v550 = vunpack.c.l.b16 %v534
      %v551 = vunpack.c.l.b16 %v535
      %v552 = vunpack.c.l.b16 %v536
      %v553 = vunpack.c.l.b16 %v537
      %v554 = vpack.c.b16 %v551, %v550
      %v555 = vpack.c.b16 %v553, %v552
      %vm558 = vcmask 261120
      %v560 = vsel %vm558, %v539, 0
      %562 = vmatprep.subr.bf16.mxu0 0
      %563 = vmatpush1.bf16.msra.mxu0 %v554
      %564 = vmatprep.subr.bf16.mxu0 0
      %565 = vmatpush1.bf16.msra.mxu0 %v555
      %566 = vmatprep.subr.bf16.mxu0 0
      %567 = vmatpush1.bf16.msra.mxu0 0
      %568 = vmatprep.subr.bf16.mxu0 0
      %569 = vmatpush1.bf16.msra.mxu0 0
      %570 = vmatprep.subr.bf16.mxu0 0
      %571 = vmatpush1.bf16.msra.mxu0 0
      %572 = vmatprep.subr.bf16.mxu0 0
      %573 = vmatpush1.bf16.msra.mxu0 0
      %574 = vmatprep.subr.bf16.mxu0 0
      %575 = vmatpush1.bf16.msra.mxu0 0
      %576 = vmatprep.subr.bf16.mxu0 0
      %577 = vmatpush1.bf16.msra.mxu0 0
      %578 = vmatprep.subr.bf16.mxu0 0
      %579 = vmatpush1.bf16.msra.mxu0 0
      %580 = vmatprep.subr.bf16.mxu0 0
      %581 = vmatpush1.bf16.msra.mxu0 0
      %582 = vmatprep.subr.bf16.mxu0 0
      %583 = vmatpush1.bf16.msra.mxu0 0
      %584 = vmatprep.subr.bf16.mxu0 0
      %585 = vmatpush1.bf16.msra.mxu0 0
      %586 = vmatprep.subr.bf16.mxu0 0
      %587 = vmatpush1.bf16.msra.mxu0 0
      %588 = vmatprep.subr.bf16.mxu0 0
      %589 = vmatpush1.bf16.msra.mxu0 0
      %590 = vmatprep.subr.bf16.mxu0 0
      %591 = vmatpush1.bf16.msra.mxu0 0
      %592 = vmatprep.subr.bf16.mxu0 0
      %593 = vmatpush1.bf16.msra.mxu0 0
      %594 = vmatprep.mubr.bf16.mxu0 0
      %595 = vmatmul.mubr.bf16.gmra.mrb[0].mxu0 %v560
      %v596 = vpop.f32.mrb[0].mxu0
      %v597 = vadd.f32 %v544, %v596
      %v598 = vpop.f32.mrb[0].mxu0
      %v599 = vpop.f32.mrb[0].mxu0
      %v600 = vpop.f32.mrb[0].mxu0
      %601 = vdwg.mxu0
      %v602 = vld [vmem:[%s4] sm:$0xff]
      %v603 = vld [vmem:[%s4 + $0x8] sm:$0xff]
      %v604 = vld [vmem:[%s4 + $0x10] sm:$0xff]
      %v605 = vld [vmem:[%s4 + $0x18] sm:$0xff]
      %v606 = vld [vmem:[%s5] sm:$0x1]
      %608 = vrot.lane.b32.xlu0 %v597, 96
      %v609 = vpop.permute.xlu0 %608
      %vm610 = vcmask 64512
      %v611 = vsel %vm610, %v597, 0
      %v613 = vsel %vm610, %v609, 0
      %615 = vmatprep.subr.mxu0 0.0
      %616 = vmatpush1.xpose.msra.mxu0 %v613
      %617 = vmatprep.subr.mxu0 0.0
      %618 = vmatpush1.xpose.msra.mxu0 0.0
      %619 = vmatprep.subr.mxu0 0.0
      %620 = vmatpush1.xpose.msra.mxu0 0.0
      %621 = vmatprep.subr.mxu0 0.0
      %622 = vmatpush1.xpose.msra.mxu0 0.0
      %623 = vmatprep.subr.mxu0 0.0
      %624 = vmatpush1.xpose.msra.mxu0 0.0
      %625 = vmatprep.subr.mxu0 0.0
      %626 = vmatpush1.xpose.msra.mxu0 0.0
      %627 = vmatprep.subr.mxu0 0.0
      %628 = vmatpush1.xpose.msra.mxu0 0.0
      %629 = vmatprep.subr.mxu0 0.0
      %630 = vmatpush1.xpose.msra.mxu0 0.0
      %631 = vmatprep.subr.mxu0 0.0
      %632 = vmatpush1.xpose.msra.mxu0 0.0
      %633 = vmatprep.subr.mxu0 0.0
      %634 = vmatpush1.xpose.msra.mxu0 0.0
      %635 = vmatprep.subr.mxu0 0.0
      %636 = vmatpush1.xpose.msra.mxu0 0.0
      %637 = vmatprep.subr.mxu0 0.0
      %638 = vmatpush1.xpose.msra.mxu0 0.0
      %639 = vmatprep.subr.mxu0 0.0
      %640 = vmatpush1.xpose.msra.mxu0 0.0
      %641 = vmatprep.subr.mxu0 0.0
      %642 = vmatpush1.xpose.msra.mxu0 0.0
      %643 = vmatprep.subr.mxu0 0.0
      %644 = vmatpush1.xpose.msra.mxu0 0.0
      %645 = vmatprep.subr.mxu0 0.0
      %646 = vmatpush1.xpose.msra.mxu0 0.0
      %647 = vmatprep.subr.mxu0 0.0
      %648 = vmatpush1.xpose.msra.mxu0 0.0
      %649 = vmatprep.subr.mxu0 0.0
      %650 = vmatpush1.xpose.msra.mxu0 0.0
      %651 = vmatprep.subr.mxu0 0.0
      %652 = vmatpush1.xpose.msra.mxu0 0.0
      %653 = vmatprep.subr.mxu0 0.0
      %654 = vmatpush1.xpose.msra.mxu0 0.0
      %655 = vmatprep.subr.mxu0 0.0
      %656 = vmatpush1.xpose.msra.mxu0 0.0
      %657 = vmatprep.subr.mxu0 0.0
      %658 = vmatpush1.xpose.msra.mxu0 0.0
      %659 = vmatprep.subr.mxu0 0.0
      %660 = vmatpush1.xpose.msra.mxu0 0.0
      %661 = vmatprep.subr.mxu0 0.0
      %662 = vmatpush1.xpose.msra.mxu0 0.0
      %663 = vmatprep.subr.mxu0 0.0
      %664 = vmatpush1.xpose.msra.mxu0 0.0
      %665 = vmatprep.subr.mxu0 0.0
      %666 = vmatpush1.xpose.msra.mxu0 0.0
      %667 = vmatprep.subr.mxu0 0.0
      %668 = vmatpush1.xpose.msra.mxu0 0.0
      %669 = vmatprep.subr.mxu0 0.0
      %670 = vmatpush1.xpose.msra.mxu0 0.0
      %671 = vmatprep.subr.mxu0 0.0
      %672 = vmatpush1.xpose.msra.mxu0 0.0
      %673 = vmatprep.subr.mxu0 0.0
      %674 = vmatpush1.xpose.msra.mxu0 0.0
      %675 = vmatprep.subr.mxu0 0.0
      %676 = vmatpush1.xpose.msra.mxu0 0.0
      %677 = vmatprep.subr.mxu0 0.0
      %678 = vmatpush1.xpose.msra.mxu0 0.0
      %679 = vmatprep.mubr.f32.mxu0 0.0
      %680 = vmatmul.mubr.f32.gmra.mrb[0].mxu0 %v611
      %v681 = vpop.f32.mrb[0].mxu0
      %v682 = vadd.f32 0.0, %v681
      %v683 = vpop.f32.mrb[0].mxu0
      %684 = vdwg.mxu0
      %v685 = vmul.f32 %v682, 0.35355338
      %v687 = vlaneseq
      %v688 = vshrl.u32 %v687, 7
      %v689 = vsub.s32 0, %v688
      %v690 = vrot.slane %v533, %v689
      %v692 = vadd.f32 %v685, %v690
      %vm693 = vcmask 36864
      %v694 = vsel %vm693, %v692, -inf
      %695 = vmax.xlane.f32.xlu0 %v694
      %v696 = vpop.xlane.xlu0 %695
      %v697 = vsub.f32 %v692, %v696
      %v698 = vmul.f32 %v697, 1.442695
      %v699 = vpow.pop %v698
      %v700 = vsel %vm693, %v699, 0.0
      %701 = vadd.xlane.f32.xlu0 %v700
      %v702 = vpop.xlane.xlu0 %701
      %v703 = vrcp.pop %v702
      %v704 = vmul.f32 %v699, %v703
      %705 = vrot.lane.b32.xlu0 %v597, 64
      %v706 = vpop.permute.xlu0 %705
      %vm707 = vcmask 39936
      %v709 = vsel %vm707, %v704, 0
      %vm711 = vcmask 1044480
      %v712 = vsel %vm711, %v706, 0
      %714 = vmatprep.subr.mxu0 0.0
      %715 = vmatpush1.msra.mxu0 %v712
      %716 = vmatprep.subr.mxu0 0.0
      %717 = vmatpush1.msra.mxu0 0.0
      %718 = vmatprep.subr.mxu0 0.0
      %719 = vmatpush1.msra.mxu0 0.0
      %720 = vmatprep.subr.mxu0 0.0
      %721 = vmatpush1.msra.mxu0 0.0
      %722 = vmatprep.subr.mxu0 0.0
      %723 = vmatpush1.msra.mxu0 0.0
      %724 = vmatprep.subr.mxu0 0.0
      %725 = vmatpush1.msra.mxu0 0.0
      %726 = vmatprep.subr.mxu0 0.0
      %727 = vmatpush1.msra.mxu0 0.0
      %728 = vmatprep.subr.mxu0 0.0
      %729 = vmatpush1.msra.mxu0 0.0
      %730 = vmatprep.subr.mxu0 0.0
      %731 = vmatpush1.msra.mxu0 0.0
      %732 = vmatprep.subr.mxu0 0.0
      %733 = vmatpush1.msra.mxu0 0.0
      %734 = vmatprep.subr.mxu0 0.0
      %735 = vmatpush1.msra.mxu0 0.0
      %736 = vmatprep.subr.mxu0 0.0
      %737 = vmatpush1.msra.mxu0 0.0
      %738 = vmatprep.subr.mxu0 0.0
      %739 = vmatpush1.msra.mxu0 0.0
      %740 = vmatprep.subr.mxu0 0.0
      %741 = vmatpush1.msra.mxu0 0.0
      %742 = vmatprep.subr.mxu0 0.0
      %743 = vmatpush1.msra.mxu0 0.0
      %744 = vmatprep.subr.mxu0 0.0
      %745 = vmatpush1.msra.mxu0 0.0
      %746 = vmatprep.subr.mxu0 0.0
      %747 = vmatpush1.msra.mxu0 0.0
      %748 = vmatprep.subr.mxu0 0.0
      %749 = vmatpush1.msra.mxu0 0.0
      %750 = vmatprep.subr.mxu0 0.0
      %751 = vmatpush1.msra.mxu0 0.0
      %752 = vmatprep.subr.mxu0 0.0
      %753 = vmatpush1.msra.mxu0 0.0
      %754 = vmatprep.subr.mxu0 0.0
      %755 = vmatpush1.msra.mxu0 0.0
      %756 = vmatprep.subr.mxu0 0.0
      %757 = vmatpush1.msra.mxu0 0.0
      %758 = vmatprep.subr.mxu0 0.0
      %759 = vmatpush1.msra.mxu0 0.0
      %760 = vmatprep.subr.mxu0 0.0
      %761 = vmatpush1.msra.mxu0 0.0
      %762 = vmatprep.subr.mxu0 0.0
      %763 = vmatpush1.msra.mxu0 0.0
      %764 = vmatprep.subr.mxu0 0.0
      %765 = vmatpush1.msra.mxu0 0.0
      %766 = vmatprep.subr.mxu0 0.0
      %767 = vmatpush1.msra.mxu0 0.0
      %768 = vmatprep.subr.mxu0 0.0
      %769 = vmatpush1.msra.mxu0 0.0
      %770 = vmatprep.subr.mxu0 0.0
      %771 = vmatpush1.msra.mxu0 0.0
      %772 = vmatprep.subr.mxu0 0.0
      %773 = vmatpush1.msra.mxu0 0.0
      %774 = vmatprep.subr.mxu0 0.0
      %775 = vmatpush1.msra.mxu0 0.0
      %776 = vmatprep.subr.mxu0 0.0
      %777 = vmatpush1.msra.mxu0 0.0
      %778 = vmatprep.mubr.f32.mxu0 0.0
      %779 = vmatmul.mubr.f32.gmra.mrb[0].mxu0 %v709
      %v780 = vpop.f32.mrb[0].mxu0
      %v781 = vadd.f32 0.0, %v780
      %v782 = vpop.f32.mrb[0].mxu0
      %783 = vdwg.mxu0
      %784 = vrot.lane.b32.xlu0 %v597, 120
      %v785 = vpop.permute.xlu0 %784
      %786 = vrot.lane.b32.xlu0 %v597, 88
      %v787 = vpop.permute.xlu0 %786
      %v788 = vsel %vm610, %v785, 0
      %v790 = vsel %vm610, %v787, 0
      %792 = vmatprep.subr.mxu0 0.0
      %793 = vmatpush1.xpose.msra.mxu0 %v790
      %794 = vmatprep.subr.mxu0 0.0
      %795 = vmatpush1.xpose.msra.mxu0 0.0
      %796 = vmatprep.subr.mxu0 0.0
      %797 = vmatpush1.xpose.msra.mxu0 0.0
      %798 = vmatprep.subr.mxu0 0.0
      %799 = vmatpush1.xpose.msra.mxu0 0.0
      %800 = vmatprep.subr.mxu0 0.0
      %801 = vmatpush1.xpose.msra.mxu0 0.0
      %802 = vmatprep.subr.mxu0 0.0
      %803 = vmatpush1.xpose.msra.mxu0 0.0
      %804 = vmatprep.subr.mxu0 0.0
      %805 = vmatpush1.xpose.msra.mxu0 0.0
      %806 = vmatprep.subr.mxu0 0.0
      %807 = vmatpush1.xpose.msra.mxu0 0.0
      %808 = vmatprep.subr.mxu0 0.0
      %809 = vmatpush1.xpose.msra.mxu0 0.0
      %810 = vmatprep.subr.mxu0 0.0
      %811 = vmatpush1.xpose.msra.mxu0 0.0
      %812 = vmatprep.subr.mxu0 0.0
      %813 = vmatpush1.xpose.msra.mxu0 0.0
      %814 = vmatprep.subr.mxu0 0.0
      %815 = vmatpush1.xpose.msra.mxu0 0.0
      %816 = vmatprep.subr.mxu0 0.0
      %817 = vmatpush1.xpose.msra.mxu0 0.0
      %818 = vmatprep.subr.mxu0 0.0
      %819 = vmatpush1.xpose.msra.mxu0 0.0
      %820 = vmatprep.subr.mxu0 0.0
      %821 = vmatpush1.xpose.msra.mxu0 0.0
      %822 = vmatprep.subr.mxu0 0.0
      %823 = vmatpush1.xpose.msra.mxu0 0.0
      %824 = vmatprep.subr.mxu0 0.0
      %825 = vmatpush1.xpose.msra.mxu0 0.0
      %826 = vmatprep.subr.mxu0 0.0
      %827 = vmatpush1.xpose.msra.mxu0 0.0
      %828 = vmatprep.subr.mxu0 0.0
      %829 = vmatpush1.xpose.msra.mxu0 0.0
      %830 = vmatprep.subr.mxu0 0.0
      %831 = vmatpush1.xpose.msra.mxu0 0.0
      %832 = vmatprep.subr.mxu0 0.0
      %833 = vmatpush1.xpose.msra.mxu0 0.0
      %834 = vmatprep.subr.mxu0 0.0
      %835 = vmatpush1.xpose.msra.mxu0 0.0
      %836 = vmatprep.subr.mxu0 0.0
      %837 = vmatpush1.xpose.msra.mxu0 0.0
      %838 = vmatprep.subr.mxu0 0.0
      %839 = vmatpush1.xpose.msra.mxu0 0.0
      %840 = vmatprep.subr.mxu0 0.0
      %841 = vmatpush1.xpose.msra.mxu0 0.0
      %842 = vmatprep.subr.mxu0 0.0
      %843 = vmatpush1.xpose.msra.mxu0 0.0
      %844 = vmatprep.subr.mxu0 0.0
      %845 = vmatpush1.xpose.msra.mxu0 0.0
      %846 = vmatprep.subr.mxu0 0.0
      %847 = vmatpush1.xpose.msra.mxu0 0.0
      %848 = vmatprep.subr.mxu0 0.0
      %849 = vmatpush1.xpose.msra.mxu0 0.0
      %850 = vmatprep.subr.mxu0 0.0
      %851 = vmatpush1.xpose.msra.mxu0 0.0
      %852 = vmatprep.subr.mxu0 0.0
      %853 = vmatpush1.xpose.msra.mxu0 0.0
      %854 = vmatprep.subr.mxu0 0.0
      %855 = vmatpush1.xpose.msra.mxu0 0.0
      %856 = vmatprep.mubr.f32.mxu0 0.0
      %857 = vmatmul.mubr.f32.gmra.mrb[0].mxu0 %v788
      %v858 = vpop.f32.mrb[0].mxu0
      %v859 = vadd.f32 0.0, %v858
      %v860 = vpop.f32.mrb[0].mxu0
      %861 = vdwg.mxu0
      %v862 = vmul.f32 %v859, 0.35355338
      %v863 = vadd.f32 %v862, %v690
      %v864 = vsel %vm693, %v863, -inf
      %865 = vmax.xlane.f32.xlu0 %v864
      %v866 = vpop.xlane.xlu0 %865
      %v867 = vsub.f32 %v863, %v866
      %v868 = vmul.f32 %v867, 1.442695
      %v869 = vpow.pop %v868
      %v870 = vsel %vm693, %v869, 0.0
      %871 = vadd.xlane.f32.xlu0 %v870
      %v872 = vpop.xlane.xlu0 %871
      %v873 = vrcp.pop %v872
      %v874 = vmul.f32 %v869, %v873
      %875 = vrot.lane.b32.xlu0 %v597, 56
      %v876 = vpop.permute.xlu0 %875
      %v878 = vsel %vm707, %v874, 0
      %v880 = vsel %vm711, %v876, 0
      %882 = vmatprep.subr.mxu0 0.0
      %883 = vmatpush1.msra.mxu0 %v880
      %884 = vmatprep.subr.mxu0 0.0
      %885 = vmatpush1.msra.mxu0 0.0
      %886 = vmatprep.subr.mxu0 0.0
      %887 = vmatpush1.msra.mxu0 0.0
      %888 = vmatprep.subr.mxu0 0.0
      %889 = vmatpush1.msra.mxu0 0.0
      %890 = vmatprep.subr.mxu0 0.0
      %891 = vmatpush1.msra.mxu0 0.0
      %892 = vmatprep.subr.mxu0 0.0
      %893 = vmatpush1.msra.mxu0 0.0
      %894 = vmatprep.subr.mxu0 0.0
      %895 = vmatpush1.msra.mxu0 0.0
      %896 = vmatprep.subr.mxu0 0.0
      %897 = vmatpush1.msra.mxu0 0.0
      %898 = vmatprep.subr.mxu0 0.0
      %899 = vmatpush1.msra.mxu0 0.0
      %900 = vmatprep.subr.mxu0 0.0
      %901 = vmatpush1.msra.mxu0 0.0
      %902 = vmatprep.subr.mxu0 0.0
      %903 = vmatpush1.msra.mxu0 0.0
      %904 = vmatprep.subr.mxu0 0.0
      %905 = vmatpush1.msra.mxu0 0.0
      %906 = vmatprep.subr.mxu0 0.0
      %907 = vmatpush1.msra.mxu0 0.0
      %908 = vmatprep.subr.mxu0 0.0
      %909 = vmatpush1.msra.mxu0 0.0
      %910 = vmatprep.subr.mxu0 0.0
      %911 = vmatpush1.msra.mxu0 0.0
      %912 = vmatprep.subr.mxu0 0.0
      %913 = vmatpush1.msra.mxu0 0.0
      %914 = vmatprep.subr.mxu0 0.0
      %915 = vmatpush1.msra.mxu0 0.0
      %916 = vmatprep.subr.mxu0 0.0
      %917 = vmatpush1.msra.mxu0 0.0
      %918 = vmatprep.subr.mxu0 0.0
      %919 = vmatpush1.msra.mxu0 0.0
      %920 = vmatprep.subr.mxu0 0.0
      %921 = vmatpush1.msra.mxu0 0.0
      %922 = vmatprep.subr.mxu0 0.0
      %923 = vmatpush1.msra.mxu0 0.0
      %924 = vmatprep.subr.mxu0 0.0
      %925 = vmatpush1.msra.mxu0 0.0
      %926 = vmatprep.subr.mxu0 0.0
      %927 = vmatpush1.msra.mxu0 0.0
      %928 = vmatprep.subr.mxu0 0.0
      %929 = vmatpush1.msra.mxu0 0.0
      %930 = vmatprep.subr.mxu0 0.0
      %931 = vmatpush1.msra.mxu0 0.0
      %932 = vmatprep.subr.mxu0 0.0
      %933 = vmatpush1.msra.mxu0 0.0
      %934 = vmatprep.subr.mxu0 0.0
      %935 = vmatpush1.msra.mxu0 0.0
      %936 = vmatprep.subr.mxu0 0.0
      %937 = vmatpush1.msra.mxu0 0.0
      %938 = vmatprep.subr.mxu0 0.0
      %939 = vmatpush1.msra.mxu0 0.0
      %940 = vmatprep.subr.mxu0 0.0
      %941 = vmatpush1.msra.mxu0 0.0
      %942 = vmatprep.subr.mxu0 0.0
      %943 = vmatpush1.msra.mxu0 0.0
      %944 = vmatprep.subr.mxu0 0.0
      %945 = vmatpush1.msra.mxu0 0.0
      %946 = vmatprep.mubr.f32.mxu0 0.0
      %947 = vmatmul.mubr.f32.gmra.mrb[0].mxu0 %v878
      %v948 = vpop.f32.mrb[0].mxu0
      %v949 = vadd.f32 0.0, %v948
      %v950 = vpop.f32.mrb[0].mxu0
      %951 = vdwg.mxu0
      %v953 = vsel %vm610, %v949, 0
      %955 = vmatprep.subr.mxu0 0.0
      %956 = vmatpush1.msra.mxu0 %v603
      %957 = vmatprep.subr.mxu0 0.0
      %958 = vmatpush1.msra.mxu0 0.0
      %959 = vmatprep.subr.mxu0 0.0
      %960 = vmatpush1.msra.mxu0 0.0
      %961 = vmatprep.subr.mxu0 0.0
      %962 = vmatpush1.msra.mxu0 0.0
      %963 = vmatprep.subr.mxu0 0.0
      %964 = vmatpush1.msra.mxu0 0.0
      %965 = vmatprep.subr.mxu0 0.0
      %966 = vmatpush1.msra.mxu0 0.0
      %967 = vmatprep.subr.mxu0 0.0
      %968 = vmatpush1.msra.mxu0 0.0
      %969 = vmatprep.subr.mxu0 0.0
      %970 = vmatpush1.msra.mxu0 0.0
      %971 = vmatprep.subr.mxu0 0.0
      %972 = vmatpush1.msra.mxu0 0.0
      %973 = vmatprep.subr.mxu0 0.0
      %974 = vmatpush1.msra.mxu0 0.0
      %975 = vmatprep.subr.mxu0 0.0
      %976 = vmatpush1.msra.mxu0 0.0
      %977 = vmatprep.subr.mxu0 0.0
      %978 = vmatpush1.msra.mxu0 0.0
      %979 = vmatprep.subr.mxu0 0.0
      %980 = vmatpush1.msra.mxu0 0.0
      %981 = vmatprep.subr.mxu0 0.0
      %982 = vmatpush1.msra.mxu0 0.0
      %983 = vmatprep.subr.mxu0 0.0
      %984 = vmatpush1.msra.mxu0 0.0
      %985 = vmatprep.subr.mxu0 0.0
      %986 = vmatpush1.msra.mxu0 0.0
      %987 = vmatprep.subr.mxu0 0.0
      %988 = vmatpush1.msra.mxu0 0.0
      %989 = vmatprep.subr.mxu0 0.0
      %990 = vmatpush1.msra.mxu0 0.0
      %991 = vmatprep.subr.mxu0 0.0
      %992 = vmatpush1.msra.mxu0 0.0
      %993 = vmatprep.subr.mxu0 0.0
      %994 = vmatpush1.msra.mxu0 0.0
      %995 = vmatprep.subr.mxu0 0.0
      %996 = vmatpush1.msra.mxu0 0.0
      %997 = vmatprep.subr.mxu0 0.0
      %998 = vmatpush1.msra.mxu0 0.0
      %999 = vmatprep.subr.mxu0 0.0
      %1000 = vmatpush1.msra.mxu0 0.0
      %1001 = vmatprep.subr.mxu0 0.0
      %1002 = vmatpush1.msra.mxu0 0.0
      %1003 = vmatprep.subr.mxu0 0.0
      %1004 = vmatpush1.msra.mxu0 0.0
      %1005 = vmatprep.subr.mxu0 0.0
      %1006 = vmatpush1.msra.mxu0 0.0
      %1007 = vmatprep.subr.mxu0 0.0
      %1008 = vmatpush1.msra.mxu0 0.0
      %1009 = vmatprep.subr.mxu0 0.0
      %1010 = vmatpush1.msra.mxu0 0.0
      %1011 = vmatprep.subr.mxu0 0.0
      %1012 = vmatpush1.msra.mxu0 0.0
      %1013 = vmatprep.subr.mxu0 0.0
      %1014 = vmatpush1.msra.mxu0 0.0
      %1015 = vmatprep.subr.mxu0 0.0
      %1016 = vmatpush1.msra.mxu0 0.0
      %1017 = vmatprep.subr.mxu0 0.0
      %1018 = vmatpush1.msra.mxu0 0.0
      %1019 = vmatprep.mubr.f32.mxu0 0.0
      %1020 = vmatmul.mubr.f32.gmra.mrb[0].mxu0 %v953
      %v1021 = vpop.f32.mrb[0].mxu0
      %v1022 = vadd.f32 0.0, %v1021
      %v1023 = vpop.f32.mrb[0].mxu0
      %1024 = vdwg.mxu0
      %v1026 = vsel %vm610, %v781, 0
      %1028 = vmatprep.subr.mxu0 0.0
      %1029 = vmatpush1.msra.mxu0 %v602
      %1030 = vmatprep.subr.mxu0 0.0
      %1031 = vmatpush1.msra.mxu0 0.0
      %1032 = vmatprep.subr.mxu0 0.0
      %1033 = vmatpush1.msra.mxu0 0.0
      %1034 = vmatprep.subr.mxu0 0.0
      %1035 = vmatpush1.msra.mxu0 0.0
      %1036 = vmatprep.subr.mxu0 0.0
      %1037 = vmatpush1.msra.mxu0 0.0
      %1038 = vmatprep.subr.mxu0 0.0
      %1039 = vmatpush1.msra.mxu0 0.0
      %1040 = vmatprep.subr.mxu0 0.0
      %1041 = vmatpush1.msra.mxu0 0.0
      %1042 = vmatprep.subr.mxu0 0.0
      %1043 = vmatpush1.msra.mxu0 0.0
      %1044 = vmatprep.subr.mxu0 0.0
      %1045 = vmatpush1.msra.mxu0 0.0
      %1046 = vmatprep.subr.mxu0 0.0
      %1047 = vmatpush1.msra.mxu0 0.0
      %1048 = vmatprep.subr.mxu0 0.0
      %1049 = vmatpush1.msra.mxu0 0.0
      %1050 = vmatprep.subr.mxu0 0.0
      %1051 = vmatpush1.msra.mxu0 0.0
      %1052 = vmatprep.subr.mxu0 0.0
      %1053 = vmatpush1.msra.mxu0 0.0
      %1054 = vmatprep.subr.mxu0 0.0
      %1055 = vmatpush1.msra.mxu0 0.0
      %1056 = vmatprep.subr.mxu0 0.0
      %1057 = vmatpush1.msra.mxu0 0.0
      %1058 = vmatprep.subr.mxu0 0.0
      %1059 = vmatpush1.msra.mxu0 0.0
      %1060 = vmatprep.subr.mxu0 0.0
      %1061 = vmatpush1.msra.mxu0 0.0
      %1062 = vmatprep.subr.mxu0 0.0
      %1063 = vmatpush1.msra.mxu0 0.0
      %1064 = vmatprep.subr.mxu0 0.0
      %1065 = vmatpush1.msra.mxu0 0.0
      %1066 = vmatprep.subr.mxu0 0.0
      %1067 = vmatpush1.msra.mxu0 0.0
      %1068 = vmatprep.subr.mxu0 0.0
      %1069 = vmatpush1.msra.mxu0 0.0
      %1070 = vmatprep.subr.mxu0 0.0
      %1071 = vmatpush1.msra.mxu0 0.0
      %1072 = vmatprep.subr.mxu0 0.0
      %1073 = vmatpush1.msra.mxu0 0.0
      %1074 = vmatprep.subr.mxu0 0.0
      %1075 = vmatpush1.msra.mxu0 0.0
      %1076 = vmatprep.subr.mxu0 0.0
      %1077 = vmatpush1.msra.mxu0 0.0
      %1078 = vmatprep.subr.mxu0 0.0
      %1079 = vmatpush1.msra.mxu0 0.0
      %1080 = vmatprep.subr.mxu0 0.0
      %1081 = vmatpush1.msra.mxu0 0.0
      %1082 = vmatprep.subr.mxu0 0.0
      %1083 = vmatpush1.msra.mxu0 0.0
      %1084 = vmatprep.subr.mxu0 0.0
      %1085 = vmatpush1.msra.mxu0 0.0
      %1086 = vmatprep.subr.mxu0 0.0
      %1087 = vmatpush1.msra.mxu0 0.0
      %1088 = vmatprep.subr.mxu0 0.0
      %1089 = vmatpush1.msra.mxu0 0.0
      %1090 = vmatprep.subr.mxu0 0.0
      %1091 = vmatpush1.msra.mxu0 0.0
      %1092 = vmatprep.mubr.f32.mxu0 0.0
      %1093 = vmatmul.mubr.f32.gmra.mrb[0].mxu0 %v1026
      %v1094 = vpop.f32.mrb[0].mxu0
      %v1095 = vadd.f32 %v1022, %v1094
      %v1096 = vpop.f32.mrb[0].mxu0
      %1097 = vdwg.mxu0
      %1098 = vrot.lane.b32.xlu0 %v597, 112
      %v1099 = vpop.permute.xlu0 %1098
      %1100 = vrot.lane.b32.xlu0 %v597, 80
      %v1101 = vpop.permute.xlu0 %1100
      %v1102 = vsel %vm610, %v1099, 0
      %v1104 = vsel %vm610, %v1101, 0
      %1106 = vmatprep.subr.mxu0 0.0
      %1107 = vmatpush1.xpose.msra.mxu0 %v1104
      %1108 = vmatprep.subr.mxu0 0.0
      %1109 = vmatpush1.xpose.msra.mxu0 0.0
      %1110 = vmatprep.subr.mxu0 0.0
      %1111 = vmatpush1.xpose.msra.mxu0 0.0
      %1112 = vmatprep.subr.mxu0 0.0
      %1113 = vmatpush1.xpose.msra.mxu0 0.0
      %1114 = vmatprep.subr.mxu0 0.0
      %1115 = vmatpush1.xpose.msra.mxu0 0.0
      %1116 = vmatprep.subr.mxu0 0.0
      %1117 = vmatpush1.xpose.msra.mxu0 0.0
      %1118 = vmatprep.subr.mxu0 0.0
      %1119 = vmatpush1.xpose.msra.mxu0 0.0
      %1120 = vmatprep.subr.mxu0 0.0
      %1121 = vmatpush1.xpose.msra.mxu0 0.0
      %1122 = vmatprep.subr.mxu0 0.0
      %1123 = vmatpush1.xpose.msra.mxu0 0.0
      %1124 = vmatprep.subr.mxu0 0.0
      %1125 = vmatpush1.xpose.msra.mxu0 0.0
      %1126 = vmatprep.subr.mxu0 0.0
      %1127 = vmatpush1.xpose.msra.mxu0 0.0
      %1128 = vmatprep.subr.mxu0 0.0
      %1129 = vmatpush1.xpose.msra.mxu0 0.0
      %1130 = vmatprep.subr.mxu0 0.0
      %1131 = vmatpush1.xpose.msra.mxu0 0.0
      %1132 = vmatprep.subr.mxu0 0.0
      %1133 = vmatpush1.xpose.msra.mxu0 0.0
      %1134 = vmatprep.subr.mxu0 0.0
      %1135 = vmatpush1.xpose.msra.mxu0 0.0
      %1136 = vmatprep.subr.mxu0 0.0
      %1137 = vmatpush1.xpose.msra.mxu0 0.0
      %1138 = vmatprep.subr.mxu0 0.0
      %1139 = vmatpush1.xpose.msra.mxu0 0.0
      %1140 = vmatprep.subr.mxu0 0.0
      %1141 = vmatpush1.xpose.msra.mxu0 0.0
      %1142 = vmatprep.subr.mxu0 0.0
      %1143 = vmatpush1.xpose.msra.mxu0 0.0
      %1144 = vmatprep.subr.mxu0 0.0
      %1145 = vmatpush1.xpose.msra.mxu0 0.0
      %1146 = vmatprep.subr.mxu0 0.0
      %1147 = vmatpush1.xpose.msra.mxu0 0.0
      %1148 = vmatprep.subr.mxu0 0.0
      %1149 = vmatpush1.xpose.msra.mxu0 0.0
      %1150 = vmatprep.subr.mxu0 0.0
      %1151 = vmatpush1.xpose.msra.mxu0 0.0
      %1152 = vmatprep.subr.mxu0 0.0
      %1153 = vmatpush1.xpose.msra.mxu0 0.0
      %1154 = vmatprep.subr.mxu0 0.0
      %1155 = vmatpush1.xpose.msra.mxu0 0.0
      %1156 = vmatprep.subr.mxu0 0.0
      %1157 = vmatpush1.xpose.msra.mxu0 0.0
      %1158 = vmatprep.subr.mxu0 0.0
      %1159 = vmatpush1.xpose.msra.mxu0 0.0
      %1160 = vmatprep.subr.mxu0 0.0
      %1161 = vmatpush1.xpose.msra.mxu0 0.0
      %1162 = vmatprep.subr.mxu0 0.0
      %1163 = vmatpush1.xpose.msra.mxu0 0.0
      %1164 = vmatprep.subr.mxu0 0.0
      %1165 = vmatpush1.xpose.msra.mxu0 0.0
      %1166 = vmatprep.subr.mxu0 0.0
      %1167 = vmatpush1.xpose.msra.mxu0 0.0
      %1168 = vmatprep.subr.mxu0 0.0
      %1169 = vmatpush1.xpose.msra.mxu0 0.0
      %1170 = vmatprep.mubr.f32.mxu0 0.0
      %1171 = vmatmul.mubr.f32.gmra.mrb[0].mxu0 %v1102
      %v1172 = vpop.f32.mrb[0].mxu0
      %v1173 = vadd.f32 0.0, %v1172
      %v1174 = vpop.f32.mrb[0].mxu0
      %1175 = vdwg.mxu0
      %v1176 = vmul.f32 %v1173, 0.35355338
      %v1177 = vadd.f32 %v1176, %v690
      %v1178 = vsel %vm693, %v1177, -inf
      %1179 = vmax.xlane.f32.xlu0 %v1178
      %v1180 = vpop.xlane.xlu0 %1179
      %v1181 = vsub.f32 %v1177, %v1180
      %v1182 = vmul.f32 %v1181, 1.442695
      %v1183 = vpow.pop %v1182
      %v1184 = vsel %vm693, %v1183, 0.0
      %1185 = vadd.xlane.f32.xlu0 %v1184
      %v1186 = vpop.xlane.xlu0 %1185
      %v1187 = vrcp.pop %v1186
      %v1188 = vmul.f32 %v1183, %v1187
      %1189 = vrot.lane.b32.xlu0 %v597, 48
      %v1190 = vpop.permute.xlu0 %1189
      %v1192 = vsel %vm707, %v1188, 0
      %v1194 = vsel %vm711, %v1190, 0
      %1196 = vmatprep.subr.mxu0 0.0
      %1197 = vmatpush1.msra.mxu0 %v1194
      %1198 = vmatprep.subr.mxu0 0.0
      %1199 = vmatpush1.msra.mxu0 0.0
      %1200 = vmatprep.subr.mxu0 0.0
      %1201 = vmatpush1.msra.mxu0 0.0
      %1202 = vmatprep.subr.mxu0 0.0
      %1203 = vmatpush1.msra.mxu0 0.0
      %1204 = vmatprep.subr.mxu0 0.0
      %1205 = vmatpush1.msra.mxu0 0.0
      %1206 = vmatprep.subr.mxu0 0.0
      %1207 = vmatpush1.msra.mxu0 0.0
      %1208 = vmatprep.subr.mxu0 0.0
      %1209 = vmatpush1.msra.mxu0 0.0
      %1210 = vmatprep.subr.mxu0 0.0
      %1211 = vmatpush1.msra.mxu0 0.0
      %1212 = vmatprep.subr.mxu0 0.0
      %1213 = vmatpush1.msra.mxu0 0.0
      %1214 = vmatprep.subr.mxu0 0.0
      %1215 = vmatpush1.msra.mxu0 0.0
      %1216 = vmatprep.subr.mxu0 0.0
      %1217 = vmatpush1.msra.mxu0 0.0
      %1218 = vmatprep.subr.mxu0 0.0
      %1219 = vmatpush1.msra.mxu0 0.0
      %1220 = vmatprep.subr.mxu0 0.0
      %1221 = vmatpush1.msra.mxu0 0.0
      %1222 = vmatprep.subr.mxu0 0.0
      %1223 = vmatpush1.msra.mxu0 0.0
      %1224 = vmatprep.subr.mxu0 0.0
      %1225 = vmatpush1.msra.mxu0 0.0
      %1226 = vmatprep.subr.mxu0 0.0
      %1227 = vmatpush1.msra.mxu0 0.0
      %1228 = vmatprep.subr.mxu0 0.0
      %1229 = vmatpush1.msra.mxu0 0.0
      %1230 = vmatprep.subr.mxu0 0.0
      %1231 = vmatpush1.msra.mxu0 0.0
      %1232 = vmatprep.subr.mxu0 0.0
      %1233 = vmatpush1.msra.mxu0 0.0
      %1234 = vmatprep.subr.mxu0 0.0
      %1235 = vmatpush1.msra.mxu0 0.0
      %1236 = vmatprep.subr.mxu0 0.0
      %1237 = vmatpush1.msra.mxu0 0.0
      %1238 = vmatprep.subr.mxu0 0.0
      %1239 = vmatpush1.msra.mxu0 0.0
      %1240 = vmatprep.subr.mxu0 0.0
      %1241 = vmatpush1.msra.mxu0 0.0
      %1242 = vmatprep.subr.mxu0 0.0
      %1243 = vmatpush1.msra.mxu0 0.0
      %1244 = vmatprep.subr.mxu0 0.0
      %1245 = vmatpush1.msra.mxu0 0.0
      %1246 = vmatprep.subr.mxu0 0.0
      %1247 = vmatpush1.msra.mxu0 0.0
      %1248 = vmatprep.subr.mxu0 0.0
      %1249 = vmatpush1.msra.mxu0 0.0
      %1250 = vmatprep.subr.mxu0 0.0
      %1251 = vmatpush1.msra.mxu0 0.0
      %1252 = vmatprep.subr.mxu0 0.0
      %1253 = vmatpush1.msra.mxu0 0.0
      %1254 = vmatprep.subr.mxu0 0.0
      %1255 = vmatpush1.msra.mxu0 0.0
      %1256 = vmatprep.subr.mxu0 0.0
      %1257 = vmatpush1.msra.mxu0 0.0
      %1258 = vmatprep.subr.mxu0 0.0
      %1259 = vmatpush1.msra.mxu0 0.0
      %1260 = vmatprep.mubr.f32.mxu0 0.0
      %1261 = vmatmul.mubr.f32.gmra.mrb[0].mxu0 %v1192
      %v1262 = vpop.f32.mrb[0].mxu0
      %v1263 = vadd.f32 0.0, %v1262
      %v1264 = vpop.f32.mrb[0].mxu0
      %1265 = vdwg.mxu0
      %v1267 = vsel %vm610, %v1263, 0
      %1269 = vmatprep.subr.mxu0 0.0
      %1270 = vmatpush1.msra.mxu0 %v604
      %1271 = vmatprep.subr.mxu0 0.0
      %1272 = vmatpush1.msra.mxu0 0.0
      %1273 = vmatprep.subr.mxu0 0.0
      %1274 = vmatpush1.msra.mxu0 0.0
      %1275 = vmatprep.subr.mxu0 0.0
      %1276 = vmatpush1.msra.mxu0 0.0
      %1277 = vmatprep.subr.mxu0 0.0
      %1278 = vmatpush1.msra.mxu0 0.0
      %1279 = vmatprep.subr.mxu0 0.0
      %1280 = vmatpush1.msra.mxu0 0.0
      %1281 = vmatprep.subr.mxu0 0.0
      %1282 = vmatpush1.msra.mxu0 0.0
      %1283 = vmatprep.subr.mxu0 0.0
      %1284 = vmatpush1.msra.mxu0 0.0
      %1285 = vmatprep.subr.mxu0 0.0
      %1286 = vmatpush1.msra.mxu0 0.0
      %1287 = vmatprep.subr.mxu0 0.0
      %1288 = vmatpush1.msra.mxu0 0.0
      %1289 = vmatprep.subr.mxu0 0.0
      %1290 = vmatpush1.msra.mxu0 0.0
      %1291 = vmatprep.subr.mxu0 0.0
      %1292 = vmatpush1.msra.mxu0 0.0
      %1293 = vmatprep.subr.mxu0 0.0
      %1294 = vmatpush1.msra.mxu0 0.0
      %1295 = vmatprep.subr.mxu0 0.0
      %1296 = vmatpush1.msra.mxu0 0.0
      %1297 = vmatprep.subr.mxu0 0.0
      %1298 = vmatpush1.msra.mxu0 0.0
      %1299 = vmatprep.subr.mxu0 0.0
      %1300 = vmatpush1.msra.mxu0 0.0
      %1301 = vmatprep.subr.mxu0 0.0
      %1302 = vmatpush1.msra.mxu0 0.0
      %1303 = vmatprep.subr.mxu0 0.0
      %1304 = vmatpush1.msra.mxu0 0.0
      %1305 = vmatprep.subr.mxu0 0.0
      %1306 = vmatpush1.msra.mxu0 0.0
      %1307 = vmatprep.subr.mxu0 0.0
      %1308 = vmatpush1.msra.mxu0 0.0
      %1309 = vmatprep.subr.mxu0 0.0
      %1310 = vmatpush1.msra.mxu0 0.0
      %1311 = vmatprep.subr.mxu0 0.0
      %1312 = vmatpush1.msra.mxu0 0.0
      %1313 = vmatprep.subr.mxu0 0.0
      %1314 = vmatpush1.msra.mxu0 0.0
      %1315 = vmatprep.subr.mxu0 0.0
      %1316 = vmatpush1.msra.mxu0 0.0
      %1317 = vmatprep.subr.mxu0 0.0
      %1318 = vmatpush1.msra.mxu0 0.0
      %1319 = vmatprep.subr.mxu0 0.0
      %1320 = vmatpush1.msra.mxu0 0.0
      %1321 = vmatprep.subr.mxu0 0.0
      %1322 = vmatpush1.msra.mxu0 0.0
      %1323 = vmatprep.subr.mxu0 0.0
      %1324 = vmatpush1.msra.mxu0 0.0
      %1325 = vmatprep.subr.mxu0 0.0
      %1326 = vmatpush1.msra.mxu0 0.0
      %1327 = vmatprep.subr.mxu0 0.0
      %1328 = vmatpush1.msra.mxu0 0.0
      %1329 = vmatprep.subr.mxu0 0.0
      %1330 = vmatpush1.msra.mxu0 0.0
      %1331 = vmatprep.subr.mxu0 0.0
      %1332 = vmatpush1.msra.mxu0 0.0
      %1333 = vmatprep.mubr.f32.mxu0 0.0
      %1334 = vmatmul.mubr.f32.gmra.mrb[0].mxu0 %v1267
      %v1335 = vpop.f32.mrb[0].mxu0
      %v1336 = vadd.f32 0.0, %v1335
      %v1337 = vpop.f32.mrb[0].mxu0
      %1338 = vdwg.mxu0
      %v1339 = vadd.f32 %v1095, %v1336
      %1340 = vrot.lane.b32.xlu0 %v597, 104
      %v1341 = vpop.permute.xlu0 %1340
      %1342 = vrot.lane.b32.xlu0 %v597, 72
      %v1343 = vpop.permute.xlu0 %1342
      %v1344 = vsel %vm610, %v1341, 0
      %v1346 = vsel %vm610, %v1343, 0
      %1348 = vmatprep.subr.mxu0 0.0
      %1349 = vmatpush1.xpose.msra.mxu0 %v1346
      %1350 = vmatprep.subr.mxu0 0.0
      %1351 = vmatpush1.xpose.msra.mxu0 0.0
      %1352 = vmatprep.subr.mxu0 0.0
      %1353 = vmatpush1.xpose.msra.mxu0 0.0
      %1354 = vmatprep.subr.mxu0 0.0
      %1355 = vmatpush1.xpose.msra.mxu0 0.0
      %1356 = vmatprep.subr.mxu0 0.0
      %1357 = vmatpush1.xpose.msra.mxu0 0.0
      %1358 = vmatprep.subr.mxu0 0.0
      %1359 = vmatpush1.xpose.msra.mxu0 0.0
      %1360 = vmatprep.subr.mxu0 0.0
      %1361 = vmatpush1.xpose.msra.mxu0 0.0
      %1362 = vmatprep.subr.mxu0 0.0
      %1363 = vmatpush1.xpose.msra.mxu0 0.0
      %1364 = vmatprep.subr.mxu0 0.0
      %1365 = vmatpush1.xpose.msra.mxu0 0.0
      %1366 = vmatprep.subr.mxu0 0.0
      %1367 = vmatpush1.xpose.msra.mxu0 0.0
      %1368 = vmatprep.subr.mxu0 0.0
      %1369 = vmatpush1.xpose.msra.mxu0 0.0
      %1370 = vmatprep.subr.mxu0 0.0
      %1371 = vmatpush1.xpose.msra.mxu0 0.0
      %1372 = vmatprep.subr.mxu0 0.0
      %1373 = vmatpush1.xpose.msra.mxu0 0.0
      %1374 = vmatprep.subr.mxu0 0.0
      %1375 = vmatpush1.xpose.msra.mxu0 0.0
      %1376 = vmatprep.subr.mxu0 0.0
      %1377 = vmatpush1.xpose.msra.mxu0 0.0
      %1378 = vmatprep.subr.mxu0 0.0
      %1379 = vmatpush1.xpose.msra.mxu0 0.0
      %1380 = vmatprep.subr.mxu0 0.0
      %1381 = vmatpush1.xpose.msra.mxu0 0.0
      %1382 = vmatprep.subr.mxu0 0.0
      %1383 = vmatpush1.xpose.msra.mxu0 0.0
      %1384 = vmatprep.subr.mxu0 0.0
      %1385 = vmatpush1.xpose.msra.mxu0 0.0
      %1386 = vmatprep.subr.mxu0 0.0
      %1387 = vmatpush1.xpose.msra.mxu0 0.0
      %1388 = vmatprep.subr.mxu0 0.0
      %1389 = vmatpush1.xpose.msra.mxu0 0.0
      %1390 = vmatprep.subr.mxu0 0.0
      %1391 = vmatpush1.xpose.msra.mxu0 0.0
      %1392 = vmatprep.subr.mxu0 0.0
      %1393 = vmatpush1.xpose.msra.mxu0 0.0
      %1394 = vmatprep.subr.mxu0 0.0
      %1395 = vmatpush1.xpose.msra.mxu0 0.0
      %1396 = vmatprep.subr.mxu0 0.0
      %1397 = vmatpush1.xpose.msra.mxu0 0.0
      %1398 = vmatprep.subr.mxu0 0.0
      %1399 = vmatpush1.xpose.msra.mxu0 0.0
      %1400 = vmatprep.subr.mxu0 0.0
      %1401 = vmatpush1.xpose.msra.mxu0 0.0
      %1402 = vmatprep.subr.mxu0 0.0
      %1403 = vmatpush1.xpose.msra.mxu0 0.0
      %1404 = vmatprep.subr.mxu0 0.0
      %1405 = vmatpush1.xpose.msra.mxu0 0.0
      %1406 = vmatprep.subr.mxu0 0.0
      %1407 = vmatpush1.xpose.msra.mxu0 0.0
      %1408 = vmatprep.subr.mxu0 0.0
      %1409 = vmatpush1.xpose.msra.mxu0 0.0
      %1410 = vmatprep.subr.mxu0 0.0
      %1411 = vmatpush1.xpose.msra.mxu0 0.0
      %1412 = vmatprep.mubr.f32.mxu0 0.0
      %1413 = vmatmul.mubr.f32.gmra.mrb[0].mxu0 %v1344
      %v1414 = vpop.f32.mrb[0].mxu0
      %v1415 = vadd.f32 0.0, %v1414
      %v1416 = vpop.f32.mrb[0].mxu0
      %1417 = vdwg.mxu0
      %v1418 = vmul.f32 %v1415, 0.35355338
      %v1419 = vadd.f32 %v1418, %v690
      %v1420 = vsel %vm693, %v1419, -inf
      %1421 = vmax.xlane.f32.xlu0 %v1420
      %v1422 = vpop.xlane.xlu0 %1421
      %v1423 = vsub.f32 %v1419, %v1422
      %v1424 = vmul.f32 %v1423, 1.442695
      %v1425 = vpow.pop %v1424
      %v1426 = vsel %vm693, %v1425, 0.0
      %1427 = vadd.xlane.f32.xlu0 %v1426
      %v1428 = vpop.xlane.xlu0 %1427
      %v1429 = vrcp.pop %v1428
      %v1430 = vmul.f32 %v1425, %v1429
      %1431 = vrot.lane.b32.xlu0 %v597, 40
      %v1432 = vpop.permute.xlu0 %1431
      %v1434 = vsel %vm707, %v1430, 0
      %v1436 = vsel %vm711, %v1432, 0
      %1438 = vmatprep.subr.mxu0 0.0
      %1439 = vmatpush1.msra.mxu0 %v1436
      %1440 = vmatprep.subr.mxu0 0.0
      %1441 = vmatpush1.msra.mxu0 0.0
      %1442 = vmatprep.subr.mxu0 0.0
      %1443 = vmatpush1.msra.mxu0 0.0
      %1444 = vmatprep.subr.mxu0 0.0
      %1445 = vmatpush1.msra.mxu0 0.0
      %1446 = vmatprep.subr.mxu0 0.0
      %1447 = vmatpush1.msra.mxu0 0.0
      %1448 = vmatprep.subr.mxu0 0.0
      %1449 = vmatpush1.msra.mxu0 0.0
      %1450 = vmatprep.subr.mxu0 0.0
      %1451 = vmatpush1.msra.mxu0 0.0
      %1452 = vmatprep.subr.mxu0 0.0
      %1453 = vmatpush1.msra.mxu0 0.0
      %1454 = vmatprep.subr.mxu0 0.0
      %1455 = vmatpush1.msra.mxu0 0.0
      %1456 = vmatprep.subr.mxu0 0.0
      %1457 = vmatpush1.msra.mxu0 0.0
      %1458 = vmatprep.subr.mxu0 0.0
      %1459 = vmatpush1.msra.mxu0 0.0
      %1460 = vmatprep.subr.mxu0 0.0
      %1461 = vmatpush1.msra.mxu0 0.0
      %1462 = vmatprep.subr.mxu0 0.0
      %1463 = vmatpush1.msra.mxu0 0.0
      %1464 = vmatprep.subr.mxu0 0.0
      %1465 = vmatpush1.msra.mxu0 0.0
      %1466 = vmatprep.subr.mxu0 0.0
      %1467 = vmatpush1.msra.mxu0 0.0
      %1468 = vmatprep.subr.mxu0 0.0
      %1469 = vmatpush1.msra.mxu0 0.0
      %1470 = vmatprep.subr.mxu0 0.0
      %1471 = vmatpush1.msra.mxu0 0.0
      %1472 = vmatprep.subr.mxu0 0.0
      %1473 = vmatpush1.msra.mxu0 0.0
      %1474 = vmatprep.subr.mxu0 0.0
      %1475 = vmatpush1.msra.mxu0 0.0
      %1476 = vmatprep.subr.mxu0 0.0
      %1477 = vmatpush1.msra.mxu0 0.0
      %1478 = vmatprep.subr.mxu0 0.0
      %1479 = vmatpush1.msra.mxu0 0.0
      %1480 = vmatprep.subr.mxu0 0.0
      %1481 = vmatpush1.msra.mxu0 0.0
      %1482 = vmatprep.subr.mxu0 0.0
      %1483 = vmatpush1.msra.mxu0 0.0
      %1484 = vmatprep.subr.mxu0 0.0
      %1485 = vmatpush1.msra.mxu0 0.0
      %1486 = vmatprep.subr.mxu0 0.0
      %1487 = vmatpush1.msra.mxu0 0.0
      %1488 = vmatprep.subr.mxu0 0.0
      %1489 = vmatpush1.msra.mxu0 0.0
      %1490 = vmatprep.subr.mxu0 0.0
      %1491 = vmatpush1.msra.mxu0 0.0
      %1492 = vmatprep.subr.mxu0 0.0
      %1493 = vmatpush1.msra.mxu0 0.0
      %1494 = vmatprep.subr.mxu0 0.0
      %1495 = vmatpush1.msra.mxu0 0.0
      %1496 = vmatprep.subr.mxu0 0.0
      %1497 = vmatpush1.msra.mxu0 0.0
      %1498 = vmatprep.subr.mxu0 0.0
      %1499 = vmatpush1.msra.mxu0 0.0
      %1500 = vmatprep.subr.mxu0 0.0
      %1501 = vmatpush1.msra.mxu0 0.0
      %1502 = vmatprep.mubr.f32.mxu0 0.0
      %1503 = vmatmul.mubr.f32.gmra.mrb[0].mxu0 %v1434
      %v1504 = vpop.f32.mrb[0].mxu0
      %v1505 = vadd.f32 0.0, %v1504
      %v1506 = vpop.f32.mrb[0].mxu0
      %1507 = vdwg.mxu0
      %v1509 = vsel %vm610, %v1505, 0
      %1511 = vmatprep.subr.mxu0 0.0
      %1512 = vmatpush1.msra.mxu0 %v605
      %1513 = vmatprep.subr.mxu0 0.0
      %1514 = vmatpush1.msra.mxu0 0.0
      %1515 = vmatprep.subr.mxu0 0.0
      %1516 = vmatpush1.msra.mxu0 0.0
      %1517 = vmatprep.subr.mxu0 0.0
      %1518 = vmatpush1.msra.mxu0 0.0
      %1519 = vmatprep.subr.mxu0 0.0
      %1520 = vmatpush1.msra.mxu0 0.0
      %1521 = vmatprep.subr.mxu0 0.0
      %1522 = vmatpush1.msra.mxu0 0.0
      %1523 = vmatprep.subr.mxu0 0.0
      %1524 = vmatpush1.msra.mxu0 0.0
      %1525 = vmatprep.subr.mxu0 0.0
      %1526 = vmatpush1.msra.mxu0 0.0
      %1527 = vmatprep.subr.mxu0 0.0
      %1528 = vmatpush1.msra.mxu0 0.0
      %1529 = vmatprep.subr.mxu0 0.0
      %1530 = vmatpush1.msra.mxu0 0.0
      %1531 = vmatprep.subr.mxu0 0.0
      %1532 = vmatpush1.msra.mxu0 0.0
      %1533 = vmatprep.subr.mxu0 0.0
      %1534 = vmatpush1.msra.mxu0 0.0
      %1535 = vmatprep.subr.mxu0 0.0
      %1536 = vmatpush1.msra.mxu0 0.0
      %1537 = vmatprep.subr.mxu0 0.0
      %1538 = vmatpush1.msra.mxu0 0.0
      %1539 = vmatprep.subr.mxu0 0.0
      %1540 = vmatpush1.msra.mxu0 0.0
      %1541 = vmatprep.subr.mxu0 0.0
      %1542 = vmatpush1.msra.mxu0 0.0
      %1543 = vmatprep.subr.mxu0 0.0
      %1544 = vmatpush1.msra.mxu0 0.0
      %1545 = vmatprep.subr.mxu0 0.0
      %1546 = vmatpush1.msra.mxu0 0.0
      %1547 = vmatprep.subr.mxu0 0.0
      %1548 = vmatpush1.msra.mxu0 0.0
      %1549 = vmatprep.subr.mxu0 0.0
      %1550 = vmatpush1.msra.mxu0 0.0
      %1551 = vmatprep.subr.mxu0 0.0
      %1552 = vmatpush1.msra.mxu0 0.0
      %1553 = vmatprep.subr.mxu0 0.0
      %1554 = vmatpush1.msra.mxu0 0.0
      %1555 = vmatprep.subr.mxu0 0.0
      %1556 = vmatpush1.msra.mxu0 0.0
      %1557 = vmatprep.subr.mxu0 0.0
      %1558 = vmatpush1.msra.mxu0 0.0
      %1559 = vmatprep.subr.mxu0 0.0
      %1560 = vmatpush1.msra.mxu0 0.0
      %1561 = vmatprep.subr.mxu0 0.0
      %1562 = vmatpush1.msra.mxu0 0.0
      %1563 = vmatprep.subr.mxu0 0.0
      %1564 = vmatpush1.msra.mxu0 0.0
      %1565 = vmatprep.subr.mxu0 0.0
      %1566 = vmatpush1.msra.mxu0 0.0
      %1567 = vmatprep.subr.mxu0 0.0
      %1568 = vmatpush1.msra.mxu0 0.0
      %1569 = vmatprep.subr.mxu0 0.0
      %1570 = vmatpush1.msra.mxu0 0.0
      %1571 = vmatprep.subr.mxu0 0.0
      %1572 = vmatpush1.msra.mxu0 0.0
      %1573 = vmatprep.subr.mxu0 0.0
      %1574 = vmatpush1.msra.mxu0 0.0
      %1575 = vmatprep.mubr.f32.mxu0 0.0
      %1576 = vmatmul.mubr.f32.gmra.mrb[0].mxu0 %v1509
      %v1577 = vpop.f32.mrb[0].mxu0
      %v1578 = vadd.f32 0.0, %v1577
      %v1579 = vpop.f32.mrb[0].mxu0
      %1580 = vdwg.mxu0
      %v1581 = vadd.f32 %v1339, %v1578
      %v1583 = vlaneseq
      %v1584 = vshrl.u32 %v1583, 7
      %v1585 = vsub.s32 0, %v1584
      %v1586 = vrot.slane %v606, %v1585
      %v1588 = vadd.f32 %v1581, %v1586
      %v1589 = vadd.f32 %v532, %v1588
      %v1590 = vld [vmem:[%s6] sm:$0x1]
      %v1591 = vld [vmem:[%s7] sm:$0x1]
      %vm1592 = vcmask 258048
      %v1593 = vsel %vm1592, %v1589, 0.0
      %1594 = vadd.xlane.f32.xlu0 %v1593
      %v1595 = vpop.xlane.xlu0 %1594
      %v1596 = vrcp.pop 32.0
      %v1597 = vmul.f32 %v1595, %v1596
      %v1598 = vsub.f32 %v1589, %v1597
      %v1599 = vmul.f32 %v1598, %v1598
      %v1600 = vsel %vm1592, %v1599, 0.0
      %1601 = vadd.xlane.f32.xlu0 %v1600
      %v1602 = vpop.xlane.xlu0 %1601
      %v1603 = vmul.f32 %v1602, %v1596
      %v1604 = vadd.f32 %v1603, 1e-05
      %v1605 = vrsqrt.pop %v1604
      %v1606 = vmul.f32 %v1598, %v1605
      %v1608 = vlaneseq
      %v1609 = vshrl.u32 %v1608, 7
      %v1610 = vsub.s32 0, %v1609
      %v1611 = vrot.slane %v1590, %v1610
      %v1613 = vmul.f32 %v1606, %v1611
      %v1615 = vlaneseq
      %v1616 = vshrl.u32 %v1615, 7
      %v1617 = vsub.s32 0, %v1616
      %v1618 = vrot.slane %v1591, %v1617
      %v1620 = vadd.f32 %v1613, %v1618
      %v1621 = vld [vmem:[%s8] sm:$0xf]
      %v1622 = vld [vmem:[%s8 + $0x4] sm:$0xf]
      %v1623 = vld [vmem:[%s8 + $0x8] sm:$0xf]
      %v1624 = vld [vmem:[%s8 + $0xc] sm:$0xf]
      %v1625 = vld [vmem:[%s9] sm:$0x1]
      %v1626 = vld [vmem:[%s10] sm:$0xf]
      %v1627 = vld [vmem:[%s10 + $0x4] sm:$0xf]
      %v1628 = vld [vmem:[%s10 + $0x8] sm:$0xf]
      %v1629 = vld [vmem:[%s10 + $0xc] sm:$0xf]
      %v1630 = vld [vmem:[%s10 + $0x10] sm:$0xf]
      %v1631 = vld [vmem:[%s10 + $0x14] sm:$0xf]
      %v1632 = vld [vmem:[%s10 + $0x18] sm:$0xf]
      %v1633 = vld [vmem:[%s10 + $0x1c] sm:$0xf]
      %v1634 = vld [vmem:[%s10 + $0x20] sm:$0xf]
      %v1635 = vld [vmem:[%s10 + $0x24] sm:$0xf]
      %v1636 = vld [vmem:[%s10 + $0x28] sm:$0xf]
      %v1637 = vld [vmem:[%s10 + $0x2c] sm:$0xf]
      %v1638 = vld [vmem:[%s10 + $0x30] sm:$0xf]
      %v1639 = vld [vmem:[%s10 + $0x34] sm:$0xf]
      %v1640 = vld [vmem:[%s10 + $0x38] sm:$0xf]
      %v1641 = vld [vmem:[%s10 + $0x3c] sm:$0xf]
      %v1642 = vld [vmem:[%s11] sm:$0x1]
      %v1643 = vpack.c.bf16 %v1620, %v1620
      %v1645 = vlaneseq
      %v1646 = vshrl.u32 %v1645, 7
      %v1647 = vsub.s32 0, %v1646
      %v1648 = vrot.slane %v1625, %v1647
      %v1654 = vunpack.c.l.b16 %v1621
      %v1655 = vunpack.c.l.b16 %v1622
      %v1656 = vunpack.c.l.b16 %v1623
      %v1657 = vunpack.c.l.b16 %v1624
      %v1658 = vpack.c.b16 %v1655, %v1654
      %v1659 = vpack.c.b16 %v1657, %v1656
      %v1663 = vsel %vm558, %v1643, 0
      %1665 = vmatprep.subr.bf16.mxu0 0
      %1666 = vmatpush1.bf16.msra.mxu0 %v1658
      %1667 = vmatprep.subr.bf16.mxu0 0
      %1668 = vmatpush1.bf16.msra.mxu0 %v1659
      %1669 = vmatprep.subr.bf16.mxu0 0
      %1670 = vmatpush1.bf16.msra.mxu0 0
      %1671 = vmatprep.subr.bf16.mxu0 0
      %1672 = vmatpush1.bf16.msra.mxu0 0
      %1673 = vmatprep.subr.bf16.mxu0 0
      %1674 = vmatpush1.bf16.msra.mxu0 0
      %1675 = vmatprep.subr.bf16.mxu0 0
      %1676 = vmatpush1.bf16.msra.mxu0 0
      %1677 = vmatprep.subr.bf16.mxu0 0
      %1678 = vmatpush1.bf16.msra.mxu0 0
      %1679 = vmatprep.subr.bf16.mxu0 0
      %1680 = vmatpush1.bf16.msra.mxu0 0
      %1681 = vmatprep.subr.bf16.mxu0 0
      %1682 = vmatpush1.bf16.msra.mxu0 0
      %1683 = vmatprep.subr.bf16.mxu0 0
      %1684 = vmatpush1.bf16.msra.mxu0 0
      %1685 = vmatprep.subr.bf16.mxu0 0
      %1686 = vmatpush1.bf16.msra.mxu0 0
      %1687 = vmatprep.subr.bf16.mxu0 0
      %1688 = vmatpush1.bf16.msra.mxu0 0
      %1689 = vmatprep.subr.bf16.mxu0 0
      %1690 = vmatpush1.bf16.msra.mxu0 0
      %1691 = vmatprep.subr.bf16.mxu0 0
      %1692 = vmatpush1.bf16.msra.mxu0 0
      %1693 = vmatprep.subr.bf16.mxu0 0
      %1694 = vmatpush1.bf16.msra.mxu0 0
      %1695 = vmatprep.subr.bf16.mxu0 0
      %1696 = vmatpush1.bf16.msra.mxu0 0
      %1697 = vmatprep.mubr.bf16.mxu0 0
      %1698 = vmatmul.mubr.bf16.gmra.mrb[0].mxu0 %v1663
      %v1699 = vpop.f32.mrb[0].mxu0
      %v1700 = vadd.f32 %v1648, %v1699
      %v1701 = vpop.f32.mrb[0].mxu0
      %v1702 = vpop.f32.mrb[0].mxu0
      %v1703 = vpop.f32.mrb[0].mxu0
      %1704 = vdwg.mxu0
      %v1705 = vmax.f32 %v1700, 0.0
      %v1706 = vpack.c.bf16 %v1705, %v1705
      %v1708 = vlaneseq
      %v1709 = vshrl.u32 %v1708, 7
      %v1710 = vsub.s32 0, %v1709
      %v1711 = vrot.slane %v1642, %v1710
      %v1729 = vunpack.c.l.b16 %v1626
      %v1730 = vunpack.c.l.b16 %v1627
      %v1731 = vunpack.c.l.b16 %v1628
      %v1732 = vunpack.c.l.b16 %v1629
      %v1733 = vunpack.c.l.b16 %v1630
      %v1734 = vunpack.c.l.b16 %v1631
      %v1735 = vunpack.c.l.b16 %v1632
      %v1736 = vunpack.c.l.b16 %v1633
      %v1737 = vunpack.c.l.b16 %v1634
      %v1738 = vunpack.c.l.b16 %v1635
      %v1739 = vunpack.c.l.b16 %v1636
      %v1740 = vunpack.c.l.b16 %v1637
      %v1741 = vunpack.c.l.b16 %v1638
      %v1742 = vunpack.c.l.b16 %v1639
      %v1743 = vunpack.c.l.b16 %v1640
      %v1744 = vunpack.c.l.b16 %v1641
      %v1745 = vpack.c.b16 %v1730, %v1729
      %v1746 = vpack.c.b16 %v1732, %v1731
      %v1747 = vpack.c.b16 %v1734, %v1733
      %v1748 = vpack.c.b16 %v1736, %v1735
      %v1749 = vpack.c.b16 %v1738, %v1737
      %v1750 = vpack.c.b16 %v1740, %v1739
      %v1751 = vpack.c.b16 %v1742, %v1741
      %v1752 = vpack.c.b16 %v1744, %v1743
      %1761 = vmatprep.subr.bf16.mxu0 0
      %1762 = vmatpush1.bf16.msra.mxu0 %v1745
      %1763 = vmatprep.subr.bf16.mxu0 0
      %1764 = vmatpush1.bf16.msra.mxu0 %v1746
      %1765 = vmatprep.subr.bf16.mxu0 0
      %1766 = vmatpush1.bf16.msra.mxu0 %v1747
      %1767 = vmatprep.subr.bf16.mxu0 0
      %1768 = vmatpush1.bf16.msra.mxu0 %v1748
      %1769 = vmatprep.subr.bf16.mxu0 0
      %1770 = vmatpush1.bf16.msra.mxu0 %v1749
      %1771 = vmatprep.subr.bf16.mxu0 0
      %1772 = vmatpush1.bf16.msra.mxu0 %v1750
      %1773 = vmatprep.subr.bf16.mxu0 0
      %1774 = vmatpush1.bf16.msra.mxu0 %v1751
      %1775 = vmatprep.subr.bf16.mxu0 0
      %1776 = vmatpush1.bf16.msra.mxu0 %v1752
      %1777 = vmatprep.subr.bf16.mxu0 0
      %1778 = vmatpush1.bf16.msra.mxu0 0
      %1779 = vmatprep.subr.bf16.mxu0 0
      %1780 = vmatpush1.bf16.msra.mxu0 0
      %1781 = vmatprep.subr.bf16.mxu0 0
      %1782 = vmatpush1.bf16.msra.mxu0 0
      %1783 = vmatprep.subr.bf16.mxu0 0
      %1784 = vmatpush1.bf16.msra.mxu0 0
      %1785 = vmatprep.subr.bf16.mxu0 0
      %1786 = vmatpush1.bf16.msra.mxu0 0
      %1787 = vmatprep.subr.bf16.mxu0 0
      %1788 = vmatpush1.bf16.msra.mxu0 0
      %1789 = vmatprep.subr.bf16.mxu0 0
      %1790 = vmatpush1.bf16.msra.mxu0 0
      %1791 = vmatprep.subr.bf16.mxu0 0
      %1792 = vmatpush1.bf16.msra.mxu0 0
      %1793 = vmatprep.mubr.bf16.mxu0 0
      %1794 = vmatmul.mubr.bf16.gmra.mrb[0].mxu0 %v1706
      %v1795 = vpop.f32.mrb[0].mxu0
      %v1796 = vadd.f32 %v1711, %v1795
      %v1797 = vpop.f32.mrb[0].mxu0
      %v1798 = vpop.f32.mrb[0].mxu0
      %v1799 = vpop.f32.mrb[0].mxu0
      %1800 = vdwg.mxu0
      %v1801 = vadd.f32 %v1620, %v1796
      %v1802 = vld [vmem:[%s12] sm:$0x1]
      %v1803 = vld [vmem:[%s13] sm:$0x1]
      %v1804 = vsel %vm1592, %v1801, 0.0
      %1805 = vadd.xlane.f32.xlu0 %v1804
      %v1806 = vpop.xlane.xlu0 %1805
      %v1807 = vmul.f32 %v1806, %v1596
      %v1808 = vsub.f32 %v1801, %v1807
      %v1809 = vmul.f32 %v1808, %v1808
      %v1810 = vsel %vm1592, %v1809, 0.0
      %1811 = vadd.xlane.f32.xlu0 %v1810
      %v1812 = vpop.xlane.xlu0 %1811
      %v1813 = vmul.f32 %v1812, %v1596
      %v1814 = vadd.f32 %v1813, 1e-05
      %v1815 = vrsqrt.pop %v1814
      %v1816 = vmul.f32 %v1808, %v1815
      %v1818 = vlaneseq
      %v1819 = vshrl.u32 %v1818, 7
      %v1820 = vsub.s32 0, %v1819
      %v1821 = vrot.slane %v1802, %v1820
      %v1823 = vmul.f32 %v1816, %v1821
      %v1825 = vlaneseq
      %v1826 = vshrl.u32 %v1825, 7
      %v1827 = vsub.s32 0, %v1826
      %v1828 = vrot.slane %v1803, %v1827
      %v1830 = vadd.f32 %v1823, %v1828
      %1831 = vst.msk [vmem:[%s530] sm:$0x1f] %vm1592, %v1830
      %p1832 = scmp.lt.s32.totalorder %s27, 1
      %s1833 = scalar_select %p1832, %s27, 1
      %s1834 = smul.addr %s1833, 8
      %s1835 = scalar_lea.vmem %s16, %s1834
      // Predicated region
      $region85: #{_lambda_.5} parent=83 // pred_check
        %p1836 = pneg %p391
      $region86: #{_lambda_.5} parent=83 // pred_check_branch
        %1838 = sbr.rel (%p1836) target = $region88
      $region87: #{_lambda_.5} parent=83 // pred_region
        _
      $region88: #{_lambda_.5} parent=83 // pred_fallthru
        _
    $region84: #{_lambda_.5} parent=5 // pred_fallthru
      _
    %p1839 = scmp.le.s32.totalorder 2, %s22
    // Predicated region
    $region89: #{_lambda_.5} parent=5 // pred_check
      %p1840 = pneg %p1839
    $region90: #{_lambda_.5} parent=5 // pred_check_branch
      %1842 = sbr.rel (%p1840) target = $region92
    $region91: #{_lambda_.5} parent=5 // pred_region
      %s1843 = ssub.s32 %s22, 2
      // Predicated region
      $region93: #{_lambda_.5} parent=91 // pred_check
        %p1844 = pneg %p397
      $region94: #{_lambda_.5} parent=91 // pred_check_branch
        %1846 = sbr.rel (%p1844) target = $region96
      $region95: #{_lambda_.5} parent=91 // pred_region
        %p1847 = scmp.lt.s32.totalorder %s28, 1
        %s1848 = scalar_select %p1847, %s28, 1
        %s1849 = smul.addr %s1848, 8
        %s1850 = scalar_lea.vmem %s16, %s1849
      $region96: #{_lambda_.5} parent=91 // pred_fallthru
        _
    $region92: #{_lambda_.5} parent=5 // pred_fallthru
      _
  $region6: #{_lambda_.5} parent=0 // loop_footer
    %s26 = sadd.s32 1, %s22
  $region7: #{_lambda_.5} parent=0 // loop_footer_branch
    %21 = sbr.rel target = $region3
  $region8: #{_lambda_.5} parent=0 // loop_exit
    _

// kernel: _lambda_.6
$region0: #{_lambda_.6}
  #allocation0 [shape = 'u32[]', space=smem, size = 0x4, offset = 0x4, fixed_abs, tag = 'smem constant byte address 0x4 - core index']
  #allocation1 [shape = 'u32[144,128]{1,0:T(1,128)}', space=vmem, size = 0x12000, scoped, tag = 'internal scratch']
  %s0 = inlined_call_operand.vmem [shape: f32[2,5,32], index: 0, kind: input, shape index: {}]
  %s1 = inlined_call_operand.vmem [shape: f32[2,1,5], index: 1, kind: input, shape index: {}]
  %s2 = inlined_call_operand.vmem [shape: bf16[32,96], index: 2, kind: input, shape index: {}]
  %s3 = inlined_call_operand.vmem [shape: f32[1,96], index: 3, kind: input, shape index: {}]
  %s4 = inlined_call_operand.vmem [shape: f32[32,32], index: 4, kind: input, shape index: {}]
  %s5 = inlined_call_operand.vmem [shape: f32[1,32], index: 5, kind: input, shape index: {}]
  %s6 = inlined_call_operand.vmem [shape: f32[1,32], index: 6, kind: input, shape index: {}]
  %s7 = inlined_call_operand.vmem [shape: f32[1,32], index: 7, kind: input, shape index: {}]
  %s8 = inlined_call_operand.vmem [shape: bf16[32,128], index: 8, kind: input, shape index: {}]
  %s9 = inlined_call_operand.vmem [shape: f32[1,128], index: 9, kind: input, shape index: {}]
  %s10 = inlined_call_operand.vmem [shape: bf16[128,32], index: 10, kind: input, shape index: {}]
  %s11 = inlined_call_operand.vmem [shape: f32[1,32], index: 11, kind: input, shape index: {}]
  %s12 = inlined_call_operand.vmem [shape: f32[1,32], index: 12, kind: input, shape index: {}]
  %s13 = inlined_call_operand.vmem [shape: f32[1,32], index: 13, kind: input, shape index: {}]
  %s14 = inlined_call_operand.vmem [shape: f32[1,32], index: 14, kind: input, shape index: {}]
  %s15 = inlined_call_operand.vmem [shape: f32[1,32], index: 15, kind: input, shape index: {}]
  %s16 = inlined_call_operand.vmem [shape: f32[2,5,32], index: 16, kind: output, shape index: {}]
  %s17 = sld [smem:[#allocation0]]
  $region97: #{_lambda_.6} parent=0
    _
  %s19 = ssub.s32 1, %s17
  %s20 = scalar_select 0, %s19, %s17
  loop: start=0, step=1, limit=4
  $region2: #{_lambda_.6} parent=0 // loop_pre_header
    _
  $region3: #{_lambda_.6} parent=0 // loop_header
    %s22 = sphi 0, %s26
    %p23 = scmp.ge.s32.totalorder %s22, 4
    %s32 = sphi 0, %s34
    %s35 = sphi 0, %s32
    %s36 = sphi 0, %s35
    %s52 = sphi 0, %s36
    %s58 = sphi 0, %s60
    %s61 = sphi 0, %s58
    %s62 = sphi 0, %s61
    %s78 = sphi 0, %s62
    %s82 = sphi 0, %s82
    %s84 = sphi 0, %s82
    %s85 = sphi 0, %s84
    %s99 = sphi 0, %s85
    %s103 = sphi 0, %s103
    %s105 = sphi 0, %s103
    %s106 = sphi 0, %s105
    %s120 = sphi 0, %s106
    %s124 = sphi 0, %s124
    %s126 = sphi 0, %s124
    %s127 = sphi 0, %s126
    %s141 = sphi 0, %s127
    %s145 = sphi 0, %s145
    %s147 = sphi 0, %s145
    %s148 = sphi 0, %s147
    %s162 = sphi 0, %s148
    %s166 = sphi 0, %s166
    %s168 = sphi 0, %s166
    %s169 = sphi 0, %s168
    %s183 = sphi 0, %s169
    %s187 = sphi 0, %s187
    %s189 = sphi 0, %s187
    %s190 = sphi 0, %s189
    %s204 = sphi 0, %s190
    %s208 = sphi 0, %s208
    %s210 = sphi 0, %s208
    %s211 = sphi 0, %s210
    %s225 = sphi 0, %s211
    %s229 = sphi 0, %s229
    %s231 = sphi 0, %s229
    %s232 = sphi 0, %s231
    %s246 = sphi 0, %s232
    %s250 = sphi 0, %s250
    %s252 = sphi 0, %s250
    %s253 = sphi 0, %s252
    %s267 = sphi 0, %s253
    %s271 = sphi 0, %s271
    %s273 = sphi 0, %s271
    %s274 = sphi 0, %s273
    %s288 = sphi 0, %s274
    %s292 = sphi 0, %s292
    %s294 = sphi 0, %s292
    %s295 = sphi 0, %s294
    %s309 = sphi 0, %s295
    %s313 = sphi 0, %s313
    %s315 = sphi 0, %s313
    %s316 = sphi 0, %s315
    %s330 = sphi 0, %s316
    %s334 = sphi 0, %s334
    %s336 = sphi 0, %s334
    %s337 = sphi 0, %s336
    %s351 = sphi 0, %s337
    %s355 = sphi 0, %s355
    %s357 = sphi 0, %s355
    %s358 = sphi 0, %s357
    %s372 = sphi 0, %s358
    %s378 = sphi 0, %s380
    %s381 = sphi 0, %s378
    %s382 = sphi 0, %s381
    %s398 = sphi 0, %s382
  $region4: #{_lambda_.6} parent=0 // loop_header_branch
    %25 = sbr.rel (%p23) target = $region8
  $region5: #{_lambda_.6} parent=0 // loop_body
    %s27 = ssub.s32 %s22, 1
    %s28 = ssub.s32 %s22, 2
    %s29 = sadd.s32 %s22, 1
    %s30 = ssub.s32 %s22, %s29
    %p31 = scmp.eq.s32.totalorder %s30, 0
    %s33 = sadd.s32 %s32, 1
    %s34 = scalar_select %p31, %s32, %s33
    %p37 = pneg %p31
    %p38 = scmp.eq.s32.totalorder %s22, 1
    %p39 = por %p37, %p38
    %p40 = scmp.ne.s32.totalorder %s32, %s35
    %p41 = scmp.eq.s32.totalorder %s22, 0
    %p42 = por %p40, %p41
    %p43 = scmp.ne.s32.totalorder %s32, %s35
    %p44 = scmp.eq.s32.totalorder %s27, 1
    %p45 = por %p43, %p44
    %p46 = scmp.ne.s32.totalorder %s35, %s36
    %p47 = scmp.eq.s32.totalorder %s27, 0
    %p48 = por %p46, %p47
    %p49 = scmp.ne.s32.totalorder %s35, %s36
    %p50 = scmp.eq.s32.totalorder %s28, 1
    %p51 = por %p49, %p50
    %p53 = scmp.ne.s32.totalorder %s36, %s52
    %p54 = scmp.eq.s32.totalorder %s28, 0
    %p55 = por %p53, %p54
    %s56 = ssub.s32 %s22, %s29
    %p57 = scmp.eq.s32.totalorder %s56, 0
    %s59 = sadd.s32 %s58, 1
    %s60 = scalar_select %p57, %s58, %s59
    %p63 = pneg %p57
    %p64 = scmp.eq.s32.totalorder %s22, 1
    %p65 = por %p63, %p64
    %p66 = scmp.ne.s32.totalorder %s58, %s61
    %p67 = scmp.eq.s32.totalorder %s22, 0
    %p68 = por %p66, %p67
    %p69 = scmp.ne.s32.totalorder %s58, %s61
    %p70 = scmp.eq.s32.totalorder %s27, 1
    %p71 = por %p69, %p70
    %p72 = scmp.ne.s32.totalorder %s61, %s62
    %p73 = scmp.eq.s32.totalorder %s27, 0
    %p74 = por %p72, %p73
    %p75 = scmp.ne.s32.totalorder %s61, %s62
    %p76 = scmp.eq.s32.totalorder %s28, 1
    %p77 = por %p75, %p76
    %p79 = scmp.ne.s32.totalorder %s62, %s78
    %p80 = scmp.eq.s32.totalorder %s28, 0
    %p81 = por %p79, %p80
    %s83 = sadd.s32 %s82, 1
    %p86 = scmp.eq.s32.totalorder %s22, 1
    %p87 = scmp.ne.s32.totalorder %s82, %s84
    %p88 = scmp.eq.s32.totalorder %s22, 0
    %p89 = por %p87, %p88
    %p90 = scmp.ne.s32.totalorder %s82, %s84
    %p91 = scmp.eq.s32.totalorder %s27, 1
    %p92 = por %p90, %p91
    %p93 = scmp.ne.s32.totalorder %s84, %s85
    %p94 = scmp.eq.s32.totalorder %s27, 0
    %p95 = por %p93, %p94
    %p96 = scmp.ne.s32.totalorder %s84, %s85
    %p97 = scmp.eq.s32.totalorder %s28, 1
    %p98 = por %p96, %p97
    %p100 = scmp.ne.s32.totalorder %s85, %s99
    %p101 = scmp.eq.s32.totalorder %s28, 0
    %p102 = por %p100, %p101
    %s104 = sadd.s32 %s103, 1
    %p107 = scmp.eq.s32.totalorder %s22, 1
    %p108 = scmp.ne.s32.totalorder %s103, %s105
    %p109 = scmp.eq.s32.totalorder %s22, 0
    %p110 = por %p108, %p109
    %p111 = scmp.ne.s32.totalorder %s103, %s105
    %p112 = scmp.eq.s32.totalorder %s27, 1
    %p113 = por %p111, %p112
    %p114 = scmp.ne.s32.totalorder %s105, %s106
    %p115 = scmp.eq.s32.totalorder %s27, 0
    %p116 = por %p114, %p115
    %p117 = scmp.ne.s32.totalorder %s105, %s106
    %p118 = scmp.eq.s32.totalorder %s28, 1
    %p119 = por %p117, %p118
    %p121 = scmp.ne.s32.totalorder %s106, %s120
    %p122 = scmp.eq.s32.totalorder %s28, 0
    %p123 = por %p121, %p122
    %s125 = sadd.s32 %s124, 1
    %p128 = scmp.eq.s32.totalorder %s22, 1
    %p129 = scmp.ne.s32.totalorder %s124, %s126
    %p130 = scmp.eq.s32.totalorder %s22, 0
    %p131 = por %p129, %p130
    %p132 = scmp.ne.s32.totalorder %s124, %s126
    %p133 = scmp.eq.s32.totalorder %s27, 1
    %p134 = por %p132, %p133
    %p135 = scmp.ne.s32.totalorder %s126, %s127
    %p136 = scmp.eq.s32.totalorder %s27, 0
    %p137 = por %p135, %p136
    %p138 = scmp.ne.s32.totalorder %s126, %s127
    %p139 = scmp.eq.s32.totalorder %s28, 1
    %p140 = por %p138, %p139
    %p142 = scmp.ne.s32.totalorder %s127, %s141
    %p143 = scmp.eq.s32.totalorder %s28, 0
    %p144 = por %p142, %p143
    %s146 = sadd.s32 %s145, 1
    %p149 = scmp.eq.s32.totalorder %s22, 1
    %p150 = scmp.ne.s32.totalorder %s145, %s147
    %p151 = scmp.eq.s32.totalorder %s22, 0
    %p152 = por %p150, %p151
    %p153 = scmp.ne.s32.totalorder %s145, %s147
    %p154 = scmp.eq.s32.totalorder %s27, 1
    %p155 = por %p153, %p154
    %p156 = scmp.ne.s32.totalorder %s147, %s148
    %p157 = scmp.eq.s32.totalorder %s27, 0
    %p158 = por %p156, %p157
    %p159 = scmp.ne.s32.totalorder %s147, %s148
    %p160 = scmp.eq.s32.totalorder %s28, 1
    %p161 = por %p159, %p160
    %p163 = scmp.ne.s32.totalorder %s148, %s162
    %p164 = scmp.eq.s32.totalorder %s28, 0
    %p165 = por %p163, %p164
    %s167 = sadd.s32 %s166, 1
    %p170 = scmp.eq.s32.totalorder %s22, 1
    %p171 = scmp.ne.s32.totalorder %s166, %s168
    %p172 = scmp.eq.s32.totalorder %s22, 0
    %p173 = por %p171, %p172
    %p174 = scmp.ne.s32.totalorder %s166, %s168
    %p175 = scmp.eq.s32.totalorder %s27, 1
    %p176 = por %p174, %p175
    %p177 = scmp.ne.s32.totalorder %s168, %s169
    %p178 = scmp.eq.s32.totalorder %s27, 0
    %p179 = por %p177, %p178
    %p180 = scmp.ne.s32.totalorder %s168, %s169
    %p181 = scmp.eq.s32.totalorder %s28, 1
    %p182 = por %p180, %p181
    %p184 = scmp.ne.s32.totalorder %s169, %s183
    %p185 = scmp.eq.s32.totalorder %s28, 0
    %p186 = por %p184, %p185
    %s188 = sadd.s32 %s187, 1
    %p191 = scmp.eq.s32.totalorder %s22, 1
    %p192 = scmp.ne.s32.totalorder %s187, %s189
    %p193 = scmp.eq.s32.totalorder %s22, 0
    %p194 = por %p192, %p193
    %p195 = scmp.ne.s32.totalorder %s187, %s189
    %p196 = scmp.eq.s32.totalorder %s27, 1
    %p197 = por %p195, %p196
    %p198 = scmp.ne.s32.totalorder %s189, %s190
    %p199 = scmp.eq.s32.totalorder %s27, 0
    %p200 = por %p198, %p199
    %p201 = scmp.ne.s32.totalorder %s189, %s190
    %p202 = scmp.eq.s32.totalorder %s28, 1
    %p203 = por %p201, %p202
    %p205 = scmp.ne.s32.totalorder %s190, %s204
    %p206 = scmp.eq.s32.totalorder %s28, 0
    %p207 = por %p205, %p206
    %s209 = sadd.s32 %s208, 1
    %p212 = scmp.eq.s32.totalorder %s22, 1
    %p213 = scmp.ne.s32.totalorder %s208, %s210
    %p214 = scmp.eq.s32.totalorder %s22, 0
    %p215 = por %p213, %p214
    %p216 = scmp.ne.s32.totalorder %s208, %s210
    %p217 = scmp.eq.s32.totalorder %s27, 1
    %p218 = por %p216, %p217
    %p219 = scmp.ne.s32.totalorder %s210, %s211
    %p220 = scmp.eq.s32.totalorder %s27, 0
    %p221 = por %p219, %p220
    %p222 = scmp.ne.s32.totalorder %s210, %s211
    %p223 = scmp.eq.s32.totalorder %s28, 1
    %p224 = por %p222, %p223
    %p226 = scmp.ne.s32.totalorder %s211, %s225
    %p227 = scmp.eq.s32.totalorder %s28, 0
    %p228 = por %p226, %p227
    %s230 = sadd.s32 %s229, 1
    %p233 = scmp.eq.s32.totalorder %s22, 1
    %p234 = scmp.ne.s32.totalorder %s229, %s231
    %p235 = scmp.eq.s32.totalorder %s22, 0
    %p236 = por %p234, %p235
    %p237 = scmp.ne.s32.totalorder %s229, %s231
    %p238 = scmp.eq.s32.totalorder %s27, 1
    %p239 = por %p237, %p238
    %p240 = scmp.ne.s32.totalorder %s231, %s232
    %p241 = scmp.eq.s32.totalorder %s27, 0
    %p242 = por %p240, %p241
    %p243 = scmp.ne.s32.totalorder %s231, %s232
    %p244 = scmp.eq.s32.totalorder %s28, 1
    %p245 = por %p243, %p244
    %p247 = scmp.ne.s32.totalorder %s232, %s246
    %p248 = scmp.eq.s32.totalorder %s28, 0
    %p249 = por %p247, %p248
    %s251 = sadd.s32 %s250, 1
    %p254 = scmp.eq.s32.totalorder %s22, 1
    %p255 = scmp.ne.s32.totalorder %s250, %s252
    %p256 = scmp.eq.s32.totalorder %s22, 0
    %p257 = por %p255, %p256
    %p258 = scmp.ne.s32.totalorder %s250, %s252
    %p259 = scmp.eq.s32.totalorder %s27, 1
    %p260 = por %p258, %p259
    %p261 = scmp.ne.s32.totalorder %s252, %s253
    %p262 = scmp.eq.s32.totalorder %s27, 0
    %p263 = por %p261, %p262
    %p264 = scmp.ne.s32.totalorder %s252, %s253
    %p265 = scmp.eq.s32.totalorder %s28, 1
    %p266 = por %p264, %p265
    %p268 = scmp.ne.s32.totalorder %s253, %s267
    %p269 = scmp.eq.s32.totalorder %s28, 0
    %p270 = por %p268, %p269
    %s272 = sadd.s32 %s271, 1
    %p275 = scmp.eq.s32.totalorder %s22, 1
    %p276 = scmp.ne.s32.totalorder %s271, %s273
    %p277 = scmp.eq.s32.totalorder %s22, 0
    %p278 = por %p276, %p277
    %p279 = scmp.ne.s32.totalorder %s271, %s273
    %p280 = scmp.eq.s32.totalorder %s27, 1
    %p281 = por %p279, %p280
    %p282 = scmp.ne.s32.totalorder %s273, %s274
    %p283 = scmp.eq.s32.totalorder %s27, 0
    %p284 = por %p282, %p283
    %p285 = scmp.ne.s32.totalorder %s273, %s274
    %p286 = scmp.eq.s32.totalorder %s28, 1
    %p287 = por %p285, %p286
    %p289 = scmp.ne.s32.totalorder %s274, %s288
    %p290 = scmp.eq.s32.totalorder %s28, 0
    %p291 = por %p289, %p290
    %s293 = sadd.s32 %s292, 1
    %p296 = scmp.eq.s32.totalorder %s22, 1
    %p297 = scmp.ne.s32.totalorder %s292, %s294
    %p298 = scmp.eq.s32.totalorder %s22, 0
    %p299 = por %p297, %p298
    %p300 = scmp.ne.s32.totalorder %s292, %s294
    %p301 = scmp.eq.s32.totalorder %s27, 1
    %p302 = por %p300, %p301
    %p303 = scmp.ne.s32.totalorder %s294, %s295
    %p304 = scmp.eq.s32.totalorder %s27, 0
    %p305 = por %p303, %p304
    %p306 = scmp.ne.s32.totalorder %s294, %s295
    %p307 = scmp.eq.s32.totalorder %s28, 1
    %p308 = por %p306, %p307
    %p310 = scmp.ne.s32.totalorder %s295, %s309
    %p311 = scmp.eq.s32.totalorder %s28, 0
    %p312 = por %p310, %p311
    %s314 = sadd.s32 %s313, 1
    %p317 = scmp.eq.s32.totalorder %s22, 1
    %p318 = scmp.ne.s32.totalorder %s313, %s315
    %p319 = scmp.eq.s32.totalorder %s22, 0
    %p320 = por %p318, %p319
    %p321 = scmp.ne.s32.totalorder %s313, %s315
    %p322 = scmp.eq.s32.totalorder %s27, 1
    %p323 = por %p321, %p322
    %p324 = scmp.ne.s32.totalorder %s315, %s316
    %p325 = scmp.eq.s32.totalorder %s27, 0
    %p326 = por %p324, %p325
    %p327 = scmp.ne.s32.totalorder %s315, %s316
    %p328 = scmp.eq.s32.totalorder %s28, 1
    %p329 = por %p327, %p328
    %p331 = scmp.ne.s32.totalorder %s316, %s330
    %p332 = scmp.eq.s32.totalorder %s28, 0
    %p333 = por %p331, %p332
    %s335 = sadd.s32 %s334, 1
    %p338 = scmp.eq.s32.totalorder %s22, 1
    %p339 = scmp.ne.s32.totalorder %s334, %s336
    %p340 = scmp.eq.s32.totalorder %s22, 0
    %p341 = por %p339, %p340
    %p342 = scmp.ne.s32.totalorder %s334, %s336
    %p343 = scmp.eq.s32.totalorder %s27, 1
    %p344 = por %p342, %p343
    %p345 = scmp.ne.s32.totalorder %s336, %s337
    %p346 = scmp.eq.s32.totalorder %s27, 0
    %p347 = por %p345, %p346
    %p348 = scmp.ne.s32.totalorder %s336, %s337
    %p349 = scmp.eq.s32.totalorder %s28, 1
    %p350 = por %p348, %p349
    %p352 = scmp.ne.s32.totalorder %s337, %s351
    %p353 = scmp.eq.s32.totalorder %s28, 0
    %p354 = por %p352, %p353
    %s356 = sadd.s32 %s355, 1
    %p359 = scmp.eq.s32.totalorder %s22, 1
    %p360 = scmp.ne.s32.totalorder %s355, %s357
    %p361 = scmp.eq.s32.totalorder %s22, 0
    %p362 = por %p360, %p361
    %p363 = scmp.ne.s32.totalorder %s355, %s357
    %p364 = scmp.eq.s32.totalorder %s27, 1
    %p365 = por %p363, %p364
    %p366 = scmp.ne.s32.totalorder %s357, %s358
    %p367 = scmp.eq.s32.totalorder %s27, 0
    %p368 = por %p366, %p367
    %p369 = scmp.ne.s32.totalorder %s357, %s358
    %p370 = scmp.eq.s32.totalorder %s28, 1
    %p371 = por %p369, %p370
    %p373 = scmp.ne.s32.totalorder %s358, %s372
    %p374 = scmp.eq.s32.totalorder %s28, 0
    %p375 = por %p373, %p374
    %s376 = ssub.s32 %s22, %s29
    %p377 = scmp.eq.s32.totalorder %s376, 0
    %s379 = sadd.s32 %s378, 1
    %s380 = scalar_select %p377, %s378, %s379
    %p383 = pneg %p377
    %p384 = scmp.eq.s32.totalorder %s22, 1
    %p385 = por %p383, %p384
    %p386 = scmp.ne.s32.totalorder %s378, %s381
    %p387 = scmp.eq.s32.totalorder %s22, 0
    %p388 = por %p386, %p387
    %p389 = scmp.ne.s32.totalorder %s378, %s381
    %p390 = scmp.eq.s32.totalorder %s27, 1
    %p391 = por %p389, %p390
    %p392 = scmp.ne.s32.totalorder %s381, %s382
    %p393 = scmp.eq.s32.totalorder %s27, 0
    %p394 = por %p392, %p393
    %p395 = scmp.ne.s32.totalorder %s381, %s382
    %p396 = scmp.eq.s32.totalorder %s28, 1
    %p397 = por %p395, %p396
    %p399 = scmp.ne.s32.totalorder %s382, %s398
    %p400 = scmp.eq.s32.totalorder %s28, 0
    %p401 = por %p399, %p400
    %p402 = scmp.le.s32.totalorder 1, %s22
    %p403 = scmp.lt.s32.totalorder %s22, 3
    %p404 = pnand %p402, %p403
    %p405 = pneg %p404
    // Predicated region
    $region9: #{_lambda_.6} parent=5 // pred_check
      _
    $region10: #{_lambda_.6} parent=5 // pred_check_branch
      %407 = sbr.rel (%p404) target = $region12
    $region11: #{_lambda_.6} parent=5 // pred_region
      %s408 = ssub.s32 %s22, 1
      // Predicated region
      $region13: #{_lambda_.6} parent=11 // pred_check
        %p409 = pneg %p95
      $region14: #{_lambda_.6} parent=11 // pred_check_branch
        %411 = sbr.rel (%p409) target = $region16
      $region15: #{_lambda_.6} parent=11 // pred_region
        _
      $region16: #{_lambda_.6} parent=11 // pred_fallthru
        _
      // Predicated region
      $region17: #{_lambda_.6} parent=11 // pred_check
        %p412 = pneg %p116
      $region18: #{_lambda_.6} parent=11 // pred_check_branch
        %414 = sbr.rel (%p412) target = $region20
      $region19: #{_lambda_.6} parent=11 // pred_region
        _
      $region20: #{_lambda_.6} parent=11 // pred_fallthru
        _
      // Predicated region
      $region21: #{_lambda_.6} parent=11 // pred_check
        %p415 = pneg %p137
      $region22: #{_lambda_.6} parent=11 // pred_check_branch
        %417 = sbr.rel (%p415) target = $region24
      $region23: #{_lambda_.6} parent=11 // pred_region
        _
      $region24: #{_lambda_.6} parent=11 // pred_fallthru
        _
      // Predicated region
      $region25: #{_lambda_.6} parent=11 // pred_check
        %p418 = pneg %p158
      $region26: #{_lambda_.6} parent=11 // pred_check_branch
        %420 = sbr.rel (%p418) target = $region28
      $region27: #{_lambda_.6} parent=11 // pred_region
        _
      $region28: #{_lambda_.6} parent=11 // pred_fallthru
        _
      // Predicated region
      $region29: #{_lambda_.6} parent=11 // pred_check
        %p421 = pneg %p179
      $region30: #{_lambda_.6} parent=11 // pred_check_branch
        %423 = sbr.rel (%p421) target = $region32
      $region31: #{_lambda_.6} parent=11 // pred_region
        _
      $region32: #{_lambda_.6} parent=11 // pred_fallthru
        _
      // Predicated region
      $region33: #{_lambda_.6} parent=11 // pred_check
        %p424 = pneg %p200
      $region34: #{_lambda_.6} parent=11 // pred_check_branch
        %426 = sbr.rel (%p424) target = $region36
      $region35: #{_lambda_.6} parent=11 // pred_region
        _
      $region36: #{_lambda_.6} parent=11 // pred_fallthru
        _
      // Predicated region
      $region37: #{_lambda_.6} parent=11 // pred_check
        %p427 = pneg %p221
      $region38: #{_lambda_.6} parent=11 // pred_check_branch
        %429 = sbr.rel (%p427) target = $region40
      $region39: #{_lambda_.6} parent=11 // pred_region
        _
      $region40: #{_lambda_.6} parent=11 // pred_fallthru
        _
      // Predicated region
      $region41: #{_lambda_.6} parent=11 // pred_check
        %p430 = pneg %p242
      $region42: #{_lambda_.6} parent=11 // pred_check_branch
        %432 = sbr.rel (%p430) target = $region44
      $region43: #{_lambda_.6} parent=11 // pred_region
        _
      $region44: #{_lambda_.6} parent=11 // pred_fallthru
        _
      // Predicated region
      $region45: #{_lambda_.6} parent=11 // pred_check
        %p433 = pneg %p263
      $region46: #{_lambda_.6} parent=11 // pred_check_branch
        %435 = sbr.rel (%p433) target = $region48
      $region47: #{_lambda_.6} parent=11 // pred_region
        _
      $region48: #{_lambda_.6} parent=11 // pred_fallthru
        _
      // Predicated region
      $region49: #{_lambda_.6} parent=11 // pred_check
        %p436 = pneg %p284
      $region50: #{_lambda_.6} parent=11 // pred_check_branch
        %438 = sbr.rel (%p436) target = $region52
      $region51: #{_lambda_.6} parent=11 // pred_region
        _
      $region52: #{_lambda_.6} parent=11 // pred_fallthru
        _
      // Predicated region
      $region53: #{_lambda_.6} parent=11 // pred_check
        %p439 = pneg %p305
      $region54: #{_lambda_.6} parent=11 // pred_check_branch
        %441 = sbr.rel (%p439) target = $region56
      $region55: #{_lambda_.6} parent=11 // pred_region
        _
      $region56: #{_lambda_.6} parent=11 // pred_fallthru
        _
      // Predicated region
      $region57: #{_lambda_.6} parent=11 // pred_check
        %p442 = pneg %p326
      $region58: #{_lambda_.6} parent=11 // pred_check_branch
        %444 = sbr.rel (%p442) target = $region60
      $region59: #{_lambda_.6} parent=11 // pred_region
        _
      $region60: #{_lambda_.6} parent=11 // pred_fallthru
        _
      // Predicated region
      $region61: #{_lambda_.6} parent=11 // pred_check
        %p445 = pneg %p347
      $region62: #{_lambda_.6} parent=11 // pred_check_branch
        %447 = sbr.rel (%p445) target = $region64
      $region63: #{_lambda_.6} parent=11 // pred_region
        _
      $region64: #{_lambda_.6} parent=11 // pred_fallthru
        _
      // Predicated region
      $region65: #{_lambda_.6} parent=11 // pred_check
        %p448 = pneg %p368
      $region66: #{_lambda_.6} parent=11 // pred_check_branch
        %450 = sbr.rel (%p448) target = $region68
      $region67: #{_lambda_.6} parent=11 // pred_region
        _
      $region68: #{_lambda_.6} parent=11 // pred_fallthru
        _
    $region12: #{_lambda_.6} parent=5 // pred_fallthru
      _
    %p451 = scmp.lt.s32.totalorder %s22, 2
    // Predicated region
    $region69: #{_lambda_.6} parent=5 // pred_check
      %p452 = pneg %p451
    $region70: #{_lambda_.6} parent=5 // pred_check_branch
      %454 = sbr.rel (%p452) target = $region72
    $region71: #{_lambda_.6} parent=5 // pred_region
      // Predicated region
      $region73: #{_lambda_.6} parent=71 // pred_check
        %p455 = pneg %p42
      $region74: #{_lambda_.6} parent=71 // pred_check_branch
        %457 = sbr.rel (%p455) target = $region76
      $region75: #{_lambda_.6} parent=71 // pred_region
        %p458 = scmp.lt.s32.totalorder %s22, 1
        %s459 = scalar_select %p458, %s22, 1
        %s460 = smul.addr %s459, 8
        %s461 = scalar_lea.vmem %s0, %s460
      $region76: #{_lambda_.6} parent=71 // pred_fallthru
        _
      // Predicated region
      $region77: #{_lambda_.6} parent=71 // pred_check
        %p462 = pneg %p68
      $region78: #{_lambda_.6} parent=71 // pred_check_branch
        %464 = sbr.rel (%p462) target = $region80
      $region79: #{_lambda_.6} parent=71 // pred_region
        %p465 = scmp.lt.s32.totalorder %s22, 1
        %s466 = scalar_select %p465, %s22, 1
        %s467 = scalar_lea.vmem %s1, %s466
      $region80: #{_lambda_.6} parent=71 // pred_fallthru
        _
    $region72: #{_lambda_.6} parent=5 // pred_fallthru
      _
    %p468 = scmp.le.s32.totalorder 1, %s22
    %p469 = scmp.lt.s32.totalorder %s22, 3
    %p470 = pnand %p468, %p469
    %p471 = pneg %p470
    // Predicated region
    $region81: #{_lambda_.6} parent=5 // pred_check
      _
    $region82: #{_lambda_.6} parent=5 // pred_check_branch
      %473 = sbr.rel (%p470) target = $region84
    $region83: #{_lambda_.6} parent=5 // pred_region
      %s474 = ssub.s32 %s22, 1
      %p475 = scmp.lt.s32.totalorder %s27, 1
      %s476 = scalar_select %p475, %s27, 1
      %s477 = smul.addr %s476, 8
      %s478 = scalar_lea.vmem %s0, %s477
      %p479 = pneg %p48
      %p480 = pneg %p45
      %p481 = scmp.lt.s32.totalorder %s27, 1
      %s482 = scalar_select %p481, %s27, 1
      %s483 = scalar_lea.vmem %s1, %s482
      %p484 = pneg %p74
      %p485 = pneg %p71
      %p486 = pneg %p95
      %p487 = pneg %p92
      %p488 = pneg %p116
      %p489 = pneg %p113
      %p490 = pneg %p137
      %p491 = pneg %p134
      %p492 = pneg %p158
      %p493 = pneg %p155
      %p494 = pneg %p179
      %p495 = pneg %p176
      %p496 = pneg %p200
      %p497 = pneg %p197
      %p498 = pneg %p221
      %p499 = pneg %p218
      %p500 = pneg %p242
      %p501 = pneg %p239
      %p502 = pneg %p263
      %p503 = pneg %p260
      %p504 = pneg %p284
      %p505 = pneg %p281
      %p506 = pneg %p305
      %p507 = pneg %p302
      %p508 = pneg %p326
      %p509 = pneg %p323
      %p510 = pneg %p347
      %p511 = pneg %p344
      %p512 = pneg %p368
      %p513 = pneg %p365
      %p514 = pneg %p394
      %p515 = pneg %p391
      %p516 = scmp.lt.s32.totalorder %s27, 1
      %s517 = scalar_select %p516, %s27, 1
      %s518 = smul.addr %s517, 8
      %s519 = scalar_lea.vmem %s16, %s518
      %p520 = scmp.lt.s32.totalorder %s27, 1
      %s521 = scalar_select %p520, %s27, 1
      %s522 = smul.addr %s521, 8
      %s523 = scalar_lea.vmem %s0, %s522
      %p524 = scmp.lt.s32.totalorder %s27, 1
      %s525 = scalar_select %p524, %s27, 1
      %s526 = scalar_lea.vmem %s1, %s525
      %p527 = scmp.lt.s32.totalorder %s27, 1
      %s528 = scalar_select %p527, %s27, 1
      %s529 = smul.addr %s528, 8
      %s530 = scalar_lea.vmem %s16, %s529
      %v532 = vld [vmem:[%s523] sm:$0x1f]
      %v533 = vld [vmem:[%s526] sm:$0x1]
      %v534 = vld [vmem:[%s2] sm:$0xf]
      %v535 = vld [vmem:[%s2 + $0x4] sm:$0xf]
      %v536 = vld [vmem:[%s2 + $0x8] sm:$0xf]
      %v537 = vld [vmem:[%s2 + $0xc] sm:$0xf]
      %v538 = vld [vmem:[%s3] sm:$0x1]
      %v539 = vpack.c.bf16 %v532, %v532
      %v541 = vlaneseq
      %v542 = vshrl.u32 %v541, 7
      %v543 = vsub.s32 0, %v542
      %v544 = vrot.slane %v538, %v543
      %v550 = vunpack.c.l.b16 %v534
      %v551 = vunpack.c.l.b16 %v535
      %v552 = vunpack.c.l.b16 %v536
      %v553 = vunpack.c.l.b16 %v537
      %v554 = vpack.c.b16 %v551, %v550
      %v555 = vpack.c.b16 %v553, %v552
      %vm558 = vcmask 261120
      %v560 = vsel %vm558, %v539, 0
      %562 = vmatprep.subr.bf16.mxu0 0
      %563 = vmatpush1.bf16.msra.mxu0 %v554
      %564 = vmatprep.subr.bf16.mxu0 0
      %565 = vmatpush1.bf16.msra.mxu0 %v555
      %566 = vmatprep.subr.bf16.mxu0 0
      %567 = vmatpush1.bf16.msra.mxu0 0
      %568 = vmatprep.subr.bf16.mxu0 0
      %569 = vmatpush1.bf16.msra.mxu0 0
      %570 = vmatprep.subr.bf16.mxu0 0
      %571 = vmatpush1.bf16.msra.mxu0 0
      %572 = vmatprep.subr.bf16.mxu0 0
      %573 = vmatpush1.bf16.msra.mxu0 0
      %574 = vmatprep.subr.bf16.mxu0 0
      %575 = vmatpush1.bf16.msra.mxu0 0
      %576 = vmatprep.subr.bf16.mxu0 0
      %577 = vmatpush1.bf16.msra.mxu0 0
      %578 = vmatprep.subr.bf16.mxu0 0
      %579 = vmatpush1.bf16.msra.mxu0 0
      %580 = vmatprep.subr.bf16.mxu0 0
      %581 = vmatpush1.bf16.msra.mxu0 0
      %582 = vmatprep.subr.bf16.mxu0 0
      %583 = vmatpush1.bf16.msra.mxu0 0
      %584 = vmatprep.subr.bf16.mxu0 0
      %585 = vmatpush1.bf16.msra.mxu0 0
      %586 = vmatprep.subr.bf16.mxu0 0
      %587 = vmatpush1.bf16.msra.mxu0 0
      %588 = vmatprep.subr.bf16.mxu0 0
      %589 = vmatpush1.bf16.msra.mxu0 0
      %590 = vmatprep.subr.bf16.mxu0 0
      %591 = vmatpush1.bf16.msra.mxu0 0
      %592 = vmatprep.subr.bf16.mxu0 0
      %593 = vmatpush1.bf16.msra.mxu0 0
      %594 = vmatprep.mubr.bf16.mxu0 0
      %595 = vmatmul.mubr.bf16.gmra.mrb[0].mxu0 %v560
      %v596 = vpop.f32.mrb[0].mxu0
      %v597 = vadd.f32 %v544, %v596
      %v598 = vpop.f32.mrb[0].mxu0
      %v599 = vpop.f32.mrb[0].mxu0
      %v600 = vpop.f32.mrb[0].mxu0
      %601 = vdwg.mxu0
      %v602 = vld [vmem:[%s4] sm:$0xff]
      %v603 = vld [vmem:[%s4 + $0x8] sm:$0xff]
      %v604 = vld [vmem:[%s4 + $0x10] sm:$0xff]
      %v605 = vld [vmem:[%s4 + $0x18] sm:$0xff]
      %v606 = vld [vmem:[%s5] sm:$0x1]
      %608 = vrot.lane.b32.xlu0 %v597, 96
      %v609 = vpop.permute.xlu0 %608
      %vm610 = vcmask 64512
      %v611 = vsel %vm610, %v597, 0
      %v613 = vsel %vm610, %v609, 0
      %615 = vmatprep.subr.mxu0 0.0
      %616 = vmatpush1.xpose.msra.mxu0 %v613
      %617 = vmatprep.subr.mxu0 0.0
      %618 = vmatpush1.xpose.msra.mxu0 0.0
      %619 = vmatprep.subr.mxu0 0.0
      %620 = vmatpush1.xpose.msra.mxu0 0.0
      %621 = vmatprep.subr.mxu0 0.0
      %622 = vmatpush1.xpose.msra.mxu0 0.0
      %623 = vmatprep.subr.mxu0 0.0
      %624 = vmatpush1.xpose.msra.mxu0 0.0
      %625 = vmatprep.subr.mxu0 0.0
      %626 = vmatpush1.xpose.msra.mxu0 0.0
      %627 = vmatprep.subr.mxu0 0.0
      %628 = vmatpush1.xpose.msra.mxu0 0.0
      %629 = vmatprep.subr.mxu0 0.0
      %630 = vmatpush1.xpose.msra.mxu0 0.0
      %631 = vmatprep.subr.mxu0 0.0
      %632 = vmatpush1.xpose.msra.mxu0 0.0
      %633 = vmatprep.subr.mxu0 0.0
      %634 = vmatpush1.xpose.msra.mxu0 0.0
      %635 = vmatprep.subr.mxu0 0.0
      %636 = vmatpush1.xpose.msra.mxu0 0.0
      %637 = vmatprep.subr.mxu0 0.0
      %638 = vmatpush1.xpose.msra.mxu0 0.0
      %639 = vmatprep.subr.mxu0 0.0
      %640 = vmatpush1.xpose.msra.mxu0 0.0
      %641 = vmatprep.subr.mxu0 0.0
      %642 = vmatpush1.xpose.msra.mxu0 0.0
      %643 = vmatprep.subr.mxu0 0.0
      %644 = vmatpush1.xpose.msra.mxu0 0.0
      %645 = vmatprep.subr.mxu0 0.0
      %646 = vmatpush1.xpose.msra.mxu0 0.0
      %647 = vmatprep.subr.mxu0 0.0
      %648 = vmatpush1.xpose.msra.mxu0 0.0
      %649 = vmatprep.subr.mxu0 0.0
      %650 = vmatpush1.xpose.msra.mxu0 0.0
      %651 = vmatprep.subr.mxu0 0.0
      %652 = vmatpush1.xpose.msra.mxu0 0.0
      %653 = vmatprep.subr.mxu0 0.0
      %654 = vmatpush1.xpose.msra.mxu0 0.0
      %655 = vmatprep.subr.mxu0 0.0
      %656 = vmatpush1.xpose.msra.mxu0 0.0
      %657 = vmatprep.subr.mxu0 0.0
      %658 = vmatpush1.xpose.msra.mxu0 0.0
      %659 = vmatprep.subr.mxu0 0.0
      %660 = vmatpush1.xpose.msra.mxu0 0.0
      %661 = vmatprep.subr.mxu0 0.0
      %662 = vmatpush1.xpose.msra.mxu0 0.0
      %663 = vmatprep.subr.mxu0 0.0
      %664 = vmatpush1.xpose.msra.mxu0 0.0
      %665 = vmatprep.subr.mxu0 0.0
      %666 = vmatpush1.xpose.msra.mxu0 0.0
      %667 = vmatprep.subr.mxu0 0.0
      %668 = vmatpush1.xpose.msra.mxu0 0.0
      %669 = vmatprep.subr.mxu0 0.0
      %670 = vmatpush1.xpose.msra.mxu0 0.0
      %671 = vmatprep.subr.mxu0 0.0
      %672 = vmatpush1.xpose.msra.mxu0 0.0
      %673 = vmatprep.subr.mxu0 0.0
      %674 = vmatpush1.xpose.msra.mxu0 0.0
      %675 = vmatprep.subr.mxu0 0.0
      %676 = vmatpush1.xpose.msra.mxu0 0.0
      %677 = vmatprep.subr.mxu0 0.0
      %678 = vmatpush1.xpose.msra.mxu0 0.0
      %679 = vmatprep.mubr.f32.mxu0 0.0
      %680 = vmatmul.mubr.f32.gmra.mrb[0].mxu0 %v611
      %v681 = vpop.f32.mrb[0].mxu0
      %v682 = vadd.f32 0.0, %v681
      %v683 = vpop.f32.mrb[0].mxu0
      %684 = vdwg.mxu0
      %v685 = vmul.f32 %v682, 0.35355338
      %v687 = vlaneseq
      %v688 = vshrl.u32 %v687, 7
      %v689 = vsub.s32 0, %v688
      %v690 = vrot.slane %v533, %v689
      %v692 = vadd.f32 %v685, %v690
      %vm693 = vcmask 36864
      %v694 = vsel %vm693, %v692, -inf
      %695 = vmax.xlane.f32.xlu0 %v694
      %v696 = vpop.xlane.xlu0 %695
      %v697 = vsub.f32 %v692, %v696
      %v698 = vmul.f32 %v697, 1.442695
      %v699 = vpow.pop %v698
      %v700 = vsel %vm693, %v699, 0.0
      %701 = vadd.xlane.f32.xlu0 %v700
      %v702 = vpop.xlane.xlu0 %701
      %v703 = vrcp.pop %v702
      %v704 = vmul.f32 %v699, %v703
      %705 = vrot.lane.b32.xlu0 %v597, 64
      %v706 = vpop.permute.xlu0 %705
      %vm707 = vcmask 39936
      %v709 = vsel %vm707, %v704, 0
      %vm711 = vcmask 1044480
      %v712 = vsel %vm711, %v706, 0
      %714 = vmatprep.subr.mxu0 0.0
      %715 = vmatpush1.msra.mxu0 %v712
      %716 = vmatprep.subr.mxu0 0.0
      %717 = vmatpush1.msra.mxu0 0.0
      %718 = vmatprep.subr.mxu0 0.0
      %719 = vmatpush1.msra.mxu0 0.0
      %720 = vmatprep.subr.mxu0 0.0
      %721 = vmatpush1.msra.mxu0 0.0
      %722 = vmatprep.subr.mxu0 0.0
      %723 = vmatpush1.msra.mxu0 0.0
      %724 = vmatprep.subr.mxu0 0.0
      %725 = vmatpush1.msra.mxu0 0.0
      %726 = vmatprep.subr.mxu0 0.0
      %727 = vmatpush1.msra.mxu0 0.0
      %728 = vmatprep.subr.mxu0 0.0
      %729 = vmatpush1.msra.mxu0 0.0
      %730 = vmatprep.subr.mxu0 0.0
      %731 = vmatpush1.msra.mxu0 0.0
      %732 = vmatprep.subr.mxu0 0.0
      %733 = vmatpush1.msra.mxu0 0.0
      %734 = vmatprep.subr.mxu0 0.0
      %735 = vmatpush1.msra.mxu0 0.0
      %736 = vmatprep.subr.mxu0 0.0
      %737 = vmatpush1.msra.mxu0 0.0
      %738 = vmatprep.subr.mxu0 0.0
      %739 = vmatpush1.msra.mxu0 0.0
      %740 = vmatprep.subr.mxu0 0.0
      %741 = vmatpush1.msra.mxu0 0.0
      %742 = vmatprep.subr.mxu0 0.0
      %743 = vmatpush1.msra.mxu0 0.0
      %744 = vmatprep.subr.mxu0 0.0
      %745 = vmatpush1.msra.mxu0 0.0
      %746 = vmatprep.subr.mxu0 0.0
      %747 = vmatpush1.msra.mxu0 0.0
      %748 = vmatprep.subr.mxu0 0.0
      %749 = vmatpush1.msra.mxu0 0.0
      %750 = vmatprep.subr.mxu0 0.0
      %751 = vmatpush1.msra.mxu0 0.0
      %752 = vmatprep.subr.mxu0 0.0
      %753 = vmatpush1.msra.mxu0 0.0
      %754 = vmatprep.subr.mxu0 0.0
      %755 = vmatpush1.msra.mxu0 0.0
      %756 = vmatprep.subr.mxu0 0.0
      %757 = vmatpush1.msra.mxu0 0.0
      %758 = vmatprep.subr.mxu0 0.0
      %759 = vmatpush1.msra.mxu0 0.0
      %760 = vmatprep.subr.mxu0 0.0
      %761 = vmatpush1.msra.mxu0 0.0
      %762 = vmatprep.subr.mxu0 0.0
      %763 = vmatpush1.msra.mxu0 0.0
      %764 = vmatprep.subr.mxu0 0.0
      %765 = vmatpush1.msra.mxu0 0.0
      %766 = vmatprep.subr.mxu0 0.0
      %767 = vmatpush1.msra.mxu0 0.0
      %768 = vmatprep.subr.mxu0 0.0
      %769 = vmatpush1.msra.mxu0 0.0
      %770 = vmatprep.subr.mxu0 0.0
      %771 = vmatpush1.msra.mxu0 0.0
      %772 = vmatprep.subr.mxu0 0.0
      %773 = vmatpush1.msra.mxu0 0.0
      %774 = vmatprep.subr.mxu0 0.0
      %775 = vmatpush1.msra.mxu0 0.0
      %776 = vmatprep.subr.mxu0 0.0
      %777 = vmatpush1.msra.mxu0 0.0
      %778 = vmatprep.mubr.f32.mxu0 0.0
      %779 = vmatmul.mubr.f32.gmra.mrb[0].mxu0 %v709
      %v780 = vpop.f32.mrb[0].mxu0
      %v781 = vadd.f32 0.0, %v780
      %v782 = vpop.f32.mrb[0].mxu0
      %783 = vdwg.mxu0
      %784 = vrot.lane.b32.xlu0 %v597, 120
      %v785 = vpop.permute.xlu0 %784
      %786 = vrot.lane.b32.xlu0 %v597, 88
      %v787 = vpop.permute.xlu0 %786
      %v788 = vsel %vm610, %v785, 0
      %v790 = vsel %vm610, %v787, 0
      %792 = vmatprep.subr.mxu0 0.0
      %793 = vmatpush1.xpose.msra.mxu0 %v790
      %794 = vmatprep.subr.mxu0 0.0
      %795 = vmatpush1.xpose.msra.mxu0 0.0
      %796 = vmatprep.subr.mxu0 0.0
      %797 = vmatpush1.xpose.msra.mxu0 0.0
      %798 = vmatprep.subr.mxu0 0.0
      %799 = vmatpush1.xpose.msra.mxu0 0.0
      %800 = vmatprep.subr.mxu0 0.0
      %801 = vmatpush1.xpose.msra.mxu0 0.0
      %802 = vmatprep.subr.mxu0 0.0
      %803 = vmatpush1.xpose.msra.mxu0 0.0
      %804 = vmatprep.subr.mxu0 0.0
      %805 = vmatpush1.xpose.msra.mxu0 0.0
      %806 = vmatprep.subr.mxu0 0.0
      %807 = vmatpush1.xpose.msra.mxu0 0.0
      %808 = vmatprep.subr.mxu0 0.0
      %809 = vmatpush1.xpose.msra.mxu0 0.0
      %810 = vmatprep.subr.mxu0 0.0
      %811 = vmatpush1.xpose.msra.mxu0 0.0
      %812 = vmatprep.subr.mxu0 0.0
      %813 = vmatpush1.xpose.msra.mxu0 0.0
      %814 = vmatprep.subr.mxu0 0.0
      %815 = vmatpush1.xpose.msra.mxu0 0.0
      %816 = vmatprep.subr.mxu0 0.0
      %817 = vmatpush1.xpose.msra.mxu0 0.0
      %818 = vmatprep.subr.mxu0 0.0
      %819 = vmatpush1.xpose.msra.mxu0 0.0
      %820 = vmatprep.subr.mxu0 0.0
      %821 = vmatpush1.xpose.msra.mxu0 0.0
      %822 = vmatprep.subr.mxu0 0.0
      %823 = vmatpush1.xpose.msra.mxu0 0.0
      %824 = vmatprep.subr.mxu0 0.0
      %825 = vmatpush1.xpose.msra.mxu0 0.0
      %826 = vmatprep.subr.mxu0 0.0
      %827 = vmatpush1.xpose.msra.mxu0 0.0
      %828 = vmatprep.subr.mxu0 0.0
      %829 = vmatpush1.xpose.msra.mxu0 0.0
      %830 = vmatprep.subr.mxu0 0.0
      %831 = vmatpush1.xpose.msra.mxu0 0.0
      %832 = vmatprep.subr.mxu0 0.0
      %833 = vmatpush1.xpose.msra.mxu0 0.0
      %834 = vmatprep.subr.mxu0 0.0
      %835 = vmatpush1.xpose.msra.mxu0 0.0
      %836 = vmatprep.subr.mxu0 0.0
      %837 = vmatpush1.xpose.msra.mxu0 0.0
      %838 = vmatprep.subr.mxu0 0.0
      %839 = vmatpush1.xpose.msra.mxu0 0.0
      %840 = vmatprep.subr.mxu0 0.0
      %841 = vmatpush1.xpose.msra.mxu0 0.0
      %842 = vmatprep.subr.mxu0 0.0
      %843 = vmatpush1.xpose.msra.mxu0 0.0
      %844 = vmatprep.subr.mxu0 0.0
      %845 = vmatpush1.xpose.msra.mxu0 0.0
      %846 = vmatprep.subr.mxu0 0.0
      %847 = vmatpush1.xpose.msra.mxu0 0.0
      %848 = vmatprep.subr.mxu0 0.0
      %849 = vmatpush1.xpose.msra.mxu0 0.0
      %850 = vmatprep.subr.mxu0 0.0
      %851 = vmatpush1.xpose.msra.mxu0 0.0
      %852 = vmatprep.subr.mxu0 0.0
      %853 = vmatpush1.xpose.msra.mxu0 0.0
      %854 = vmatprep.subr.mxu0 0.0
      %855 = vmatpush1.xpose.msra.mxu0 0.0
      %856 = vmatprep.mubr.f32.mxu0 0.0
      %857 = vmatmul.mubr.f32.gmra.mrb[0].mxu0 %v788
      %v858 = vpop.f32.mrb[0].mxu0
      %v859 = vadd.f32 0.0, %v858
      %v860 = vpop.f32.mrb[0].mxu0
      %861 = vdwg.mxu0
      %v862 = vmul.f32 %v859, 0.35355338
      %v863 = vadd.f32 %v862, %v690
      %v864 = vsel %vm693, %v863, -inf
      %865 = vmax.xlane.f32.xlu0 %v864
      %v866 = vpop.xlane.xlu0 %865
      %v867 = vsub.f32 %v863, %v866
      %v868 = vmul.f32 %v867, 1.442695
      %v869 = vpow.pop %v868
      %v870 = vsel %vm693, %v869, 0.0
      %871 = vadd.xlane.f32.xlu0 %v870
      %v872 = vpop.xlane.xlu0 %871
      %v873 = vrcp.pop %v872
      %v874 = vmul.f32 %v869, %v873
      %875 = vrot.lane.b32.xlu0 %v597, 56
      %v876 = vpop.permute.xlu0 %875
      %v878 = vsel %vm707, %v874, 0
      %v880 = vsel %vm711, %v876, 0
      %882 = vmatprep.subr.mxu0 0.0
      %883 = vmatpush1.msra.mxu0 %v880
      %884 = vmatprep.subr.mxu0 0.0
      %885 = vmatpush1.msra.mxu0 0.0
      %886 = vmatprep.subr.mxu0 0.0
      %887 = vmatpush1.msra.mxu0 0.0
      %888 = vmatprep.subr.mxu0 0.0
      %889 = vmatpush1.msra.mxu0 0.0
      %890 = vmatprep.subr.mxu0 0.0
      %891 = vmatpush1.msra.mxu0 0.0
      %892 = vmatprep.subr.mxu0 0.0
      %893 = vmatpush1.msra.mxu0 0.0
      %894 = vmatprep.subr.mxu0 0.0
      %895 = vmatpush1.msra.mxu0 0.0
      %896 = vmatprep.subr.mxu0 0.0
      %897 = vmatpush1.msra.mxu0 0.0
      %898 = vmatprep.subr.mxu0 0.0
      %899 = vmatpush1.msra.mxu0 0.0
      %900 = vmatprep.subr.mxu0 0.0
      %901 = vmatpush1.msra.mxu0 0.0
      %902 = vmatprep.subr.mxu0 0.0
      %903 = vmatpush1.msra.mxu0 0.0
      %904 = vmatprep.subr.mxu0 0.0
      %905 = vmatpush1.msra.mxu0 0.0
      %906 = vmatprep.subr.mxu0 0.0
      %907 = vmatpush1.msra.mxu0 0.0
      %908 = vmatprep.subr.mxu0 0.0
      %909 = vmatpush1.msra.mxu0 0.0
      %910 = vmatprep.subr.mxu0 0.0
      %911 = vmatpush1.msra.mxu0 0.0
      %912 = vmatprep.subr.mxu0 0.0
      %913 = vmatpush1.msra.mxu0 0.0
      %914 = vmatprep.subr.mxu0 0.0
      %915 = vmatpush1.msra.mxu0 0.0
      %916 = vmatprep.subr.mxu0 0.0
      %917 = vmatpush1.msra.mxu0 0.0
      %918 = vmatprep.subr.mxu0 0.0
      %919 = vmatpush1.msra.mxu0 0.0
      %920 = vmatprep.subr.mxu0 0.0
      %921 = vmatpush1.msra.mxu0 0.0
      %922 = vmatprep.subr.mxu0 0.0
      %923 = vmatpush1.msra.mxu0 0.0
      %924 = vmatprep.subr.mxu0 0.0
      %925 = vmatpush1.msra.mxu0 0.0
      %926 = vmatprep.subr.mxu0 0.0
      %927 = vmatpush1.msra.mxu0 0.0
      %928 = vmatprep.subr.mxu0 0.0
      %929 = vmatpush1.msra.mxu0 0.0
      %930 = vmatprep.subr.mxu0 0.0
      %931 = vmatpush1.msra.mxu0 0.0
      %932 = vmatprep.subr.mxu0 0.0
      %933 = vmatpush1.msra.mxu0 0.0
      %934 = vmatprep.subr.mxu0 0.0
      %935 = vmatpush1.msra.mxu0 0.0
      %936 = vmatprep.subr.mxu0 0.0
      %937 = vmatpush1.msra.mxu0 0.0
      %938 = vmatprep.subr.mxu0 0.0
      %939 = vmatpush1.msra.mxu0 0.0
      %940 = vmatprep.subr.mxu0 0.0
      %941 = vmatpush1.msra.mxu0 0.0
      %942 = vmatprep.subr.mxu0 0.0
      %943 = vmatpush1.msra.mxu0 0.0
      %944 = vmatprep.subr.mxu0 0.0
      %945 = vmatpush1.msra.mxu0 0.0
      %946 = vmatprep.mubr.f32.mxu0 0.0
      %947 = vmatmul.mubr.f32.gmra.mrb[0].mxu0 %v878
      %v948 = vpop.f32.mrb[0].mxu0
      %v949 = vadd.f32 0.0, %v948
      %v950 = vpop.f32.mrb[0].mxu0
      %951 = vdwg.mxu0
      %v953 = vsel %vm610, %v949, 0
      %955 = vmatprep.subr.mxu0 0.0
      %956 = vmatpush1.msra.mxu0 %v603
      %957 = vmatprep.subr.mxu0 0.0
      %958 = vmatpush1.msra.mxu0 0.0
      %959 = vmatprep.subr.mxu0 0.0
      %960 = vmatpush1.msra.mxu0 0.0
      %961 = vmatprep.subr.mxu0 0.0
      %962 = vmatpush1.msra.mxu0 0.0
      %963 = vmatprep.subr.mxu0 0.0
      %964 = vmatpush1.msra.mxu0 0.0
      %965 = vmatprep.subr.mxu0 0.0
      %966 = vmatpush1.msra.mxu0 0.0
      %967 = vmatprep.subr.mxu0 0.0
      %968 = vmatpush1.msra.mxu0 0.0
      %969 = vmatprep.subr.mxu0 0.0
      %970 = vmatpush1.msra.mxu0 0.0
      %971 = vmatprep.subr.mxu0 0.0
      %972 = vmatpush1.msra.mxu0 0.0
      %973 = vmatprep.subr.mxu0 0.0
      %974 = vmatpush1.msra.mxu0 0.0
      %975 = vmatprep.subr.mxu0 0.0
      %976 = vmatpush1.msra.mxu0 0.0
      %977 = vmatprep.subr.mxu0 0.0
      %978 = vmatpush1.msra.mxu0 0.0
      %979 = vmatprep.subr.mxu0 0.0
      %980 = vmatpush1.msra.mxu0 0.0
      %981 = vmatprep.subr.mxu0 0.0
      %982 = vmatpush1.msra.mxu0 0.0
      %983 = vmatprep.subr.mxu0 0.0
      %984 = vmatpush1.msra.mxu0 0.0
      %985 = vmatprep.subr.mxu0 0.0
      %986 = vmatpush1.msra.mxu0 0.0
      %987 = vmatprep.subr.mxu0 0.0
      %988 = vmatpush1.msra.mxu0 0.0
      %989 = vmatprep.subr.mxu0 0.0
      %990 = vmatpush1.msra.mxu0 0.0
      %991 = vmatprep.subr.mxu0 0.0
      %992 = vmatpush1.msra.mxu0 0.0
      %993 = vmatprep.subr.mxu0 0.0
      %994 = vmatpush1.msra.mxu0 0.0
      %995 = vmatprep.subr.mxu0 0.0
      %996 = vmatpush1.msra.mxu0 0.0
      %997 = vmatprep.subr.mxu0 0.0
      %998 = vmatpush1.msra.mxu0 0.0
      %999 = vmatprep.subr.mxu0 0.0
      %1000 = vmatpush1.msra.mxu0 0.0
      %1001 = vmatprep.subr.mxu0 0.0
      %1002 = vmatpush1.msra.mxu0 0.0
      %1003 = vmatprep.subr.mxu0 0.0
      %1004 = vmatpush1.msra.mxu0 0.0
      %1005 = vmatprep.subr.mxu0 0.0
      %1006 = vmatpush1.msra.mxu0 0.0
      %1007 = vmatprep.subr.mxu0 0.0
      %1008 = vmatpush1.msra.mxu0 0.0
      %1009 = vmatprep.subr.mxu0 0.0
      %1010 = vmatpush1.msra.mxu0 0.0
      %1011 = vmatprep.subr.mxu0 0.0
      %1012 = vmatpush1.msra.mxu0 0.0
      %1013 = vmatprep.subr.mxu0 0.0
      %1014 = vmatpush1.msra.mxu0 0.0
      %1015 = vmatprep.subr.mxu0 0.0
      %1016 = vmatpush1.msra.mxu0 0.0
      %1017 = vmatprep.subr.mxu0 0.0
      %1018 = vmatpush1.msra.mxu0 0.0
      %1019 = vmatprep.mubr.f32.mxu0 0.0
      %1020 = vmatmul.mubr.f32.gmra.mrb[0].mxu0 %v953
      %v1021 = vpop.f32.mrb[0].mxu0
      %v1022 = vadd.f32 0.0, %v1021
      %v1023 = vpop.f32.mrb[0].mxu0
      %1024 = vdwg.mxu0
      %v1026 = vsel %vm610, %v781, 0
      %1028 = vmatprep.subr.mxu0 0.0
      %1029 = vmatpush1.msra.mxu0 %v602
      %1030 = vmatprep.subr.mxu0 0.0
      %1031 = vmatpush1.msra.mxu0 0.0
      %1032 = vmatprep.subr.mxu0 0.0
      %1033 = vmatpush1.msra.mxu0 0.0
      %1034 = vmatprep.subr.mxu0 0.0
      %1035 = vmatpush1.msra.mxu0 0.0
      %1036 = vmatprep.subr.mxu0 0.0
      %1037 = vmatpush1.msra.mxu0 0.0
      %1038 = vmatprep.subr.mxu0 0.0
      %1039 = vmatpush1.msra.mxu0 0.0
      %1040 = vmatprep.subr.mxu0 0.0
      %1041 = vmatpush1.msra.mxu0 0.0
      %1042 = vmatprep.subr.mxu0 0.0
      %1043 = vmatpush1.msra.mxu0 0.0
      %1044 = vmatprep.subr.mxu0 0.0
      %1045 = vmatpush1.msra.mxu0 0.0
      %1046 = vmatprep.subr.mxu0 0.0
      %1047 = vmatpush1.msra.mxu0 0.0
      %1048 = vmatprep.subr.mxu0 0.0
      %1049 = vmatpush1.msra.mxu0 0.0
      %1050 = vmatprep.subr.mxu0 0.0
      %1051 = vmatpush1.msra.mxu0 0.0
      %1052 = vmatprep.subr.mxu0 0.0
      %1053 = vmatpush1.msra.mxu0 0.0
      %1054 = vmatprep.subr.mxu0 0.0
      %1055 = vmatpush1.msra.mxu0 0.0
      %1056 = vmatprep.subr.mxu0 0.0
      %1057 = vmatpush1.msra.mxu0 0.0
      %1058 = vmatprep.subr.mxu0 0.0
      %1059 = vmatpush1.msra.mxu0 0.0
      %1060 = vmatprep.subr.mxu0 0.0
      %1061 = vmatpush1.msra.mxu0 0.0
      %1062 = vmatprep.subr.mxu0 0.0
      %1063 = vmatpush1.msra.mxu0 0.0
      %1064 = vmatprep.subr.mxu0 0.0
      %1065 = vmatpush1.msra.mxu0 0.0
      %1066 = vmatprep.subr.mxu0 0.0
      %1067 = vmatpush1.msra.mxu0 0.0
      %1068 = vmatprep.subr.mxu0 0.0
      %1069 = vmatpush1.msra.mxu0 0.0
      %1070 = vmatprep.subr.mxu0 0.0
      %1071 = vmatpush1.msra.mxu0 0.0
      %1072 = vmatprep.subr.mxu0 0.0
      %1073 = vmatpush1.msra.mxu0 0.0
      %1074 = vmatprep.subr.mxu0 0.0
      %1075 = vmatpush1.msra.mxu0 0.0
      %1076 = vmatprep.subr.mxu0 0.0
      %1077 = vmatpush1.msra.mxu0 0.0
      %1078 = vmatprep.subr.mxu0 0.0
      %1079 = vmatpush1.msra.mxu0 0.0
      %1080 = vmatprep.subr.mxu0 0.0
      %1081 = vmatpush1.msra.mxu0 0.0
      %1082 = vmatprep.subr.mxu0 0.0
      %1083 = vmatpush1.msra.mxu0 0.0
      %1084 = vmatprep.subr.mxu0 0.0
      %1085 = vmatpush1.msra.mxu0 0.0
      %1086 = vmatprep.subr.mxu0 0.0
      %1087 = vmatpush1.msra.mxu0 0.0
      %1088 = vmatprep.subr.mxu0 0.0
      %1089 = vmatpush1.msra.mxu0 0.0
      %1090 = vmatprep.subr.mxu0 0.0
      %1091 = vmatpush1.msra.mxu0 0.0
      %1092 = vmatprep.mubr.f32.mxu0 0.0
      %1093 = vmatmul.mubr.f32.gmra.mrb[0].mxu0 %v1026
      %v1094 = vpop.f32.mrb[0].mxu0
      %v1095 = vadd.f32 %v1022, %v1094
      %v1096 = vpop.f32.mrb[0].mxu0
      %1097 = vdwg.mxu0
      %1098 = vrot.lane.b32.xlu0 %v597, 112
      %v1099 = vpop.permute.xlu0 %1098
      %1100 = vrot.lane.b32.xlu0 %v597, 80
      %v1101 = vpop.permute.xlu0 %1100
      %v1102 = vsel %vm610, %v1099, 0
      %v1104 = vsel %vm610, %v1101, 0
      %1106 = vmatprep.subr.mxu0 0.0
      %1107 = vmatpush1.xpose.msra.mxu0 %v1104
      %1108 = vmatprep.subr.mxu0 0.0
      %1109 = vmatpush1.xpose.msra.mxu0 0.0
      %1110 = vmatprep.subr.mxu0 0.0
      %1111 = vmatpush1.xpose.msra.mxu0 0.0
      %1112 = vmatprep.subr.mxu0 0.0
      %1113 = vmatpush1.xpose.msra.mxu0 0.0
      %1114 = vmatprep.subr.mxu0 0.0
      %1115 = vmatpush1.xpose.msra.mxu0 0.0
      %1116 = vmatprep.subr.mxu0 0.0
      %1117 = vmatpush1.xpose.msra.mxu0 0.0
      %1118 = vmatprep.subr.mxu0 0.0
      %1119 = vmatpush1.xpose.msra.mxu0 0.0
      %1120 = vmatprep.subr.mxu0 0.0
      %1121 = vmatpush1.xpose.msra.mxu0 0.0
      %1122 = vmatprep.subr.mxu0 0.0
      %1123 = vmatpush1.xpose.msra.mxu0 0.0
      %1124 = vmatprep.subr.mxu0 0.0
      %1125 = vmatpush1.xpose.msra.mxu0 0.0
      %1126 = vmatprep.subr.mxu0 0.0
      %1127 = vmatpush1.xpose.msra.mxu0 0.0
      %1128 = vmatprep.subr.mxu0 0.0
      %1129 = vmatpush1.xpose.msra.mxu0 0.0
      %1130 = vmatprep.subr.mxu0 0.0
      %1131 = vmatpush1.xpose.msra.mxu0 0.0
      %1132 = vmatprep.subr.mxu0 0.0
      %1133 = vmatpush1.xpose.msra.mxu0 0.0
      %1134 = vmatprep.subr.mxu0 0.0
      %1135 = vmatpush1.xpose.msra.mxu0 0.0
      %1136 = vmatprep.subr.mxu0 0.0
      %1137 = vmatpush1.xpose.msra.mxu0 0.0
      %1138 = vmatprep.subr.mxu0 0.0
      %1139 = vmatpush1.xpose.msra.mxu0 0.0
      %1140 = vmatprep.subr.mxu0 0.0
      %1141 = vmatpush1.xpose.msra.mxu0 0.0
      %1142 = vmatprep.subr.mxu0 0.0
      %1143 = vmatpush1.xpose.msra.mxu0 0.0
      %1144 = vmatprep.subr.mxu0 0.0
      %1145 = vmatpush1.xpose.msra.mxu0 0.0
      %1146 = vmatprep.subr.mxu0 0.0
      %1147 = vmatpush1.xpose.msra.mxu0 0.0
      %1148 = vmatprep.subr.mxu0 0.0
      %1149 = vmatpush1.xpose.msra.mxu0 0.0
      %1150 = vmatprep.subr.mxu0 0.0
      %1151 = vmatpush1.xpose.msra.mxu0 0.0
      %1152 = vmatprep.subr.mxu0 0.0
      %1153 = vmatpush1.xpose.msra.mxu0 0.0
      %1154 = vmatprep.subr.mxu0 0.0
      %1155 = vmatpush1.xpose.msra.mxu0 0.0
      %1156 = vmatprep.subr.mxu0 0.0
      %1157 = vmatpush1.xpose.msra.mxu0 0.0
      %1158 = vmatprep.subr.mxu0 0.0
      %1159 = vmatpush1.xpose.msra.mxu0 0.0
      %1160 = vmatprep.subr.mxu0 0.0
      %1161 = vmatpush1.xpose.msra.mxu0 0.0
      %1162 = vmatprep.subr.mxu0 0.0
      %1163 = vmatpush1.xpose.msra.mxu0 0.0
      %1164 = vmatprep.subr.mxu0 0.0
      %1165 = vmatpush1.xpose.msra.mxu0 0.0
      %1166 = vmatprep.subr.mxu0 0.0
      %1167 = vmatpush1.xpose.msra.mxu0 0.0
      %1168 = vmatprep.subr.mxu0 0.0
      %1169 = vmatpush1.xpose.msra.mxu0 0.0
      %1170 = vmatprep.mubr.f32.mxu0 0.0
      %1171 = vmatmul.mubr.f32.gmra.mrb[0].mxu0 %v1102
      %v1172 = vpop.f32.mrb[0].mxu0
      %v1173 = vadd.f32 0.0, %v1172
      %v1174 = vpop.f32.mrb[0].mxu0
      %1175 = vdwg.mxu0
      %v1176 = vmul.f32 %v1173, 0.35355338
      %v1177 = vadd.f32 %v1176, %v690
      %v1178 = vsel %vm693, %v1177, -inf
      %1179 = vmax.xlane.f32.xlu0 %v1178
      %v1180 = vpop.xlane.xlu0 %1179
      %v1181 = vsub.f32 %v1177, %v1180
      %v1182 = vmul.f32 %v1181, 1.442695
      %v1183 = vpow.pop %v1182
      %v1184 = vsel %vm693, %v1183, 0.0
      %1185 = vadd.xlane.f32.xlu0 %v1184
      %v1186 = vpop.xlane.xlu0 %1185
      %v1187 = vrcp.pop %v1186
      %v1188 = vmul.f32 %v1183, %v1187
      %1189 = vrot.lane.b32.xlu0 %v597, 48
      %v1190 = vpop.permute.xlu0 %1189
      %v1192 = vsel %vm707, %v1188, 0
      %v1194 = vsel %vm711, %v1190, 0
      %1196 = vmatprep.subr.mxu0 0.0
      %1197 = vmatpush1.msra.mxu0 %v1194
      %1198 = vmatprep.subr.mxu0 0.0
      %1199 = vmatpush1.msra.mxu0 0.0
      %1200 = vmatprep.subr.mxu0 0.0
      %1201 = vmatpush1.msra.mxu0 0.0
      %1202 = vmatprep.subr.mxu0 0.0
      %1203 = vmatpush1.msra.mxu0 0.0
      %1204 = vmatprep.subr.mxu0 0.0
      %1205 = vmatpush1.msra.mxu0 0.0
      %1206 = vmatprep.subr.mxu0 0.0
      %1207 = vmatpush1.msra.mxu0 0.0
      %1208 = vmatprep.subr.mxu0 0.0
      %1209 = vmatpush1.msra.mxu0 0.0
      %1210 = vmatprep.subr.mxu0 0.0
      %1211 = vmatpush1.msra.mxu0 0.0
      %1212 = vmatprep.subr.mxu0 0.0
      %1213 = vmatpush1.msra.mxu0 0.0
      %1214 = vmatprep.subr.mxu0 0.0
      %1215 = vmatpush1.msra.mxu0 0.0
      %1216 = vmatprep.subr.mxu0 0.0
      %1217 = vmatpush1.msra.mxu0 0.0
      %1218 = vmatprep.subr.mxu0 0.0
      %1219 = vmatpush1.msra.mxu0 0.0
      %1220 = vmatprep.subr.mxu0 0.0
      %1221 = vmatpush1.msra.mxu0 0.0
      %1222 = vmatprep.subr.mxu0 0.0
      %1223 = vmatpush1.msra.mxu0 0.0
      %1224 = vmatprep.subr.mxu0 0.0
      %1225 = vmatpush1.msra.mxu0 0.0
      %1226 = vmatprep.subr.mxu0 0.0
      %1227 = vmatpush1.msra.mxu0 0.0
      %1228 = vmatprep.subr.mxu0 0.0
      %1229 = vmatpush1.msra.mxu0 0.0
      %1230 = vmatprep.subr.mxu0 0.0
      %1231 = vmatpush1.msra.mxu0 0.0
      %1232 = vmatprep.subr.mxu0 0.0
      %1233 = vmatpush1.msra.mxu0 0.0
      %1234 = vmatprep.subr.mxu0 0.0
      %1235 = vmatpush1.msra.mxu0 0.0
      %1236 = vmatprep.subr.mxu0 0.0
      %1237 = vmatpush1.msra.mxu0 0.0
      %1238 = vmatprep.subr.mxu0 0.0
      %1239 = vmatpush1.msra.mxu0 0.0
      %1240 = vmatprep.subr.mxu0 0.0
      %1241 = vmatpush1.msra.mxu0 0.0
      %1242 = vmatprep.subr.mxu0 0.0
      %1243 = vmatpush1.msra.mxu0 0.0
      %1244 = vmatprep.subr.mxu0 0.0
      %1245 = vmatpush1.msra.mxu0 0.0
      %1246 = vmatprep.subr.mxu0 0.0
      %1247 = vmatpush1.msra.mxu0 0.0
      %1248 = vmatprep.subr.mxu0 0.0
      %1249 = vmatpush1.msra.mxu0 0.0
      %1250 = vmatprep.subr.mxu0 0.0
      %1251 = vmatpush1.msra.mxu0 0.0
      %1252 = vmatprep.subr.mxu0 0.0
      %1253 = vmatpush1.msra.mxu0 0.0
      %1254 = vmatprep.subr.mxu0 0.0
      %1255 = vmatpush1.msra.mxu0 0.0
      %1256 = vmatprep.subr.mxu0 0.0
      %1257 = vmatpush1.msra.mxu0 0.0
      %1258 = vmatprep.subr.mxu0 0.0
      %1259 = vmatpush1.msra.mxu0 0.0
      %1260 = vmatprep.mubr.f32.mxu0 0.0
      %1261 = vmatmul.mubr.f32.gmra.mrb[0].mxu0 %v1192
      %v1262 = vpop.f32.mrb[0].mxu0
      %v1263 = vadd.f32 0.0, %v1262
      %v1264 = vpop.f32.mrb[0].mxu0
      %1265 = vdwg.mxu0
      %v1267 = vsel %vm610, %v1263, 0
      %1269 = vmatprep.subr.mxu0 0.0
      %1270 = vmatpush1.msra.mxu0 %v604
      %1271 = vmatprep.subr.mxu0 0.0
      %1272 = vmatpush1.msra.mxu0 0.0
      %1273 = vmatprep.subr.mxu0 0.0
      %1274 = vmatpush1.msra.mxu0 0.0
      %1275 = vmatprep.subr.mxu0 0.0
      %1276 = vmatpush1.msra.mxu0 0.0
      %1277 = vmatprep.subr.mxu0 0.0
      %1278 = vmatpush1.msra.mxu0 0.0
      %1279 = vmatprep.subr.mxu0 0.0
      %1280 = vmatpush1.msra.mxu0 0.0
      %1281 = vmatprep.subr.mxu0 0.0
      %1282 = vmatpush1.msra.mxu0 0.0
      %1283 = vmatprep.subr.mxu0 0.0
      %1284 = vmatpush1.msra.mxu0 0.0
      %1285 = vmatprep.subr.mxu0 0.0
      %1286 = vmatpush1.msra.mxu0 0.0
      %1287 = vmatprep.subr.mxu0 0.0
      %1288 = vmatpush1.msra.mxu0 0.0
      %1289 = vmatprep.subr.mxu0 0.0
      %1290 = vmatpush1.msra.mxu0 0.0
      %1291 = vmatprep.subr.mxu0 0.0
      %1292 = vmatpush1.msra.mxu0 0.0
      %1293 = vmatprep.subr.mxu0 0.0
      %1294 = vmatpush1.msra.mxu0 0.0
      %1295 = vmatprep.subr.mxu0 0.0
      %1296 = vmatpush1.msra.mxu0 0.0
      %1297 = vmatprep.subr.mxu0 0.0
      %1298 = vmatpush1.msra.mxu0 0.0
      %1299 = vmatprep.subr.mxu0 0.0
      %1300 = vmatpush1.msra.mxu0 0.0
      %1301 = vmatprep.subr.mxu0 0.0
      %1302 = vmatpush1.msra.mxu0 0.0
      %1303 = vmatprep.subr.mxu0 0.0
      %1304 = vmatpush1.msra.mxu0 0.0
      %1305 = vmatprep.subr.mxu0 0.0
      %1306 = vmatpush1.msra.mxu0 0.0
      %1307 = vmatprep.subr.mxu0 0.0
      %1308 = vmatpush1.msra.mxu0 0.0
      %1309 = vmatprep.subr.mxu0 0.0
      %1310 = vmatpush1.msra.mxu0 0.0
      %1311 = vmatprep.subr.mxu0 0.0
      %1312 = vmatpush1.msra.mxu0 0.0
      %1313 = vmatprep.subr.mxu0 0.0
      %1314 = vmatpush1.msra.mxu0 0.0
      %1315 = vmatprep.subr.mxu0 0.0
      %1316 = vmatpush1.msra.mxu0 0.0
      %1317 = vmatprep.subr.mxu0 0.0
      %1318 = vmatpush1.msra.mxu0 0.0
      %1319 = vmatprep.subr.mxu0 0.0
      %1320 = vmatpush1.msra.mxu0 0.0
      %1321 = vmatprep.subr.mxu0 0.0
      %1322 = vmatpush1.msra.mxu0 0.0
      %1323 = vmatprep.subr.mxu0 0.0
      %1324 = vmatpush1.msra.mxu0 0.0
      %1325 = vmatprep.subr.mxu0 0.0
      %1326 = vmatpush1.msra.mxu0 0.0
      %1327 = vmatprep.subr.mxu0 0.0
      %1328 = vmatpush1.msra.mxu0 0.0
      %1329 = vmatprep.subr.mxu0 0.0
      %1330 = vmatpush1.msra.mxu0 0.0
      %1331 = vmatprep.subr.mxu0 0.0
      %1332 = vmatpush1.msra.mxu0 0.0
      %1333 = vmatprep.mubr.f32.mxu0 0.0
      %1334 = vmatmul.mubr.f32.gmra.mrb[0].mxu0 %v1267
      %v1335 = vpop.f32.mrb[0].mxu0
      %v1336 = vadd.f32 0.0, %v1335
      %v1337 = vpop.f32.mrb[0].mxu0
      %1338 = vdwg.mxu0
      %v1339 = vadd.f32 %v1095, %v1336
      %1340 = vrot.lane.b32.xlu0 %v597, 104
      %v1341 = vpop.permute.xlu0 %1340
      %1342 = vrot.lane.b32.xlu0 %v597, 72
      %v1343 = vpop.permute.xlu0 %1342
      %v1344 = vsel %vm610, %v1341, 0
      %v1346 = vsel %vm610, %v1343, 0
      %1348 = vmatprep.subr.mxu0 0.0
      %1349 = vmatpush1.xpose.msra.mxu0 %v1346
      %1350 = vmatprep.subr.mxu0 0.0
      %1351 = vmatpush1.xpose.msra.mxu0 0.0
      %1352 = vmatprep.subr.mxu0 0.0
      %1353 = vmatpush1.xpose.msra.mxu0 0.0
      %1354 = vmatprep.subr.mxu0 0.0
      %1355 = vmatpush1.xpose.msra.mxu0 0.0
      %1356 = vmatprep.subr.mxu0 0.0
      %1357 = vmatpush1.xpose.msra.mxu0 0.0
      %1358 = vmatprep.subr.mxu0 0.0
      %1359 = vmatpush1.xpose.msra.mxu0 0.0
      %1360 = vmatprep.subr.mxu0 0.0
      %1361 = vmatpush1.xpose.msra.mxu0 0.0
      %1362 = vmatprep.subr.mxu0 0.0
      %1363 = vmatpush1.xpose.msra.mxu0 0.0
      %1364 = vmatprep.subr.mxu0 0.0
      %1365 = vmatpush1.xpose.msra.mxu0 0.0
      %1366 = vmatprep.subr.mxu0 0.0
      %1367 = vmatpush1.xpose.msra.mxu0 0.0
      %1368 = vmatprep.subr.mxu0 0.0
      %1369 = vmatpush1.xpose.msra.mxu0 0.0
      %1370 = vmatprep.subr.mxu0 0.0
      %1371 = vmatpush1.xpose.msra.mxu0 0.0
      %1372 = vmatprep.subr.mxu0 0.0
      %1373 = vmatpush1.xpose.msra.mxu0 0.0
      %1374 = vmatprep.subr.mxu0 0.0
      %1375 = vmatpush1.xpose.msra.mxu0 0.0
      %1376 = vmatprep.subr.mxu0 0.0
      %1377 = vmatpush1.xpose.msra.mxu0 0.0
      %1378 = vmatprep.subr.mxu0 0.0
      %1379 = vmatpush1.xpose.msra.mxu0 0.0
      %1380 = vmatprep.subr.mxu0 0.0
      %1381 = vmatpush1.xpose.msra.mxu0 0.0
      %1382 = vmatprep.subr.mxu0 0.0
      %1383 = vmatpush1.xpose.msra.mxu0 0.0
      %1384 = vmatprep.subr.mxu0 0.0
      %1385 = vmatpush1.xpose.msra.mxu0 0.0
      %1386 = vmatprep.subr.mxu0 0.0
      %1387 = vmatpush1.xpose.msra.mxu0 0.0
      %1388 = vmatprep.subr.mxu0 0.0
      %1389 = vmatpush1.xpose.msra.mxu0 0.0
      %1390 = vmatprep.subr.mxu0 0.0
      %1391 = vmatpush1.xpose.msra.mxu0 0.0
      %1392 = vmatprep.subr.mxu0 0.0
      %1393 = vmatpush1.xpose.msra.mxu0 0.0
      %1394 = vmatprep.subr.mxu0 0.0
      %1395 = vmatpush1.xpose.msra.mxu0 0.0
      %1396 = vmatprep.subr.mxu0 0.0
      %1397 = vmatpush1.xpose.msra.mxu0 0.0
      %1398 = vmatprep.subr.mxu0 0.0
      %1399 = vmatpush1.xpose.msra.mxu0 0.0
      %1400 = vmatprep.subr.mxu0 0.0
      %1401 = vmatpush1.xpose.msra.mxu0 0.0
      %1402 = vmatprep.subr.mxu0 0.0
      %1403 = vmatpush1.xpose.msra.mxu0 0.0
      %1404 = vmatprep.subr.mxu0 0.0
      %1405 = vmatpush1.xpose.msra.mxu0 0.0
      %1406 = vmatprep.subr.mxu0 0.0
      %1407 = vmatpush1.xpose.msra.mxu0 0.0
      %1408 = vmatprep.subr.mxu0 0.0
      %1409 = vmatpush1.xpose.msra.mxu0 0.0
      %1410 = vmatprep.subr.mxu0 0.0
      %1411 = vmatpush1.xpose.msra.mxu0 0.0
      %1412 = vmatprep.mubr.f32.mxu0 0.0
      %1413 = vmatmul.mubr.f32.gmra.mrb[0].mxu0 %v1344
      %v1414 = vpop.f32.mrb[0].mxu0
      %v1415 = vadd.f32 0.0, %v1414
      %v1416 = vpop.f32.mrb[0].mxu0
      %1417 = vdwg.mxu0
      %v1418 = vmul.f32 %v1415, 0.35355338
      %v1419 = vadd.f32 %v1418, %v690
      %v1420 = vsel %vm693, %v1419, -inf
      %1421 = vmax.xlane.f32.xlu0 %v1420
      %v1422 = vpop.xlane.xlu0 %1421
      %v1423 = vsub.f32 %v1419, %v1422
      %v1424 = vmul.f32 %v1423, 1.442695
      %v1425 = vpow.pop %v1424
      %v1426 = vsel %vm693, %v1425, 0.0
      %1427 = vadd.xlane.f32.xlu0 %v1426
      %v1428 = vpop.xlane.xlu0 %1427
      %v1429 = vrcp.pop %v1428
      %v1430 = vmul.f32 %v1425, %v1429
      %1431 = vrot.lane.b32.xlu0 %v597, 40
      %v1432 = vpop.permute.xlu0 %1431
      %v1434 = vsel %vm707, %v1430, 0
      %v1436 = vsel %vm711, %v1432, 0
      %1438 = vmatprep.subr.mxu0 0.0
      %1439 = vmatpush1.msra.mxu0 %v1436
      %1440 = vmatprep.subr.mxu0 0.0
      %1441 = vmatpush1.msra.mxu0 0.0
      %1442 = vmatprep.subr.mxu0 0.0
      %1443 = vmatpush1.msra.mxu0 0.0
      %1444 = vmatprep.subr.mxu0 0.0
      %1445 = vmatpush1.msra.mxu0 0.0
      %1446 = vmatprep.subr.mxu0 0.0
      %1447 = vmatpush1.msra.mxu0 0.0
      %1448 = vmatprep.subr.mxu0 0.0
      %1449 = vmatpush1.msra.mxu0 0.0
      %1450 = vmatprep.subr.mxu0 0.0
      %1451 = vmatpush1.msra.mxu0 0.0
      %1452 = vmatprep.subr.mxu0 0.0
      %1453 = vmatpush1.msra.mxu0 0.0
      %1454 = vmatprep.subr.mxu0 0.0
      %1455 = vmatpush1.msra.mxu0 0.0
      %1456 = vmatprep.subr.mxu0 0.0
      %1457 = vmatpush1.msra.mxu0 0.0
      %1458 = vmatprep.subr.mxu0 0.0
      %1459 = vmatpush1.msra.mxu0 0.0
      %1460 = vmatprep.subr.mxu0 0.0
      %1461 = vmatpush1.msra.mxu0 0.0
      %1462 = vmatprep.subr.mxu0 0.0
      %1463 = vmatpush1.msra.mxu0 0.0
      %1464 = vmatprep.subr.mxu0 0.0
      %1465 = vmatpush1.msra.mxu0 0.0
      %1466 = vmatprep.subr.mxu0 0.0
      %1467 = vmatpush1.msra.mxu0 0.0
      %1468 = vmatprep.subr.mxu0 0.0
      %1469 = vmatpush1.msra.mxu0 0.0
      %1470 = vmatprep.subr.mxu0 0.0
      %1471 = vmatpush1.msra.mxu0 0.0
      %1472 = vmatprep.subr.mxu0 0.0
      %1473 = vmatpush1.msra.mxu0 0.0
      %1474 = vmatprep.subr.mxu0 0.0
      %1475 = vmatpush1.msra.mxu0 0.0
      %1476 = vmatprep.subr.mxu0 0.0
      %1477 = vmatpush1.msra.mxu0 0.0
      %1478 = vmatprep.subr.mxu0 0.0
      %1479 = vmatpush1.msra.mxu0 0.0
      %1480 = vmatprep.subr.mxu0 0.0
      %1481 = vmatpush1.msra.mxu0 0.0
      %1482 = vmatprep.subr.mxu0 0.0
      %1483 = vmatpush1.msra.mxu0 0.0
      %1484 = vmatprep.subr.mxu0 0.0
      %1485 = vmatpush1.msra.mxu0 0.0
      %1486 = vmatprep.subr.mxu0 0.0
      %1487 = vmatpush1.msra.mxu0 0.0
      %1488 = vmatprep.subr.mxu0 0.0
      %1489 = vmatpush1.msra.mxu0 0.0
      %1490 = vmatprep.subr.mxu0 0.0
      %1491 = vmatpush1.msra.mxu0 0.0
      %1492 = vmatprep.subr.mxu0 0.0
      %1493 = vmatpush1.msra.mxu0 0.0
      %1494 = vmatprep.subr.mxu0 0.0
      %1495 = vmatpush1.msra.mxu0 0.0
      %1496 = vmatprep.subr.mxu0 0.0
      %1497 = vmatpush1.msra.mxu0 0.0
      %1498 = vmatprep.subr.mxu0 0.0
      %1499 = vmatpush1.msra.mxu0 0.0
      %1500 = vmatprep.subr.mxu0 0.0
      %1501 = vmatpush1.msra.mxu0 0.0
      %1502 = vmatprep.mubr.f32.mxu0 0.0
      %1503 = vmatmul.mubr.f32.gmra.mrb[0].mxu0 %v1434
      %v1504 = vpop.f32.mrb[0].mxu0
      %v1505 = vadd.f32 0.0, %v1504
      %v1506 = vpop.f32.mrb[0].mxu0
      %1507 = vdwg.mxu0
      %v1509 = vsel %vm610, %v1505, 0
      %1511 = vmatprep.subr.mxu0 0.0
      %1512 = vmatpush1.msra.mxu0 %v605
      %1513 = vmatprep.subr.mxu0 0.0
      %1514 = vmatpush1.msra.mxu0 0.0
      %1515 = vmatprep.subr.mxu0 0.0
      %1516 = vmatpush1.msra.mxu0 0.0
      %1517 = vmatprep.subr.mxu0 0.0
      %1518 = vmatpush1.msra.mxu0 0.0
      %1519 = vmatprep.subr.mxu0 0.0
      %1520 = vmatpush1.msra.mxu0 0.0
      %1521 = vmatprep.subr.mxu0 0.0
      %1522 = vmatpush1.msra.mxu0 0.0
      %1523 = vmatprep.subr.mxu0 0.0
      %1524 = vmatpush1.msra.mxu0 0.0
      %1525 = vmatprep.subr.mxu0 0.0
      %1526 = vmatpush1.msra.mxu0 0.0
      %1527 = vmatprep.subr.mxu0 0.0
      %1528 = vmatpush1.msra.mxu0 0.0
      %1529 = vmatprep.subr.mxu0 0.0
      %1530 = vmatpush1.msra.mxu0 0.0
      %1531 = vmatprep.subr.mxu0 0.0
      %1532 = vmatpush1.msra.mxu0 0.0
      %1533 = vmatprep.subr.mxu0 0.0
      %1534 = vmatpush1.msra.mxu0 0.0
      %1535 = vmatprep.subr.mxu0 0.0
      %1536 = vmatpush1.msra.mxu0 0.0
      %1537 = vmatprep.subr.mxu0 0.0
      %1538 = vmatpush1.msra.mxu0 0.0
      %1539 = vmatprep.subr.mxu0 0.0
      %1540 = vmatpush1.msra.mxu0 0.0
      %1541 = vmatprep.subr.mxu0 0.0
      %1542 = vmatpush1.msra.mxu0 0.0
      %1543 = vmatprep.subr.mxu0 0.0
      %1544 = vmatpush1.msra.mxu0 0.0
      %1545 = vmatprep.subr.mxu0 0.0
      %1546 = vmatpush1.msra.mxu0 0.0
      %1547 = vmatprep.subr.mxu0 0.0
      %1548 = vmatpush1.msra.mxu0 0.0
      %1549 = vmatprep.subr.mxu0 0.0
      %1550 = vmatpush1.msra.mxu0 0.0
      %1551 = vmatprep.subr.mxu0 0.0
      %1552 = vmatpush1.msra.mxu0 0.0
      %1553 = vmatprep.subr.mxu0 0.0
      %1554 = vmatpush1.msra.mxu0 0.0
      %1555 = vmatprep.subr.mxu0 0.0
      %1556 = vmatpush1.msra.mxu0 0.0
      %1557 = vmatprep.subr.mxu0 0.0
      %1558 = vmatpush1.msra.mxu0 0.0
      %1559 = vmatprep.subr.mxu0 0.0
      %1560 = vmatpush1.msra.mxu0 0.0
      %1561 = vmatprep.subr.mxu0 0.0
      %1562 = vmatpush1.msra.mxu0 0.0
      %1563 = vmatprep.subr.mxu0 0.0
      %1564 = vmatpush1.msra.mxu0 0.0
      %1565 = vmatprep.subr.mxu0 0.0
      %1566 = vmatpush1.msra.mxu0 0.0
      %1567 = vmatprep.subr.mxu0 0.0
      %1568 = vmatpush1.msra.mxu0 0.0
      %1569 = vmatprep.subr.mxu0 0.0
      %1570 = vmatpush1.msra.mxu0 0.0
      %1571 = vmatprep.subr.mxu0 0.0
      %1572 = vmatpush1.msra.mxu0 0.0
      %1573 = vmatprep.subr.mxu0 0.0
      %1574 = vmatpush1.msra.mxu0 0.0
      %1575 = vmatprep.mubr.f32.mxu0 0.0
      %1576 = vmatmul.mubr.f32.gmra.mrb[0].mxu0 %v1509
      %v1577 = vpop.f32.mrb[0].mxu0
      %v1578 = vadd.f32 0.0, %v1577
      %v1579 = vpop.f32.mrb[0].mxu0
      %1580 = vdwg.mxu0
      %v1581 = vadd.f32 %v1339, %v1578
      %v1583 = vlaneseq
      %v1584 = vshrl.u32 %v1583, 7
      %v1585 = vsub.s32 0, %v1584
      %v1586 = vrot.slane %v606, %v1585
      %v1588 = vadd.f32 %v1581, %v1586
      %v1589 = vadd.f32 %v532, %v1588
      %v1590 = vld [vmem:[%s6] sm:$0x1]
      %v1591 = vld [vmem:[%s7] sm:$0x1]
      %vm1592 = vcmask 258048
      %v1593 = vsel %vm1592, %v1589, 0.0
      %1594 = vadd.xlane.f32.xlu0 %v1593
      %v1595 = vpop.xlane.xlu0 %1594
      %v1596 = vrcp.pop 32.0
      %v1597 = vmul.f32 %v1595, %v1596
      %v1598 = vsub.f32 %v1589, %v1597
      %v1599 = vmul.f32 %v1598, %v1598
      %v1600 = vsel %vm1592, %v1599, 0.0
      %1601 = vadd.xlane.f32.xlu0 %v1600
      %v1602 = vpop.xlane.xlu0 %1601
      %v1603 = vmul.f32 %v1602, %v1596
      %v1604 = vadd.f32 %v1603, 1e-05
      %v1605 = vrsqrt.pop %v1604
      %v1606 = vmul.f32 %v1598, %v1605
      %v1608 = vlaneseq
      %v1609 = vshrl.u32 %v1608, 7
      %v1610 = vsub.s32 0, %v1609
      %v1611 = vrot.slane %v1590, %v1610
      %v1613 = vmul.f32 %v1606, %v1611
      %v1615 = vlaneseq
      %v1616 = vshrl.u32 %v1615, 7
      %v1617 = vsub.s32 0, %v1616
      %v1618 = vrot.slane %v1591, %v1617
      %v1620 = vadd.f32 %v1613, %v1618
      %v1621 = vld [vmem:[%s8] sm:$0xf]
      %v1622 = vld [vmem:[%s8 + $0x4] sm:$0xf]
      %v1623 = vld [vmem:[%s8 + $0x8] sm:$0xf]
      %v1624 = vld [vmem:[%s8 + $0xc] sm:$0xf]
      %v1625 = vld [vmem:[%s9] sm:$0x1]
      %v1626 = vld [vmem:[%s10] sm:$0xf]
      %v1627 = vld [vmem:[%s10 + $0x4] sm:$0xf]
      %v1628 = vld [vmem:[%s10 + $0x8] sm:$0xf]
      %v1629 = vld [vmem:[%s10 + $0xc] sm:$0xf]
      %v1630 = vld [vmem:[%s10 + $0x10] sm:$0xf]
      %v1631 = vld [vmem:[%s10 + $0x14] sm:$0xf]
      %v1632 = vld [vmem:[%s10 + $0x18] sm:$0xf]
      %v1633 = vld [vmem:[%s10 + $0x1c] sm:$0xf]
      %v1634 = vld [vmem:[%s10 + $0x20] sm:$0xf]
      %v1635 = vld [vmem:[%s10 + $0x24] sm:$0xf]
      %v1636 = vld [vmem:[%s10 + $0x28] sm:$0xf]
      %v1637 = vld [vmem:[%s10 + $0x2c] sm:$0xf]
      %v1638 = vld [vmem:[%s10 + $0x30] sm:$0xf]
      %v1639 = vld [vmem:[%s10 + $0x34] sm:$0xf]
      %v1640 = vld [vmem:[%s10 + $0x38] sm:$0xf]
      %v1641 = vld [vmem:[%s10 + $0x3c] sm:$0xf]
      %v1642 = vld [vmem:[%s11] sm:$0x1]
      %v1643 = vpack.c.bf16 %v1620, %v1620
      %v1645 = vlaneseq
      %v1646 = vshrl.u32 %v1645, 7
      %v1647 = vsub.s32 0, %v1646
      %v1648 = vrot.slane %v1625, %v1647
      %v1654 = vunpack.c.l.b16 %v1621
      %v1655 = vunpack.c.l.b16 %v1622
      %v1656 = vunpack.c.l.b16 %v1623
      %v1657 = vunpack.c.l.b16 %v1624
      %v1658 = vpack.c.b16 %v1655, %v1654
      %v1659 = vpack.c.b16 %v1657, %v1656
      %v1663 = vsel %vm558, %v1643, 0
      %1665 = vmatprep.subr.bf16.mxu0 0
      %1666 = vmatpush1.bf16.msra.mxu0 %v1658
      %1667 = vmatprep.subr.bf16.mxu0 0
      %1668 = vmatpush1.bf16.msra.mxu0 %v1659
      %1669 = vmatprep.subr.bf16.mxu0 0
      %1670 = vmatpush1.bf16.msra.mxu0 0
      %1671 = vmatprep.subr.bf16.mxu0 0
      %1672 = vmatpush1.bf16.msra.mxu0 0
      %1673 = vmatprep.subr.bf16.mxu0 0
      %1674 = vmatpush1.bf16.msra.mxu0 0
      %1675 = vmatprep.subr.bf16.mxu0 0
      %1676 = vmatpush1.bf16.msra.mxu0 0
      %1677 = vmatprep.subr.bf16.mxu0 0
      %1678 = vmatpush1.bf16.msra.mxu0 0
      %1679 = vmatprep.subr.bf16.mxu0 0
      %1680 = vmatpush1.bf16.msra.mxu0 0
      %1681 = vmatprep.subr.bf16.mxu0 0
      %1682 = vmatpush1.bf16.msra.mxu0 0
      %1683 = vmatprep.subr.bf16.mxu0 0
      %1684 = vmatpush1.bf16.msra.mxu0 0
      %1685 = vmatprep.subr.bf16.mxu0 0
      %1686 = vmatpush1.bf16.msra.mxu0 0
      %1687 = vmatprep.subr.bf16.mxu0 0
      %1688 = vmatpush1.bf16.msra.mxu0 0
      %1689 = vmatprep.subr.bf16.mxu0 0
      %1690 = vmatpush1.bf16.msra.mxu0 0
      %1691 = vmatprep.subr.bf16.mxu0 0
      %1692 = vmatpush1.bf16.msra.mxu0 0
      %1693 = vmatprep.subr.bf16.mxu0 0
      %1694 = vmatpush1.bf16.msra.mxu0 0
      %1695 = vmatprep.subr.bf16.mxu0 0
      %1696 = vmatpush1.bf16.msra.mxu0 0
      %1697 = vmatprep.mubr.bf16.mxu0 0
      %1698 = vmatmul.mubr.bf16.gmra.mrb[0].mxu0 %v1663
      %v1699 = vpop.f32.mrb[0].mxu0
      %v1700 = vadd.f32 %v1648, %v1699
      %v1701 = vpop.f32.mrb[0].mxu0
      %v1702 = vpop.f32.mrb[0].mxu0
      %v1703 = vpop.f32.mrb[0].mxu0
      %1704 = vdwg.mxu0
      %v1705 = vmax.f32 %v1700, 0.0
      %v1706 = vpack.c.bf16 %v1705, %v1705
      %v1708 = vlaneseq
      %v1709 = vshrl.u32 %v1708, 7
      %v1710 = vsub.s32 0, %v1709
      %v1711 = vrot.slane %v1642, %v1710
      %v1729 = vunpack.c.l.b16 %v1626
      %v1730 = vunpack.c.l.b16 %v1627
      %v1731 = vunpack.c.l.b16 %v1628
      %v1732 = vunpack.c.l.b16 %v1629
      %v1733 = vunpack.c.l.b16 %v1630
      %v1734 = vunpack.c.l.b16 %v1631
      %v1735 = vunpack.c.l.b16 %v1632
      %v1736 = vunpack.c.l.b16 %v1633
      %v1737 = vunpack.c.l.b16 %v1634
      %v1738 = vunpack.c.l.b16 %v1635
      %v1739 = vunpack.c.l.b16 %v1636
      %v1740 = vunpack.c.l.b16 %v1637
      %v1741 = vunpack.c.l.b16 %v1638
      %v1742 = vunpack.c.l.b16 %v1639
      %v1743 = vunpack.c.l.b16 %v1640
      %v1744 = vunpack.c.l.b16 %v1641
      %v1745 = vpack.c.b16 %v1730, %v1729
      %v1746 = vpack.c.b16 %v1732, %v1731
      %v1747 = vpack.c.b16 %v1734, %v1733
      %v1748 = vpack.c.b16 %v1736, %v1735
      %v1749 = vpack.c.b16 %v1738, %v1737
      %v1750 = vpack.c.b16 %v1740, %v1739
      %v1751 = vpack.c.b16 %v1742, %v1741
      %v1752 = vpack.c.b16 %v1744, %v1743
      %1761 = vmatprep.subr.bf16.mxu0 0
      %1762 = vmatpush1.bf16.msra.mxu0 %v1745
      %1763 = vmatprep.subr.bf16.mxu0 0
      %1764 = vmatpush1.bf16.msra.mxu0 %v1746
      %1765 = vmatprep.subr.bf16.mxu0 0
      %1766 = vmatpush1.bf16.msra.mxu0 %v1747
      %1767 = vmatprep.subr.bf16.mxu0 0
      %1768 = vmatpush1.bf16.msra.mxu0 %v1748
      %1769 = vmatprep.subr.bf16.mxu0 0
      %1770 = vmatpush1.bf16.msra.mxu0 %v1749
      %1771 = vmatprep.subr.bf16.mxu0 0
      %1772 = vmatpush1.bf16.msra.mxu0 %v1750
      %1773 = vmatprep.subr.bf16.mxu0 0
      %1774 = vmatpush1.bf16.msra.mxu0 %v1751
      %1775 = vmatprep.subr.bf16.mxu0 0
      %1776 = vmatpush1.bf16.msra.mxu0 %v1752
      %1777 = vmatprep.subr.bf16.mxu0 0
      %1778 = vmatpush1.bf16.msra.mxu0 0
      %1779 = vmatprep.subr.bf16.mxu0 0
      %1780 = vmatpush1.bf16.msra.mxu0 0
      %1781 = vmatprep.subr.bf16.mxu0 0
      %1782 = vmatpush1.bf16.msra.mxu0 0
      %1783 = vmatprep.subr.bf16.mxu0 0
      %1784 = vmatpush1.bf16.msra.mxu0 0
      %1785 = vmatprep.subr.bf16.mxu0 0
      %1786 = vmatpush1.bf16.msra.mxu0 0
      %1787 = vmatprep.subr.bf16.mxu0 0
      %1788 = vmatpush1.bf16.msra.mxu0 0
      %1789 = vmatprep.subr.bf16.mxu0 0
      %1790 = vmatpush1.bf16.msra.mxu0 0
      %1791 = vmatprep.subr.bf16.mxu0 0
      %1792 = vmatpush1.bf16.msra.mxu0 0
      %1793 = vmatprep.mubr.bf16.mxu0 0
      %1794 = vmatmul.mubr.bf16.gmra.mrb[0].mxu0 %v1706
      %v1795 = vpop.f32.mrb[0].mxu0
      %v1796 = vadd.f32 %v1711, %v1795
      %v1797 = vpop.f32.mrb[0].mxu0
      %v1798 = vpop.f32.mrb[0].mxu0
      %v1799 = vpop.f32.mrb[0].mxu0
      %1800 = vdwg.mxu0
      %v1801 = vadd.f32 %v1620, %v1796
      %v1802 = vld [vmem:[%s12] sm:$0x1]
      %v1803 = vld [vmem:[%s13] sm:$0x1]
      %v1804 = vsel %vm1592, %v1801, 0.0
      %1805 = vadd.xlane.f32.xlu0 %v1804
      %v1806 = vpop.xlane.xlu0 %1805
      %v1807 = vmul.f32 %v1806, %v1596
      %v1808 = vsub.f32 %v1801, %v1807
      %v1809 = vmul.f32 %v1808, %v1808
      %v1810 = vsel %vm1592, %v1809, 0.0
      %1811 = vadd.xlane.f32.xlu0 %v1810
      %v1812 = vpop.xlane.xlu0 %1811
      %v1813 = vmul.f32 %v1812, %v1596
      %v1814 = vadd.f32 %v1813, 1e-05
      %v1815 = vrsqrt.pop %v1814
      %v1816 = vmul.f32 %v1808, %v1815
      %v1818 = vlaneseq
      %v1819 = vshrl.u32 %v1818, 7
      %v1820 = vsub.s32 0, %v1819
      %v1821 = vrot.slane %v1802, %v1820
      %v1823 = vmul.f32 %v1816, %v1821
      %v1825 = vlaneseq
      %v1826 = vshrl.u32 %v1825, 7
      %v1827 = vsub.s32 0, %v1826
      %v1828 = vrot.slane %v1803, %v1827
      %v1830 = vadd.f32 %v1823, %v1828
      %v1831 = vld [vmem:[%s14] sm:$0x1]
      %v1832 = vld [vmem:[%s15] sm:$0x1]
      %v1833 = vsel %vm1592, %v1830, 0.0
      %1834 = vadd.xlane.f32.xlu0 %v1833
      %v1835 = vpop.xlane.xlu0 %1834
      %v1836 = vmul.f32 %v1835, %v1596
      %v1837 = vsub.f32 %v1830, %v1836
      %v1838 = vmul.f32 %v1837, %v1837
      %v1839 = vsel %vm1592, %v1838, 0.0
      %1840 = vadd.xlane.f32.xlu0 %v1839
      %v1841 = vpop.xlane.xlu0 %1840
      %v1842 = vmul.f32 %v1841, %v1596
      %v1843 = vadd.f32 %v1842, 1e-05
      %v1844 = vrsqrt.pop %v1843
      %v1845 = vmul.f32 %v1837, %v1844
      %v1847 = vlaneseq
      %v1848 = vshrl.u32 %v1847, 7
      %v1849 = vsub.s32 0, %v1848
      %v1850 = vrot.slane %v1831, %v1849
      %v1852 = vmul.f32 %v1845, %v1850
      %v1854 = vlaneseq
      %v1855 = vshrl.u32 %v1854, 7
      %v1856 = vsub.s32 0, %v1855
      %v1857 = vrot.slane %v1832, %v1856
      %v1859 = vadd.f32 %v1852, %v1857
      %1860 = vst.msk [vmem:[%s530] sm:$0x1f] %vm1592, %v1859
      %p1861 = scmp.lt.s32.totalorder %s27, 1
      %s1862 = scalar_select %p1861, %s27, 1
      %s1863 = smul.addr %s1862, 8
      %s1864 = scalar_lea.vmem %s16, %s1863
      // Predicated region
      $region85: #{_lambda_.6} parent=83 // pred_check
        %p1865 = pneg %p391
      $region86: #{_lambda_.6} parent=83 // pred_check_branch
        %1867 = sbr.rel (%p1865) target = $region88
      $region87: #{_lambda_.6} parent=83 // pred_region
        _
      $region88: #{_lambda_.6} parent=83 // pred_fallthru
        _
    $region84: #{_lambda_.6} parent=5 // pred_fallthru
      _
    %p1868 = scmp.le.s32.totalorder 2, %s22
    // Predicated region
    $region89: #{_lambda_.6} parent=5 // pred_check
      %p1869 = pneg %p1868
    $region90: #{_lambda_.6} parent=5 // pred_check_branch
      %1871 = sbr.rel (%p1869) target = $region92
    $region91: #{_lambda_.6} parent=5 // pred_region
      %s1872 = ssub.s32 %s22, 2
      // Predicated region
      $region93: #{_lambda_.6} parent=91 // pred_check
        %p1873 = pneg %p397
      $region94: #{_lambda_.6} parent=91 // pred_check_branch
        %1875 = sbr.rel (%p1873) target = $region96
      $region95: #{_lambda_.6} parent=91 // pred_region
        %p1876 = scmp.lt.s32.totalorder %s28, 1
        %s1877 = scalar_select %p1876, %s28, 1
        %s1878 = smul.addr %s1877, 8
        %s1879 = scalar_lea.vmem %s16, %s1878
      $region96: #{_lambda_.6} parent=91 // pred_fallthru
        _
    $region92: #{_lambda_.6} parent=5 // pred_fallthru
      _
  $region6: #{_lambda_.6} parent=0 // loop_footer
    %s26 = sadd.s32 1, %s22
  $region7: #{_lambda_.6} parent=0 // loop_footer_branch
    %21 = sbr.rel target = $region3
  $region8: #{_lambda_.6} parent=0 // loop_exit
    _

// kernel: _lambda_.7
$region0: #{_lambda_.7}
  #allocation0 [shape = 'u32[]', space=smem, size = 0x4, offset = 0x4, fixed_abs, tag = 'smem constant byte address 0x4 - core index']
  #allocation1 [shape = 'u32[144,128]{1,0:T(1,128)}', space=vmem, size = 0x12000, scoped, tag = 'internal scratch']
  %s0 = inlined_call_operand.vmem [shape: f32[2,5,32], index: 0, kind: input, shape index: {}]
  %s1 = inlined_call_operand.vmem [shape: f32[2,5,32], index: 1, kind: input, shape index: {}]
  %s2 = inlined_call_operand.vmem [shape: f32[2,1,5], index: 2, kind: input, shape index: {}]
  %s3 = inlined_call_operand.vmem [shape: bf16[32,96], index: 3, kind: input, shape index: {}]
  %s4 = inlined_call_operand.vmem [shape: f32[1,96], index: 4, kind: input, shape index: {}]
  %s5 = inlined_call_operand.vmem [shape: f32[32,32], index: 5, kind: input, shape index: {}]
  %s6 = inlined_call_operand.vmem [shape: f32[1,32], index: 6, kind: input, shape index: {}]
  %s7 = inlined_call_operand.vmem [shape: f32[1,32], index: 7, kind: input, shape index: {}]
  %s8 = inlined_call_operand.vmem [shape: f32[1,32], index: 8, kind: input, shape index: {}]
  %s9 = inlined_call_operand.vmem [shape: bf16[32,32], index: 9, kind: input, shape index: {}]
  %s10 = inlined_call_operand.vmem [shape: f32[1,32], index: 10, kind: input, shape index: {}]
  %s11 = inlined_call_operand.vmem [shape: bf16[32,64], index: 11, kind: input, shape index: {}]
  %s12 = inlined_call_operand.vmem [shape: f32[1,64], index: 12, kind: input, shape index: {}]
  %s13 = inlined_call_operand.vmem [shape: f32[32,32], index: 13, kind: input, shape index: {}]
  %s14 = inlined_call_operand.vmem [shape: f32[1,32], index: 14, kind: input, shape index: {}]
  %s15 = inlined_call_operand.vmem [shape: f32[1,32], index: 15, kind: input, shape index: {}]
  %s16 = inlined_call_operand.vmem [shape: f32[1,32], index: 16, kind: input, shape index: {}]
  %s17 = inlined_call_operand.vmem [shape: bf16[32,128], index: 17, kind: input, shape index: {}]
  %s18 = inlined_call_operand.vmem [shape: f32[1,128], index: 18, kind: input, shape index: {}]
  %s19 = inlined_call_operand.vmem [shape: bf16[128,32], index: 19, kind: input, shape index: {}]
  %s20 = inlined_call_operand.vmem [shape: f32[1,32], index: 20, kind: input, shape index: {}]
  %s21 = inlined_call_operand.vmem [shape: f32[1,32], index: 21, kind: input, shape index: {}]
  %s22 = inlined_call_operand.vmem [shape: f32[1,32], index: 22, kind: input, shape index: {}]
  %s23 = inlined_call_operand.vmem [shape: f32[2,5,32], index: 23, kind: output, shape index: {}]
  %s24 = sld [smem:[#allocation0]]
  $region125: #{_lambda_.7} parent=0
    _
  %s26 = ssub.s32 1, %s24
  %s27 = scalar_select 0, %s26, %s24
  loop: start=0, step=1, limit=4
  $region2: #{_lambda_.7} parent=0 // loop_pre_header
    _
  $region3: #{_lambda_.7} parent=0 // loop_header
    %s29 = sphi 0, %s33
    %p30 = scmp.ge.s32.totalorder %s29, 4
    %s39 = sphi 0, %s41
    %s42 = sphi 0, %s39
    %s43 = sphi 0, %s42
    %s59 = sphi 0, %s43
    %s65 = sphi 0, %s67
    %s68 = sphi 0, %s65
    %s69 = sphi 0, %s68
    %s85 = sphi 0, %s69
    %s91 = sphi 0, %s93
    %s94 = sphi 0, %s91
    %s95 = sphi 0, %s94
    %s111 = sphi 0, %s95
    %s115 = sphi 0, %s115
    %s117 = sphi 0, %s115
    %s118 = sphi 0, %s117
    %s132 = sphi 0, %s118
    %s136 = sphi 0, %s136
    %s138 = sphi 0, %s136
    %s139 = sphi 0, %s138
    %s153 = sphi 0, %s139
    %s157 = sphi 0, %s157
    %s159 = sphi 0, %s157
    %s160 = sphi 0, %s159
    %s174 = sphi 0, %s160
    %s178 = sphi 0, %s178
    %s180 = sphi 0, %s178
    %s181 = sphi 0, %s180
    %s195 = sphi 0, %s181
    %s199 = sphi 0, %s199
    %s201 = sphi 0, %s199
    %s202 = sphi 0, %s201
    %s216 = sphi 0, %s202
    %s220 = sphi 0, %s220
    %s222 = sphi 0, %s220
    %s223 = sphi 0, %s222
    %s237 = sphi 0, %s223
    %s241 = sphi 0, %s241
    %s243 = sphi 0, %s241
    %s244 = sphi 0, %s243
    %s258 = sphi 0, %s244
    %s262 = sphi 0, %s262
    %s264 = sphi 0, %s262
    %s265 = sphi 0, %s264
    %s279 = sphi 0, %s265
    %s283 = sphi 0, %s283
    %s285 = sphi 0, %s283
    %s286 = sphi 0, %s285
    %s300 = sphi 0, %s286
    %s304 = sphi 0, %s304
    %s306 = sphi 0, %s304
    %s307 = sphi 0, %s306
    %s321 = sphi 0, %s307
    %s325 = sphi 0, %s325
    %s327 = sphi 0, %s325
    %s328 = sphi 0, %s327
    %s342 = sphi 0, %s328
    %s346 = sphi 0, %s346
    %s348 = sphi 0, %s346
    %s349 = sphi 0, %s348
    %s363 = sphi 0, %s349
    %s367 = sphi 0, %s367
    %s369 = sphi 0, %s367
    %s370 = sphi 0, %s369
    %s384 = sphi 0, %s370
    %s388 = sphi 0, %s388
    %s390 = sphi 0, %s388
    %s391 = sphi 0, %s390
    %s405 = sphi 0, %s391
    %s409 = sphi 0, %s409
    %s411 = sphi 0, %s409
    %s412 = sphi 0, %s411
    %s426 = sphi 0, %s412
    %s430 = sphi 0, %s430
    %s432 = sphi 0, %s430
    %s433 = sphi 0, %s432
    %s447 = sphi 0, %s433
    %s451 = sphi 0, %s451
    %s453 = sphi 0, %s451
    %s454 = sphi 0, %s453
    %s468 = sphi 0, %s454
    %s472 = sphi 0, %s472
    %s474 = sphi 0, %s472
    %s475 = sphi 0, %s474
    %s489 = sphi 0, %s475
    %s493 = sphi 0, %s493
    %s495 = sphi 0, %s493
    %s496 = sphi 0, %s495
    %s510 = sphi 0, %s496
    %s514 = sphi 0, %s514
    %s516 = sphi 0, %s514
    %s517 = sphi 0, %s516
    %s531 = sphi 0, %s517
    %s537 = sphi 0, %s539
    %s540 = sphi 0, %s537
    %s541 = sphi 0, %s540
    %s557 = sphi 0, %s541
  $region4: #{_lambda_.7} parent=0 // loop_header_branch
    %32 = sbr.rel (%p30) target = $region8
  $region5: #{_lambda_.7} parent=0 // loop_body
    %s34 = ssub.s32 %s29, 1
    %s35 = ssub.s32 %s29, 2
    %s36 = sadd.s32 %s29, 1
    %s37 = ssub.s32 %s29, %s36
    %p38 = scmp.eq.s32.totalorder %s37, 0
    %s40 = sadd.s32 %s39, 1
    %s41 = scalar_select %p38, %s39, %s40
    %p44 = pneg %p38
    %p45 = scmp.eq.s32.totalorder %s29, 1
    %p46 = por %p44, %p45
    %p47 = scmp.ne.s32.totalorder %s39, %s42
    %p48 = scmp.eq.s32.totalorder %s29, 0
    %p49 = por %p47, %p48
    %p50 = scmp.ne.s32.totalorder %s39, %s42
    %p51 = scmp.eq.s32.totalorder %s34, 1
    %p52 = por %p50, %p51
    %p53 = scmp.ne.s32.totalorder %s42, %s43
    %p54 = scmp.eq.s32.totalorder %s34, 0
    %p55 = por %p53, %p54
    %p56 = scmp.ne.s32.totalorder %s42, %s43
    %p57 = scmp.eq.s32.totalorder %s35, 1
    %p58 = por %p56, %p57
    %p60 = scmp.ne.s32.totalorder %s43, %s59
    %p61 = scmp.eq.s32.totalorder %s35, 0
    %p62 = por %p60, %p61
    %s63 = ssub.s32 %s29, %s36
    %p64 = scmp.eq.s32.totalorder %s63, 0
    %s66 = sadd.s32 %s65, 1
    %s67 = scalar_select %p64, %s65, %s66
    %p70 = pneg %p64
    %p71 = scmp.eq.s32.totalorder %s29, 1
    %p72 = por %p70, %p71
    %p73 = scmp.ne.s32.totalorder %s65, %s68
    %p74 = scmp.eq.s32.totalorder %s29, 0
    %p75 = por %p73, %p74
    %p76 = scmp.ne.s32.totalorder %s65, %s68
    %p77 = scmp.eq.s32.totalorder %s34, 1
    %p78 = por %p76, %p77
    %p79 = scmp.ne.s32.totalorder %s68, %s69
    %p80 = scmp.eq.s32.totalorder %s34, 0
    %p81 = por %p79, %p80
    %p82 = scmp.ne.s32.totalorder %s68, %s69
    %p83 = scmp.eq.s32.totalorder %s35, 1
    %p84 = por %p82, %p83
    %p86 = scmp.ne.s32.totalorder %s69, %s85
    %p87 = scmp.eq.s32.totalorder %s35, 0
    %p88 = por %p86, %p87
    %s89 = ssub.s32 %s29, %s36
    %p90 = scmp.eq.s32.totalorder %s89, 0
    %s92 = sadd.s32 %s91, 1
    %s93 = scalar_select %p90, %s91, %s92
    %p96 = pneg %p90
    %p97 = scmp.eq.s32.totalorder %s29, 1
    %p98 = por %p96, %p97
    %p99 = scmp.ne.s32.totalorder %s91, %s94
    %p100 = scmp.eq.s32.totalorder %s29, 0
    %p101 = por %p99, %p100
    %p102 = scmp.ne.s32.totalorder %s91, %s94
    %p103 = scmp.eq.s32.totalorder %s34, 1
    %p104 = por %p102, %p103
    %p105 = scmp.ne.s32.totalorder %s94, %s95
    %p106 = scmp.eq.s32.totalorder %s34, 0
    %p107 = por %p105, %p106
    %p108 = scmp.ne.s32.totalorder %s94, %s95
    %p109 = scmp.eq.s32.totalorder %s35, 1
    %p110 = por %p108, %p109
    %p112 = scmp.ne.s32.totalorder %s95, %s111
    %p113 = scmp.eq.s32.totalorder %s35, 0
    %p114 = por %p112, %p113
    %s116 = sadd.s32 %s115, 1
    %p119 = scmp.eq.s32.totalorder %s29, 1
    %p120 = scmp.ne.s32.totalorder %s115, %s117
    %p121 = scmp.eq.s32.totalorder %s29, 0
    %p122 = por %p120, %p121
    %p123 = scmp.ne.s32.totalorder %s115, %s117
    %p124 = scmp.eq.s32.totalorder %s34, 1
    %p125 = por %p123, %p124
    %p126 = scmp.ne.s32.totalorder %s117, %s118
    %p127 = scmp.eq.s32.totalorder %s34, 0
    %p128 = por %p126, %p127
    %p129 = scmp.ne.s32.totalorder %s117, %s118
    %p130 = scmp.eq.s32.totalorder %s35, 1
    %p131 = por %p129, %p130
    %p133 = scmp.ne.s32.totalorder %s118, %s132
    %p134 = scmp.eq.s32.totalorder %s35, 0
    %p135 = por %p133, %p134
    %s137 = sadd.s32 %s136, 1
    %p140 = scmp.eq.s32.totalorder %s29, 1
    %p141 = scmp.ne.s32.totalorder %s136, %s138
    %p142 = scmp.eq.s32.totalorder %s29, 0
    %p143 = por %p141, %p142
    %p144 = scmp.ne.s32.totalorder %s136, %s138
    %p145 = scmp.eq.s32.totalorder %s34, 1
    %p146 = por %p144, %p145
    %p147 = scmp.ne.s32.totalorder %s138, %s139
    %p148 = scmp.eq.s32.totalorder %s34, 0
    %p149 = por %p147, %p148
    %p150 = scmp.ne.s32.totalorder %s138, %s139
    %p151 = scmp.eq.s32.totalorder %s35, 1
    %p152 = por %p150, %p151
    %p154 = scmp.ne.s32.totalorder %s139, %s153
    %p155 = scmp.eq.s32.totalorder %s35, 0
    %p156 = por %p154, %p155
    %s158 = sadd.s32 %s157, 1
    %p161 = scmp.eq.s32.totalorder %s29, 1
    %p162 = scmp.ne.s32.totalorder %s157, %s159
    %p163 = scmp.eq.s32.totalorder %s29, 0
    %p164 = por %p162, %p163
    %p165 = scmp.ne.s32.totalorder %s157, %s159
    %p166 = scmp.eq.s32.totalorder %s34, 1
    %p167 = por %p165, %p166
    %p168 = scmp.ne.s32.totalorder %s159, %s160
    %p169 = scmp.eq.s32.totalorder %s34, 0
    %p170 = por %p168, %p169
    %p171 = scmp.ne.s32.totalorder %s159, %s160
    %p172 = scmp.eq.s32.totalorder %s35, 1
    %p173 = por %p171, %p172
    %p175 = scmp.ne.s32.totalorder %s160, %s174
    %p176 = scmp.eq.s32.totalorder %s35, 0
    %p177 = por %p175, %p176
    %s179 = sadd.s32 %s178, 1
    %p182 = scmp.eq.s32.totalorder %s29, 1
    %p183 = scmp.ne.s32.totalorder %s178, %s180
    %p184 = scmp.eq.s32.totalorder %s29, 0
    %p185 = por %p183, %p184
    %p186 = scmp.ne.s32.totalorder %s178, %s180
    %p187 = scmp.eq.s32.totalorder %s34, 1
    %p188 = por %p186, %p187
    %p189 = scmp.ne.s32.totalorder %s180, %s181
    %p190 = scmp.eq.s32.totalorder %s34, 0
    %p191 = por %p189, %p190
    %p192 = scmp.ne.s32.totalorder %s180, %s181
    %p193 = scmp.eq.s32.totalorder %s35, 1
    %p194 = por %p192, %p193
    %p196 = scmp.ne.s32.totalorder %s181, %s195
    %p197 = scmp.eq.s32.totalorder %s35, 0
    %p198 = por %p196, %p197
    %s200 = sadd.s32 %s199, 1
    %p203 = scmp.eq.s32.totalorder %s29, 1
    %p204 = scmp.ne.s32.totalorder %s199, %s201
    %p205 = scmp.eq.s32.totalorder %s29, 0
    %p206 = por %p204, %p205
    %p207 = scmp.ne.s32.totalorder %s199, %s201
    %p208 = scmp.eq.s32.totalorder %s34, 1
    %p209 = por %p207, %p208
    %p210 = scmp.ne.s32.totalorder %s201, %s202
    %p211 = scmp.eq.s32.totalorder %s34, 0
    %p212 = por %p210, %p211
    %p213 = scmp.ne.s32.totalorder %s201, %s202
    %p214 = scmp.eq.s32.totalorder %s35, 1
    %p215 = por %p213, %p214
    %p217 = scmp.ne.s32.totalorder %s202, %s216
    %p218 = scmp.eq.s32.totalorder %s35, 0
    %p219 = por %p217, %p218
    %s221 = sadd.s32 %s220, 1
    %p224 = scmp.eq.s32.totalorder %s29, 1
    %p225 = scmp.ne.s32.totalorder %s220, %s222
    %p226 = scmp.eq.s32.totalorder %s29, 0
    %p227 = por %p225, %p226
    %p228 = scmp.ne.s32.totalorder %s220, %s222
    %p229 = scmp.eq.s32.totalorder %s34, 1
    %p230 = por %p228, %p229
    %p231 = scmp.ne.s32.totalorder %s222, %s223
    %p232 = scmp.eq.s32.totalorder %s34, 0
    %p233 = por %p231, %p232
    %p234 = scmp.ne.s32.totalorder %s222, %s223
    %p235 = scmp.eq.s32.totalorder %s35, 1
    %p236 = por %p234, %p235
    %p238 = scmp.ne.s32.totalorder %s223, %s237
    %p239 = scmp.eq.s32.totalorder %s35, 0
    %p240 = por %p238, %p239
    %s242 = sadd.s32 %s241, 1
    %p245 = scmp.eq.s32.totalorder %s29, 1
    %p246 = scmp.ne.s32.totalorder %s241, %s243
    %p247 = scmp.eq.s32.totalorder %s29, 0
    %p248 = por %p246, %p247
    %p249 = scmp.ne.s32.totalorder %s241, %s243
    %p250 = scmp.eq.s32.totalorder %s34, 1
    %p251 = por %p249, %p250
    %p252 = scmp.ne.s32.totalorder %s243, %s244
    %p253 = scmp.eq.s32.totalorder %s34, 0
    %p254 = por %p252, %p253
    %p255 = scmp.ne.s32.totalorder %s243, %s244
    %p256 = scmp.eq.s32.totalorder %s35, 1
    %p257 = por %p255, %p256
    %p259 = scmp.ne.s32.totalorder %s244, %s258
    %p260 = scmp.eq.s32.totalorder %s35, 0
    %p261 = por %p259, %p260
    %s263 = sadd.s32 %s262, 1
    %p266 = scmp.eq.s32.totalorder %s29, 1
    %p267 = scmp.ne.s32.totalorder %s262, %s264
    %p268 = scmp.eq.s32.totalorder %s29, 0
    %p269 = por %p267, %p268
    %p270 = scmp.ne.s32.totalorder %s262, %s264
    %p271 = scmp.eq.s32.totalorder %s34, 1
    %p272 = por %p270, %p271
    %p273 = scmp.ne.s32.totalorder %s264, %s265
    %p274 = scmp.eq.s32.totalorder %s34, 0
    %p275 = por %p273, %p274
    %p276 = scmp.ne.s32.totalorder %s264, %s265
    %p277 = scmp.eq.s32.totalorder %s35, 1
    %p278 = por %p276, %p277
    %p280 = scmp.ne.s32.totalorder %s265, %s279
    %p281 = scmp.eq.s32.totalorder %s35, 0
    %p282 = por %p280, %p281
    %s284 = sadd.s32 %s283, 1
    %p287 = scmp.eq.s32.totalorder %s29, 1
    %p288 = scmp.ne.s32.totalorder %s283, %s285
    %p289 = scmp.eq.s32.totalorder %s29, 0
    %p290 = por %p288, %p289
    %p291 = scmp.ne.s32.totalorder %s283, %s285
    %p292 = scmp.eq.s32.totalorder %s34, 1
    %p293 = por %p291, %p292
    %p294 = scmp.ne.s32.totalorder %s285, %s286
    %p295 = scmp.eq.s32.totalorder %s34, 0
    %p296 = por %p294, %p295
    %p297 = scmp.ne.s32.totalorder %s285, %s286
    %p298 = scmp.eq.s32.totalorder %s35, 1
    %p299 = por %p297, %p298
    %p301 = scmp.ne.s32.totalorder %s286, %s300
    %p302 = scmp.eq.s32.totalorder %s35, 0
    %p303 = por %p301, %p302
    %s305 = sadd.s32 %s304, 1
    %p308 = scmp.eq.s32.totalorder %s29, 1
    %p309 = scmp.ne.s32.totalorder %s304, %s306
    %p310 = scmp.eq.s32.totalorder %s29, 0
    %p311 = por %p309, %p310
    %p312 = scmp.ne.s32.totalorder %s304, %s306
    %p313 = scmp.eq.s32.totalorder %s34, 1
    %p314 = por %p312, %p313
    %p315 = scmp.ne.s32.totalorder %s306, %s307
    %p316 = scmp.eq.s32.totalorder %s34, 0
    %p317 = por %p315, %p316
    %p318 = scmp.ne.s32.totalorder %s306, %s307
    %p319 = scmp.eq.s32.totalorder %s35, 1
    %p320 = por %p318, %p319
    %p322 = scmp.ne.s32.totalorder %s307, %s321
    %p323 = scmp.eq.s32.totalorder %s35, 0
    %p324 = por %p322, %p323
    %s326 = sadd.s32 %s325, 1
    %p329 = scmp.eq.s32.totalorder %s29, 1
    %p330 = scmp.ne.s32.totalorder %s325, %s327
    %p331 = scmp.eq.s32.totalorder %s29, 0
    %p332 = por %p330, %p331
    %p333 = scmp.ne.s32.totalorder %s325, %s327
    %p334 = scmp.eq.s32.totalorder %s34, 1
    %p335 = por %p333, %p334
    %p336 = scmp.ne.s32.totalorder %s327, %s328
    %p337 = scmp.eq.s32.totalorder %s34, 0
    %p338 = por %p336, %p337
    %p339 = scmp.ne.s32.totalorder %s327, %s328
    %p340 = scmp.eq.s32.totalorder %s35, 1
    %p341 = por %p339, %p340
    %p343 = scmp.ne.s32.totalorder %s328, %s342
    %p344 = scmp.eq.s32.totalorder %s35, 0
    %p345 = por %p343, %p344
    %s347 = sadd.s32 %s346, 1
    %p350 = scmp.eq.s32.totalorder %s29, 1
    %p351 = scmp.ne.s32.totalorder %s346, %s348
    %p352 = scmp.eq.s32.totalorder %s29, 0
    %p353 = por %p351, %p352
    %p354 = scmp.ne.s32.totalorder %s346, %s348
    %p355 = scmp.eq.s32.totalorder %s34, 1
    %p356 = por %p354, %p355
    %p357 = scmp.ne.s32.totalorder %s348, %s349
    %p358 = scmp.eq.s32.totalorder %s34, 0
    %p359 = por %p357, %p358
    %p360 = scmp.ne.s32.totalorder %s348, %s349
    %p361 = scmp.eq.s32.totalorder %s35, 1
    %p362 = por %p360, %p361
    %p364 = scmp.ne.s32.totalorder %s349, %s363
    %p365 = scmp.eq.s32.totalorder %s35, 0
    %p366 = por %p364, %p365
    %s368 = sadd.s32 %s367, 1
    %p371 = scmp.eq.s32.totalorder %s29, 1
    %p372 = scmp.ne.s32.totalorder %s367, %s369
    %p373 = scmp.eq.s32.totalorder %s29, 0
    %p374 = por %p372, %p373
    %p375 = scmp.ne.s32.totalorder %s367, %s369
    %p376 = scmp.eq.s32.totalorder %s34, 1
    %p377 = por %p375, %p376
    %p378 = scmp.ne.s32.totalorder %s369, %s370
    %p379 = scmp.eq.s32.totalorder %s34, 0
    %p380 = por %p378, %p379
    %p381 = scmp.ne.s32.totalorder %s369, %s370
    %p382 = scmp.eq.s32.totalorder %s35, 1
    %p383 = por %p381, %p382
    %p385 = scmp.ne.s32.totalorder %s370, %s384
    %p386 = scmp.eq.s32.totalorder %s35, 0
    %p387 = por %p385, %p386
    %s389 = sadd.s32 %s388, 1
    %p392 = scmp.eq.s32.totalorder %s29, 1
    %p393 = scmp.ne.s32.totalorder %s388, %s390
    %p394 = scmp.eq.s32.totalorder %s29, 0
    %p395 = por %p393, %p394
    %p396 = scmp.ne.s32.totalorder %s388, %s390
    %p397 = scmp.eq.s32.totalorder %s34, 1
    %p398 = por %p396, %p397
    %p399 = scmp.ne.s32.totalorder %s390, %s391
    %p400 = scmp.eq.s32.totalorder %s34, 0
    %p401 = por %p399, %p400
    %p402 = scmp.ne.s32.totalorder %s390, %s391
    %p403 = scmp.eq.s32.totalorder %s35, 1
    %p404 = por %p402, %p403
    %p406 = scmp.ne.s32.totalorder %s391, %s405
    %p407 = scmp.eq.s32.totalorder %s35, 0
    %p408 = por %p406, %p407
    %s410 = sadd.s32 %s409, 1
    %p413 = scmp.eq.s32.totalorder %s29, 1
    %p414 = scmp.ne.s32.totalorder %s409, %s411
    %p415 = scmp.eq.s32.totalorder %s29, 0
    %p416 = por %p414, %p415
    %p417 = scmp.ne.s32.totalorder %s409, %s411
    %p418 = scmp.eq.s32.totalorder %s34, 1
    %p419 = por %p417, %p418
    %p420 = scmp.ne.s32.totalorder %s411, %s412
    %p421 = scmp.eq.s32.totalorder %s34, 0
    %p422 = por %p420, %p421
    %p423 = scmp.ne.s32.totalorder %s411, %s412
    %p424 = scmp.eq.s32.totalorder %s35, 1
    %p425 = por %p423, %p424
    %p427 = scmp.ne.s32.totalorder %s412, %s426
    %p428 = scmp.eq.s32.totalorder %s35, 0
    %p429 = por %p427, %p428
    %s431 = sadd.s32 %s430, 1
    %p434 = scmp.eq.s32.totalorder %s29, 1
    %p435 = scmp.ne.s32.totalorder %s430, %s432
    %p436 = scmp.eq.s32.totalorder %s29, 0
    %p437 = por %p435, %p436
    %p438 = scmp.ne.s32.totalorder %s430, %s432
    %p439 = scmp.eq.s32.totalorder %s34, 1
    %p440 = por %p438, %p439
    %p441 = scmp.ne.s32.totalorder %s432, %s433
    %p442 = scmp.eq.s32.totalorder %s34, 0
    %p443 = por %p441, %p442
    %p444 = scmp.ne.s32.totalorder %s432, %s433
    %p445 = scmp.eq.s32.totalorder %s35, 1
    %p446 = por %p444, %p445
    %p448 = scmp.ne.s32.totalorder %s433, %s447
    %p449 = scmp.eq.s32.totalorder %s35, 0
    %p450 = por %p448, %p449
    %s452 = sadd.s32 %s451, 1
    %p455 = scmp.eq.s32.totalorder %s29, 1
    %p456 = scmp.ne.s32.totalorder %s451, %s453
    %p457 = scmp.eq.s32.totalorder %s29, 0
    %p458 = por %p456, %p457
    %p459 = scmp.ne.s32.totalorder %s451, %s453
    %p460 = scmp.eq.s32.totalorder %s34, 1
    %p461 = por %p459, %p460
    %p462 = scmp.ne.s32.totalorder %s453, %s454
    %p463 = scmp.eq.s32.totalorder %s34, 0
    %p464 = por %p462, %p463
    %p465 = scmp.ne.s32.totalorder %s453, %s454
    %p466 = scmp.eq.s32.totalorder %s35, 1
    %p467 = por %p465, %p466
    %p469 = scmp.ne.s32.totalorder %s454, %s468
    %p470 = scmp.eq.s32.totalorder %s35, 0
    %p471 = por %p469, %p470
    %s473 = sadd.s32 %s472, 1
    %p476 = scmp.eq.s32.totalorder %s29, 1
    %p477 = scmp.ne.s32.totalorder %s472, %s474
    %p478 = scmp.eq.s32.totalorder %s29, 0
    %p479 = por %p477, %p478
    %p480 = scmp.ne.s32.totalorder %s472, %s474
    %p481 = scmp.eq.s32.totalorder %s34, 1
    %p482 = por %p480, %p481
    %p483 = scmp.ne.s32.totalorder %s474, %s475
    %p484 = scmp.eq.s32.totalorder %s34, 0
    %p485 = por %p483, %p484
    %p486 = scmp.ne.s32.totalorder %s474, %s475
    %p487 = scmp.eq.s32.totalorder %s35, 1
    %p488 = por %p486, %p487
    %p490 = scmp.ne.s32.totalorder %s475, %s489
    %p491 = scmp.eq.s32.totalorder %s35, 0
    %p492 = por %p490, %p491
    %s494 = sadd.s32 %s493, 1
    %p497 = scmp.eq.s32.totalorder %s29, 1
    %p498 = scmp.ne.s32.totalorder %s493, %s495
    %p499 = scmp.eq.s32.totalorder %s29, 0
    %p500 = por %p498, %p499
    %p501 = scmp.ne.s32.totalorder %s493, %s495
    %p502 = scmp.eq.s32.totalorder %s34, 1
    %p503 = por %p501, %p502
    %p504 = scmp.ne.s32.totalorder %s495, %s496
    %p505 = scmp.eq.s32.totalorder %s34, 0
    %p506 = por %p504, %p505
    %p507 = scmp.ne.s32.totalorder %s495, %s496
    %p508 = scmp.eq.s32.totalorder %s35, 1
    %p509 = por %p507, %p508
    %p511 = scmp.ne.s32.totalorder %s496, %s510
    %p512 = scmp.eq.s32.totalorder %s35, 0
    %p513 = por %p511, %p512
    %s515 = sadd.s32 %s514, 1
    %p518 = scmp.eq.s32.totalorder %s29, 1
    %p519 = scmp.ne.s32.totalorder %s514, %s516
    %p520 = scmp.eq.s32.totalorder %s29, 0
    %p521 = por %p519, %p520
    %p522 = scmp.ne.s32.totalorder %s514, %s516
    %p523 = scmp.eq.s32.totalorder %s34, 1
    %p524 = por %p522, %p523
    %p525 = scmp.ne.s32.totalorder %s516, %s517
    %p526 = scmp.eq.s32.totalorder %s34, 0
    %p527 = por %p525, %p526
    %p528 = scmp.ne.s32.totalorder %s516, %s517
    %p529 = scmp.eq.s32.totalorder %s35, 1
    %p530 = por %p528, %p529
    %p532 = scmp.ne.s32.totalorder %s517, %s531
    %p533 = scmp.eq.s32.totalorder %s35, 0
    %p534 = por %p532, %p533
    %s535 = ssub.s32 %s29, %s36
    %p536 = scmp.eq.s32.totalorder %s535, 0
    %s538 = sadd.s32 %s537, 1
    %s539 = scalar_select %p536, %s537, %s538
    %p542 = pneg %p536
    %p543 = scmp.eq.s32.totalorder %s29, 1
    %p544 = por %p542, %p543
    %p545 = scmp.ne.s32.totalorder %s537, %s540
    %p546 = scmp.eq.s32.totalorder %s29, 0
    %p547 = por %p545, %p546
    %p548 = scmp.ne.s32.totalorder %s537, %s540
    %p549 = scmp.eq.s32.totalorder %s34, 1
    %p550 = por %p548, %p549
    %p551 = scmp.ne.s32.totalorder %s540, %s541
    %p552 = scmp.eq.s32.totalorder %s34, 0
    %p553 = por %p551, %p552
    %p554 = scmp.ne.s32.totalorder %s540, %s541
    %p555 = scmp.eq.s32.totalorder %s35, 1
    %p556 = por %p554, %p555
    %p558 = scmp.ne.s32.totalorder %s541, %s557
    %p559 = scmp.eq.s32.totalorder %s35, 0
    %p560 = por %p558, %p559
    %p561 = scmp.le.s32.totalorder 1, %s29
    %p562 = scmp.lt.s32.totalorder %s29, 3
    %p563 = pnand %p561, %p562
    %p564 = pneg %p563
    // Predicated region
    $region9: #{_lambda_.7} parent=5 // pred_check
      _
    $region10: #{_lambda_.7} parent=5 // pred_check_branch
      %566 = sbr.rel (%p563) target = $region12
    $region11: #{_lambda_.7} parent=5 // pred_region
      %s567 = ssub.s32 %s29, 1
      // Predicated region
      $region13: #{_lambda_.7} parent=11 // pred_check
        %p568 = pneg %p128
      $region14: #{_lambda_.7} parent=11 // pred_check_branch
        %570 = sbr.rel (%p568) target = $region16
      $region15: #{_lambda_.7} parent=11 // pred_region
        _
      $region16: #{_lambda_.7} parent=11 // pred_fallthru
        _
      // Predicated region
      $region17: #{_lambda_.7} parent=11 // pred_check
        %p571 = pneg %p149
      $region18: #{_lambda_.7} parent=11 // pred_check_branch
        %573 = sbr.rel (%p571) target = $region20
      $region19: #{_lambda_.7} parent=11 // pred_region
        _
      $region20: #{_lambda_.7} parent=11 // pred_fallthru
        _
      // Predicated region
      $region21: #{_lambda_.7} parent=11 // pred_check
        %p574 = pneg %p170
      $region22: #{_lambda_.7} parent=11 // pred_check_branch
        %576 = sbr.rel (%p574) target = $region24
      $region23: #{_lambda_.7} parent=11 // pred_region
        _
      $region24: #{_lambda_.7} parent=11 // pred_fallthru
        _
      // Predicated region
      $region25: #{_lambda_.7} parent=11 // pred_check
        %p577 = pneg %p191
      $region26: #{_lambda_.7} parent=11 // pred_check_branch
        %579 = sbr.rel (%p577) target = $region28
      $region27: #{_lambda_.7} parent=11 // pred_region
        _
      $region28: #{_lambda_.7} parent=11 // pred_fallthru
        _
      // Predicated region
      $region29: #{_lambda_.7} parent=11 // pred_check
        %p580 = pneg %p212
      $region30: #{_lambda_.7} parent=11 // pred_check_branch
        %582 = sbr.rel (%p580) target = $region32
      $region31: #{_lambda_.7} parent=11 // pred_region
        _
      $region32: #{_lambda_.7} parent=11 // pred_fallthru
        _
      // Predicated region
      $region33: #{_lambda_.7} parent=11 // pred_check
        %p583 = pneg %p233
      $region34: #{_lambda_.7} parent=11 // pred_check_branch
        %585 = sbr.rel (%p583) target = $region36
      $region35: #{_lambda_.7} parent=11 // pred_region
        _
      $region36: #{_lambda_.7} parent=11 // pred_fallthru
        _
      // Predicated region
      $region37: #{_lambda_.7} parent=11 // pred_check
        %p586 = pneg %p254
      $region38: #{_lambda_.7} parent=11 // pred_check_branch
        %588 = sbr.rel (%p586) target = $region40
      $region39: #{_lambda_.7} parent=11 // pred_region
        _
      $region40: #{_lambda_.7} parent=11 // pred_fallthru
        _
      // Predicated region
      $region41: #{_lambda_.7} parent=11 // pred_check
        %p589 = pneg %p275
      $region42: #{_lambda_.7} parent=11 // pred_check_branch
        %591 = sbr.rel (%p589) target = $region44
      $region43: #{_lambda_.7} parent=11 // pred_region
        _
      $region44: #{_lambda_.7} parent=11 // pred_fallthru
        _
      // Predicated region
      $region45: #{_lambda_.7} parent=11 // pred_check
        %p592 = pneg %p296
      $region46: #{_lambda_.7} parent=11 // pred_check_branch
        %594 = sbr.rel (%p592) target = $region48
      $region47: #{_lambda_.7} parent=11 // pred_region
        _
      $region48: #{_lambda_.7} parent=11 // pred_fallthru
        _
      // Predicated region
      $region49: #{_lambda_.7} parent=11 // pred_check
        %p595 = pneg %p317
      $region50: #{_lambda_.7} parent=11 // pred_check_branch
        %597 = sbr.rel (%p595) target = $region52
      $region51: #{_lambda_.7} parent=11 // pred_region
        _
      $region52: #{_lambda_.7} parent=11 // pred_fallthru
        _
      // Predicated region
      $region53: #{_lambda_.7} parent=11 // pred_check
        %p598 = pneg %p338
      $region54: #{_lambda_.7} parent=11 // pred_check_branch
        %600 = sbr.rel (%p598) target = $region56
      $region55: #{_lambda_.7} parent=11 // pred_region
        _
      $region56: #{_lambda_.7} parent=11 // pred_fallthru
        _
      // Predicated region
      $region57: #{_lambda_.7} parent=11 // pred_check
        %p601 = pneg %p359
      $region58: #{_lambda_.7} parent=11 // pred_check_branch
        %603 = sbr.rel (%p601) target = $region60
      $region59: #{_lambda_.7} parent=11 // pred_region
        _
      $region60: #{_lambda_.7} parent=11 // pred_fallthru
        _
      // Predicated region
      $region61: #{_lambda_.7} parent=11 // pred_check
        %p604 = pneg %p380
      $region62: #{_lambda_.7} parent=11 // pred_check_branch
        %606 = sbr.rel (%p604) target = $region64
      $region63: #{_lambda_.7} parent=11 // pred_region
        _
      $region64: #{_lambda_.7} parent=11 // pred_fallthru
        _
      // Predicated region
      $region65: #{_lambda_.7} parent=11 // pred_check
        %p607 = pneg %p401
      $region66: #{_lambda_.7} parent=11 // pred_check_branch
        %609 = sbr.rel (%p607) target = $region68
      $region67: #{_lambda_.7} parent=11 // pred_region
        _
      $region68: #{_lambda_.7} parent=11 // pred_fallthru
        _
      // Predicated region
      $region69: #{_lambda_.7} parent=11 // pred_check
        %p610 = pneg %p422
      $region70: #{_lambda_.7} parent=11 // pred_check_branch
        %612 = sbr.rel (%p610) target = $region72
      $region71: #{_lambda_.7} parent=11 // pred_region
        _
      $region72: #{_lambda_.7} parent=11 // pred_fallthru
        _
      // Predicated region
      $region73: #{_lambda_.7} parent=11 // pred_check
        %p613 = pneg %p443
      $region74: #{_lambda_.7} parent=11 // pred_check_branch
        %615 = sbr.rel (%p613) target = $region76
      $region75: #{_lambda_.7} parent=11 // pred_region
        _
      $region76: #{_lambda_.7} parent=11 // pred_fallthru
        _
      // Predicated region
      $region77: #{_lambda_.7} parent=11 // pred_check
        %p616 = pneg %p464
      $region78: #{_lambda_.7} parent=11 // pred_check_branch
        %618 = sbr.rel (%p616) target = $region80
      $region79: #{_lambda_.7} parent=11 // pred_region
        _
      $region80: #{_lambda_.7} parent=11 // pred_fallthru
        _
      // Predicated region
      $region81: #{_lambda_.7} parent=11 // pred_check
        %p619 = pneg %p485
      $region82: #{_lambda_.7} parent=11 // pred_check_branch
        %621 = sbr.rel (%p619) target = $region84
      $region83: #{_lambda_.7} parent=11 // pred_region
        _
      $region84: #{_lambda_.7} parent=11 // pred_fallthru
        _
      // Predicated region
      $region85: #{_lambda_.7} parent=11 // pred_check
        %p622 = pneg %p506
      $region86: #{_lambda_.7} parent=11 // pred_check_branch
        %624 = sbr.rel (%p622) target = $region88
      $region87: #{_lambda_.7} parent=11 // pred_region
        _
      $region88: #{_lambda_.7} parent=11 // pred_fallthru
        _
      // Predicated region
      $region89: #{_lambda_.7} parent=11 // pred_check
        %p625 = pneg %p527
      $region90: #{_lambda_.7} parent=11 // pred_check_branch
        %627 = sbr.rel (%p625) target = $region92
      $region91: #{_lambda_.7} parent=11 // pred_region
        _
      $region92: #{_lambda_.7} parent=11 // pred_fallthru
        _
    $region12: #{_lambda_.7} parent=5 // pred_fallthru
      _
    %p628 = scmp.lt.s32.totalorder %s29, 2
    // Predicated region
    $region93: #{_lambda_.7} parent=5 // pred_check
      %p629 = pneg %p628
    $region94: #{_lambda_.7} parent=5 // pred_check_branch
      %631 = sbr.rel (%p629) target = $region96
    $region95: #{_lambda_.7} parent=5 // pred_region
      // Predicated region
      $region97: #{_lambda_.7} parent=95 // pred_check
        %p632 = pneg %p49
      $region98: #{_lambda_.7} parent=95 // pred_check_branch
        %634 = sbr.rel (%p632) target = $region100
      $region99: #{_lambda_.7} parent=95 // pred_region
        %p635 = scmp.lt.s32.totalorder %s29, 1
        %s636 = scalar_select %p635, %s29, 1
        %s637 = smul.addr %s636, 8
        %s638 = scalar_lea.vmem %s0, %s637
      $region100: #{_lambda_.7} parent=95 // pred_fallthru
        _
      // Predicated region
      $region101: #{_lambda_.7} parent=95 // pred_check
        %p639 = pneg %p75
      $region102: #{_lambda_.7} parent=95 // pred_check_branch
        %641 = sbr.rel (%p639) target = $region104
      $region103: #{_lambda_.7} parent=95 // pred_region
        %p642 = scmp.lt.s32.totalorder %s29, 1
        %s643 = scalar_select %p642, %s29, 1
        %s644 = smul.addr %s643, 8
        %s645 = scalar_lea.vmem %s1, %s644
      $region104: #{_lambda_.7} parent=95 // pred_fallthru
        _
      // Predicated region
      $region105: #{_lambda_.7} parent=95 // pred_check
        %p646 = pneg %p101
      $region106: #{_lambda_.7} parent=95 // pred_check_branch
        %648 = sbr.rel (%p646) target = $region108
      $region107: #{_lambda_.7} parent=95 // pred_region
        %p649 = scmp.lt.s32.totalorder %s29, 1
        %s650 = scalar_select %p649, %s29, 1
        %s651 = scalar_lea.vmem %s2, %s650
      $region108: #{_lambda_.7} parent=95 // pred_fallthru
        _
    $region96: #{_lambda_.7} parent=5 // pred_fallthru
      _
    %p652 = scmp.le.s32.totalorder 1, %s29
    %p653 = scmp.lt.s32.totalorder %s29, 3
    %p654 = pnand %p652, %p653
    %p655 = pneg %p654
    // Predicated region
    $region109: #{_lambda_.7} parent=5 // pred_check
      _
    $region110: #{_lambda_.7} parent=5 // pred_check_branch
      %657 = sbr.rel (%p654) target = $region112
    $region111: #{_lambda_.7} parent=5 // pred_region
      %s658 = ssub.s32 %s29, 1
      %p659 = scmp.lt.s32.totalorder %s34, 1
      %s660 = scalar_select %p659, %s34, 1
      %s661 = smul.addr %s660, 8
      %s662 = scalar_lea.vmem %s0, %s661
      %p663 = pneg %p55
      %p664 = pneg %p52
      %p665 = scmp.lt.s32.totalorder %s34, 1
      %s666 = scalar_select %p665, %s34, 1
      %s667 = smul.addr %s666, 8
      %s668 = scalar_lea.vmem %s1, %s667
      %p669 = pneg %p81
      %p670 = pneg %p78
      %p671 = scmp.lt.s32.totalorder %s34, 1
      %s672 = scalar_select %p671, %s34, 1
      %s673 = scalar_lea.vmem %s2, %s672
      %p674 = pneg %p107
      %p675 = pneg %p104
      %p676 = pneg %p128
      %p677 = pneg %p125
      %p678 = pneg %p149
      %p679 = pneg %p146
      %p680 = pneg %p170
      %p681 = pneg %p167
      %p682 = pneg %p191
      %p683 = pneg %p188
      %p684 = pneg %p212
      %p685 = pneg %p209
      %p686 = pneg %p233
      %p687 = pneg %p230
      %p688 = pneg %p254
      %p689 = pneg %p251
      %p690 = pneg %p275
      %p691 = pneg %p272
      %p692 = pneg %p296
      %p693 = pneg %p293
      %p694 = pneg %p317
      %p695 = pneg %p314
      %p696 = pneg %p338
      %p697 = pneg %p335
      %p698 = pneg %p359
      %p699 = pneg %p356
      %p700 = pneg %p380
      %p701 = pneg %p377
      %p702 = pneg %p401
      %p703 = pneg %p398
      %p704 = pneg %p422
      %p705 = pneg %p419
      %p706 = pneg %p443
      %p707 = pneg %p440
      %p708 = pneg %p464
      %p709 = pneg %p461
      %p710 = pneg %p485
      %p711 = pneg %p482
      %p712 = pneg %p506
      %p713 = pneg %p503
      %p714 = pneg %p527
      %p715 = pneg %p524
      %p716 = pneg %p553
      %p717 = pneg %p550
      %p718 = scmp.lt.s32.totalorder %s34, 1
      %s719 = scalar_select %p718, %s34, 1
      %s720 = smul.addr %s719, 8
      %s721 = scalar_lea.vmem %s23, %s720
      %p722 = scmp.lt.s32.totalorder %s34, 1
      %s723 = scalar_select %p722, %s34, 1
      %s724 = smul.addr %s723, 8
      %s725 = scalar_lea.vmem %s0, %s724
      %p726 = scmp.lt.s32.totalorder %s34, 1
      %s727 = scalar_select %p726, %s34, 1
      %s728 = smul.addr %s727, 8
      %s729 = scalar_lea.vmem %s1, %s728
      %p730 = scmp.lt.s32.totalorder %s34, 1
      %s731 = scalar_select %p730, %s34, 1
      %s732 = scalar_lea.vmem %s2, %s731
      %p733 = scmp.lt.s32.totalorder %s34, 1
      %s734 = scalar_select %p733, %s34, 1
      %s735 = smul.addr %s734, 8
      %s736 = scalar_lea.vmem %s23, %s735
      %v738 = vld [vmem:[%s725] sm:$0x1f]
      %v739 = vld [vmem:[%s729] sm:$0x1f]
      %v740 = vld [vmem:[%s732] sm:$0x1]
      %v741 = vld [vmem:[%s3] sm:$0xf]
      %v742 = vld [vmem:[%s3 + $0x4] sm:$0xf]
      %v743 = vld [vmem:[%s3 + $0x8] sm:$0xf]
      %v744 = vld [vmem:[%s3 + $0xc] sm:$0xf]
      %v745 = vld [vmem:[%s4] sm:$0x1]
      %v746 = vpack.c.bf16 %v738, %v738
      %v748 = vlaneseq
      %v749 = vshrl.u32 %v748, 7
      %v750 = vsub.s32 0, %v749
      %v751 = vrot.slane %v745, %v750
      %v757 = vunpack.c.l.b16 %v741
      %v758 = vunpack.c.l.b16 %v742
      %v759 = vunpack.c.l.b16 %v743
      %v760 = vunpack.c.l.b16 %v744
      %v761 = vpack.c.b16 %v758, %v757
      %v762 = vpack.c.b16 %v760, %v759
      %vm765 = vcmask 261120
      %v767 = vsel %vm765, %v746, 0
      %769 = vmatprep.subr.bf16.mxu0 0
      %770 = vmatpush1.bf16.msra.mxu0 %v761
      %771 = vmatprep.subr.bf16.mxu0 0
      %772 = vmatpush1.bf16.msra.mxu0 %v762
      %773 = vmatprep.subr.bf16.mxu0 0
      %774 = vmatpush1.bf16.msra.mxu0 0
      %775 = vmatprep.subr.bf16.mxu0 0
      %776 = vmatpush1.bf16.msra.mxu0 0
      %777 = vmatprep.subr.bf16.mxu0 0
      %778 = vmatpush1.bf16.msra.mxu0 0
      %779 = vmatprep.subr.bf16.mxu0 0
      %780 = vmatpush1.bf16.msra.mxu0 0
      %781 = vmatprep.subr.bf16.mxu0 0
      %782 = vmatpush1.bf16.msra.mxu0 0
      %783 = vmatprep.subr.bf16.mxu0 0
      %784 = vmatpush1.bf16.msra.mxu0 0
      %785 = vmatprep.subr.bf16.mxu0 0
      %786 = vmatpush1.bf16.msra.mxu0 0
      %787 = vmatprep.subr.bf16.mxu0 0
      %788 = vmatpush1.bf16.msra.mxu0 0
      %789 = vmatprep.subr.bf16.mxu0 0
      %790 = vmatpush1.bf16.msra.mxu0 0
      %791 = vmatprep.subr.bf16.mxu0 0
      %792 = vmatpush1.bf16.msra.mxu0 0
      %793 = vmatprep.subr.bf16.mxu0 0
      %794 = vmatpush1.bf16.msra.mxu0 0
      %795 = vmatprep.subr.bf16.mxu0 0
      %796 = vmatpush1.bf16.msra.mxu0 0
      %797 = vmatprep.subr.bf16.mxu0 0
      %798 = vmatpush1.bf16.msra.mxu0 0
      %799 = vmatprep.subr.bf16.mxu0 0
      %800 = vmatpush1.bf16.msra.mxu0 0
      %801 = vmatprep.mubr.bf16.mxu0 0
      %802 = vmatmul.mubr.bf16.gmra.mrb[0].mxu0 %v767
      %v803 = vpop.f32.mrb[0].mxu0
      %v804 = vadd.f32 %v751, %v803
      %v805 = vpop.f32.mrb[0].mxu0
      %v806 = vpop.f32.mrb[0].mxu0
      %v807 = vpop.f32.mrb[0].mxu0
      %808 = vdwg.mxu0
      %v809 = vld [vmem:[%s5] sm:$0xff]
      %v810 = vld [vmem:[%s5 + $0x8] sm:$0xff]
      %v811 = vld [vmem:[%s5 + $0x10] sm:$0xff]
      %v812 = vld [vmem:[%s5 + $0x18] sm:$0xff]
      %v813 = vld [vmem:[%s6] sm:$0x1]
      %815 = vrot.lane.b32.xlu0 %v804, 96
      %v816 = vpop.permute.xlu0 %815
      %vm817 = vcmask 64512
      %v818 = vsel %vm817, %v804, 0
      %v820 = vsel %vm817, %v816, 0
      %822 = vmatprep.subr.mxu0 0.0
      %823 = vmatpush1.xpose.msra.mxu0 %v820
      %824 = vmatprep.subr.mxu0 0.0
      %825 = vmatpush1.xpose.msra.mxu0 0.0
      %826 = vmatprep.subr.mxu0 0.0
      %827 = vmatpush1.xpose.msra.mxu0 0.0
      %828 = vmatprep.subr.mxu0 0.0
      %829 = vmatpush1.xpose.msra.mxu0 0.0
      %830 = vmatprep.subr.mxu0 0.0
      %831 = vmatpush1.xpose.msra.mxu0 0.0
      %832 = vmatprep.subr.mxu0 0.0
      %833 = vmatpush1.xpose.msra.mxu0 0.0
      %834 = vmatprep.subr.mxu0 0.0
      %835 = vmatpush1.xpose.msra.mxu0 0.0
      %836 = vmatprep.subr.mxu0 0.0
      %837 = vmatpush1.xpose.msra.mxu0 0.0
      %838 = vmatprep.subr.mxu0 0.0
      %839 = vmatpush1.xpose.msra.mxu0 0.0
      %840 = vmatprep.subr.mxu0 0.0
      %841 = vmatpush1.xpose.msra.mxu0 0.0
      %842 = vmatprep.subr.mxu0 0.0
      %843 = vmatpush1.xpose.msra.mxu0 0.0
      %844 = vmatprep.subr.mxu0 0.0
      %845 = vmatpush1.xpose.msra.mxu0 0.0
      %846 = vmatprep.subr.mxu0 0.0
      %847 = vmatpush1.xpose.msra.mxu0 0.0
      %848 = vmatprep.subr.mxu0 0.0
      %849 = vmatpush1.xpose.msra.mxu0 0.0
      %850 = vmatprep.subr.mxu0 0.0
      %851 = vmatpush1.xpose.msra.mxu0 0.0
      %852 = vmatprep.subr.mxu0 0.0
      %853 = vmatpush1.xpose.msra.mxu0 0.0
      %854 = vmatprep.subr.mxu0 0.0
      %855 = vmatpush1.xpose.msra.mxu0 0.0
      %856 = vmatprep.subr.mxu0 0.0
      %857 = vmatpush1.xpose.msra.mxu0 0.0
      %858 = vmatprep.subr.mxu0 0.0
      %859 = vmatpush1.xpose.msra.mxu0 0.0
      %860 = vmatprep.subr.mxu0 0.0
      %861 = vmatpush1.xpose.msra.mxu0 0.0
      %862 = vmatprep.subr.mxu0 0.0
      %863 = vmatpush1.xpose.msra.mxu0 0.0
      %864 = vmatprep.subr.mxu0 0.0
      %865 = vmatpush1.xpose.msra.mxu0 0.0
      %866 = vmatprep.subr.mxu0 0.0
      %867 = vmatpush1.xpose.msra.mxu0 0.0
      %868 = vmatprep.subr.mxu0 0.0
      %869 = vmatpush1.xpose.msra.mxu0 0.0
      %870 = vmatprep.subr.mxu0 0.0
      %871 = vmatpush1.xpose.msra.mxu0 0.0
      %872 = vmatprep.subr.mxu0 0.0
      %873 = vmatpush1.xpose.msra.mxu0 0.0
      %874 = vmatprep.subr.mxu0 0.0
      %875 = vmatpush1.xpose.msra.mxu0 0.0
      %876 = vmatprep.subr.mxu0 0.0
      %877 = vmatpush1.xpose.msra.mxu0 0.0
      %878 = vmatprep.subr.mxu0 0.0
      %879 = vmatpush1.xpose.msra.mxu0 0.0
      %880 = vmatprep.subr.mxu0 0.0
      %881 = vmatpush1.xpose.msra.mxu0 0.0
      %882 = vmatprep.subr.mxu0 0.0
      %883 = vmatpush1.xpose.msra.mxu0 0.0
      %884 = vmatprep.subr.mxu0 0.0
      %885 = vmatpush1.xpose.msra.mxu0 0.0
      %886 = vmatprep.mubr.f32.mxu0 0.0
      %887 = vmatmul.mubr.f32.gmra.mrb[0].mxu0 %v818
      %v888 = vpop.f32.mrb[0].mxu0
      %v889 = vadd.f32 0.0, %v888
      %v890 = vpop.f32.mrb[0].mxu0
      %891 = vdwg.mxu0
      %v892 = vmul.f32 %v889, 0.35355338
      %vm893 = vcmask 36864
      %v894 = vsel %vm893, %v892, -inf
      %895 = vmax.xlane.f32.xlu0 %v894
      %v896 = vpop.xlane.xlu0 %895
      %v897 = vsub.f32 %v892, %v896
      %v898 = vmul.f32 %v897, 1.442695
      %v899 = vpow.pop %v898
      %v900 = vsel %vm893, %v899, 0.0
      %901 = vadd.xlane.f32.xlu0 %v900
      %v902 = vpop.xlane.xlu0 %901
      %v903 = vrcp.pop %v902
      %v904 = vmul.f32 %v899, %v903
      %905 = vrot.lane.b32.xlu0 %v804, 64
      %v906 = vpop.permute.xlu0 %905
      %vm907 = vcmask 39936
      %v909 = vsel %vm907, %v904, 0
      %vm911 = vcmask 1044480
      %v912 = vsel %vm911, %v906, 0
      %914 = vmatprep.subr.mxu0 0.0
      %915 = vmatpush1.msra.mxu0 %v912
      %916 = vmatprep.subr.mxu0 0.0
      %917 = vmatpush1.msra.mxu0 0.0
      %918 = vmatprep.subr.mxu0 0.0
      %919 = vmatpush1.msra.mxu0 0.0
      %920 = vmatprep.subr.mxu0 0.0
      %921 = vmatpush1.msra.mxu0 0.0
      %922 = vmatprep.subr.mxu0 0.0
      %923 = vmatpush1.msra.mxu0 0.0
      %924 = vmatprep.subr.mxu0 0.0
      %925 = vmatpush1.msra.mxu0 0.0
      %926 = vmatprep.subr.mxu0 0.0
      %927 = vmatpush1.msra.mxu0 0.0
      %928 = vmatprep.subr.mxu0 0.0
      %929 = vmatpush1.msra.mxu0 0.0
      %930 = vmatprep.subr.mxu0 0.0
      %931 = vmatpush1.msra.mxu0 0.0
      %932 = vmatprep.subr.mxu0 0.0
      %933 = vmatpush1.msra.mxu0 0.0
      %934 = vmatprep.subr.mxu0 0.0
      %935 = vmatpush1.msra.mxu0 0.0
      %936 = vmatprep.subr.mxu0 0.0
      %937 = vmatpush1.msra.mxu0 0.0
      %938 = vmatprep.subr.mxu0 0.0
      %939 = vmatpush1.msra.mxu0 0.0
      %940 = vmatprep.subr.mxu0 0.0
      %941 = vmatpush1.msra.mxu0 0.0
      %942 = vmatprep.subr.mxu0 0.0
      %943 = vmatpush1.msra.mxu0 0.0
      %944 = vmatprep.subr.mxu0 0.0
      %945 = vmatpush1.msra.mxu0 0.0
      %946 = vmatprep.subr.mxu0 0.0
      %947 = vmatpush1.msra.mxu0 0.0
      %948 = vmatprep.subr.mxu0 0.0
      %949 = vmatpush1.msra.mxu0 0.0
      %950 = vmatprep.subr.mxu0 0.0
      %951 = vmatpush1.msra.mxu0 0.0
      %952 = vmatprep.subr.mxu0 0.0
      %953 = vmatpush1.msra.mxu0 0.0
      %954 = vmatprep.subr.mxu0 0.0
      %955 = vmatpush1.msra.mxu0 0.0
      %956 = vmatprep.subr.mxu0 0.0
      %957 = vmatpush1.msra.mxu0 0.0
      %958 = vmatprep.subr.mxu0 0.0
      %959 = vmatpush1.msra.mxu0 0.0
      %960 = vmatprep.subr.mxu0 0.0
      %961 = vmatpush1.msra.mxu0 0.0
      %962 = vmatprep.subr.mxu0 0.0
      %963 = vmatpush1.msra.mxu0 0.0
      %964 = vmatprep.subr.mxu0 0.0
      %965 = vmatpush1.msra.mxu0 0.0
      %966 = vmatprep.subr.mxu0 0.0
      %967 = vmatpush1.msra.mxu0 0.0
      %968 = vmatprep.subr.mxu0 0.0
      %969 = vmatpush1.msra.mxu0 0.0
      %970 = vmatprep.subr.mxu0 0.0
      %971 = vmatpush1.msra.mxu0 0.0
      %972 = vmatprep.subr.mxu0 0.0
      %973 = vmatpush1.msra.mxu0 0.0
      %974 = vmatprep.subr.mxu0 0.0
      %975 = vmatpush1.msra.mxu0 0.0
      %976 = vmatprep.subr.mxu0 0.0
      %977 = vmatpush1.msra.mxu0 0.0
      %978 = vmatprep.mubr.f32.mxu0 0.0
      %979 = vmatmul.mubr.f32.gmra.mrb[0].mxu0 %v909
      %v980 = vpop.f32.mrb[0].mxu0
      %v981 = vadd.f32 0.0, %v980
      %v982 = vpop.f32.mrb[0].mxu0
      %983 = vdwg.mxu0
      %984 = vrot.lane.b32.xlu0 %v804, 120
      %v985 = vpop.permute.xlu0 %984
      %986 = vrot.lane.b32.xlu0 %v804, 88
      %v987 = vpop.permute.xlu0 %986
      %v988 = vsel %vm817, %v985, 0
      %v990 = vsel %vm817, %v987, 0
      %992 = vmatprep.subr.mxu0 0.0
      %993 = vmatpush1.xpose.msra.mxu0 %v990
      %994 = vmatprep.subr.mxu0 0.0
      %995 = vmatpush1.xpose.msra.mxu0 0.0
      %996 = vmatprep.subr.mxu0 0.0
      %997 = vmatpush1.xpose.msra.mxu0 0.0
      %998 = vmatprep.subr.mxu0 0.0
      %999 = vmatpush1.xpose.msra.mxu0 0.0
      %1000 = vmatprep.subr.mxu0 0.0
      %1001 = vmatpush1.xpose.msra.mxu0 0.0
      %1002 = vmatprep.subr.mxu0 0.0
      %1003 = vmatpush1.xpose.msra.mxu0 0.0
      %1004 = vmatprep.subr.mxu0 0.0
      %1005 = vmatpush1.xpose.msra.mxu0 0.0
      %1006 = vmatprep.subr.mxu0 0.0
      %1007 = vmatpush1.xpose.msra.mxu0 0.0
      %1008 = vmatprep.subr.mxu0 0.0
      %1009 = vmatpush1.xpose.msra.mxu0 0.0
      %1010 = vmatprep.subr.mxu0 0.0
      %1011 = vmatpush1.xpose.msra.mxu0 0.0
      %1012 = vmatprep.subr.mxu0 0.0
      %1013 = vmatpush1.xpose.msra.mxu0 0.0
      %1014 = vmatprep.subr.mxu0 0.0
      %1015 = vmatpush1.xpose.msra.mxu0 0.0
      %1016 = vmatprep.subr.mxu0 0.0
      %1017 = vmatpush1.xpose.msra.mxu0 0.0
      %1018 = vmatprep.subr.mxu0 0.0
      %1019 = vmatpush1.xpose.msra.mxu0 0.0
      %1020 = vmatprep.subr.mxu0 0.0
      %1021 = vmatpush1.xpose.msra.mxu0 0.0
      %1022 = vmatprep.subr.mxu0 0.0
      %1023 = vmatpush1.xpose.msra.mxu0 0.0
      %1024 = vmatprep.subr.mxu0 0.0
      %1025 = vmatpush1.xpose.msra.mxu0 0.0
      %1026 = vmatprep.subr.mxu0 0.0
      %1027 = vmatpush1.xpose.msra.mxu0 0.0
      %1028 = vmatprep.subr.mxu0 0.0
      %1029 = vmatpush1.xpose.msra.mxu0 0.0
      %1030 = vmatprep.subr.mxu0 0.0
      %1031 = vmatpush1.xpose.msra.mxu0 0.0
      %1032 = vmatprep.subr.mxu0 0.0
      %1033 = vmatpush1.xpose.msra.mxu0 0.0
      %1034 = vmatprep.subr.mxu0 0.0
      %1035 = vmatpush1.xpose.msra.mxu0 0.0
      %1036 = vmatprep.subr.mxu0 0.0
      %1037 = vmatpush1.xpose.msra.mxu0 0.0
      %1038 = vmatprep.subr.mxu0 0.0
      %1039 = vmatpush1.xpose.msra.mxu0 0.0
      %1040 = vmatprep.subr.mxu0 0.0
      %1041 = vmatpush1.xpose.msra.mxu0 0.0
      %1042 = vmatprep.subr.mxu0 0.0
      %1043 = vmatpush1.xpose.msra.mxu0 0.0
      %1044 = vmatprep.subr.mxu0 0.0
      %1045 = vmatpush1.xpose.msra.mxu0 0.0
      %1046 = vmatprep.subr.mxu0 0.0
      %1047 = vmatpush1.xpose.msra.mxu0 0.0
      %1048 = vmatprep.subr.mxu0 0.0
      %1049 = vmatpush1.xpose.msra.mxu0 0.0
      %1050 = vmatprep.subr.mxu0 0.0
      %1051 = vmatpush1.xpose.msra.mxu0 0.0
      %1052 = vmatprep.subr.mxu0 0.0
      %1053 = vmatpush1.xpose.msra.mxu0 0.0
      %1054 = vmatprep.subr.mxu0 0.0
      %1055 = vmatpush1.xpose.msra.mxu0 0.0
      %1056 = vmatprep.mubr.f32.mxu0 0.0
      %1057 = vmatmul.mubr.f32.gmra.mrb[0].mxu0 %v988
      %v1058 = vpop.f32.mrb[0].mxu0
      %v1059 = vadd.f32 0.0, %v1058
      %v1060 = vpop.f32.mrb[0].mxu0
      %1061 = vdwg.mxu0
      %v1062 = vmul.f32 %v1059, 0.35355338
      %v1063 = vsel %vm893, %v1062, -inf
      %1064 = vmax.xlane.f32.xlu0 %v1063
      %v1065 = vpop.xlane.xlu0 %1064
      %v1066 = vsub.f32 %v1062, %v1065
      %v1067 = vmul.f32 %v1066, 1.442695
      %v1068 = vpow.pop %v1067
      %v1069 = vsel %vm893, %v1068, 0.0
      %1070 = vadd.xlane.f32.xlu0 %v1069
      %v1071 = vpop.xlane.xlu0 %1070
      %v1072 = vrcp.pop %v1071
      %v1073 = vmul.f32 %v1068, %v1072
      %1074 = vrot.lane.b32.xlu0 %v804, 56
      %v1075 = vpop.permute.xlu0 %1074
      %v1077 = vsel %vm907, %v1073, 0
      %v1079 = vsel %vm911, %v1075, 0
      %1081 = vmatprep.subr.mxu0 0.0
      %1082 = vmatpush1.msra.mxu0 %v1079
      %1083 = vmatprep.subr.mxu0 0.0
      %1084 = vmatpush1.msra.mxu0 0.0
      %1085 = vmatprep.subr.mxu0 0.0
      %1086 = vmatpush1.msra.mxu0 0.0
      %1087 = vmatprep.subr.mxu0 0.0
      %1088 = vmatpush1.msra.mxu0 0.0
      %1089 = vmatprep.subr.mxu0 0.0
      %1090 = vmatpush1.msra.mxu0 0.0
      %1091 = vmatprep.subr.mxu0 0.0
      %1092 = vmatpush1.msra.mxu0 0.0
      %1093 = vmatprep.subr.mxu0 0.0
      %1094 = vmatpush1.msra.mxu0 0.0
      %1095 = vmatprep.subr.mxu0 0.0
      %1096 = vmatpush1.msra.mxu0 0.0
      %1097 = vmatprep.subr.mxu0 0.0
      %1098 = vmatpush1.msra.mxu0 0.0
      %1099 = vmatprep.subr.mxu0 0.0
      %1100 = vmatpush1.msra.mxu0 0.0
      %1101 = vmatprep.subr.mxu0 0.0
      %1102 = vmatpush1.msra.mxu0 0.0
      %1103 = vmatprep.subr.mxu0 0.0
      %1104 = vmatpush1.msra.mxu0 0.0
      %1105 = vmatprep.subr.mxu0 0.0
      %1106 = vmatpush1.msra.mxu0 0.0
      %1107 = vmatprep.subr.mxu0 0.0
      %1108 = vmatpush1.msra.mxu0 0.0
      %1109 = vmatprep.subr.mxu0 0.0
      %1110 = vmatpush1.msra.mxu0 0.0
      %1111 = vmatprep.subr.mxu0 0.0
      %1112 = vmatpush1.msra.mxu0 0.0
      %1113 = vmatprep.subr.mxu0 0.0
      %1114 = vmatpush1.msra.mxu0 0.0
      %1115 = vmatprep.subr.mxu0 0.0
      %1116 = vmatpush1.msra.mxu0 0.0
      %1117 = vmatprep.subr.mxu0 0.0
      %1118 = vmatpush1.msra.mxu0 0.0
      %1119 = vmatprep.subr.mxu0 0.0
      %1120 = vmatpush1.msra.mxu0 0.0
      %1121 = vmatprep.subr.mxu0 0.0
      %1122 = vmatpush1.msra.mxu0 0.0
      %1123 = vmatprep.subr.mxu0 0.0
      %1124 = vmatpush1.msra.mxu0 0.0
      %1125 = vmatprep.subr.mxu0 0.0
      %1126 = vmatpush1.msra.mxu0 0.0
      %1127 = vmatprep.subr.mxu0 0.0
      %1128 = vmatpush1.msra.mxu0 0.0
      %1129 = vmatprep.subr.mxu0 0.0
      %1130 = vmatpush1.msra.mxu0 0.0
      %1131 = vmatprep.subr.mxu0 0.0
      %1132 = vmatpush1.msra.mxu0 0.0
      %1133 = vmatprep.subr.mxu0 0.0
      %1134 = vmatpush1.msra.mxu0 0.0
      %1135 = vmatprep.subr.mxu0 0.0
      %1136 = vmatpush1.msra.mxu0 0.0
      %1137 = vmatprep.subr.mxu0 0.0
      %1138 = vmatpush1.msra.mxu0 0.0
      %1139 = vmatprep.subr.mxu0 0.0
      %1140 = vmatpush1.msra.mxu0 0.0
      %1141 = vmatprep.subr.mxu0 0.0
      %1142 = vmatpush1.msra.mxu0 0.0
      %1143 = vmatprep.subr.mxu0 0.0
      %1144 = vmatpush1.msra.mxu0 0.0
      %1145 = vmatprep.mubr.f32.mxu0 0.0
      %1146 = vmatmul.mubr.f32.gmra.mrb[0].mxu0 %v1077
      %v1147 = vpop.f32.mrb[0].mxu0
      %v1148 = vadd.f32 0.0, %v1147
      %v1149 = vpop.f32.mrb[0].mxu0
      %1150 = vdwg.mxu0
      %v1152 = vsel %vm817, %v1148, 0
      %1154 = vmatprep.subr.mxu0 0.0
      %1155 = vmatpush1.msra.mxu0 %v810
      %1156 = vmatprep.subr.mxu0 0.0
      %1157 = vmatpush1.msra.mxu0 0.0
      %1158 = vmatprep.subr.mxu0 0.0
      %1159 = vmatpush1.msra.mxu0 0.0
      %1160 = vmatprep.subr.mxu0 0.0
      %1161 = vmatpush1.msra.mxu0 0.0
      %1162 = vmatprep.subr.mxu0 0.0
      %1163 = vmatpush1.msra.mxu0 0.0
      %1164 = vmatprep.subr.mxu0 0.0
      %1165 = vmatpush1.msra.mxu0 0.0
      %1166 = vmatprep.subr.mxu0 0.0
      %1167 = vmatpush1.msra.mxu0 0.0
      %1168 = vmatprep.subr.mxu0 0.0
      %1169 = vmatpush1.msra.mxu0 0.0
      %1170 = vmatprep.subr.mxu0 0.0
      %1171 = vmatpush1.msra.mxu0 0.0
      %1172 = vmatprep.subr.mxu0 0.0
      %1173 = vmatpush1.msra.mxu0 0.0
      %1174 = vmatprep.subr.mxu0 0.0
      %1175 = vmatpush1.msra.mxu0 0.0
      %1176 = vmatprep.subr.mxu0 0.0
      %1177 = vmatpush1.msra.mxu0 0.0
      %1178 = vmatprep.subr.mxu0 0.0
      %1179 = vmatpush1.msra.mxu0 0.0
      %1180 = vmatprep.subr.mxu0 0.0
      %1181 = vmatpush1.msra.mxu0 0.0
      %1182 = vmatprep.subr.mxu0 0.0
      %1183 = vmatpush1.msra.mxu0 0.0
      %1184 = vmatprep.subr.mxu0 0.0
      %1185 = vmatpush1.msra.mxu0 0.0
      %1186 = vmatprep.subr.mxu0 0.0
      %1187 = vmatpush1.msra.mxu0 0.0
      %1188 = vmatprep.subr.mxu0 0.0
      %1189 = vmatpush1.msra.mxu0 0.0
      %1190 = vmatprep.subr.mxu0 0.0
      %1191 = vmatpush1.msra.mxu0 0.0
      %1192 = vmatprep.subr.mxu0 0.0
      %1193 = vmatpush1.msra.mxu0 0.0
      %1194 = vmatprep.subr.mxu0 0.0
      %1195 = vmatpush1.msra.mxu0 0.0
      %1196 = vmatprep.subr.mxu0 0.0
      %1197 = vmatpush1.msra.mxu0 0.0
      %1198 = vmatprep.subr.mxu0 0.0
      %1199 = vmatpush1.msra.mxu0 0.0
      %1200 = vmatprep.subr.mxu0 0.0
      %1201 = vmatpush1.msra.mxu0 0.0
      %1202 = vmatprep.subr.mxu0 0.0
      %1203 = vmatpush1.msra.mxu0 0.0
      %1204 = vmatprep.subr.mxu0 0.0
      %1205 = vmatpush1.msra.mxu0 0.0
      %1206 = vmatprep.subr.mxu0 0.0
      %1207 = vmatpush1.msra.mxu0 0.0
      %1208 = vmatprep.subr.mxu0 0.0
      %1209 = vmatpush1.msra.mxu0 0.0
      %1210 = vmatprep.subr.mxu0 0.0
      %1211 = vmatpush1.msra.mxu0 0.0
      %1212 = vmatprep.subr.mxu0 0.0
      %1213 = vmatpush1.msra.mxu0 0.0
      %1214 = vmatprep.subr.mxu0 0.0
      %1215 = vmatpush1.msra.mxu0 0.0
      %1216 = vmatprep.subr.mxu0 0.0
      %1217 = vmatpush1.msra.mxu0 0.0
      %1218 = vmatprep.mubr.f32.mxu0 0.0
      %1219 = vmatmul.mubr.f32.gmra.mrb[0].mxu0 %v1152
      %v1220 = vpop.f32.mrb[0].mxu0
      %v1221 = vadd.f32 0.0, %v1220
      %v1222 = vpop.f32.mrb[0].mxu0
      %1223 = vdwg.mxu0
      %v1225 = vsel %vm817, %v981, 0
      %1227 = vmatprep.subr.mxu0 0.0
      %1228 = vmatpush1.msra.mxu0 %v809
      %1229 = vmatprep.subr.mxu0 0.0
      %1230 = vmatpush1.msra.mxu0 0.0
      %1231 = vmatprep.subr.mxu0 0.0
      %1232 = vmatpush1.msra.mxu0 0.0
      %1233 = vmatprep.subr.mxu0 0.0
      %1234 = vmatpush1.msra.mxu0 0.0
      %1235 = vmatprep.subr.mxu0 0.0
      %1236 = vmatpush1.msra.mxu0 0.0
      %1237 = vmatprep.subr.mxu0 0.0
      %1238 = vmatpush1.msra.mxu0 0.0
      %1239 = vmatprep.subr.mxu0 0.0
      %1240 = vmatpush1.msra.mxu0 0.0
      %1241 = vmatprep.subr.mxu0 0.0
      %1242 = vmatpush1.msra.mxu0 0.0
      %1243 = vmatprep.subr.mxu0 0.0
      %1244 = vmatpush1.msra.mxu0 0.0
      %1245 = vmatprep.subr.mxu0 0.0
      %1246 = vmatpush1.msra.mxu0 0.0
      %1247 = vmatprep.subr.mxu0 0.0
      %1248 = vmatpush1.msra.mxu0 0.0
      %1249 = vmatprep.subr.mxu0 0.0
      %1250 = vmatpush1.msra.mxu0 0.0
      %1251 = vmatprep.subr.mxu0 0.0
      %1252 = vmatpush1.msra.mxu0 0.0
      %1253 = vmatprep.subr.mxu0 0.0
      %1254 = vmatpush1.msra.mxu0 0.0
      %1255 = vmatprep.subr.mxu0 0.0
      %1256 = vmatpush1.msra.mxu0 0.0
      %1257 = vmatprep.subr.mxu0 0.0
      %1258 = vmatpush1.msra.mxu0 0.0
      %1259 = vmatprep.subr.mxu0 0.0
      %1260 = vmatpush1.msra.mxu0 0.0
      %1261 = vmatprep.subr.mxu0 0.0
      %1262 = vmatpush1.msra.mxu0 0.0
      %1263 = vmatprep.subr.mxu0 0.0
      %1264 = vmatpush1.msra.mxu0 0.0
      %1265 = vmatprep.subr.mxu0 0.0
      %1266 = vmatpush1.msra.mxu0 0.0
      %1267 = vmatprep.subr.mxu0 0.0
      %1268 = vmatpush1.msra.mxu0 0.0
      %1269 = vmatprep.subr.mxu0 0.0
      %1270 = vmatpush1.msra.mxu0 0.0
      %1271 = vmatprep.subr.mxu0 0.0
      %1272 = vmatpush1.msra.mxu0 0.0
      %1273 = vmatprep.subr.mxu0 0.0
      %1274 = vmatpush1.msra.mxu0 0.0
      %1275 = vmatprep.subr.mxu0 0.0
      %1276 = vmatpush1.msra.mxu0 0.0
      %1277 = vmatprep.subr.mxu0 0.0
      %1278 = vmatpush1.msra.mxu0 0.0
      %1279 = vmatprep.subr.mxu0 0.0
      %1280 = vmatpush1.msra.mxu0 0.0
      %1281 = vmatprep.subr.mxu0 0.0
      %1282 = vmatpush1.msra.mxu0 0.0
      %1283 = vmatprep.subr.mxu0 0.0
      %1284 = vmatpush1.msra.mxu0 0.0
      %1285 = vmatprep.subr.mxu0 0.0
      %1286 = vmatpush1.msra.mxu0 0.0
      %1287 = vmatprep.subr.mxu0 0.0
      %1288 = vmatpush1.msra.mxu0 0.0
      %1289 = vmatprep.subr.mxu0 0.0
      %1290 = vmatpush1.msra.mxu0 0.0
      %1291 = vmatprep.mubr.f32.mxu0 0.0
      %1292 = vmatmul.mubr.f32.gmra.mrb[0].mxu0 %v1225
      %v1293 = vpop.f32.mrb[0].mxu0
      %v1294 = vadd.f32 %v1221, %v1293
      %v1295 = vpop.f32.mrb[0].mxu0
      %1296 = vdwg.mxu0
      %1297 = vrot.lane.b32.xlu0 %v804, 112
      %v1298 = vpop.permute.xlu0 %1297
      %1299 = vrot.lane.b32.xlu0 %v804, 80
      %v1300 = vpop.permute.xlu0 %1299
      %v1301 = vsel %vm817, %v1298, 0
      %v1303 = vsel %vm817, %v1300, 0
      %1305 = vmatprep.subr.mxu0 0.0
      %1306 = vmatpush1.xpose.msra.mxu0 %v1303
      %1307 = vmatprep.subr.mxu0 0.0
      %1308 = vmatpush1.xpose.msra.mxu0 0.0
      %1309 = vmatprep.subr.mxu0 0.0
      %1310 = vmatpush1.xpose.msra.mxu0 0.0
      %1311 = vmatprep.subr.mxu0 0.0
      %1312 = vmatpush1.xpose.msra.mxu0 0.0
      %1313 = vmatprep.subr.mxu0 0.0
      %1314 = vmatpush1.xpose.msra.mxu0 0.0
      %1315 = vmatprep.subr.mxu0 0.0
      %1316 = vmatpush1.xpose.msra.mxu0 0.0
      %1317 = vmatprep.subr.mxu0 0.0
      %1318 = vmatpush1.xpose.msra.mxu0 0.0
      %1319 = vmatprep.subr.mxu0 0.0
      %1320 = vmatpush1.xpose.msra.mxu0 0.0
      %1321 = vmatprep.subr.mxu0 0.0
      %1322 = vmatpush1.xpose.msra.mxu0 0.0
      %1323 = vmatprep.subr.mxu0 0.0
      %1324 = vmatpush1.xpose.msra.mxu0 0.0
      %1325 = vmatprep.subr.mxu0 0.0
      %1326 = vmatpush1.xpose.msra.mxu0 0.0
      %1327 = vmatprep.subr.mxu0 0.0
      %1328 = vmatpush1.xpose.msra.mxu0 0.0
      %1329 = vmatprep.subr.mxu0 0.0
      %1330 = vmatpush1.xpose.msra.mxu0 0.0
      %1331 = vmatprep.subr.mxu0 0.0
      %1332 = vmatpush1.xpose.msra.mxu0 0.0
      %1333 = vmatprep.subr.mxu0 0.0
      %1334 = vmatpush1.xpose.msra.mxu0 0.0
      %1335 = vmatprep.subr.mxu0 0.0
      %1336 = vmatpush1.xpose.msra.mxu0 0.0
      %1337 = vmatprep.subr.mxu0 0.0
      %1338 = vmatpush1.xpose.msra.mxu0 0.0
      %1339 = vmatprep.subr.mxu0 0.0
      %1340 = vmatpush1.xpose.msra.mxu0 0.0
      %1341 = vmatprep.subr.mxu0 0.0
      %1342 = vmatpush1.xpose.msra.mxu0 0.0
      %1343 = vmatprep.subr.mxu0 0.0
      %1344 = vmatpush1.xpose.msra.mxu0 0.0
      %1345 = vmatprep.subr.mxu0 0.0
      %1346 = vmatpush1.xpose.msra.mxu0 0.0
      %1347 = vmatprep.subr.mxu0 0.0
      %1348 = vmatpush1.xpose.msra.mxu0 0.0
      %1349 = vmatprep.subr.mxu0 0.0
      %1350 = vmatpush1.xpose.msra.mxu0 0.0
      %1351 = vmatprep.subr.mxu0 0.0
      %1352 = vmatpush1.xpose.msra.mxu0 0.0
      %1353 = vmatprep.subr.mxu0 0.0
      %1354 = vmatpush1.xpose.msra.mxu0 0.0
      %1355 = vmatprep.subr.mxu0 0.0
      %1356 = vmatpush1.xpose.msra.mxu0 0.0
      %1357 = vmatprep.subr.mxu0 0.0
      %1358 = vmatpush1.xpose.msra.mxu0 0.0
      %1359 = vmatprep.subr.mxu0 0.0
      %1360 = vmatpush1.xpose.msra.mxu0 0.0
      %1361 = vmatprep.subr.mxu0 0.0
      %1362 = vmatpush1.xpose.msra.mxu0 0.0
      %1363 = vmatprep.subr.mxu0 0.0
      %1364 = vmatpush1.xpose.msra.mxu0 0.0
      %1365 = vmatprep.subr.mxu0 0.0
      %1366 = vmatpush1.xpose.msra.mxu0 0.0
      %1367 = vmatprep.subr.mxu0 0.0
      %1368 = vmatpush1.xpose.msra.mxu0 0.0
      %1369 = vmatprep.mubr.f32.mxu0 0.0
      %1370 = vmatmul.mubr.f32.gmra.mrb[0].mxu0 %v1301
      %v1371 = vpop.f32.mrb[0].mxu0
      %v1372 = vadd.f32 0.0, %v1371
      %v1373 = vpop.f32.mrb[0].mxu0
      %1374 = vdwg.mxu0
      %v1375 = vmul.f32 %v1372, 0.35355338
      %v1376 = vsel %vm893, %v1375, -inf
      %1377 = vmax.xlane.f32.xlu0 %v1376
      %v1378 = vpop.xlane.xlu0 %1377
      %v1379 = vsub.f32 %v1375, %v1378
      %v1380 = vmul.f32 %v1379, 1.442695
      %v1381 = vpow.pop %v1380
      %v1382 = vsel %vm893, %v1381, 0.0
      %1383 = vadd.xlane.f32.xlu0 %v1382
      %v1384 = vpop.xlane.xlu0 %1383
      %v1385 = vrcp.pop %v1384
      %v1386 = vmul.f32 %v1381, %v1385
      %1387 = vrot.lane.b32.xlu0 %v804, 48
      %v1388 = vpop.permute.xlu0 %1387
      %v1390 = vsel %vm907, %v1386, 0
      %v1392 = vsel %vm911, %v1388, 0
      %1394 = vmatprep.subr.mxu0 0.0
      %1395 = vmatpush1.msra.mxu0 %v1392
      %1396 = vmatprep.subr.mxu0 0.0
      %1397 = vmatpush1.msra.mxu0 0.0
      %1398 = vmatprep.subr.mxu0 0.0
      %1399 = vmatpush1.msra.mxu0 0.0
      %1400 = vmatprep.subr.mxu0 0.0
      %1401 = vmatpush1.msra.mxu0 0.0
      %1402 = vmatprep.subr.mxu0 0.0
      %1403 = vmatpush1.msra.mxu0 0.0
      %1404 = vmatprep.subr.mxu0 0.0
      %1405 = vmatpush1.msra.mxu0 0.0
      %1406 = vmatprep.subr.mxu0 0.0
      %1407 = vmatpush1.msra.mxu0 0.0
      %1408 = vmatprep.subr.mxu0 0.0
      %1409 = vmatpush1.msra.mxu0 0.0
      %1410 = vmatprep.subr.mxu0 0.0
      %1411 = vmatpush1.msra.mxu0 0.0
      %1412 = vmatprep.subr.mxu0 0.0
      %1413 = vmatpush1.msra.mxu0 0.0
      %1414 = vmatprep.subr.mxu0 0.0
      %1415 = vmatpush1.msra.mxu0 0.0
      %1416 = vmatprep.subr.mxu0 0.0
      %1417 = vmatpush1.msra.mxu0 0.0
      %1418 = vmatprep.subr.mxu0 0.0
      %1419 = vmatpush1.msra.mxu0 0.0
      %1420 = vmatprep.subr.mxu0 0.0
      %1421 = vmatpush1.msra.mxu0 0.0
      %1422 = vmatprep.subr.mxu0 0.0
      %1423 = vmatpush1.msra.mxu0 0.0
      %1424 = vmatprep.subr.mxu0 0.0
      %1425 = vmatpush1.msra.mxu0 0.0
      %1426 = vmatprep.subr.mxu0 0.0
      %1427 = vmatpush1.msra.mxu0 0.0
      %1428 = vmatprep.subr.mxu0 0.0
      %1429 = vmatpush1.msra.mxu0 0.0
      %1430 = vmatprep.subr.mxu0 0.0
      %1431 = vmatpush1.msra.mxu0 0.0
      %1432 = vmatprep.subr.mxu0 0.0
      %1433 = vmatpush1.msra.mxu0 0.0
      %1434 = vmatprep.subr.mxu0 0.0
      %1435 = vmatpush1.msra.mxu0 0.0
      %1436 = vmatprep.subr.mxu0 0.0
      %1437 = vmatpush1.msra.mxu0 0.0
      %1438 = vmatprep.subr.mxu0 0.0
      %1439 = vmatpush1.msra.mxu0 0.0
      %1440 = vmatprep.subr.mxu0 0.0
      %1441 = vmatpush1.msra.mxu0 0.0
      %1442 = vmatprep.subr.mxu0 0.0
      %1443 = vmatpush1.msra.mxu0 0.0
      %1444 = vmatprep.subr.mxu0 0.0
      %1445 = vmatpush1.msra.mxu0 0.0
      %1446 = vmatprep.subr.mxu0 0.0
      %1447 = vmatpush1.msra.mxu0 0.0
      %1448 = vmatprep.subr.mxu0 0.0
      %1449 = vmatpush1.msra.mxu0 0.0
      %1450 = vmatprep.subr.mxu0 0.0
      %1451 = vmatpush1.msra.mxu0 0.0
      %1452 = vmatprep.subr.mxu0 0.0
      %1453 = vmatpush1.msra.mxu0 0.0
      %1454 = vmatprep.subr.mxu0 0.0
      %1455 = vmatpush1.msra.mxu0 0.0
      %1456 = vmatprep.subr.mxu0 0.0
      %1457 = vmatpush1.msra.mxu0 0.0
      %1458 = vmatprep.mubr.f32.mxu0 0.0
      %1459 = vmatmul.mubr.f32.gmra.mrb[0].mxu0 %v1390
      %v1460 = vpop.f32.mrb[0].mxu0
      %v1461 = vadd.f32 0.0, %v1460
      %v1462 = vpop.f32.mrb[0].mxu0
      %1463 = vdwg.mxu0
      %v1465 = vsel %vm817, %v1461, 0
      %1467 = vmatprep.subr.mxu0 0.0
      %1468 = vmatpush1.msra.mxu0 %v811
      %1469 = vmatprep.subr.mxu0 0.0
      %1470 = vmatpush1.msra.mxu0 0.0
      %1471 = vmatprep.subr.mxu0 0.0
      %1472 = vmatpush1.msra.mxu0 0.0
      %1473 = vmatprep.subr.mxu0 0.0
      %1474 = vmatpush1.msra.mxu0 0.0
      %1475 = vmatprep.subr.mxu0 0.0
      %1476 = vmatpush1.msra.mxu0 0.0
      %1477 = vmatprep.subr.mxu0 0.0
      %1478 = vmatpush1.msra.mxu0 0.0
      %1479 = vmatprep.subr.mxu0 0.0
      %1480 = vmatpush1.msra.mxu0 0.0
      %1481 = vmatprep.subr.mxu0 0.0
      %1482 = vmatpush1.msra.mxu0 0.0
      %1483 = vmatprep.subr.mxu0 0.0
      %1484 = vmatpush1.msra.mxu0 0.0
      %1485 = vmatprep.subr.mxu0 0.0
      %1486 = vmatpush1.msra.mxu0 0.0
      %1487 = vmatprep.subr.mxu0 0.0
      %1488 = vmatpush1.msra.mxu0 0.0
      %1489 = vmatprep.subr.mxu0 0.0
      %1490 = vmatpush1.msra.mxu0 0.0
      %1491 = vmatprep.subr.mxu0 0.0
      %1492 = vmatpush1.msra.mxu0 0.0
      %1493 = vmatprep.subr.mxu0 0.0
      %1494 = vmatpush1.msra.mxu0 0.0
      %1495 = vmatprep.subr.mxu0 0.0
      %1496 = vmatpush1.msra.mxu0 0.0
      %1497 = vmatprep.subr.mxu0 0.0
      %1498 = vmatpush1.msra.mxu0 0.0
      %1499 = vmatprep.subr.mxu0 0.0
      %1500 = vmatpush1.msra.mxu0 0.0
      %1501 = vmatprep.subr.mxu0 0.0
      %1502 = vmatpush1.msra.mxu0 0.0
      %1503 = vmatprep.subr.mxu0 0.0
      %1504 = vmatpush1.msra.mxu0 0.0
      %1505 = vmatprep.subr.mxu0 0.0
      %1506 = vmatpush1.msra.mxu0 0.0
      %1507 = vmatprep.subr.mxu0 0.0
      %1508 = vmatpush1.msra.mxu0 0.0
      %1509 = vmatprep.subr.mxu0 0.0
      %1510 = vmatpush1.msra.mxu0 0.0
      %1511 = vmatprep.subr.mxu0 0.0
      %1512 = vmatpush1.msra.mxu0 0.0
      %1513 = vmatprep.subr.mxu0 0.0
      %1514 = vmatpush1.msra.mxu0 0.0
      %1515 = vmatprep.subr.mxu0 0.0
      %1516 = vmatpush1.msra.mxu0 0.0
      %1517 = vmatprep.subr.mxu0 0.0
      %1518 = vmatpush1.msra.mxu0 0.0
      %1519 = vmatprep.subr.mxu0 0.0
      %1520 = vmatpush1.msra.mxu0 0.0
      %1521 = vmatprep.subr.mxu0 0.0
      %1522 = vmatpush1.msra.mxu0 0.0
      %1523 = vmatprep.subr.mxu0 0.0
      %1524 = vmatpush1.msra.mxu0 0.0
      %1525 = vmatprep.subr.mxu0 0.0
      %1526 = vmatpush1.msra.mxu0 0.0
      %1527 = vmatprep.subr.mxu0 0.0
      %1528 = vmatpush1.msra.mxu0 0.0
      %1529 = vmatprep.subr.mxu0 0.0
      %1530 = vmatpush1.msra.mxu0 0.0
      %1531 = vmatprep.mubr.f32.mxu0 0.0
      %1532 = vmatmul.mubr.f32.gmra.mrb[0].mxu0 %v1465
      %v1533 = vpop.f32.mrb[0].mxu0
      %v1534 = vadd.f32 0.0, %v1533
      %v1535 = vpop.f32.mrb[0].mxu0
      %1536 = vdwg.mxu0
      %v1537 = vadd.f32 %v1294, %v1534
      %1538 = vrot.lane.b32.xlu0 %v804, 104
      %v1539 = vpop.permute.xlu0 %1538
      %1540 = vrot.lane.b32.xlu0 %v804, 72
      %v1541 = vpop.permute.xlu0 %1540
      %v1542 = vsel %vm817, %v1539, 0
      %v1544 = vsel %vm817, %v1541, 0
      %1546 = vmatprep.subr.mxu0 0.0
      %1547 = vmatpush1.xpose.msra.mxu0 %v1544
      %1548 = vmatprep.subr.mxu0 0.0
      %1549 = vmatpush1.xpose.msra.mxu0 0.0
      %1550 = vmatprep.subr.mxu0 0.0
      %1551 = vmatpush1.xpose.msra.mxu0 0.0
      %1552 = vmatprep.subr.mxu0 0.0
      %1553 = vmatpush1.xpose.msra.mxu0 0.0
      %1554 = vmatprep.subr.mxu0 0.0
      %1555 = vmatpush1.xpose.msra.mxu0 0.0
      %1556 = vmatprep.subr.mxu0 0.0
      %1557 = vmatpush1.xpose.msra.mxu0 0.0
      %1558 = vmatprep.subr.mxu0 0.0
      %1559 = vmatpush1.xpose.msra.mxu0 0.0
      %1560 = vmatprep.subr.mxu0 0.0
      %1561 = vmatpush1.xpose.msra.mxu0 0.0
      %1562 = vmatprep.subr.mxu0 0.0
      %1563 = vmatpush1.xpose.msra.mxu0 0.0
      %1564 = vmatprep.subr.mxu0 0.0
      %1565 = vmatpush1.xpose.msra.mxu0 0.0
      %1566 = vmatprep.subr.mxu0 0.0
      %1567 = vmatpush1.xpose.msra.mxu0 0.0
      %1568 = vmatprep.subr.mxu0 0.0
      %1569 = vmatpush1.xpose.msra.mxu0 0.0
      %1570 = vmatprep.subr.mxu0 0.0
      %1571 = vmatpush1.xpose.msra.mxu0 0.0
      %1572 = vmatprep.subr.mxu0 0.0
      %1573 = vmatpush1.xpose.msra.mxu0 0.0
      %1574 = vmatprep.subr.mxu0 0.0
      %1575 = vmatpush1.xpose.msra.mxu0 0.0
      %1576 = vmatprep.subr.mxu0 0.0
      %1577 = vmatpush1.xpose.msra.mxu0 0.0
      %1578 = vmatprep.subr.mxu0 0.0
      %1579 = vmatpush1.xpose.msra.mxu0 0.0
      %1580 = vmatprep.subr.mxu0 0.0
      %1581 = vmatpush1.xpose.msra.mxu0 0.0
      %1582 = vmatprep.subr.mxu0 0.0
      %1583 = vmatpush1.xpose.msra.mxu0 0.0
      %1584 = vmatprep.subr.mxu0 0.0
      %1585 = vmatpush1.xpose.msra.mxu0 0.0
      %1586 = vmatprep.subr.mxu0 0.0
      %1587 = vmatpush1.xpose.msra.mxu0 0.0
      %1588 = vmatprep.subr.mxu0 0.0
      %1589 = vmatpush1.xpose.msra.mxu0 0.0
      %1590 = vmatprep.subr.mxu0 0.0
      %1591 = vmatpush1.xpose.msra.mxu0 0.0
      %1592 = vmatprep.subr.mxu0 0.0
      %1593 = vmatpush1.xpose.msra.mxu0 0.0
      %1594 = vmatprep.subr.mxu0 0.0
      %1595 = vmatpush1.xpose.msra.mxu0 0.0
      %1596 = vmatprep.subr.mxu0 0.0
      %1597 = vmatpush1.xpose.msra.mxu0 0.0
      %1598 = vmatprep.subr.mxu0 0.0
      %1599 = vmatpush1.xpose.msra.mxu0 0.0
      %1600 = vmatprep.subr.mxu0 0.0
      %1601 = vmatpush1.xpose.msra.mxu0 0.0
      %1602 = vmatprep.subr.mxu0 0.0
      %1603 = vmatpush1.xpose.msra.mxu0 0.0
      %1604 = vmatprep.subr.mxu0 0.0
      %1605 = vmatpush1.xpose.msra.mxu0 0.0
      %1606 = vmatprep.subr.mxu0 0.0
      %1607 = vmatpush1.xpose.msra.mxu0 0.0
      %1608 = vmatprep.subr.mxu0 0.0
      %1609 = vmatpush1.xpose.msra.mxu0 0.0
      %1610 = vmatprep.mubr.f32.mxu0 0.0
      %1611 = vmatmul.mubr.f32.gmra.mrb[0].mxu0 %v1542
      %v1612 = vpop.f32.mrb[0].mxu0
      %v1613 = vadd.f32 0.0, %v1612
      %v1614 = vpop.f32.mrb[0].mxu0
      %1615 = vdwg.mxu0
      %v1616 = vmul.f32 %v1613, 0.35355338
      %v1617 = vsel %vm893, %v1616, -inf
      %1618 = vmax.xlane.f32.xlu0 %v1617
      %v1619 = vpop.xlane.xlu0 %1618
      %v1620 = vsub.f32 %v1616, %v1619
      %v1621 = vmul.f32 %v1620, 1.442695
      %v1622 = vpow.pop %v1621
      %v1623 = vsel %vm893, %v1622, 0.0
      %1624 = vadd.xlane.f32.xlu0 %v1623
      %v1625 = vpop.xlane.xlu0 %1624
      %v1626 = vrcp.pop %v1625
      %v1627 = vmul.f32 %v1622, %v1626
      %1628 = vrot.lane.b32.xlu0 %v804, 40
      %v1629 = vpop.permute.xlu0 %1628
      %v1631 = vsel %vm907, %v1627, 0
      %v1633 = vsel %vm911, %v1629, 0
      %1635 = vmatprep.subr.mxu0 0.0
      %1636 = vmatpush1.msra.mxu0 %v1633
      %1637 = vmatprep.subr.mxu0 0.0
      %1638 = vmatpush1.msra.mxu0 0.0
      %1639 = vmatprep.subr.mxu0 0.0
      %1640 = vmatpush1.msra.mxu0 0.0
      %1641 = vmatprep.subr.mxu0 0.0
      %1642 = vmatpush1.msra.mxu0 0.0
      %1643 = vmatprep.subr.mxu0 0.0
      %1644 = vmatpush1.msra.mxu0 0.0
      %1645 = vmatprep.subr.mxu0 0.0
      %1646 = vmatpush1.msra.mxu0 0.0
      %1647 = vmatprep.subr.mxu0 0.0
      %1648 = vmatpush1.msra.mxu0 0.0
      %1649 = vmatprep.subr.mxu0 0.0
      %1650 = vmatpush1.msra.mxu0 0.0
      %1651 = vmatprep.subr.mxu0 0.0
      %1652 = vmatpush1.msra.mxu0 0.0
      %1653 = vmatprep.subr.mxu0 0.0
      %1654 = vmatpush1.msra.mxu0 0.0
      %1655 = vmatprep.subr.mxu0 0.0
      %1656 = vmatpush1.msra.mxu0 0.0
      %1657 = vmatprep.subr.mxu0 0.0
      %1658 = vmatpush1.msra.mxu0 0.0
      %1659 = vmatprep.subr.mxu0 0.0
      %1660 = vmatpush1.msra.mxu0 0.0
      %1661 = vmatprep.subr.mxu0 0.0
      %1662 = vmatpush1.msra.mxu0 0.0
      %1663 = vmatprep.subr.mxu0 0.0
      %1664 = vmatpush1.msra.mxu0 0.0
      %1665 = vmatprep.subr.mxu0 0.0
      %1666 = vmatpush1.msra.mxu0 0.0
      %1667 = vmatprep.subr.mxu0 0.0
      %1668 = vmatpush1.msra.mxu0 0.0
      %1669 = vmatprep.subr.mxu0 0.0
      %1670 = vmatpush1.msra.mxu0 0.0
      %1671 = vmatprep.subr.mxu0 0.0
      %1672 = vmatpush1.msra.mxu0 0.0
      %1673 = vmatprep.subr.mxu0 0.0
      %1674 = vmatpush1.msra.mxu0 0.0
      %1675 = vmatprep.subr.mxu0 0.0
      %1676 = vmatpush1.msra.mxu0 0.0
      %1677 = vmatprep.subr.mxu0 0.0
      %1678 = vmatpush1.msra.mxu0 0.0
      %1679 = vmatprep.subr.mxu0 0.0
      %1680 = vmatpush1.msra.mxu0 0.0
      %1681 = vmatprep.subr.mxu0 0.0
      %1682 = vmatpush1.msra.mxu0 0.0
      %1683 = vmatprep.subr.mxu0 0.0
      %1684 = vmatpush1.msra.mxu0 0.0
      %1685 = vmatprep.subr.mxu0 0.0
      %1686 = vmatpush1.msra.mxu0 0.0
      %1687 = vmatprep.subr.mxu0 0.0
      %1688 = vmatpush1.msra.mxu0 0.0
      %1689 = vmatprep.subr.mxu0 0.0
      %1690 = vmatpush1.msra.mxu0 0.0
      %1691 = vmatprep.subr.mxu0 0.0
      %1692 = vmatpush1.msra.mxu0 0.0
      %1693 = vmatprep.subr.mxu0 0.0
      %1694 = vmatpush1.msra.mxu0 0.0
      %1695 = vmatprep.subr.mxu0 0.0
      %1696 = vmatpush1.msra.mxu0 0.0
      %1697 = vmatprep.subr.mxu0 0.0
      %1698 = vmatpush1.msra.mxu0 0.0
      %1699 = vmatprep.mubr.f32.mxu0 0.0
      %1700 = vmatmul.mubr.f32.gmra.mrb[0].mxu0 %v1631
      %v1701 = vpop.f32.mrb[0].mxu0
      %v1702 = vadd.f32 0.0, %v1701
      %v1703 = vpop.f32.mrb[0].mxu0
      %1704 = vdwg.mxu0
      %v1706 = vsel %vm817, %v1702, 0
      %1708 = vmatprep.subr.mxu0 0.0
      %1709 = vmatpush1.msra.mxu0 %v812
      %1710 = vmatprep.subr.mxu0 0.0
      %1711 = vmatpush1.msra.mxu0 0.0
      %1712 = vmatprep.subr.mxu0 0.0
      %1713 = vmatpush1.msra.mxu0 0.0
      %1714 = vmatprep.subr.mxu0 0.0
      %1715 = vmatpush1.msra.mxu0 0.0
      %1716 = vmatprep.subr.mxu0 0.0
      %1717 = vmatpush1.msra.mxu0 0.0
      %1718 = vmatprep.subr.mxu0 0.0
      %1719 = vmatpush1.msra.mxu0 0.0
      %1720 = vmatprep.subr.mxu0 0.0
      %1721 = vmatpush1.msra.mxu0 0.0
      %1722 = vmatprep.subr.mxu0 0.0
      %1723 = vmatpush1.msra.mxu0 0.0
      %1724 = vmatprep.subr.mxu0 0.0
      %1725 = vmatpush1.msra.mxu0 0.0
      %1726 = vmatprep.subr.mxu0 0.0
      %1727 = vmatpush1.msra.mxu0 0.0
      %1728 = vmatprep.subr.mxu0 0.0
      %1729 = vmatpush1.msra.mxu0 0.0
      %1730 = vmatprep.subr.mxu0 0.0
      %1731 = vmatpush1.msra.mxu0 0.0
      %1732 = vmatprep.subr.mxu0 0.0
      %1733 = vmatpush1.msra.mxu0 0.0
      %1734 = vmatprep.subr.mxu0 0.0
      %1735 = vmatpush1.msra.mxu0 0.0
      %1736 = vmatprep.subr.mxu0 0.0
      %1737 = vmatpush1.msra.mxu0 0.0
      %1738 = vmatprep.subr.mxu0 0.0
      %1739 = vmatpush1.msra.mxu0 0.0
      %1740 = vmatprep.subr.mxu0 0.0
      %1741 = vmatpush1.msra.mxu0 0.0
      %1742 = vmatprep.subr.mxu0 0.0
      %1743 = vmatpush1.msra.mxu0 0.0
      %1744 = vmatprep.subr.mxu0 0.0
      %1745 = vmatpush1.msra.mxu0 0.0
      %1746 = vmatprep.subr.mxu0 0.0
      %1747 = vmatpush1.msra.mxu0 0.0
      %1748 = vmatprep.subr.mxu0 0.0
      %1749 = vmatpush1.msra.mxu0 0.0
      %1750 = vmatprep.subr.mxu0 0.0
      %1751 = vmatpush1.msra.mxu0 0.0
      %1752 = vmatprep.subr.mxu0 0.0
      %1753 = vmatpush1.msra.mxu0 0.0
      %1754 = vmatprep.subr.mxu0 0.0
      %1755 = vmatpush1.msra.mxu0 0.0
      %1756 = vmatprep.subr.mxu0 0.0
      %1757 = vmatpush1.msra.mxu0 0.0
      %1758 = vmatprep.subr.mxu0 0.0
      %1759 = vmatpush1.msra.mxu0 0.0
      %1760 = vmatprep.subr.mxu0 0.0
      %1761 = vmatpush1.msra.mxu0 0.0
      %1762 = vmatprep.subr.mxu0 0.0
      %1763 = vmatpush1.msra.mxu0 0.0
      %1764 = vmatprep.subr.mxu0 0.0
      %1765 = vmatpush1.msra.mxu0 0.0
      %1766 = vmatprep.subr.mxu0 0.0
      %1767 = vmatpush1.msra.mxu0 0.0
      %1768 = vmatprep.subr.mxu0 0.0
      %1769 = vmatpush1.msra.mxu0 0.0
      %1770 = vmatprep.subr.mxu0 0.0
      %1771 = vmatpush1.msra.mxu0 0.0
      %1772 = vmatprep.mubr.f32.mxu0 0.0
      %1773 = vmatmul.mubr.f32.gmra.mrb[0].mxu0 %v1706
      %v1774 = vpop.f32.mrb[0].mxu0
      %v1775 = vadd.f32 0.0, %v1774
      %v1776 = vpop.f32.mrb[0].mxu0
      %1777 = vdwg.mxu0
      %v1778 = vadd.f32 %v1537, %v1775
      %v1780 = vlaneseq
      %v1781 = vshrl.u32 %v1780, 7
      %v1782 = vsub.s32 0, %v1781
      %v1783 = vrot.slane %v813, %v1782
      %v1785 = vadd.f32 %v1778, %v1783
      %v1786 = vadd.f32 %v738, %v1785
      %v1787 = vld [vmem:[%s7] sm:$0x1]
      %v1788 = vld [vmem:[%s8] sm:$0x1]
      %vm1789 = vcmask 258048
      %v1790 = vsel %vm1789, %v1786, 0.0
      %1791 = vadd.xlane.f32.xlu0 %v1790
      %v1792 = vpop.xlane.xlu0 %1791
      %v1793 = vrcp.pop 32.0
      %v1794 = vmul.f32 %v1792, %v1793
      %v1795 = vsub.f32 %v1786, %v1794
      %v1796 = vmul.f32 %v1795, %v1795
      %v1797 = vsel %vm1789, %v1796, 0.0
      %1798 = vadd.xlane.f32.xlu0 %v1797
      %v1799 = vpop.xlane.xlu0 %1798
      %v1800 = vmul.f32 %v1799, %v1793
      %v1801 = vadd.f32 %v1800, 1e-05
      %v1802 = vrsqrt.pop %v1801
      %v1803 = vmul.f32 %v1795, %v1802
      %v1805 = vlaneseq
      %v1806 = vshrl.u32 %v1805, 7
      %v1807 = vsub.s32 0, %v1806
      %v1808 = vrot.slane %v1787, %v1807
      %v1810 = vmul.f32 %v1803, %v1808
      %v1812 = vlaneseq
      %v1813 = vshrl.u32 %v1812, 7
      %v1814 = vsub.s32 0, %v1813
      %v1815 = vrot.slane %v1788, %v1814
      %v1817 = vadd.f32 %v1810, %v1815
      %v1818 = vld [vmem:[%s9] sm:$0xf]
      %v1819 = vld [vmem:[%s9 + $0x4] sm:$0xf]
      %v1820 = vld [vmem:[%s9 + $0x8] sm:$0xf]
      %v1821 = vld [vmem:[%s9 + $0xc] sm:$0xf]
      %v1822 = vld [vmem:[%s10] sm:$0x1]
      %v1823 = vpack.c.bf16 %v1817, %v1817
      %v1825 = vlaneseq
      %v1826 = vshrl.u32 %v1825, 7
      %v1827 = vsub.s32 0, %v1826
      %v1828 = vrot.slane %v1822, %v1827
      %v1834 = vunpack.c.l.b16 %v1818
      %v1835 = vunpack.c.l.b16 %v1819
      %v1836 = vunpack.c.l.b16 %v1820
      %v1837 = vunpack.c.l.b16 %v1821
      %v1838 = vpack.c.b16 %v1835, %v1834
      %v1839 = vpack.c.b16 %v1837, %v1836
      %v1843 = vsel %vm765, %v1823, 0
      %1845 = vmatprep.subr.bf16.mxu0 0
      %1846 = vmatpush1.bf16.msra.mxu0 %v1838
      %1847 = vmatprep.subr.bf16.mxu0 0
      %1848 = vmatpush1.bf16.msra.mxu0 %v1839
      %1849 = vmatprep.subr.bf16.mxu0 0
      %1850 = vmatpush1.bf16.msra.mxu0 0
      %1851 = vmatprep.subr.bf16.mxu0 0
      %1852 = vmatpush1.bf16.msra.mxu0 0
      %1853 = vmatprep.subr.bf16.mxu0 0
      %1854 = vmatpush1.bf16.msra.mxu0 0
      %1855 = vmatprep.subr.bf16.mxu0 0
      %1856 = vmatpush1.bf16.msra.mxu0 0
      %1857 = vmatprep.subr.bf16.mxu0 0
      %1858 = vmatpush1.bf16.msra.mxu0 0
      %1859 = vmatprep.subr.bf16.mxu0 0
      %1860 = vmatpush1.bf16.msra.mxu0 0
      %1861 = vmatprep.subr.bf16.mxu0 0
      %1862 = vmatpush1.bf16.msra.mxu0 0
      %1863 = vmatprep.subr.bf16.mxu0 0
      %1864 = vmatpush1.bf16.msra.mxu0 0
      %1865 = vmatprep.subr.bf16.mxu0 0
      %1866 = vmatpush1.bf16.msra.mxu0 0
      %1867 = vmatprep.subr.bf16.mxu0 0
      %1868 = vmatpush1.bf16.msra.mxu0 0
      %1869 = vmatprep.subr.bf16.mxu0 0
      %1870 = vmatpush1.bf16.msra.mxu0 0
      %1871 = vmatprep.subr.bf16.mxu0 0
      %1872 = vmatpush1.bf16.msra.mxu0 0
      %1873 = vmatprep.subr.bf16.mxu0 0
      %1874 = vmatpush1.bf16.msra.mxu0 0
      %1875 = vmatprep.subr.bf16.mxu0 0
      %1876 = vmatpush1.bf16.msra.mxu0 0
      %1877 = vmatprep.mubr.bf16.mxu0 0
      %1878 = vmatmul.mubr.bf16.gmra.mrb[0].mxu0 %v1843
      %v1879 = vpop.f32.mrb[0].mxu0
      %v1880 = vadd.f32 %v1828, %v1879
      %v1881 = vpop.f32.mrb[0].mxu0
      %v1882 = vpop.f32.mrb[0].mxu0
      %v1883 = vpop.f32.mrb[0].mxu0
      %1884 = vdwg.mxu0
      %v1885 = vld [vmem:[%s11] sm:$0xf]
      %v1886 = vld [vmem:[%s11 + $0x4] sm:$0xf]
      %v1887 = vld [vmem:[%s11 + $0x8] sm:$0xf]
      %v1888 = vld [vmem:[%s11 + $0xc] sm:$0xf]
      %v1889 = vld [vmem:[%s12] sm:$0x1]
      %v1890 = vpack.c.bf16 %v739, %v739
      %v1892 = vlaneseq
      %v1893 = vshrl.u32 %v1892, 7
      %v1894 = vsub.s32 0, %v1893
      %v1895 = vrot.slane %v1889, %v1894
      %v1901 = vunpack.c.l.b16 %v1885
      %v1902 = vunpack.c.l.b16 %v1886
      %v1903 = vunpack.c.l.b16 %v1887
      %v1904 = vunpack.c.l.b16 %v1888
      %v1905 = vpack.c.b16 %v1902, %v1901
      %v1906 = vpack.c.b16 %v1904, %v1903
      %v1910 = vsel %vm765, %v1890, 0
      %1912 = vmatprep.subr.bf16.mxu0 0
      %1913 = vmatpush1.bf16.msra.mxu0 %v1905
      %1914 = vmatprep.subr.bf16.mxu0 0
      %1915 = vmatpush1.bf16.msra.mxu0 %v1906
      %1916 = vmatprep.subr.bf16.mxu0 0
      %1917 = vmatpush1.bf16.msra.mxu0 0
      %1918 = vmatprep.subr.bf16.mxu0 0
      %1919 = vmatpush1.bf16.msra.mxu0 0
      %1920 = vmatprep.subr.bf16.mxu0 0
      %1921 = vmatpush1.bf16.msra.mxu0 0
      %1922 = vmatprep.subr.bf16.mxu0 0
      %1923 = vmatpush1.bf16.msra.mxu0 0
      %1924 = vmatprep.subr.bf16.mxu0 0
      %1925 = vmatpush1.bf16.msra.mxu0 0
      %1926 = vmatprep.subr.bf16.mxu0 0
      %1927 = vmatpush1.bf16.msra.mxu0 0
      %1928 = vmatprep.subr.bf16.mxu0 0
      %1929 = vmatpush1.bf16.msra.mxu0 0
      %1930 = vmatprep.subr.bf16.mxu0 0
      %1931 = vmatpush1.bf16.msra.mxu0 0
      %1932 = vmatprep.subr.bf16.mxu0 0
      %1933 = vmatpush1.bf16.msra.mxu0 0
      %1934 = vmatprep.subr.bf16.mxu0 0
      %1935 = vmatpush1.bf16.msra.mxu0 0
      %1936 = vmatprep.subr.bf16.mxu0 0
      %1937 = vmatpush1.bf16.msra.mxu0 0
      %1938 = vmatprep.subr.bf16.mxu0 0
      %1939 = vmatpush1.bf16.msra.mxu0 0
      %1940 = vmatprep.subr.bf16.mxu0 0
      %1941 = vmatpush1.bf16.msra.mxu0 0
      %1942 = vmatprep.subr.bf16.mxu0 0
      %1943 = vmatpush1.bf16.msra.mxu0 0
      %1944 = vmatprep.mubr.bf16.mxu0 0
      %1945 = vmatmul.mubr.bf16.gmra.mrb[0].mxu0 %v1910
      %v1946 = vpop.f32.mrb[0].mxu0
      %v1947 = vadd.f32 %v1895, %v1946
      %v1948 = vpop.f32.mrb[0].mxu0
      %v1949 = vpop.f32.mrb[0].mxu0
      %v1950 = vpop.f32.mrb[0].mxu0
      %1951 = vdwg.mxu0
      %v1952 = vld [vmem:[%s13] sm:$0xff]
      %v1953 = vld [vmem:[%s13 + $0x8] sm:$0xff]
      %v1954 = vld [vmem:[%s13 + $0x10] sm:$0xff]
      %v1955 = vld [vmem:[%s13 + $0x18] sm:$0xff]
      %v1956 = vld [vmem:[%s14] sm:$0x1]
      %v1958 = vsel %vm817, %v1880, 0
      %v1961 = vsel %vm817, %v1947, 0
      %1963 = vmatprep.subr.mxu0 0.0
      %1964 = vmatpush1.xpose.msra.mxu0 %v1961
      %1965 = vmatprep.subr.mxu0 0.0
      %1966 = vmatpush1.xpose.msra.mxu0 0.0
      %1967 = vmatprep.subr.mxu0 0.0
      %1968 = vmatpush1.xpose.msra.mxu0 0.0
      %1969 = vmatprep.subr.mxu0 0.0
      %1970 = vmatpush1.xpose.msra.mxu0 0.0
      %1971 = vmatprep.subr.mxu0 0.0
      %1972 = vmatpush1.xpose.msra.mxu0 0.0
      %1973 = vmatprep.subr.mxu0 0.0
      %1974 = vmatpush1.xpose.msra.mxu0 0.0
      %1975 = vmatprep.subr.mxu0 0.0
      %1976 = vmatpush1.xpose.msra.mxu0 0.0
      %1977 = vmatprep.subr.mxu0 0.0
      %1978 = vmatpush1.xpose.msra.mxu0 0.0
      %1979 = vmatprep.subr.mxu0 0.0
      %1980 = vmatpush1.xpose.msra.mxu0 0.0
      %1981 = vmatprep.subr.mxu0 0.0
      %1982 = vmatpush1.xpose.msra.mxu0 0.0
      %1983 = vmatprep.subr.mxu0 0.0
      %1984 = vmatpush1.xpose.msra.mxu0 0.0
      %1985 = vmatprep.subr.mxu0 0.0
      %1986 = vmatpush1.xpose.msra.mxu0 0.0
      %1987 = vmatprep.subr.mxu0 0.0
      %1988 = vmatpush1.xpose.msra.mxu0 0.0
      %1989 = vmatprep.subr.mxu0 0.0
      %1990 = vmatpush1.xpose.msra.mxu0 0.0
      %1991 = vmatprep.subr.mxu0 0.0
      %1992 = vmatpush1.xpose.msra.mxu0 0.0
      %1993 = vmatprep.subr.mxu0 0.0
      %1994 = vmatpush1.xpose.msra.mxu0 0.0
      %1995 = vmatprep.subr.mxu0 0.0
      %1996 = vmatpush1.xpose.msra.mxu0 0.0
      %1997 = vmatprep.subr.mxu0 0.0
      %1998 = vmatpush1.xpose.msra.mxu0 0.0
      %1999 = vmatprep.subr.mxu0 0.0
      %2000 = vmatpush1.xpose.msra.mxu0 0.0
      %2001 = vmatprep.subr.mxu0 0.0
      %2002 = vmatpush1.xpose.msra.mxu0 0.0
      %2003 = vmatprep.subr.mxu0 0.0
      %2004 = vmatpush1.xpose.msra.mxu0 0.0
      %2005 = vmatprep.subr.mxu0 0.0
      %2006 = vmatpush1.xpose.msra.mxu0 0.0
      %2007 = vmatprep.subr.mxu0 0.0
      %2008 = vmatpush1.xpose.msra.mxu0 0.0
      %2009 = vmatprep.subr.mxu0 0.0
      %2010 = vmatpush1.xpose.msra.mxu0 0.0
      %2011 = vmatprep.subr.mxu0 0.0
      %2012 = vmatpush1.xpose.msra.mxu0 0.0
      %2013 = vmatprep.subr.mxu0 0.0
      %2014 = vmatpush1.xpose.msra.mxu0 0.0
      %2015 = vmatprep.subr.mxu0 0.0
      %2016 = vmatpush1.xpose.msra.mxu0 0.0
      %2017 = vmatprep.subr.mxu0 0.0
      %2018 = vmatpush1.xpose.msra.mxu0 0.0
      %2019 = vmatprep.subr.mxu0 0.0
      %2020 = vmatpush1.xpose.msra.mxu0 0.0
      %2021 = vmatprep.subr.mxu0 0.0
      %2022 = vmatpush1.xpose.msra.mxu0 0.0
      %2023 = vmatprep.subr.mxu0 0.0
      %2024 = vmatpush1.xpose.msra.mxu0 0.0
      %2025 = vmatprep.subr.mxu0 0.0
      %2026 = vmatpush1.xpose.msra.mxu0 0.0
      %2027 = vmatprep.mubr.f32.mxu0 0.0
      %2028 = vmatmul.mubr.f32.gmra.mrb[0].mxu0 %v1958
      %v2029 = vpop.f32.mrb[0].mxu0
      %v2030 = vadd.f32 0.0, %v2029
      %v2031 = vpop.f32.mrb[0].mxu0
      %2032 = vdwg.mxu0
      %v2033 = vmul.f32 %v2030, 0.35355338
      %v2035 = vlaneseq
      %v2036 = vshrl.u32 %v2035, 7
      %v2037 = vsub.s32 0, %v2036
      %v2038 = vrot.slane %v740, %v2037
      %v2040 = vadd.f32 %v2033, %v2038
      %v2041 = vsel %vm893, %v2040, -inf
      %2042 = vmax.xlane.f32.xlu0 %v2041
      %v2043 = vpop.xlane.xlu0 %2042
      %v2044 = vsub.f32 %v2040, %v2043
      %v2045 = vmul.f32 %v2044, 1.442695
      %v2046 = vpow.pop %v2045
      %v2047 = vsel %vm893, %v2046, 0.0
      %2048 = vadd.xlane.f32.xlu0 %v2047
      %v2049 = vpop.xlane.xlu0 %2048
      %v2050 = vrcp.pop %v2049
      %v2051 = vmul.f32 %v2046, %v2050
      %2052 = vrot.lane.b32.xlu0 %v1947, 96
      %v2053 = vpop.permute.xlu0 %2052
      %v2055 = vsel %vm907, %v2051, 0
      %v2057 = vsel %vm911, %v2053, 0
      %2059 = vmatprep.subr.mxu0 0.0
      %2060 = vmatpush1.msra.mxu0 %v2057
      %2061 = vmatprep.subr.mxu0 0.0
      %2062 = vmatpush1.msra.mxu0 0.0
      %2063 = vmatprep.subr.mxu0 0.0
      %2064 = vmatpush1.msra.mxu0 0.0
      %2065 = vmatprep.subr.mxu0 0.0
      %2066 = vmatpush1.msra.mxu0 0.0
      %2067 = vmatprep.subr.mxu0 0.0
      %2068 = vmatpush1.msra.mxu0 0.0
      %2069 = vmatprep.subr.mxu0 0.0
      %2070 = vmatpush1.msra.mxu0 0.0
      %2071 = vmatprep.subr.mxu0 0.0
      %2072 = vmatpush1.msra.mxu0 0.0
      %2073 = vmatprep.subr.mxu0 0.0
      %2074 = vmatpush1.msra.mxu0 0.0
      %2075 = vmatprep.subr.mxu0 0.0
      %2076 = vmatpush1.msra.mxu0 0.0
      %2077 = vmatprep.subr.mxu0 0.0
      %2078 = vmatpush1.msra.mxu0 0.0
      %2079 = vmatprep.subr.mxu0 0.0
      %2080 = vmatpush1.msra.mxu0 0.0
      %2081 = vmatprep.subr.mxu0 0.0
      %2082 = vmatpush1.msra.mxu0 0.0
      %2083 = vmatprep.subr.mxu0 0.0
      %2084 = vmatpush1.msra.mxu0 0.0
      %2085 = vmatprep.subr.mxu0 0.0
      %2086 = vmatpush1.msra.mxu0 0.0
      %2087 = vmatprep.subr.mxu0 0.0
      %2088 = vmatpush1.msra.mxu0 0.0
      %2089 = vmatprep.subr.mxu0 0.0
      %2090 = vmatpush1.msra.mxu0 0.0
      %2091 = vmatprep.subr.mxu0 0.0
      %2092 = vmatpush1.msra.mxu0 0.0
      %2093 = vmatprep.subr.mxu0 0.0
      %2094 = vmatpush1.msra.mxu0 0.0
      %2095 = vmatprep.subr.mxu0 0.0
      %2096 = vmatpush1.msra.mxu0 0.0
      %2097 = vmatprep.subr.mxu0 0.0
      %2098 = vmatpush1.msra.mxu0 0.0
      %2099 = vmatprep.subr.mxu0 0.0
      %2100 = vmatpush1.msra.mxu0 0.0
      %2101 = vmatprep.subr.mxu0 0.0
      %2102 = vmatpush1.msra.mxu0 0.0
      %2103 = vmatprep.subr.mxu0 0.0
      %2104 = vmatpush1.msra.mxu0 0.0
      %2105 = vmatprep.subr.mxu0 0.0
      %2106 = vmatpush1.msra.mxu0 0.0
      %2107 = vmatprep.subr.mxu0 0.0
      %2108 = vmatpush1.msra.mxu0 0.0
      %2109 = vmatprep.subr.mxu0 0.0
      %2110 = vmatpush1.msra.mxu0 0.0
      %2111 = vmatprep.subr.mxu0 0.0
      %2112 = vmatpush1.msra.mxu0 0.0
      %2113 = vmatprep.subr.mxu0 0.0
      %2114 = vmatpush1.msra.mxu0 0.0
      %2115 = vmatprep.subr.mxu0 0.0
      %2116 = vmatpush1.msra.mxu0 0.0
      %2117 = vmatprep.subr.mxu0 0.0
      %2118 = vmatpush1.msra.mxu0 0.0
      %2119 = vmatprep.subr.mxu0 0.0
      %2120 = vmatpush1.msra.mxu0 0.0
      %2121 = vmatprep.subr.mxu0 0.0
      %2122 = vmatpush1.msra.mxu0 0.0
      %2123 = vmatprep.mubr.f32.mxu0 0.0
      %2124 = vmatmul.mubr.f32.gmra.mrb[0].mxu0 %v2055
      %v2125 = vpop.f32.mrb[0].mxu0
      %v2126 = vadd.f32 0.0, %v2125
      %v2127 = vpop.f32.mrb[0].mxu0
      %2128 = vdwg.mxu0
      %2129 = vrot.lane.b32.xlu0 %v1880, 120
      %v2130 = vpop.permute.xlu0 %2129
      %2131 = vrot.lane.b32.xlu0 %v1947, 120
      %v2132 = vpop.permute.xlu0 %2131
      %v2133 = vsel %vm817, %v2130, 0
      %v2135 = vsel %vm817, %v2132, 0
      %2137 = vmatprep.subr.mxu0 0.0
      %2138 = vmatpush1.xpose.msra.mxu0 %v2135
      %2139 = vmatprep.subr.mxu0 0.0
      %2140 = vmatpush1.xpose.msra.mxu0 0.0
      %2141 = vmatprep.subr.mxu0 0.0
      %2142 = vmatpush1.xpose.msra.mxu0 0.0
      %2143 = vmatprep.subr.mxu0 0.0
      %2144 = vmatpush1.xpose.msra.mxu0 0.0
      %2145 = vmatprep.subr.mxu0 0.0
      %2146 = vmatpush1.xpose.msra.mxu0 0.0
      %2147 = vmatprep.subr.mxu0 0.0
      %2148 = vmatpush1.xpose.msra.mxu0 0.0
      %2149 = vmatprep.subr.mxu0 0.0
      %2150 = vmatpush1.xpose.msra.mxu0 0.0
      %2151 = vmatprep.subr.mxu0 0.0
      %2152 = vmatpush1.xpose.msra.mxu0 0.0
      %2153 = vmatprep.subr.mxu0 0.0
      %2154 = vmatpush1.xpose.msra.mxu0 0.0
      %2155 = vmatprep.subr.mxu0 0.0
      %2156 = vmatpush1.xpose.msra.mxu0 0.0
      %2157 = vmatprep.subr.mxu0 0.0
      %2158 = vmatpush1.xpose.msra.mxu0 0.0
      %2159 = vmatprep.subr.mxu0 0.0
      %2160 = vmatpush1.xpose.msra.mxu0 0.0
      %2161 = vmatprep.subr.mxu0 0.0
      %2162 = vmatpush1.xpose.msra.mxu0 0.0
      %2163 = vmatprep.subr.mxu0 0.0
      %2164 = vmatpush1.xpose.msra.mxu0 0.0
      %2165 = vmatprep.subr.mxu0 0.0
      %2166 = vmatpush1.xpose.msra.mxu0 0.0
      %2167 = vmatprep.subr.mxu0 0.0
      %2168 = vmatpush1.xpose.msra.mxu0 0.0
      %2169 = vmatprep.subr.mxu0 0.0
      %2170 = vmatpush1.xpose.msra.mxu0 0.0
      %2171 = vmatprep.subr.mxu0 0.0
      %2172 = vmatpush1.xpose.msra.mxu0 0.0
      %2173 = vmatprep.subr.mxu0 0.0
      %2174 = vmatpush1.xpose.msra.mxu0 0.0
      %2175 = vmatprep.subr.mxu0 0.0
      %2176 = vmatpush1.xpose.msra.mxu0 0.0
      %2177 = vmatprep.subr.mxu0 0.0
      %2178 = vmatpush1.xpose.msra.mxu0 0.0
      %2179 = vmatprep.subr.mxu0 0.0
      %2180 = vmatpush1.xpose.msra.mxu0 0.0
      %2181 = vmatprep.subr.mxu0 0.0
      %2182 = vmatpush1.xpose.msra.mxu0 0.0
      %2183 = vmatprep.subr.mxu0 0.0
      %2184 = vmatpush1.xpose.msra.mxu0 0.0
      %2185 = vmatprep.subr.mxu0 0.0
      %2186 = vmatpush1.xpose.msra.mxu0 0.0
      %2187 = vmatprep.subr.mxu0 0.0
      %2188 = vmatpush1.xpose.msra.mxu0 0.0
      %2189 = vmatprep.subr.mxu0 0.0
      %2190 = vmatpush1.xpose.msra.mxu0 0.0
      %2191 = vmatprep.subr.mxu0 0.0
      %2192 = vmatpush1.xpose.msra.mxu0 0.0
      %2193 = vmatprep.subr.mxu0 0.0
      %2194 = vmatpush1.xpose.msra.mxu0 0.0
      %2195 = vmatprep.subr.mxu0 0.0
      %2196 = vmatpush1.xpose.msra.mxu0 0.0
      %2197 = vmatprep.subr.mxu0 0.0
      %2198 = vmatpush1.xpose.msra.mxu0 0.0
      %2199 = vmatprep.subr.mxu0 0.0
      %2200 = vmatpush1.xpose.msra.mxu0 0.0
      %2201 = vmatprep.mubr.f32.mxu0 0.0
      %2202 = vmatmul.mubr.f32.gmra.mrb[0].mxu0 %v2133
      %v2203 = vpop.f32.mrb[0].mxu0
      %v2204 = vadd.f32 0.0, %v2203
      %v2205 = vpop.f32.mrb[0].mxu0
      %2206 = vdwg.mxu0
      %v2207 = vmul.f32 %v2204, 0.35355338
      %v2208 = vadd.f32 %v2207, %v2038
      %v2209 = vsel %vm893, %v2208, -inf
      %2210 = vmax.xlane.f32.xlu0 %v2209
      %v2211 = vpop.xlane.xlu0 %2210
      %v2212 = vsub.f32 %v2208, %v2211
      %v2213 = vmul.f32 %v2212, 1.442695
      %v2214 = vpow.pop %v2213
      %v2215 = vsel %vm893, %v2214, 0.0
      %2216 = vadd.xlane.f32.xlu0 %v2215
      %v2217 = vpop.xlane.xlu0 %2216
      %v2218 = vrcp.pop %v2217
      %v2219 = vmul.f32 %v2214, %v2218
      %2220 = vrot.lane.b32.xlu0 %v1947, 88
      %v2221 = vpop.permute.xlu0 %2220
      %v2223 = vsel %vm907, %v2219, 0
      %v2225 = vsel %vm911, %v2221, 0
      %2227 = vmatprep.subr.mxu0 0.0
      %2228 = vmatpush1.msra.mxu0 %v2225
      %2229 = vmatprep.subr.mxu0 0.0
      %2230 = vmatpush1.msra.mxu0 0.0
      %2231 = vmatprep.subr.mxu0 0.0
      %2232 = vmatpush1.msra.mxu0 0.0
      %2233 = vmatprep.subr.mxu0 0.0
      %2234 = vmatpush1.msra.mxu0 0.0
      %2235 = vmatprep.subr.mxu0 0.0
      %2236 = vmatpush1.msra.mxu0 0.0
      %2237 = vmatprep.subr.mxu0 0.0
      %2238 = vmatpush1.msra.mxu0 0.0
      %2239 = vmatprep.subr.mxu0 0.0
      %2240 = vmatpush1.msra.mxu0 0.0
      %2241 = vmatprep.subr.mxu0 0.0
      %2242 = vmatpush1.msra.mxu0 0.0
      %2243 = vmatprep.subr.mxu0 0.0
      %2244 = vmatpush1.msra.mxu0 0.0
      %2245 = vmatprep.subr.mxu0 0.0
      %2246 = vmatpush1.msra.mxu0 0.0
      %2247 = vmatprep.subr.mxu0 0.0
      %2248 = vmatpush1.msra.mxu0 0.0
      %2249 = vmatprep.subr.mxu0 0.0
      %2250 = vmatpush1.msra.mxu0 0.0
      %2251 = vmatprep.subr.mxu0 0.0
      %2252 = vmatpush1.msra.mxu0 0.0
      %2253 = vmatprep.subr.mxu0 0.0
      %2254 = vmatpush1.msra.mxu0 0.0
      %2255 = vmatprep.subr.mxu0 0.0
      %2256 = vmatpush1.msra.mxu0 0.0
      %2257 = vmatprep.subr.mxu0 0.0
      %2258 = vmatpush1.msra.mxu0 0.0
      %2259 = vmatprep.subr.mxu0 0.0
      %2260 = vmatpush1.msra.mxu0 0.0
      %2261 = vmatprep.subr.mxu0 0.0
      %2262 = vmatpush1.msra.mxu0 0.0
      %2263 = vmatprep.subr.mxu0 0.0
      %2264 = vmatpush1.msra.mxu0 0.0
      %2265 = vmatprep.subr.mxu0 0.0
      %2266 = vmatpush1.msra.mxu0 0.0
      %2267 = vmatprep.subr.mxu0 0.0
      %2268 = vmatpush1.msra.mxu0 0.0
      %2269 = vmatprep.subr.mxu0 0.0
      %2270 = vmatpush1.msra.mxu0 0.0
      %2271 = vmatprep.subr.mxu0 0.0
      %2272 = vmatpush1.msra.mxu0 0.0
      %2273 = vmatprep.subr.mxu0 0.0
      %2274 = vmatpush1.msra.mxu0 0.0
      %2275 = vmatprep.subr.mxu0 0.0
      %2276 = vmatpush1.msra.mxu0 0.0
      %2277 = vmatprep.subr.mxu0 0.0
      %2278 = vmatpush1.msra.mxu0 0.0
      %2279 = vmatprep.subr.mxu0 0.0
      %2280 = vmatpush1.msra.mxu0 0.0
      %2281 = vmatprep.subr.mxu0 0.0
      %2282 = vmatpush1.msra.mxu0 0.0
      %2283 = vmatprep.subr.mxu0 0.0
      %2284 = vmatpush1.msra.mxu0 0.0
      %2285 = vmatprep.subr.mxu0 0.0
      %2286 = vmatpush1.msra.mxu0 0.0
      %2287 = vmatprep.subr.mxu0 0.0
      %2288 = vmatpush1.msra.mxu0 0.0
      %2289 = vmatprep.subr.mxu0 0.0
      %2290 = vmatpush1.msra.mxu0 0.0
      %2291 = vmatprep.mubr.f32.mxu0 0.0
      %2292 = vmatmul.mubr.f32.gmra.mrb[0].mxu0 %v2223
      %v2293 = vpop.f32.mrb[0].mxu0
      %v2294 = vadd.f32 0.0, %v2293
      %v2295 = vpop.f32.mrb[0].mxu0
      %2296 = vdwg.mxu0
      %v2298 = vsel %vm817, %v2294, 0
      %2300 = vmatprep.subr.mxu0 0.0
      %2301 = vmatpush1.msra.mxu0 %v1953
      %2302 = vmatprep.subr.mxu0 0.0
      %2303 = vmatpush1.msra.mxu0 0.0
      %2304 = vmatprep.subr.mxu0 0.0
      %2305 = vmatpush1.msra.mxu0 0.0
      %2306 = vmatprep.subr.mxu0 0.0
      %2307 = vmatpush1.msra.mxu0 0.0
      %2308 = vmatprep.subr.mxu0 0.0
      %2309 = vmatpush1.msra.mxu0 0.0
      %2310 = vmatprep.subr.mxu0 0.0
      %2311 = vmatpush1.msra.mxu0 0.0
      %2312 = vmatprep.subr.mxu0 0.0
      %2313 = vmatpush1.msra.mxu0 0.0
      %2314 = vmatprep.subr.mxu0 0.0
      %2315 = vmatpush1.msra.mxu0 0.0
      %2316 = vmatprep.subr.mxu0 0.0
      %2317 = vmatpush1.msra.mxu0 0.0
      %2318 = vmatprep.subr.mxu0 0.0
      %2319 = vmatpush1.msra.mxu0 0.0
      %2320 = vmatprep.subr.mxu0 0.0
      %2321 = vmatpush1.msra.mxu0 0.0
      %2322 = vmatprep.subr.mxu0 0.0
      %2323 = vmatpush1.msra.mxu0 0.0
      %2324 = vmatprep.subr.mxu0 0.0
      %2325 = vmatpush1.msra.mxu0 0.0
      %2326 = vmatprep.subr.mxu0 0.0
      %2327 = vmatpush1.msra.mxu0 0.0
      %2328 = vmatprep.subr.mxu0 0.0
      %2329 = vmatpush1.msra.mxu0 0.0
      %2330 = vmatprep.subr.mxu0 0.0
      %2331 = vmatpush1.msra.mxu0 0.0
      %2332 = vmatprep.subr.mxu0 0.0
      %2333 = vmatpush1.msra.mxu0 0.0
      %2334 = vmatprep.subr.mxu0 0.0
      %2335 = vmatpush1.msra.mxu0 0.0
      %2336 = vmatprep.subr.mxu0 0.0
      %2337 = vmatpush1.msra.mxu0 0.0
      %2338 = vmatprep.subr.mxu0 0.0
      %2339 = vmatpush1.msra.mxu0 0.0
      %2340 = vmatprep.subr.mxu0 0.0
      %2341 = vmatpush1.msra.mxu0 0.0
      %2342 = vmatprep.subr.mxu0 0.0
      %2343 = vmatpush1.msra.mxu0 0.0
      %2344 = vmatprep.subr.mxu0 0.0
      %2345 = vmatpush1.msra.mxu0 0.0
      %2346 = vmatprep.subr.mxu0 0.0
      %2347 = vmatpush1.msra.mxu0 0.0
      %2348 = vmatprep.subr.mxu0 0.0
      %2349 = vmatpush1.msra.mxu0 0.0
      %2350 = vmatprep.subr.mxu0 0.0
      %2351 = vmatpush1.msra.mxu0 0.0
      %2352 = vmatprep.subr.mxu0 0.0
      %2353 = vmatpush1.msra.mxu0 0.0
      %2354 = vmatprep.subr.mxu0 0.0
      %2355 = vmatpush1.msra.mxu0 0.0
      %2356 = vmatprep.subr.mxu0 0.0
      %2357 = vmatpush1.msra.mxu0 0.0
      %2358 = vmatprep.subr.mxu0 0.0
      %2359 = vmatpush1.msra.mxu0 0.0
      %2360 = vmatprep.subr.mxu0 0.0
      %2361 = vmatpush1.msra.mxu0 0.0
      %2362 = vmatprep.subr.mxu0 0.0
      %2363 = vmatpush1.msra.mxu0 0.0
      %2364 = vmatprep.mubr.f32.mxu0 0.0
      %2365 = vmatmul.mubr.f32.gmra.mrb[0].mxu0 %v2298
      %v2366 = vpop.f32.mrb[0].mxu0
      %v2367 = vadd.f32 0.0, %v2366
      %v2368 = vpop.f32.mrb[0].mxu0
      %2369 = vdwg.mxu0
      %v2371 = vsel %vm817, %v2126, 0
      %2373 = vmatprep.subr.mxu0 0.0
      %2374 = vmatpush1.msra.mxu0 %v1952
      %2375 = vmatprep.subr.mxu0 0.0
      %2376 = vmatpush1.msra.mxu0 0.0
      %2377 = vmatprep.subr.mxu0 0.0
      %2378 = vmatpush1.msra.mxu0 0.0
      %2379 = vmatprep.subr.mxu0 0.0
      %2380 = vmatpush1.msra.mxu0 0.0
      %2381 = vmatprep.subr.mxu0 0.0
      %2382 = vmatpush1.msra.mxu0 0.0
      %2383 = vmatprep.subr.mxu0 0.0
      %2384 = vmatpush1.msra.mxu0 0.0
      %2385 = vmatprep.subr.mxu0 0.0
      %2386 = vmatpush1.msra.mxu0 0.0
      %2387 = vmatprep.subr.mxu0 0.0
      %2388 = vmatpush1.msra.mxu0 0.0
      %2389 = vmatprep.subr.mxu0 0.0
      %2390 = vmatpush1.msra.mxu0 0.0
      %2391 = vmatprep.subr.mxu0 0.0
      %2392 = vmatpush1.msra.mxu0 0.0
      %2393 = vmatprep.subr.mxu0 0.0
      %2394 = vmatpush1.msra.mxu0 0.0
      %2395 = vmatprep.subr.mxu0 0.0
      %2396 = vmatpush1.msra.mxu0 0.0
      %2397 = vmatprep.subr.mxu0 0.0
      %2398 = vmatpush1.msra.mxu0 0.0
      %2399 = vmatprep.subr.mxu0 0.0
      %2400 = vmatpush1.msra.mxu0 0.0
      %2401 = vmatprep.subr.mxu0 0.0
      %2402 = vmatpush1.msra.mxu0 0.0
      %2403 = vmatprep.subr.mxu0 0.0
      %2404 = vmatpush1.msra.mxu0 0.0
      %2405 = vmatprep.subr.mxu0 0.0
      %2406 = vmatpush1.msra.mxu0 0.0
      %2407 = vmatprep.subr.mxu0 0.0
      %2408 = vmatpush1.msra.mxu0 0.0
      %2409 = vmatprep.subr.mxu0 0.0
      %2410 = vmatpush1.msra.mxu0 0.0
      %2411 = vmatprep.subr.mxu0 0.0
      %2412 = vmatpush1.msra.mxu0 0.0
      %2413 = vmatprep.subr.mxu0 0.0
      %2414 = vmatpush1.msra.mxu0 0.0
      %2415 = vmatprep.subr.mxu0 0.0
      %2416 = vmatpush1.msra.mxu0 0.0
      %2417 = vmatprep.subr.mxu0 0.0
      %2418 = vmatpush1.msra.mxu0 0.0
      %2419 = vmatprep.subr.mxu0 0.0
      %2420 = vmatpush1.msra.mxu0 0.0
      %2421 = vmatprep.subr.mxu0 0.0
      %2422 = vmatpush1.msra.mxu0 0.0
      %2423 = vmatprep.subr.mxu0 0.0
      %2424 = vmatpush1.msra.mxu0 0.0
      %2425 = vmatprep.subr.mxu0 0.0
      %2426 = vmatpush1.msra.mxu0 0.0
      %2427 = vmatprep.subr.mxu0 0.0
      %2428 = vmatpush1.msra.mxu0 0.0
      %2429 = vmatprep.subr.mxu0 0.0
      %2430 = vmatpush1.msra.mxu0 0.0
      %2431 = vmatprep.subr.mxu0 0.0
      %2432 = vmatpush1.msra.mxu0 0.0
      %2433 = vmatprep.subr.mxu0 0.0
      %2434 = vmatpush1.msra.mxu0 0.0
      %2435 = vmatprep.subr.mxu0 0.0
      %2436 = vmatpush1.msra.mxu0 0.0
      %2437 = vmatprep.mubr.f32.mxu0 0.0
      %2438 = vmatmul.mubr.f32.gmra.mrb[0].mxu0 %v2371
      %v2439 = vpop.f32.mrb[0].mxu0
      %v2440 = vadd.f32 %v2367, %v2439
      %v2441 = vpop.f32.mrb[0].mxu0
      %2442 = vdwg.mxu0
      %2443 = vrot.lane.b32.xlu0 %v1880, 112
      %v2444 = vpop.permute.xlu0 %2443
      %2445 = vrot.lane.b32.xlu0 %v1947, 112
      %v2446 = vpop.permute.xlu0 %2445
      %v2447 = vsel %vm817, %v2444, 0
      %v2449 = vsel %vm817, %v2446, 0
      %2451 = vmatprep.subr.mxu0 0.0
      %2452 = vmatpush1.xpose.msra.mxu0 %v2449
      %2453 = vmatprep.subr.mxu0 0.0
      %2454 = vmatpush1.xpose.msra.mxu0 0.0
      %2455 = vmatprep.subr.mxu0 0.0
      %2456 = vmatpush1.xpose.msra.mxu0 0.0
      %2457 = vmatprep.subr.mxu0 0.0
      %2458 = vmatpush1.xpose.msra.mxu0 0.0
      %2459 = vmatprep.subr.mxu0 0.0
      %2460 = vmatpush1.xpose.msra.mxu0 0.0
      %2461 = vmatprep.subr.mxu0 0.0
      %2462 = vmatpush1.xpose.msra.mxu0 0.0
      %2463 = vmatprep.subr.mxu0 0.0
      %2464 = vmatpush1.xpose.msra.mxu0 0.0
      %2465 = vmatprep.subr.mxu0 0.0
      %2466 = vmatpush1.xpose.msra.mxu0 0.0
      %2467 = vmatprep.subr.mxu0 0.0
      %2468 = vmatpush1.xpose.msra.mxu0 0.0
      %2469 = vmatprep.subr.mxu0 0.0
      %2470 = vmatpush1.xpose.msra.mxu0 0.0
      %2471 = vmatprep.subr.mxu0 0.0
      %2472 = vmatpush1.xpose.msra.mxu0 0.0
      %2473 = vmatprep.subr.mxu0 0.0
      %2474 = vmatpush1.xpose.msra.mxu0 0.0
      %2475 = vmatprep.subr.mxu0 0.0
      %2476 = vmatpush1.xpose.msra.mxu0 0.0
      %2477 = vmatprep.subr.mxu0 0.0
      %2478 = vmatpush1.xpose.msra.mxu0 0.0
      %2479 = vmatprep.subr.mxu0 0.0
      %2480 = vmatpush1.xpose.msra.mxu0 0.0
      %2481 = vmatprep.subr.mxu0 0.0
      %2482 = vmatpush1.xpose.msra.mxu0 0.0
      %2483 = vmatprep.subr.mxu0 0.0
      %2484 = vmatpush1.xpose.msra.mxu0 0.0
      %2485 = vmatprep.subr.mxu0 0.0
      %2486 = vmatpush1.xpose.msra.mxu0 0.0
      %2487 = vmatprep.subr.mxu0 0.0
      %2488 = vmatpush1.xpose.msra.mxu0 0.0
      %2489 = vmatprep.subr.mxu0 0.0
      %2490 = vmatpush1.xpose.msra.mxu0 0.0
      %2491 = vmatprep.subr.mxu0 0.0
      %2492 = vmatpush1.xpose.msra.mxu0 0.0
      %2493 = vmatprep.subr.mxu0 0.0
      %2494 = vmatpush1.xpose.msra.mxu0 0.0
      %2495 = vmatprep.subr.mxu0 0.0
      %2496 = vmatpush1.xpose.msra.mxu0 0.0
      %2497 = vmatprep.subr.mxu0 0.0
      %2498 = vmatpush1.xpose.msra.mxu0 0.0
      %2499 = vmatprep.subr.mxu0 0.0
      %2500 = vmatpush1.xpose.msra.mxu0 0.0
      %2501 = vmatprep.subr.mxu0 0.0
      %2502 = vmatpush1.xpose.msra.mxu0 0.0
      %2503 = vmatprep.subr.mxu0 0.0
      %2504 = vmatpush1.xpose.msra.mxu0 0.0
      %2505 = vmatprep.subr.mxu0 0.0
      %2506 = vmatpush1.xpose.msra.mxu0 0.0
      %2507 = vmatprep.subr.mxu0 0.0
      %2508 = vmatpush1.xpose.msra.mxu0 0.0
      %2509 = vmatprep.subr.mxu0 0.0
      %2510 = vmatpush1.xpose.msra.mxu0 0.0
      %2511 = vmatprep.subr.mxu0 0.0
      %2512 = vmatpush1.xpose.msra.mxu0 0.0
      %2513 = vmatprep.subr.mxu0 0.0
      %2514 = vmatpush1.xpose.msra.mxu0 0.0
      %2515 = vmatprep.mubr.f32.mxu0 0.0
      %2516 = vmatmul.mubr.f32.gmra.mrb[0].mxu0 %v2447
      %v2517 = vpop.f32.mrb[0].mxu0
      %v2518 = vadd.f32 0.0, %v2517
      %v2519 = vpop.f32.mrb[0].mxu0
      %2520 = vdwg.mxu0
      %v2521 = vmul.f32 %v2518, 0.35355338
      %v2522 = vadd.f32 %v2521, %v2038
      %v2523 = vsel %vm893, %v2522, -inf
      %2524 = vmax.xlane.f32.xlu0 %v2523
      %v2525 = vpop.xlane.xlu0 %2524
      %v2526 = vsub.f32 %v2522, %v2525
      %v2527 = vmul.f32 %v2526, 1.442695
      %v2528 = vpow.pop %v2527
      %v2529 = vsel %vm893, %v2528, 0.0
      %2530 = vadd.xlane.f32.xlu0 %v2529
      %v2531 = vpop.xlane.xlu0 %2530
      %v2532 = vrcp.pop %v2531
      %v2533 = vmul.f32 %v2528, %v2532
      %2534 = vrot.lane.b32.xlu0 %v1947, 80
      %v2535 = vpop.permute.xlu0 %2534
      %v2537 = vsel %vm907, %v2533, 0
      %v2539 = vsel %vm911, %v2535, 0
      %2541 = vmatprep.subr.mxu0 0.0
      %2542 = vmatpush1.msra.mxu0 %v2539
      %2543 = vmatprep.subr.mxu0 0.0
      %2544 = vmatpush1.msra.mxu0 0.0
      %2545 = vmatprep.subr.mxu0 0.0
      %2546 = vmatpush1.msra.mxu0 0.0
      %2547 = vmatprep.subr.mxu0 0.0
      %2548 = vmatpush1.msra.mxu0 0.0
      %2549 = vmatprep.subr.mxu0 0.0
      %2550 = vmatpush1.msra.mxu0 0.0
      %2551 = vmatprep.subr.mxu0 0.0
      %2552 = vmatpush1.msra.mxu0 0.0
      %2553 = vmatprep.subr.mxu0 0.0
      %2554 = vmatpush1.msra.mxu0 0.0
      %2555 = vmatprep.subr.mxu0 0.0
      %2556 = vmatpush1.msra.mxu0 0.0
      %2557 = vmatprep.subr.mxu0 0.0
      %2558 = vmatpush1.msra.mxu0 0.0
      %2559 = vmatprep.subr.mxu0 0.0
      %2560 = vmatpush1.msra.mxu0 0.0
      %2561 = vmatprep.subr.mxu0 0.0
      %2562 = vmatpush1.msra.mxu0 0.0
      %2563 = vmatprep.subr.mxu0 0.0
      %2564 = vmatpush1.msra.mxu0 0.0
      %2565 = vmatprep.subr.mxu0 0.0
      %2566 = vmatpush1.msra.mxu0 0.0
      %2567 = vmatprep.subr.mxu0 0.0
      %2568 = vmatpush1.msra.mxu0 0.0
      %2569 = vmatprep.subr.mxu0 0.0
      %2570 = vmatpush1.msra.mxu0 0.0
      %2571 = vmatprep.subr.mxu0 0.0
      %2572 = vmatpush1.msra.mxu0 0.0
      %2573 = vmatprep.subr.mxu0 0.0
      %2574 = vmatpush1.msra.mxu0 0.0
      %2575 = vmatprep.subr.mxu0 0.0
      %2576 = vmatpush1.msra.mxu0 0.0
      %2577 = vmatprep.subr.mxu0 0.0
      %2578 = vmatpush1.msra.mxu0 0.0
      %2579 = vmatprep.subr.mxu0 0.0
      %2580 = vmatpush1.msra.mxu0 0.0
      %2581 = vmatprep.subr.mxu0 0.0
      %2582 = vmatpush1.msra.mxu0 0.0
      %2583 = vmatprep.subr.mxu0 0.0
      %2584 = vmatpush1.msra.mxu0 0.0
      %2585 = vmatprep.subr.mxu0 0.0
      %2586 = vmatpush1.msra.mxu0 0.0
      %2587 = vmatprep.subr.mxu0 0.0
      %2588 = vmatpush1.msra.mxu0 0.0
      %2589 = vmatprep.subr.mxu0 0.0
      %2590 = vmatpush1.msra.mxu0 0.0
      %2591 = vmatprep.subr.mxu0 0.0
      %2592 = vmatpush1.msra.mxu0 0.0
      %2593 = vmatprep.subr.mxu0 0.0
      %2594 = vmatpush1.msra.mxu0 0.0
      %2595 = vmatprep.subr.mxu0 0.0
      %2596 = vmatpush1.msra.mxu0 0.0
      %2597 = vmatprep.subr.mxu0 0.0
      %2598 = vmatpush1.msra.mxu0 0.0
      %2599 = vmatprep.subr.mxu0 0.0
      %2600 = vmatpush1.msra.mxu0 0.0
      %2601 = vmatprep.subr.mxu0 0.0
      %2602 = vmatpush1.msra.mxu0 0.0
      %2603 = vmatprep.subr.mxu0 0.0
      %2604 = vmatpush1.msra.mxu0 0.0
      %2605 = vmatprep.mubr.f32.mxu0 0.0
      %2606 = vmatmul.mubr.f32.gmra.mrb[0].mxu0 %v2537
      %v2607 = vpop.f32.mrb[0].mxu0
      %v2608 = vadd.f32 0.0, %v2607
      %v2609 = vpop.f32.mrb[0].mxu0
      %2610 = vdwg.mxu0
      %v2612 = vsel %vm817, %v2608, 0
      %2614 = vmatprep.subr.mxu0 0.0
      %2615 = vmatpush1.msra.mxu0 %v1954
      %2616 = vmatprep.subr.mxu0 0.0
      %2617 = vmatpush1.msra.mxu0 0.0
      %2618 = vmatprep.subr.mxu0 0.0
      %2619 = vmatpush1.msra.mxu0 0.0
      %2620 = vmatprep.subr.mxu0 0.0
      %2621 = vmatpush1.msra.mxu0 0.0
      %2622 = vmatprep.subr.mxu0 0.0
      %2623 = vmatpush1.msra.mxu0 0.0
      %2624 = vmatprep.subr.mxu0 0.0
      %2625 = vmatpush1.msra.mxu0 0.0
      %2626 = vmatprep.subr.mxu0 0.0
      %2627 = vmatpush1.msra.mxu0 0.0
      %2628 = vmatprep.subr.mxu0 0.0
      %2629 = vmatpush1.msra.mxu0 0.0
      %2630 = vmatprep.subr.mxu0 0.0
      %2631 = vmatpush1.msra.mxu0 0.0
      %2632 = vmatprep.subr.mxu0 0.0
      %2633 = vmatpush1.msra.mxu0 0.0
      %2634 = vmatprep.subr.mxu0 0.0
      %2635 = vmatpush1.msra.mxu0 0.0
      %2636 = vmatprep.subr.mxu0 0.0
      %2637 = vmatpush1.msra.mxu0 0.0
      %2638 = vmatprep.subr.mxu0 0.0
      %2639 = vmatpush1.msra.mxu0 0.0
      %2640 = vmatprep.subr.mxu0 0.0
      %2641 = vmatpush1.msra.mxu0 0.0
      %2642 = vmatprep.subr.mxu0 0.0
      %2643 = vmatpush1.msra.mxu0 0.0
      %2644 = vmatprep.subr.mxu0 0.0
      %2645 = vmatpush1.msra.mxu0 0.0
      %2646 = vmatprep.subr.mxu0 0.0
      %2647 = vmatpush1.msra.mxu0 0.0
      %2648 = vmatprep.subr.mxu0 0.0
      %2649 = vmatpush1.msra.mxu0 0.0
      %2650 = vmatprep.subr.mxu0 0.0
      %2651 = vmatpush1.msra.mxu0 0.0
      %2652 = vmatprep.subr.mxu0 0.0
      %2653 = vmatpush1.msra.mxu0 0.0
      %2654 = vmatprep.subr.mxu0 0.0
      %2655 = vmatpush1.msra.mxu0 0.0
      %2656 = vmatprep.subr.mxu0 0.0
      %2657 = vmatpush1.msra.mxu0 0.0
      %2658 = vmatprep.subr.mxu0 0.0
      %2659 = vmatpush1.msra.mxu0 0.0
      %2660 = vmatprep.subr.mxu0 0.0
      %2661 = vmatpush1.msra.mxu0 0.0
      %2662 = vmatprep.subr.mxu0 0.0
      %2663 = vmatpush1.msra.mxu0 0.0
      %2664 = vmatprep.subr.mxu0 0.0
      %2665 = vmatpush1.msra.mxu0 0.0
      %2666 = vmatprep.subr.mxu0 0.0
      %2667 = vmatpush1.msra.mxu0 0.0
      %2668 = vmatprep.subr.mxu0 0.0
      %2669 = vmatpush1.msra.mxu0 0.0
      %2670 = vmatprep.subr.mxu0 0.0
      %2671 = vmatpush1.msra.mxu0 0.0
      %2672 = vmatprep.subr.mxu0 0.0
      %2673 = vmatpush1.msra.mxu0 0.0
      %2674 = vmatprep.subr.mxu0 0.0
      %2675 = vmatpush1.msra.mxu0 0.0
      %2676 = vmatprep.subr.mxu0 0.0
      %2677 = vmatpush1.msra.mxu0 0.0
      %2678 = vmatprep.mubr.f32.mxu0 0.0
      %2679 = vmatmul.mubr.f32.gmra.mrb[0].mxu0 %v2612
      %v2680 = vpop.f32.mrb[0].mxu0
      %v2681 = vadd.f32 0.0, %v2680
      %v2682 = vpop.f32.mrb[0].mxu0
      %2683 = vdwg.mxu0
      %v2684 = vadd.f32 %v2440, %v2681
      %2685 = vrot.lane.b32.xlu0 %v1880, 104
      %v2686 = vpop.permute.xlu0 %2685
      %2687 = vrot.lane.b32.xlu0 %v1947, 104
      %v2688 = vpop.permute.xlu0 %2687
      %v2689 = vsel %vm817, %v2686, 0
      %v2691 = vsel %vm817, %v2688, 0
      %2693 = vmatprep.subr.mxu0 0.0
      %2694 = vmatpush1.xpose.msra.mxu0 %v2691
      %2695 = vmatprep.subr.mxu0 0.0
      %2696 = vmatpush1.xpose.msra.mxu0 0.0
      %2697 = vmatprep.subr.mxu0 0.0
      %2698 = vmatpush1.xpose.msra.mxu0 0.0
      %2699 = vmatprep.subr.mxu0 0.0
      %2700 = vmatpush1.xpose.msra.mxu0 0.0
      %2701 = vmatprep.subr.mxu0 0.0
      %2702 = vmatpush1.xpose.msra.mxu0 0.0
      %2703 = vmatprep.subr.mxu0 0.0
      %2704 = vmatpush1.xpose.msra.mxu0 0.0
      %2705 = vmatprep.subr.mxu0 0.0
      %2706 = vmatpush1.xpose.msra.mxu0 0.0
      %2707 = vmatprep.subr.mxu0 0.0
      %2708 = vmatpush1.xpose.msra.mxu0 0.0
      %2709 = vmatprep.subr.mxu0 0.0
      %2710 = vmatpush1.xpose.msra.mxu0 0.0
      %2711 = vmatprep.subr.mxu0 0.0
      %2712 = vmatpush1.xpose.msra.mxu0 0.0
      %2713 = vmatprep.subr.mxu0 0.0
      %2714 = vmatpush1.xpose.msra.mxu0 0.0
      %2715 = vmatprep.subr.mxu0 0.0
      %2716 = vmatpush1.xpose.msra.mxu0 0.0
      %2717 = vmatprep.subr.mxu0 0.0
      %2718 = vmatpush1.xpose.msra.mxu0 0.0
      %2719 = vmatprep.subr.mxu0 0.0
      %2720 = vmatpush1.xpose.msra.mxu0 0.0
      %2721 = vmatprep.subr.mxu0 0.0
      %2722 = vmatpush1.xpose.msra.mxu0 0.0
      %2723 = vmatprep.subr.mxu0 0.0
      %2724 = vmatpush1.xpose.msra.mxu0 0.0
      %2725 = vmatprep.subr.mxu0 0.0
      %2726 = vmatpush1.xpose.msra.mxu0 0.0
      %2727 = vmatprep.subr.mxu0 0.0
      %2728 = vmatpush1.xpose.msra.mxu0 0.0
      %2729 = vmatprep.subr.mxu0 0.0
      %2730 = vmatpush1.xpose.msra.mxu0 0.0
      %2731 = vmatprep.subr.mxu0 0.0
      %2732 = vmatpush1.xpose.msra.mxu0 0.0
      %2733 = vmatprep.subr.mxu0 0.0
      %2734 = vmatpush1.xpose.msra.mxu0 0.0
      %2735 = vmatprep.subr.mxu0 0.0
      %2736 = vmatpush1.xpose.msra.mxu0 0.0
      %2737 = vmatprep.subr.mxu0 0.0
      %2738 = vmatpush1.xpose.msra.mxu0 0.0
      %2739 = vmatprep.subr.mxu0 0.0
      %2740 = vmatpush1.xpose.msra.mxu0 0.0
      %2741 = vmatprep.subr.mxu0 0.0
      %2742 = vmatpush1.xpose.msra.mxu0 0.0
      %2743 = vmatprep.subr.mxu0 0.0
      %2744 = vmatpush1.xpose.msra.mxu0 0.0
      %2745 = vmatprep.subr.mxu0 0.0
      %2746 = vmatpush1.xpose.msra.mxu0 0.0
      %2747 = vmatprep.subr.mxu0 0.0
      %2748 = vmatpush1.xpose.msra.mxu0 0.0
      %2749 = vmatprep.subr.mxu0 0.0
      %2750 = vmatpush1.xpose.msra.mxu0 0.0
      %2751 = vmatprep.subr.mxu0 0.0
      %2752 = vmatpush1.xpose.msra.mxu0 0.0
      %2753 = vmatprep.subr.mxu0 0.0
      %2754 = vmatpush1.xpose.msra.mxu0 0.0
      %2755 = vmatprep.subr.mxu0 0.0
      %2756 = vmatpush1.xpose.msra.mxu0 0.0
      %2757 = vmatprep.mubr.f32.mxu0 0.0
      %2758 = vmatmul.mubr.f32.gmra.mrb[0].mxu0 %v2689
      %v2759 = vpop.f32.mrb[0].mxu0
      %v2760 = vadd.f32 0.0, %v2759
      %v2761 = vpop.f32.mrb[0].mxu0
      %2762 = vdwg.mxu0
      %v2763 = vmul.f32 %v2760, 0.35355338
      %v2764 = vadd.f32 %v2763, %v2038
      %v2765 = vsel %vm893, %v2764, -inf
      %2766 = vmax.xlane.f32.xlu0 %v2765
      %v2767 = vpop.xlane.xlu0 %2766
      %v2768 = vsub.f32 %v2764, %v2767
      %v2769 = vmul.f32 %v2768, 1.442695
      %v2770 = vpow.pop %v2769
      %v2771 = vsel %vm893, %v2770, 0.0
      %2772 = vadd.xlane.f32.xlu0 %v2771
      %v2773 = vpop.xlane.xlu0 %2772
      %v2774 = vrcp.pop %v2773
      %v2775 = vmul.f32 %v2770, %v2774
      %2776 = vrot.lane.b32.xlu0 %v1947, 72
      %v2777 = vpop.permute.xlu0 %2776
      %v2779 = vsel %vm907, %v2775, 0
      %v2781 = vsel %vm911, %v2777, 0
      %2783 = vmatprep.subr.mxu0 0.0
      %2784 = vmatpush1.msra.mxu0 %v2781
      %2785 = vmatprep.subr.mxu0 0.0
      %2786 = vmatpush1.msra.mxu0 0.0
      %2787 = vmatprep.subr.mxu0 0.0
      %2788 = vmatpush1.msra.mxu0 0.0
      %2789 = vmatprep.subr.mxu0 0.0
      %2790 = vmatpush1.msra.mxu0 0.0
      %2791 = vmatprep.subr.mxu0 0.0
      %2792 = vmatpush1.msra.mxu0 0.0
      %2793 = vmatprep.subr.mxu0 0.0
      %2794 = vmatpush1.msra.mxu0 0.0
      %2795 = vmatprep.subr.mxu0 0.0
      %2796 = vmatpush1.msra.mxu0 0.0
      %2797 = vmatprep.subr.mxu0 0.0
      %2798 = vmatpush1.msra.mxu0 0.0
      %2799 = vmatprep.subr.mxu0 0.0
      %2800 = vmatpush1.msra.mxu0 0.0
      %2801 = vmatprep.subr.mxu0 0.0
      %2802 = vmatpush1.msra.mxu0 0.0
      %2803 = vmatprep.subr.mxu0 0.0
      %2804 = vmatpush1.msra.mxu0 0.0
      %2805 = vmatprep.subr.mxu0 0.0
      %2806 = vmatpush1.msra.mxu0 0.0
      %2807 = vmatprep.subr.mxu0 0.0
      %2808 = vmatpush1.msra.mxu0 0.0
      %2809 = vmatprep.subr.mxu0 0.0
      %2810 = vmatpush1.msra.mxu0 0.0
      %2811 = vmatprep.subr.mxu0 0.0
      %2812 = vmatpush1.msra.mxu0 0.0
      %2813 = vmatprep.subr.mxu0 0.0
      %2814 = vmatpush1.msra.mxu0 0.0
      %2815 = vmatprep.subr.mxu0 0.0
      %2816 = vmatpush1.msra.mxu0 0.0
      %2817 = vmatprep.subr.mxu0 0.0
      %2818 = vmatpush1.msra.mxu0 0.0
      %2819 = vmatprep.subr.mxu0 0.0
      %2820 = vmatpush1.msra.mxu0 0.0
      %2821 = vmatprep.subr.mxu0 0.0
      %2822 = vmatpush1.msra.mxu0 0.0
      %2823 = vmatprep.subr.mxu0 0.0
      %2824 = vmatpush1.msra.mxu0 0.0
      %2825 = vmatprep.subr.mxu0 0.0
      %2826 = vmatpush1.msra.mxu0 0.0
      %2827 = vmatprep.subr.mxu0 0.0
      %2828 = vmatpush1.msra.mxu0 0.0
      %2829 = vmatprep.subr.mxu0 0.0
      %2830 = vmatpush1.msra.mxu0 0.0
      %2831 = vmatprep.subr.mxu0 0.0
      %2832 = vmatpush1.msra.mxu0 0.0
      %2833 = vmatprep.subr.mxu0 0.0
      %2834 = vmatpush1.msra.mxu0 0.0
      %2835 = vmatprep.subr.mxu0 0.0
      %2836 = vmatpush1.msra.mxu0 0.0
      %2837 = vmatprep.subr.mxu0 0.0
      %2838 = vmatpush1.msra.mxu0 0.0
      %2839 = vmatprep.subr.mxu0 0.0
      %2840 = vmatpush1.msra.mxu0 0.0
      %2841 = vmatprep.subr.mxu0 0.0
      %2842 = vmatpush1.msra.mxu0 0.0
      %2843 = vmatprep.subr.mxu0 0.0
      %2844 = vmatpush1.msra.mxu0 0.0
      %2845 = vmatprep.subr.mxu0 0.0
      %2846 = vmatpush1.msra.mxu0 0.0
      %2847 = vmatprep.mubr.f32.mxu0 0.0
      %2848 = vmatmul.mubr.f32.gmra.mrb[0].mxu0 %v2779
      %v2849 = vpop.f32.mrb[0].mxu0
      %v2850 = vadd.f32 0.0, %v2849
      %v2851 = vpop.f32.mrb[0].mxu0
      %2852 = vdwg.mxu0
      %v2854 = vsel %vm817, %v2850, 0
      %2856 = vmatprep.subr.mxu0 0.0
      %2857 = vmatpush1.msra.mxu0 %v1955
      %2858 = vmatprep.subr.mxu0 0.0
      %2859 = vmatpush1.msra.mxu0 0.0
      %2860 = vmatprep.subr.mxu0 0.0
      %2861 = vmatpush1.msra.mxu0 0.0
      %2862 = vmatprep.subr.mxu0 0.0
      %2863 = vmatpush1.msra.mxu0 0.0
      %2864 = vmatprep.subr.mxu0 0.0
      %2865 = vmatpush1.msra.mxu0 0.0
      %2866 = vmatprep.subr.mxu0 0.0
      %2867 = vmatpush1.msra.mxu0 0.0
      %2868 = vmatprep.subr.mxu0 0.0
      %2869 = vmatpush1.msra.mxu0 0.0
      %2870 = vmatprep.subr.mxu0 0.0
      %2871 = vmatpush1.msra.mxu0 0.0
      %2872 = vmatprep.subr.mxu0 0.0
      %2873 = vmatpush1.msra.mxu0 0.0
      %2874 = vmatprep.subr.mxu0 0.0
      %2875 = vmatpush1.msra.mxu0 0.0
      %2876 = vmatprep.subr.mxu0 0.0
      %2877 = vmatpush1.msra.mxu0 0.0
      %2878 = vmatprep.subr.mxu0 0.0
      %2879 = vmatpush1.msra.mxu0 0.0
      %2880 = vmatprep.subr.mxu0 0.0
      %2881 = vmatpush1.msra.mxu0 0.0
      %2882 = vmatprep.subr.mxu0 0.0
      %2883 = vmatpush1.msra.mxu0 0.0
      %2884 = vmatprep.subr.mxu0 0.0
      %2885 = vmatpush1.msra.mxu0 0.0
      %2886 = vmatprep.subr.mxu0 0.0
      %2887 = vmatpush1.msra.mxu0 0.0
      %2888 = vmatprep.subr.mxu0 0.0
      %2889 = vmatpush1.msra.mxu0 0.0
      %2890 = vmatprep.subr.mxu0 0.0
      %2891 = vmatpush1.msra.mxu0 0.0
      %2892 = vmatprep.subr.mxu0 0.0
      %2893 = vmatpush1.msra.mxu0 0.0
      %2894 = vmatprep.subr.mxu0 0.0
      %2895 = vmatpush1.msra.mxu0 0.0
      %2896 = vmatprep.subr.mxu0 0.0
      %2897 = vmatpush1.msra.mxu0 0.0
      %2898 = vmatprep.subr.mxu0 0.0
      %2899 = vmatpush1.msra.mxu0 0.0
      %2900 = vmatprep.subr.mxu0 0.0
      %2901 = vmatpush1.msra.mxu0 0.0
      %2902 = vmatprep.subr.mxu0 0.0
      %2903 = vmatpush1.msra.mxu0 0.0
      %2904 = vmatprep.subr.mxu0 0.0
      %2905 = vmatpush1.msra.mxu0 0.0
      %2906 = vmatprep.subr.mxu0 0.0
      %2907 = vmatpush1.msra.mxu0 0.0
      %2908 = vmatprep.subr.mxu0 0.0
      %2909 = vmatpush1.msra.mxu0 0.0
      %2910 = vmatprep.subr.mxu0 0.0
      %2911 = vmatpush1.msra.mxu0 0.0
      %2912 = vmatprep.subr.mxu0 0.0
      %2913 = vmatpush1.msra.mxu0 0.0
      %2914 = vmatprep.subr.mxu0 0.0
      %2915 = vmatpush1.msra.mxu0 0.0
      %2916 = vmatprep.subr.mxu0 0.0
      %2917 = vmatpush1.msra.mxu0 0.0
      %2918 = vmatprep.subr.mxu0 0.0
      %2919 = vmatpush1.msra.mxu0 0.0
      %2920 = vmatprep.mubr.f32.mxu0 0.0
      %2921 = vmatmul.mubr.f32.gmra.mrb[0].mxu0 %v2854
      %v2922 = vpop.f32.mrb[0].mxu0
      %v2923 = vadd.f32 0.0, %v2922
      %v2924 = vpop.f32.mrb[0].mxu0
      %2925 = vdwg.mxu0
      %v2926 = vadd.f32 %v2684, %v2923
      %v2928 = vlaneseq
      %v2929 = vshrl.u32 %v2928, 7
      %v2930 = vsub.s32 0, %v2929
      %v2931 = vrot.slane %v1956, %v2930
      %v2933 = vadd.f32 %v2926, %v2931
      %v2934 = vadd.f32 %v1817, %v2933
      %v2935 = vld [vmem:[%s15] sm:$0x1]
      %v2936 = vld [vmem:[%s16] sm:$0x1]
      %v2937 = vsel %vm1789, %v2934, 0.0
      %2938 = vadd.xlane.f32.xlu0 %v2937
      %v2939 = vpop.xlane.xlu0 %2938
      %v2940 = vmul.f32 %v2939, %v1793
      %v2941 = vsub.f32 %v2934, %v2940
      %v2942 = vmul.f32 %v2941, %v2941
      %v2943 = vsel %vm1789, %v2942, 0.0
      %2944 = vadd.xlane.f32.xlu0 %v2943
      %v2945 = vpop.xlane.xlu0 %2944
      %v2946 = vmul.f32 %v2945, %v1793
      %v2947 = vadd.f32 %v2946, 1e-05
      %v2948 = vrsqrt.pop %v2947
      %v2949 = vmul.f32 %v2941, %v2948
      %v2951 = vlaneseq
      %v2952 = vshrl.u32 %v2951, 7
      %v2953 = vsub.s32 0, %v2952
      %v2954 = vrot.slane %v2935, %v2953
      %v2956 = vmul.f32 %v2949, %v2954
      %v2958 = vlaneseq
      %v2959 = vshrl.u32 %v2958, 7
      %v2960 = vsub.s32 0, %v2959
      %v2961 = vrot.slane %v2936, %v2960
      %v2963 = vadd.f32 %v2956, %v2961
      %v2964 = vld [vmem:[%s17] sm:$0xf]
      %v2965 = vld [vmem:[%s17 + $0x4] sm:$0xf]
      %v2966 = vld [vmem:[%s17 + $0x8] sm:$0xf]
      %v2967 = vld [vmem:[%s17 + $0xc] sm:$0xf]
      %v2968 = vld [vmem:[%s18] sm:$0x1]
      %v2969 = vld [vmem:[%s19] sm:$0xf]
      %v2970 = vld [vmem:[%s19 + $0x4] sm:$0xf]
      %v2971 = vld [vmem:[%s19 + $0x8] sm:$0xf]
      %v2972 = vld [vmem:[%s19 + $0xc] sm:$0xf]
      %v2973 = vld [vmem:[%s19 + $0x10] sm:$0xf]
      %v2974 = vld [vmem:[%s19 + $0x14] sm:$0xf]
      %v2975 = vld [vmem:[%s19 + $0x18] sm:$0xf]
      %v2976 = vld [vmem:[%s19 + $0x1c] sm:$0xf]
      %v2977 = vld [vmem:[%s19 + $0x20] sm:$0xf]
      %v2978 = vld [vmem:[%s19 + $0x24] sm:$0xf]
      %v2979 = vld [vmem:[%s19 + $0x28] sm:$0xf]
      %v2980 = vld [vmem:[%s19 + $0x2c] sm:$0xf]
      %v2981 = vld [vmem:[%s19 + $0x30] sm:$0xf]
      %v2982 = vld [vmem:[%s19 + $0x34] sm:$0xf]
      %v2983 = vld [vmem:[%s19 + $0x38] sm:$0xf]
      %v2984 = vld [vmem:[%s19 + $0x3c] sm:$0xf]
      %v2985 = vld [vmem:[%s20] sm:$0x1]
      %v2986 = vpack.c.bf16 %v2963, %v2963
      %v2988 = vlaneseq
      %v2989 = vshrl.u32 %v2988, 7
      %v2990 = vsub.s32 0, %v2989
      %v2991 = vrot.slane %v2968, %v2990
      %v2997 = vunpack.c.l.b16 %v2964
      %v2998 = vunpack.c.l.b16 %v2965
      %v2999 = vunpack.c.l.b16 %v2966
      %v3000 = vunpack.c.l.b16 %v2967
      %v3001 = vpack.c.b16 %v2998, %v2997
      %v3002 = vpack.c.b16 %v3000, %v2999
      %v3006 = vsel %vm765, %v2986, 0
      %3008 = vmatprep.subr.bf16.mxu0 0
      %3009 = vmatpush1.bf16.msra.mxu0 %v3001
      %3010 = vmatprep.subr.bf16.mxu0 0
      %3011 = vmatpush1.bf16.msra.mxu0 %v3002
      %3012 = vmatprep.subr.bf16.mxu0 0
      %3013 = vmatpush1.bf16.msra.mxu0 0
      %3014 = vmatprep.subr.bf16.mxu0 0
      %3015 = vmatpush1.bf16.msra.mxu0 0
      %3016 = vmatprep.subr.bf16.mxu0 0
      %3017 = vmatpush1.bf16.msra.mxu0 0
      %3018 = vmatprep.subr.bf16.mxu0 0
      %3019 = vmatpush1.bf16.msra.mxu0 0
      %3020 = vmatprep.subr.bf16.mxu0 0
      %3021 = vmatpush1.bf16.msra.mxu0 0
      %3022 = vmatprep.subr.bf16.mxu0 0
      %3023 = vmatpush1.bf16.msra.mxu0 0
      %3024 = vmatprep.subr.bf16.mxu0 0
      %3025 = vmatpush1.bf16.msra.mxu0 0
      %3026 = vmatprep.subr.bf16.mxu0 0
      %3027 = vmatpush1.bf16.msra.mxu0 0
      %3028 = vmatprep.subr.bf16.mxu0 0
      %3029 = vmatpush1.bf16.msra.mxu0 0
      %3030 = vmatprep.subr.bf16.mxu0 0
      %3031 = vmatpush1.bf16.msra.mxu0 0
      %3032 = vmatprep.subr.bf16.mxu0 0
      %3033 = vmatpush1.bf16.msra.mxu0 0
      %3034 = vmatprep.subr.bf16.mxu0 0
      %3035 = vmatpush1.bf16.msra.mxu0 0
      %3036 = vmatprep.subr.bf16.mxu0 0
      %3037 = vmatpush1.bf16.msra.mxu0 0
      %3038 = vmatprep.subr.bf16.mxu0 0
      %3039 = vmatpush1.bf16.msra.mxu0 0
      %3040 = vmatprep.mubr.bf16.mxu0 0
      %3041 = vmatmul.mubr.bf16.gmra.mrb[0].mxu0 %v3006
      %v3042 = vpop.f32.mrb[0].mxu0
      %v3043 = vadd.f32 %v2991, %v3042
      %v3044 = vpop.f32.mrb[0].mxu0
      %v3045 = vpop.f32.mrb[0].mxu0
      %v3046 = vpop.f32.mrb[0].mxu0
      %3047 = vdwg.mxu0
      %v3048 = vmax.f32 %v3043, 0.0
      %v3049 = vpack.c.bf16 %v3048, %v3048
      %v3051 = vlaneseq
      %v3052 = vshrl.u32 %v3051, 7
      %v3053 = vsub.s32 0, %v3052
      %v3054 = vrot.slane %v2985, %v3053
      %v3072 = vunpack.c.l.b16 %v2969
      %v3073 = vunpack.c.l.b16 %v2970
      %v3074 = vunpack.c.l.b16 %v2971
      %v3075 = vunpack.c.l.b16 %v2972
      %v3076 = vunpack.c.l.b16 %v2973
      %v3077 = vunpack.c.l.b16 %v2974
      %v3078 = vunpack.c.l.b16 %v2975
      %v3079 = vunpack.c.l.b16 %v2976
      %v3080 = vunpack.c.l.b16 %v2977
      %v3081 = vunpack.c.l.b16 %v2978
      %v3082 = vunpack.c.l.b16 %v2979
      %v3083 = vunpack.c.l.b16 %v2980
      %v3084 = vunpack.c.l.b16 %v2981
      %v3085 = vunpack.c.l.b16 %v2982
      %v3086 = vunpack.c.l.b16 %v2983
      %v3087 = vunpack.c.l.b16 %v2984
      %v3088 = vpack.c.b16 %v3073, %v3072
      %v3089 = vpack.c.b16 %v3075, %v3074
      %v3090 = vpack.c.b16 %v3077, %v3076
      %v3091 = vpack.c.b16 %v3079, %v3078
      %v3092 = vpack.c.b16 %v3081, %v3080
      %v3093 = vpack.c.b16 %v3083, %v3082
      %v3094 = vpack.c.b16 %v3085, %v3084
      %v3095 = vpack.c.b16 %v3087, %v3086
      %3104 = vmatprep.subr.bf16.mxu0 0
      %3105 = vmatpush1.bf16.msra.mxu0 %v3088
      %3106 = vmatprep.subr.bf16.mxu0 0
      %3107 = vmatpush1.bf16.msra.mxu0 %v3089
      %3108 = vmatprep.subr.bf16.mxu0 0
      %3109 = vmatpush1.bf16.msra.mxu0 %v3090
      %3110 = vmatprep.subr.bf16.mxu0 0
      %3111 = vmatpush1.bf16.msra.mxu0 %v3091
      %3112 = vmatprep.subr.bf16.mxu0 0
      %3113 = vmatpush1.bf16.msra.mxu0 %v3092
      %3114 = vmatprep.subr.bf16.mxu0 0
      %3115 = vmatpush1.bf16.msra.mxu0 %v3093
      %3116 = vmatprep.subr.bf16.mxu0 0
      %3117 = vmatpush1.bf16.msra.mxu0 %v3094
      %3118 = vmatprep.subr.bf16.mxu0 0
      %3119 = vmatpush1.bf16.msra.mxu0 %v3095
      %3120 = vmatprep.subr.bf16.mxu0 0
      %3121 = vmatpush1.bf16.msra.mxu0 0
      %3122 = vmatprep.subr.bf16.mxu0 0
      %3123 = vmatpush1.bf16.msra.mxu0 0
      %3124 = vmatprep.subr.bf16.mxu0 0
      %3125 = vmatpush1.bf16.msra.mxu0 0
      %3126 = vmatprep.subr.bf16.mxu0 0
      %3127 = vmatpush1.bf16.msra.mxu0 0
      %3128 = vmatprep.subr.bf16.mxu0 0
      %3129 = vmatpush1.bf16.msra.mxu0 0
      %3130 = vmatprep.subr.bf16.mxu0 0
      %3131 = vmatpush1.bf16.msra.mxu0 0
      %3132 = vmatprep.subr.bf16.mxu0 0
      %3133 = vmatpush1.bf16.msra.mxu0 0
      %3134 = vmatprep.subr.bf16.mxu0 0
      %3135 = vmatpush1.bf16.msra.mxu0 0
      %3136 = vmatprep.mubr.bf16.mxu0 0
      %3137 = vmatmul.mubr.bf16.gmra.mrb[0].mxu0 %v3049
      %v3138 = vpop.f32.mrb[0].mxu0
      %v3139 = vadd.f32 %v3054, %v3138
      %v3140 = vpop.f32.mrb[0].mxu0
      %v3141 = vpop.f32.mrb[0].mxu0
      %v3142 = vpop.f32.mrb[0].mxu0
      %3143 = vdwg.mxu0
      %v3144 = vadd.f32 %v2963, %v3139
      %v3145 = vld [vmem:[%s21] sm:$0x1]
      %v3146 = vld [vmem:[%s22] sm:$0x1]
      %v3147 = vsel %vm1789, %v3144, 0.0
      %3148 = vadd.xlane.f32.xlu0 %v3147
      %v3149 = vpop.xlane.xlu0 %3148
      %v3150 = vmul.f32 %v3149, %v1793
      %v3151 = vsub.f32 %v3144, %v3150
      %v3152 = vmul.f32 %v3151, %v3151
      %v3153 = vsel %vm1789, %v3152, 0.0
      %3154 = vadd.xlane.f32.xlu0 %v3153
      %v3155 = vpop.xlane.xlu0 %3154
      %v3156 = vmul.f32 %v3155, %v1793
      %v3157 = vadd.f32 %v3156, 1e-05
      %v3158 = vrsqrt.pop %v3157
      %v3159 = vmul.f32 %v3151, %v3158
      %v3161 = vlaneseq
      %v3162 = vshrl.u32 %v3161, 7
      %v3163 = vsub.s32 0, %v3162
      %v3164 = vrot.slane %v3145, %v3163
      %v3166 = vmul.f32 %v3159, %v3164
      %v3168 = vlaneseq
      %v3169 = vshrl.u32 %v3168, 7
      %v3170 = vsub.s32 0, %v3169
      %v3171 = vrot.slane %v3146, %v3170
      %v3173 = vadd.f32 %v3166, %v3171
      %3174 = vst.msk [vmem:[%s736] sm:$0x1f] %vm1789, %v3173
      %p3175 = scmp.lt.s32.totalorder %s34, 1
      %s3176 = scalar_select %p3175, %s34, 1
      %s3177 = smul.addr %s3176, 8
      %s3178 = scalar_lea.vmem %s23, %s3177
      // Predicated region
      $region113: #{_lambda_.7} parent=111 // pred_check
        %p3179 = pneg %p550
      $region114: #{_lambda_.7} parent=111 // pred_check_branch
        %3181 = sbr.rel (%p3179) target = $region116
      $region115: #{_lambda_.7} parent=111 // pred_region
        _
      $region116: #{_lambda_.7} parent=111 // pred_fallthru
        _
    $region112: #{_lambda_.7} parent=5 // pred_fallthru
      _
    %p3182 = scmp.le.s32.totalorder 2, %s29
    // Predicated region
    $region117: #{_lambda_.7} parent=5 // pred_check
      %p3183 = pneg %p3182
    $region118: #{_lambda_.7} parent=5 // pred_check_branch
      %3185 = sbr.rel (%p3183) target = $region120
    $region119: #{_lambda_.7} parent=5 // pred_region
      %s3186 = ssub.s32 %s29, 2
      // Predicated region
      $region121: #{_lambda_.7} parent=119 // pred_check
        %p3187 = pneg %p556
      $region122: #{_lambda_.7} parent=119 // pred_check_branch
        %3189 = sbr.rel (%p3187) target = $region124
      $region123: #{_lambda_.7} parent=119 // pred_region
        %p3190 = scmp.lt.s32.totalorder %s35, 1
        %s3191 = scalar_select %p3190, %s35, 1
        %s3192 = smul.addr %s3191, 8
        %s3193 = scalar_lea.vmem %s23, %s3192
      $region124: #{_lambda_.7} parent=119 // pred_fallthru
        _
    $region120: #{_lambda_.7} parent=5 // pred_fallthru
      _
  $region6: #{_lambda_.7} parent=0 // loop_footer
    %s33 = sadd.s32 1, %s29
  $region7: #{_lambda_.7} parent=0 // loop_footer_branch
    %28 = sbr.rel target = $region3
  $region8: #{_lambda_.7} parent=0 // loop_exit
    _

</llo_original>
